<compile_context>
chip_gen: v7x
topology: tpu7x:2x2x1
jax: 0.10.0
libtpu: 0.0.40
codegen_flags: <defaults>
</compile_context>

<pallas_src>
import jax
import jax.numpy as jnp
from jax.experimental import pallas as pl
from jax.experimental.pallas import tpu as pltpu

EPS = 1e-5


def _vmem_spec():
    # Whole-array block resident in VMEM (all operands here are < ~0.4 MiB).
    return pl.BlockSpec(memory_space=pltpu.MemorySpace.VMEM)


def _dot(a, b):
    return jnp.dot(a, b, preferred_element_type=jnp.float32)


# ------------------------------ fused kernel -------------------------------

def fused_cnn_kernel(x_ref, b1_ref, b2_ref,
                     s1e_ref, s1o_ref, p1e_ref, p1o_ref,
                     s2e_ref, s2o_ref, p2e_ref, p2o_ref,
                     rm1_ref, rm1t_ref, rm2_ref, rm2t_ref,
                     cb1_ref, cb2_ref,
                     g1_ref, be1_ref, g2_ref, be2_ref,
                     wf1_ref, bf1_ref, g3_ref, be3_ref,
                     wf2_ref, bf2_ref, g4_ref, be4_ref,
                     o_ref):
    n_batch = x_ref.shape[0]

    def conv_pool_relu(xn, b_ref, se_ref, so_ref, pe_ref, po_ref, bias_lane):
        # xn: [H, W*Cin].  Conv = sum_kh of banded matmuls -> [OH, OW*Cout]
        # (lane-dense).  2x2 max-pool via 0/1 selection matmuls + max, then
        # conv bias (per-channel constant commutes with max) and ReLU.
        kh_total = b_ref.shape[0]
        oh = pe_ref.shape[1]
        acc = _dot(xn[0:oh, :], b_ref[0])
        for kh in range(1, kh_total):
            acc = acc + _dot(xn[kh:kh + oh, :], b_ref[kh])
        m = jnp.maximum(_dot(acc, se_ref[...]), _dot(acc, so_ref[...]))   # pool over width
        pooled = jnp.maximum(_dot(pe_ref[...], m), _dot(po_ref[...], m))  # pool over height
        return jnp.maximum(pooled + bias_lane, 0.0)

    def bn2d(slabs, r_ref, rt_ref, gamma, beta):
        # slabs: per-sample [PH, PW*C] post-ReLU activations.
        # Per-channel sums: one sublane reduction + one [1,L]@[L,C] matmul.
        # scale/shift folded so each slab gets exactly one FMA.
        r = r_ref[...]
        rt = rt_ref[...]
        rows, lanes = slabs[0].shape
        c = r.shape[1]
        count = float(len(slabs) * rows * (lanes // c))
        rsum = jnp.sum(slabs[0], axis=0, keepdims=True)
        rsq = jnp.sum(slabs[0] * slabs[0], axis=0, keepdims=True)
        for s in slabs[1:]:
            rsum = rsum + jnp.sum(s, axis=0, keepdims=True)
            rsq = rsq + jnp.sum(s * s, axis=0, keepdims=True)
        mean = _dot(rsum, r) / count                                  # [1, C]
        var = jnp.maximum(_dot(rsq, r) / count - mean * mean, 0.0)
        scale = gamma * jax.lax.rsqrt(var + EPS)
        shift = beta - mean * scale
        scale_l = _dot(scale, rt)                                     # [1, PW*C]
        shift_l = _dot(shift, rt)
        return [s * scale_l + shift_l for s in slabs]

    def bn1d_rows(rows_list, gamma, beta):
        inv_n = 1.0 / float(len(rows_list))
        s = rows_list[0]
        sq = rows_list[0] * rows_list[0]
        for r in rows_list[1:]:
            s = s + r
            sq = sq + r * r
        mean = s * inv_n
        var = jnp.maximum(sq * inv_n - mean * mean, 0.0)
        scale = gamma * jax.lax.rsqrt(var + EPS)
        shift = beta - mean * scale
        return [r * scale + shift for r in rows_list]

    # conv1 -> pool -> relu -> bn1   (per-sample slabs [14, 14*6])
    cb1 = cb1_ref[...]
    a1 = [conv_pool_relu(x_ref[n], b1_ref, s1e_ref, s1o_ref, p1e_ref, p1o_ref, cb1)
          for n in range(n_batch)]
    h1 = bn2d(a1, rm1_ref, rm1t_ref, g1_ref[...], be1_ref[...])

    # conv2 -> pool -> relu -> bn2   (per-sample slabs [5, 5*16])
    cb2 = cb2_ref[...]
    a2 = [conv_pool_relu(h1[n], b2_ref, s2e_ref, s2o_ref, p2e_ref, p2o_ref, cb2)
          for n in range(n_batch)]
    h2 = bn2d(a2, rm2_ref, rm2t_ref, g2_ref[...], be2_ref[...])

    # fc1 -> relu -> bn3.  fc1 weight rows were pre-permuted to the slab's
    # h*(W*C) + w*C + c feature order, so "flatten" is just row-block matmuls.
    hh, lanes2 = h2[0].shape
    bf1 = bf1_ref[...]
    z1 = []
    for n in range(n_batch):
        acc = bf1
        for h in range(hh):
            acc = acc + _dot(h2[n][h:h + 1, :],
                             wf1_ref[h * lanes2:(h + 1) * lanes2, :])
        z1.append(jnp.maximum(acc, 0.0))
    h3 = bn1d_rows(z1, g3_ref[...], be3_ref[...])

    # fc2 -> relu -> bn4
    wf2 = wf2_ref[...]
    bf2 = bf2_ref[...]
    z2 = [jnp.maximum(_dot(h3[n], wf2) + bf2, 0.0) for n in range(n_batch)]
    h4 = bn1d_rows(z2, g4_ref[...], be4_ref[...])
    for n in range(n_batch):
        o_ref[n:n + 1, :] = h4[n]


# --------------------------- wrapper-side helpers ---------------------------
# (weight preprocessing only -- tiny, no activation glue in XLA)

def _band_weights(w_oihw, win):
    """B[kh][w*Cin+ci, ow*Cout+co] = W[co,ci,kh,w-ow] (0 if w-ow outside [0,KW))."""
    cout, cin, kh, kw = w_oihw.shape
    ow = win - kw + 1
    sel = (jnp.arange(win)[:, None, None] - jnp.arange(ow)[None, :, None]
           == jnp.arange(kw)[None, None, :]).astype(w_oihw.dtype)
    b = jnp.einsum('wok,cihk->hwioc', sel, w_oihw)
    return b.reshape(kh, win * cin, ow * cout)


def _col_pool_mats(ow, c):
    """0/1 selectors picking even / odd ow positions (per channel) on the lane axis."""
    pw = ow // 2
    even = (jnp.arange(ow)[:, None] == 2 * jnp.arange(pw)[None, :]).astype(jnp.float32)
    odd = (jnp.arange(ow)[:, None] == 2 * jnp.arange(pw)[None, :] + 1).astype(jnp.float32)
    eye_c = jnp.eye(c, dtype=jnp.float32)
    return jnp.kron(even, eye_c), jnp.kron(odd, eye_c)          # [ow*c, pw*c]


def _row_pool_mats(oh):
    """0/1 selectors picking even / odd output rows."""
    ph = oh // 2
    even = (2 * jnp.arange(ph)[:, None] == jnp.arange(oh)[None, :]).astype(jnp.float32)
    odd = (2 * jnp.arange(ph)[:, None] + 1 == jnp.arange(oh)[None, :]).astype(jnp.float32)
    return even, odd                                            # [ph, oh]


def _chan_sum_mat(pw, c):
    """[pw*c, c] matrix summing each channel's pw lane positions."""
    return jnp.kron(jnp.ones((pw, 1), jnp.float32), jnp.eye(c, dtype=jnp.float32))


def simple_cnn_h2_forward(x_nchw, params):
    f32 = jnp.float32
    n, cin, hin, win = x_nchw.shape
    # NCHW -> [N, H, W*Cin] slab (channel-minor lanes); only input-side glue.
    x = jnp.transpose(x_nchw, (0, 2, 3, 1)).reshape(n, hin, win * cin).astype(f32)

    # conv1 (3 -> 6, 5x5)
    w1 = params["conv1_w"]
    cout1, _, kh1, kw1 = w1.shape
    oh1, ow1 = hin - kh1 + 1, win - kw1 + 1          # 28, 28
    ph1, pw1 = oh1 // 2, ow1 // 2                    # 14, 14
    b1 = _band_weights(w1, win)                      # [5, 96, 168]
    s1e, s1o = _col_pool_mats(ow1, cout1)            # [168, 84]
    p1e, p1o = _row_pool_mats(oh1)                   # [14, 28]
    rm1 = _chan_sum_mat(pw1, cout1)                  # [84, 6]
    cb1 = jnp.tile(params["conv1_b"], pw1).reshape(1, pw1 * cout1)

    # conv2 (6 -> 16, 5x5)
    w2 = params["conv2_w"]
    cout2, _, kh2, kw2 = w2.shape
    oh2, ow2 = ph1 - kh2 + 1, pw1 - kw2 + 1          # 10, 10
    ph2, pw2 = oh2 // 2, ow2 // 2                    # 5, 5
    b2 = _band_weights(w2, pw1)                      # [5, 84, 160]
    s2e, s2o = _col_pool_mats(ow2, cout2)            # [160, 80]
    p2e, p2o = _row_pool_mats(oh2)                   # [5, 10]
    rm2 = _chan_sum_mat(pw2, cout2)                  # [80, 16]
    cb2 = jnp.tile(params["conv2_b"], pw2).reshape(1, pw2 * cout2)

    # fc1: permute weight rows from PyTorch's (c, h, w) flatten order to the
    # kernel slab order h*(pw2*cout2) + w*cout2 + c.
    fc1_w = params["fc1_w"]                          # [400, 120] ([in, out])
    feat = fc1_w.shape[0]
    new = jnp.arange(feat)
    hh = new // (pw2 * cout2)
    rem = new % (pw2 * cout2)
    ww = rem // cout2
    cc = rem % cout2
    wf1 = fc1_w[cc * (ph2 * pw2) + hh * pw2 + ww, :]

    args = (
        x, b1, b2,
        s1e, s1o, p1e, p1o,
        s2e, s2o, p2e, p2o,
        rm1, rm1.T, rm2, rm2.T,
        cb1, cb2,
        params["bn1_g"].reshape(1, -1), params["bn1_b"].reshape(1, -1),
        params["bn2_g"].reshape(1, -1), params["bn2_b"].reshape(1, -1),
        wf1, params["fc1_b"].reshape(1, -1),
        params["bn3_g"].reshape(1, -1), params["bn3_b"].reshape(1, -1),
        params["fc2_w"], params["fc2_b"].reshape(1, -1),
        params["bn4_g"].reshape(1, -1), params["bn4_b"].reshape(1, -1),
    )
    out_dim = params["fc2_w"].shape[1]
    return pl.pallas_call(
        fused_cnn_kernel,
        out_shape=jax.ShapeDtypeStruct((n, out_dim), f32),
        in_specs=[_vmem_spec()] * len(args),
        out_specs=_vmem_spec(),
    )(*args)


def init_params(key):
    ks = jax.random.split(key, 4)
    f32 = jnp.float32
    # conv weights stored OIHW (PyTorch convention); fc weights stored [in, out].
    return {
        "conv1_w": 0.1 * jax.random.normal(ks[0], (6, 3, 5, 5), f32),
        "conv1_b": jnp.zeros((6,), f32),
        "conv2_w": 0.1 * jax.random.normal(ks[1], (16, 6, 5, 5), f32),
        "conv2_b": jnp.zeros((16,), f32),
        "bn1_g": jnp.ones((6,), f32), "bn1_b": jnp.zeros((6,), f32),
        "bn2_g": jnp.ones((16,), f32), "bn2_b": jnp.zeros((16,), f32),
        "fc1_w": 0.05 * jax.random.normal(ks[2], (400, 120), f32),
        "fc1_b": jnp.zeros((120,), f32),
        "fc2_w": 0.05 * jax.random.normal(ks[3], (120, 84), f32),
        "fc2_b": jnp.zeros((84,), f32),
        "bn3_g": jnp.ones((120,), f32), "bn3_b": jnp.zeros((120,), f32),
        "bn4_g": jnp.ones((84,), f32), "bn4_b": jnp.zeros((84,), f32),
    }


if __name__ == "__main__":
    key = jax.random.PRNGKey(0)
    pkey, xkey = jax.random.split(key)
    params = init_params(pkey)
    # input_dim = 16*5*5 = 400  =>  32x32 spatial input (CIFAR-like), batch=2
    x = jax.random.normal(xkey, (2, 3, 32, 32), jnp.float32)

    out = jax.jit(simple_cnn_h2_forward)(x, params)
    out = jax.block_until_ready(out)
    assert out.shape == (2, 84) and out.dtype == jnp.float32
    assert bool(jnp.all(jnp.isfinite(out)))
    print("KERNEL_OK")
</pallas_src>

<mosaic_0001>
module attributes {stable_mosaic.version = 11 : i64} {
  func.func @fused_cnn_kernel(%arg0: memref<2x32x96xf32, #tpu.memory_space<vmem>>, %arg1: memref<5x96x168xf32, #tpu.memory_space<vmem>>, %arg2: memref<5x84x160xf32, #tpu.memory_space<vmem>>, %arg3: memref<168x84xf32, #tpu.memory_space<vmem>>, %arg4: memref<168x84xf32, #tpu.memory_space<vmem>>, %arg5: memref<14x28xf32, #tpu.memory_space<vmem>>, %arg6: memref<14x28xf32, #tpu.memory_space<vmem>>, %arg7: memref<160x80xf32, #tpu.memory_space<vmem>>, %arg8: memref<160x80xf32, #tpu.memory_space<vmem>>, %arg9: memref<5x10xf32, #tpu.memory_space<vmem>>, %arg10: memref<5x10xf32, #tpu.memory_space<vmem>>, %arg11: memref<84x6xf32, #tpu.memory_space<vmem>>, %arg12: memref<6x84xf32, #tpu.memory_space<vmem>>, %arg13: memref<80x16xf32, #tpu.memory_space<vmem>>, %arg14: memref<16x80xf32, #tpu.memory_space<vmem>>, %arg15: memref<1x84xf32, #tpu.memory_space<vmem>>, %arg16: memref<1x80xf32, #tpu.memory_space<vmem>>, %arg17: memref<1x6xf32, #tpu.memory_space<vmem>>, %arg18: memref<1x6xf32, #tpu.memory_space<vmem>>, %arg19: memref<1x16xf32, #tpu.memory_space<vmem>>, %arg20: memref<1x16xf32, #tpu.memory_space<vmem>>, %arg21: memref<400x120xf32, #tpu.memory_space<vmem>>, %arg22: memref<1x120xf32, #tpu.memory_space<vmem>>, %arg23: memref<1x120xf32, #tpu.memory_space<vmem>>, %arg24: memref<1x120xf32, #tpu.memory_space<vmem>>, %arg25: memref<120x84xf32, #tpu.memory_space<vmem>>, %arg26: memref<1x84xf32, #tpu.memory_space<vmem>>, %arg27: memref<1x84xf32, #tpu.memory_space<vmem>>, %arg28: memref<1x84xf32, #tpu.memory_space<vmem>>, %arg29: memref<2x84xf32, #tpu.memory_space<vmem>>) attributes {dimension_semantics = [], scalar_prefetch = 0 : i64, scratch_operands = 0 : i64, tpu.core_type = #tpu.core_type<tc>} {
    %c0 = arith.constant 0 : index
    %c0_0 = arith.constant 0 : index
    %0 = vector.load %arg15[%c0, %c0_0] : memref<1x84xf32, #tpu.memory_space<vmem>>, vector<1x84xf32>
    %c0_1 = arith.constant 0 : index
    %c0_2 = arith.constant 0 : index
    %c0_3 = arith.constant 0 : index
    %1 = vector.load %arg0[%c0_1, %c0_2, %c0_3] : memref<2x32x96xf32, #tpu.memory_space<vmem>>, vector<1x32x96xf32>
    %2 = vector.shape_cast %1 : vector<1x32x96xf32> to vector<32x96xf32>
    %3 = vector.extract_strided_slice %2 {offsets = [0, 0], sizes = [28, 96], strides = [1, 1]} : vector<32x96xf32> to vector<28x96xf32>
    %c0_4 = arith.constant 0 : index
    %c0_5 = arith.constant 0 : index
    %c0_6 = arith.constant 0 : index
    %4 = vector.load %arg1[%c0_4, %c0_5, %c0_6] : memref<5x96x168xf32, #tpu.memory_space<vmem>>, vector<1x96x168xf32>
    %5 = vector.shape_cast %4 : vector<1x96x168xf32> to vector<96x168xf32>
    %cst = arith.constant dense<0.000000e+00> : vector<28x168xf32>
    %6 = tpu.matmul %3, %5, %cst {dimension_numbers = #tpu.dot_dimension_numbers<[1], [0], [0], [1], [0, 0, 1, 1], [], []>} : vector<28x96xf32>, vector<96x168xf32>, vector<28x168xf32> -> vector<28x168xf32>
    %7 = vector.extract_strided_slice %2 {offsets = [1, 0], sizes = [28, 96], strides = [1, 1]} : vector<32x96xf32> to vector<28x96xf32>
    %c1 = arith.constant 1 : index
    %c0_7 = arith.constant 0 : index
    %c0_8 = arith.constant 0 : index
    %8 = vector.load %arg1[%c1, %c0_7, %c0_8] : memref<5x96x168xf32, #tpu.memory_space<vmem>>, vector<1x96x168xf32>
    %9 = vector.shape_cast %8 : vector<1x96x168xf32> to vector<96x168xf32>
    %cst_9 = arith.constant dense<0.000000e+00> : vector<28x168xf32>
    %10 = tpu.matmul %7, %9, %cst_9 {dimension_numbers = #tpu.dot_dimension_numbers<[1], [0], [0], [1], [0, 0, 1, 1], [], []>} : vector<28x96xf32>, vector<96x168xf32>, vector<28x168xf32> -> vector<28x168xf32>
    %11 = arith.addf %6, %10 : vector<28x168xf32>
    %12 = vector.extract_strided_slice %2 {offsets = [2, 0], sizes = [28, 96], strides = [1, 1]} : vector<32x96xf32> to vector<28x96xf32>
    %c2 = arith.constant 2 : index
    %c0_10 = arith.constant 0 : index
    %c0_11 = arith.constant 0 : index
    %13 = vector.load %arg1[%c2, %c0_10, %c0_11] : memref<5x96x168xf32, #tpu.memory_space<vmem>>, vector<1x96x168xf32>
    %14 = vector.shape_cast %13 : vector<1x96x168xf32> to vector<96x168xf32>
    %cst_12 = arith.constant dense<0.000000e+00> : vector<28x168xf32>
    %15 = tpu.matmul %12, %14, %cst_12 {dimension_numbers = #tpu.dot_dimension_numbers<[1], [0], [0], [1], [0, 0, 1, 1], [], []>} : vector<28x96xf32>, vector<96x168xf32>, vector<28x168xf32> -> vector<28x168xf32>
    %16 = arith.addf %11, %15 : vector<28x168xf32>
    %17 = vector.extract_strided_slice %2 {offsets = [3, 0], sizes = [28, 96], strides = [1, 1]} : vector<32x96xf32> to vector<28x96xf32>
    %c3 = arith.constant 3 : index
    %c0_13 = arith.constant 0 : index
    %c0_14 = arith.constant 0 : index
    %18 = vector.load %arg1[%c3, %c0_13, %c0_14] : memref<5x96x168xf32, #tpu.memory_space<vmem>>, vector<1x96x168xf32>
    %19 = vector.shape_cast %18 : vector<1x96x168xf32> to vector<96x168xf32>
    %cst_15 = arith.constant dense<0.000000e+00> : vector<28x168xf32>
    %20 = tpu.matmul %17, %19, %cst_15 {dimension_numbers = #tpu.dot_dimension_numbers<[1], [0], [0], [1], [0, 0, 1, 1], [], []>} : vector<28x96xf32>, vector<96x168xf32>, vector<28x168xf32> -> vector<28x168xf32>
    %21 = arith.addf %16, %20 : vector<28x168xf32>
    %22 = vector.extract_strided_slice %2 {offsets = [4, 0], sizes = [28, 96], strides = [1, 1]} : vector<32x96xf32> to vector<28x96xf32>
    %c4 = arith.constant 4 : index
    %c0_16 = arith.constant 0 : index
    %c0_17 = arith.constant 0 : index
    %23 = vector.load %arg1[%c4, %c0_16, %c0_17] : memref<5x96x168xf32, #tpu.memory_space<vmem>>, vector<1x96x168xf32>
    %24 = vector.shape_cast %23 : vector<1x96x168xf32> to vector<96x168xf32>
    %cst_18 = arith.constant dense<0.000000e+00> : vector<28x168xf32>
    %25 = tpu.matmul %22, %24, %cst_18 {dimension_numbers = #tpu.dot_dimension_numbers<[1], [0], [0], [1], [0, 0, 1, 1], [], []>} : vector<28x96xf32>, vector<96x168xf32>, vector<28x168xf32> -> vector<28x168xf32>
    %26 = arith.addf %21, %25 : vector<28x168xf32>
    %c0_19 = arith.constant 0 : index
    %c0_20 = arith.constant 0 : index
    %27 = vector.load %arg3[%c0_19, %c0_20] : memref<168x84xf32, #tpu.memory_space<vmem>>, vector<168x84xf32>
    %cst_21 = arith.constant dense<0.000000e+00> : vector<28x84xf32>
    %28 = tpu.matmul %26, %27, %cst_21 {dimension_numbers = #tpu.dot_dimension_numbers<[1], [0], [0], [1], [0, 0, 1, 1], [], []>} : vector<28x168xf32>, vector<168x84xf32>, vector<28x84xf32> -> vector<28x84xf32>
    %c0_22 = arith.constant 0 : index
    %c0_23 = arith.constant 0 : index
    %29 = vector.load %arg4[%c0_22, %c0_23] : memref<168x84xf32, #tpu.memory_space<vmem>>, vector<168x84xf32>
    %cst_24 = arith.constant dense<0.000000e+00> : vector<28x84xf32>
    %30 = tpu.matmul %26, %29, %cst_24 {dimension_numbers = #tpu.dot_dimension_numbers<[1], [0], [0], [1], [0, 0, 1, 1], [], []>} : vector<28x168xf32>, vector<168x84xf32>, vector<28x84xf32> -> vector<28x84xf32>
    %31 = arith.maximumf %28, %30 : vector<28x84xf32>
    %c0_25 = arith.constant 0 : index
    %c0_26 = arith.constant 0 : index
    %32 = vector.load %arg5[%c0_25, %c0_26] : memref<14x28xf32, #tpu.memory_space<vmem>>, vector<14x28xf32>
    %cst_27 = arith.constant dense<0.000000e+00> : vector<14x84xf32>
    %33 = tpu.matmul %32, %31, %cst_27 {dimension_numbers = #tpu.dot_dimension_numbers<[1], [0], [0], [1], [0, 0, 1, 1], [], []>} : vector<14x28xf32>, vector<28x84xf32>, vector<14x84xf32> -> vector<14x84xf32>
    %c0_28 = arith.constant 0 : index
    %c0_29 = arith.constant 0 : index
    %34 = vector.load %arg6[%c0_28, %c0_29] : memref<14x28xf32, #tpu.memory_space<vmem>>, vector<14x28xf32>
    %cst_30 = arith.constant dense<0.000000e+00> : vector<14x84xf32>
    %35 = tpu.matmul %34, %31, %cst_30 {dimension_numbers = #tpu.dot_dimension_numbers<[1], [0], [0], [1], [0, 0, 1, 1], [], []>} : vector<14x28xf32>, vector<28x84xf32>, vector<14x84xf32> -> vector<14x84xf32>
    %36 = arith.maximumf %33, %35 : vector<14x84xf32>
    %37 = vector.broadcast %0 : vector<1x84xf32> to vector<14x84xf32>
    %38 = arith.addf %36, %37 : vector<14x84xf32>
    %cst_31 = arith.constant 0.000000e+00 : f32
    %39 = vector.broadcast %cst_31 : f32 to vector<14x84xf32>
    %40 = arith.maximumf %38, %39 : vector<14x84xf32>
    %c1_32 = arith.constant 1 : index
    %c0_33 = arith.constant 0 : index
    %c0_34 = arith.constant 0 : index
    %41 = vector.load %arg0[%c1_32, %c0_33, %c0_34] : memref<2x32x96xf32, #tpu.memory_space<vmem>>, vector<1x32x96xf32>
    %42 = vector.shape_cast %41 : vector<1x32x96xf32> to vector<32x96xf32>
    %43 = vector.extract_strided_slice %42 {offsets = [0, 0], sizes = [28, 96], strides = [1, 1]} : vector<32x96xf32> to vector<28x96xf32>
    %c0_35 = arith.constant 0 : index
    %c0_36 = arith.constant 0 : index
    %c0_37 = arith.constant 0 : index
    %44 = vector.load %arg1[%c0_35, %c0_36, %c0_37] : memref<5x96x168xf32, #tpu.memory_space<vmem>>, vector<1x96x168xf32>
    %45 = vector.shape_cast %44 : vector<1x96x168xf32> to vector<96x168xf32>
    %cst_38 = arith.constant dense<0.000000e+00> : vector<28x168xf32>
    %46 = tpu.matmul %43, %45, %cst_38 {dimension_numbers = #tpu.dot_dimension_numbers<[1], [0], [0], [1], [0, 0, 1, 1], [], []>} : vector<28x96xf32>, vector<96x168xf32>, vector<28x168xf32> -> vector<28x168xf32>
    %47 = vector.extract_strided_slice %42 {offsets = [1, 0], sizes = [28, 96], strides = [1, 1]} : vector<32x96xf32> to vector<28x96xf32>
    %c1_39 = arith.constant 1 : index
    %c0_40 = arith.constant 0 : index
    %c0_41 = arith.constant 0 : index
    %48 = vector.load %arg1[%c1_39, %c0_40, %c0_41] : memref<5x96x168xf32, #tpu.memory_space<vmem>>, vector<1x96x168xf32>
    %49 = vector.shape_cast %48 : vector<1x96x168xf32> to vector<96x168xf32>
    %cst_42 = arith.constant dense<0.000000e+00> : vector<28x168xf32>
    %50 = tpu.matmul %47, %49, %cst_42 {dimension_numbers = #tpu.dot_dimension_numbers<[1], [0], [0], [1], [0, 0, 1, 1], [], []>} : vector<28x96xf32>, vector<96x168xf32>, vector<28x168xf32> -> vector<28x168xf32>
    %51 = arith.addf %46, %50 : vector<28x168xf32>
    %52 = vector.extract_strided_slice %42 {offsets = [2, 0], sizes = [28, 96], strides = [1, 1]} : vector<32x96xf32> to vector<28x96xf32>
    %c2_43 = arith.constant 2 : index
    %c0_44 = arith.constant 0 : index
    %c0_45 = arith.constant 0 : index
    %53 = vector.load %arg1[%c2_43, %c0_44, %c0_45] : memref<5x96x168xf32, #tpu.memory_space<vmem>>, vector<1x96x168xf32>
    %54 = vector.shape_cast %53 : vector<1x96x168xf32> to vector<96x168xf32>
    %cst_46 = arith.constant dense<0.000000e+00> : vector<28x168xf32>
    %55 = tpu.matmul %52, %54, %cst_46 {dimension_numbers = #tpu.dot_dimension_numbers<[1], [0], [0], [1], [0, 0, 1, 1], [], []>} : vector<28x96xf32>, vector<96x168xf32>, vector<28x168xf32> -> vector<28x168xf32>
    %56 = arith.addf %51, %55 : vector<28x168xf32>
    %57 = vector.extract_strided_slice %42 {offsets = [3, 0], sizes = [28, 96], strides = [1, 1]} : vector<32x96xf32> to vector<28x96xf32>
    %c3_47 = arith.constant 3 : index
    %c0_48 = arith.constant 0 : index
    %c0_49 = arith.constant 0 : index
    %58 = vector.load %arg1[%c3_47, %c0_48, %c0_49] : memref<5x96x168xf32, #tpu.memory_space<vmem>>, vector<1x96x168xf32>
    %59 = vector.shape_cast %58 : vector<1x96x168xf32> to vector<96x168xf32>
    %cst_50 = arith.constant dense<0.000000e+00> : vector<28x168xf32>
    %60 = tpu.matmul %57, %59, %cst_50 {dimension_numbers = #tpu.dot_dimension_numbers<[1], [0], [0], [1], [0, 0, 1, 1], [], []>} : vector<28x96xf32>, vector<96x168xf32>, vector<28x168xf32> -> vector<28x168xf32>
    %61 = arith.addf %56, %60 : vector<28x168xf32>
    %62 = vector.extract_strided_slice %42 {offsets = [4, 0], sizes = [28, 96], strides = [1, 1]} : vector<32x96xf32> to vector<28x96xf32>
    %c4_51 = arith.constant 4 : index
    %c0_52 = arith.constant 0 : index
    %c0_53 = arith.constant 0 : index
    %63 = vector.load %arg1[%c4_51, %c0_52, %c0_53] : memref<5x96x168xf32, #tpu.memory_space<vmem>>, vector<1x96x168xf32>
    %64 = vector.shape_cast %63 : vector<1x96x168xf32> to vector<96x168xf32>
    %cst_54 = arith.constant dense<0.000000e+00> : vector<28x168xf32>
    %65 = tpu.matmul %62, %64, %cst_54 {dimension_numbers = #tpu.dot_dimension_numbers<[1], [0], [0], [1], [0, 0, 1, 1], [], []>} : vector<28x96xf32>, vector<96x168xf32>, vector<28x168xf32> -> vector<28x168xf32>
    %66 = arith.addf %61, %65 : vector<28x168xf32>
    %c0_55 = arith.constant 0 : index
    %c0_56 = arith.constant 0 : index
    %67 = vector.load %arg3[%c0_55, %c0_56] : memref<168x84xf32, #tpu.memory_space<vmem>>, vector<168x84xf32>
    %cst_57 = arith.constant dense<0.000000e+00> : vector<28x84xf32>
    %68 = tpu.matmul %66, %67, %cst_57 {dimension_numbers = #tpu.dot_dimension_numbers<[1], [0], [0], [1], [0, 0, 1, 1], [], []>} : vector<28x168xf32>, vector<168x84xf32>, vector<28x84xf32> -> vector<28x84xf32>
    %c0_58 = arith.constant 0 : index
    %c0_59 = arith.constant 0 : index
    %69 = vector.load %arg4[%c0_58, %c0_59] : memref<168x84xf32, #tpu.memory_space<vmem>>, vector<168x84xf32>
    %cst_60 = arith.constant dense<0.000000e+00> : vector<28x84xf32>
    %70 = tpu.matmul %66, %69, %cst_60 {dimension_numbers = #tpu.dot_dimension_numbers<[1], [0], [0], [1], [0, 0, 1, 1], [], []>} : vector<28x168xf32>, vector<168x84xf32>, vector<28x84xf32> -> vector<28x84xf32>
    %71 = arith.maximumf %68, %70 : vector<28x84xf32>
    %c0_61 = arith.constant 0 : index
    %c0_62 = arith.constant 0 : index
    %72 = vector.load %arg5[%c0_61, %c0_62] : memref<14x28xf32, #tpu.memory_space<vmem>>, vector<14x28xf32>
    %cst_63 = arith.constant dense<0.000000e+00> : vector<14x84xf32>
    %73 = tpu.matmul %72, %71, %cst_63 {dimension_numbers = #tpu.dot_dimension_numbers<[1], [0], [0], [1], [0, 0, 1, 1], [], []>} : vector<14x28xf32>, vector<28x84xf32>, vector<14x84xf32> -> vector<14x84xf32>
    %c0_64 = arith.constant 0 : index
    %c0_65 = arith.constant 0 : index
    %74 = vector.load %arg6[%c0_64, %c0_65] : memref<14x28xf32, #tpu.memory_space<vmem>>, vector<14x28xf32>
    %cst_66 = arith.constant dense<0.000000e+00> : vector<14x84xf32>
    %75 = tpu.matmul %74, %71, %cst_66 {dimension_numbers = #tpu.dot_dimension_numbers<[1], [0], [0], [1], [0, 0, 1, 1], [], []>} : vector<14x28xf32>, vector<28x84xf32>, vector<14x84xf32> -> vector<14x84xf32>
    %76 = arith.maximumf %73, %75 : vector<14x84xf32>
    %77 = vector.broadcast %0 : vector<1x84xf32> to vector<14x84xf32>
    %78 = arith.addf %76, %77 : vector<14x84xf32>
    %cst_67 = arith.constant 0.000000e+00 : f32
    %79 = vector.broadcast %cst_67 : f32 to vector<14x84xf32>
    %80 = arith.maximumf %78, %79 : vector<14x84xf32>
    %c0_68 = arith.constant 0 : index
    %c0_69 = arith.constant 0 : index
    %81 = vector.load %arg17[%c0_68, %c0_69] : memref<1x6xf32, #tpu.memory_space<vmem>>, vector<1x6xf32>
    %c0_70 = arith.constant 0 : index
    %c0_71 = arith.constant 0 : index
    %82 = vector.load %arg18[%c0_70, %c0_71] : memref<1x6xf32, #tpu.memory_space<vmem>>, vector<1x6xf32>
    %c0_72 = arith.constant 0 : index
    %c0_73 = arith.constant 0 : index
    %83 = vector.load %arg11[%c0_72, %c0_73] : memref<84x6xf32, #tpu.memory_space<vmem>>, vector<84x6xf32>
    %c0_74 = arith.constant 0 : index
    %c0_75 = arith.constant 0 : index
    %84 = vector.load %arg12[%c0_74, %c0_75] : memref<6x84xf32, #tpu.memory_space<vmem>>, vector<6x84xf32>
    %cst_76 = arith.constant dense<0.000000e+00> : vector<84xf32>
    %85 = vector.multi_reduction <add>, %40, %cst_76 [0] : vector<14x84xf32> to vector<84xf32>
    %86 = vector.shape_cast %85 : vector<84xf32> to vector<1x84xf32>
    %87 = arith.mulf %40, %40 : vector<14x84xf32>
    %cst_77 = arith.constant dense<0.000000e+00> : vector<84xf32>
    %88 = vector.multi_reduction <add>, %87, %cst_77 [0] : vector<14x84xf32> to vector<84xf32>
    %89 = vector.shape_cast %88 : vector<84xf32> to vector<1x84xf32>
    %cst_78 = arith.constant dense<0.000000e+00> : vector<84xf32>
    %90 = vector.multi_reduction <add>, %80, %cst_78 [0] : vector<14x84xf32> to vector<84xf32>
    %91 = vector.shape_cast %90 : vector<84xf32> to vector<1x84xf32>
    %92 = arith.addf %86, %91 : vector<1x84xf32>
    %93 = arith.mulf %80, %80 : vector<14x84xf32>
    %cst_79 = arith.constant dense<0.000000e+00> : vector<84xf32>
    %94 = vector.multi_reduction <add>, %93, %cst_79 [0] : vector<14x84xf32> to vector<84xf32>
    %95 = vector.shape_cast %94 : vector<84xf32> to vector<1x84xf32>
    %96 = arith.addf %89, %95 : vector<1x84xf32>
    %cst_80 = arith.constant dense<0.000000e+00> : vector<1x6xf32>
    %97 = tpu.matmul %92, %83, %cst_80 {dimension_numbers = #tpu.dot_dimension_numbers<[1], [0], [0], [1], [0, 0, 1, 1], [], []>} : vector<1x84xf32>, vector<84x6xf32>, vector<1x6xf32> -> vector<1x6xf32>
    %cst_81 = arith.constant 3.920000e+02 : f32
    %98 = vector.broadcast %cst_81 : f32 to vector<1x6xf32>
    %99 = arith.divf %97, %98 : vector<1x6xf32>
    %cst_82 = arith.constant dense<0.000000e+00> : vector<1x6xf32>
    %100 = tpu.matmul %96, %83, %cst_82 {dimension_numbers = #tpu.dot_dimension_numbers<[1], [0], [0], [1], [0, 0, 1, 1], [], []>} : vector<1x84xf32>, vector<84x6xf32>, vector<1x6xf32> -> vector<1x6xf32>
    %cst_83 = arith.constant 3.920000e+02 : f32
    %101 = vector.broadcast %cst_83 : f32 to vector<1x6xf32>
    %102 = arith.divf %100, %101 : vector<1x6xf32>
    %103 = arith.mulf %99, %99 : vector<1x6xf32>
    %104 = arith.subf %102, %103 : vector<1x6xf32>
    %cst_84 = arith.constant 0.000000e+00 : f32
    %105 = vector.broadcast %cst_84 : f32 to vector<1x6xf32>
    %106 = arith.maximumf %104, %105 : vector<1x6xf32>
    %cst_85 = arith.constant 9.99999974E-6 : f32
    %107 = vector.broadcast %cst_85 : f32 to vector<1x6xf32>
    %108 = arith.addf %106, %107 : vector<1x6xf32>
    %109 = math.rsqrt %108 : vector<1x6xf32>
    %110 = arith.mulf %81, %109 : vector<1x6xf32>
    %111 = arith.mulf %99, %110 : vector<1x6xf32>
    %112 = arith.subf %82, %111 : vector<1x6xf32>
    %cst_86 = arith.constant dense<0.000000e+00> : vector<1x84xf32>
    %113 = tpu.matmul %110, %84, %cst_86 {dimension_numbers = #tpu.dot_dimension_numbers<[1], [0], [0], [1], [0, 0, 1, 1], [], []>} : vector<1x6xf32>, vector<6x84xf32>, vector<1x84xf32> -> vector<1x84xf32>
    %cst_87 = arith.constant dense<0.000000e+00> : vector<1x84xf32>
    %114 = tpu.matmul %112, %84, %cst_87 {dimension_numbers = #tpu.dot_dimension_numbers<[1], [0], [0], [1], [0, 0, 1, 1], [], []>} : vector<1x6xf32>, vector<6x84xf32>, vector<1x84xf32> -> vector<1x84xf32>
    %115 = vector.broadcast %113 : vector<1x84xf32> to vector<14x84xf32>
    %116 = arith.mulf %40, %115 : vector<14x84xf32>
    %117 = vector.broadcast %114 : vector<1x84xf32> to vector<14x84xf32>
    %118 = arith.addf %116, %117 : vector<14x84xf32>
    %119 = vector.broadcast %113 : vector<1x84xf32> to vector<14x84xf32>
    %120 = arith.mulf %80, %119 : vector<14x84xf32>
    %121 = vector.broadcast %114 : vector<1x84xf32> to vector<14x84xf32>
    %122 = arith.addf %120, %121 : vector<14x84xf32>
    %c0_88 = arith.constant 0 : index
    %c0_89 = arith.constant 0 : index
    %123 = vector.load %arg16[%c0_88, %c0_89] : memref<1x80xf32, #tpu.memory_space<vmem>>, vector<1x80xf32>
    %124 = vector.extract_strided_slice %118 {offsets = [0, 0], sizes = [10, 84], strides = [1, 1]} : vector<14x84xf32> to vector<10x84xf32>
    %c0_90 = arith.constant 0 : index
    %c0_91 = arith.constant 0 : index
    %c0_92 = arith.constant 0 : index
    %125 = vector.load %arg2[%c0_90, %c0_91, %c0_92] : memref<5x84x160xf32, #tpu.memory_space<vmem>>, vector<1x84x160xf32>
    %126 = vector.shape_cast %125 : vector<1x84x160xf32> to vector<84x160xf32>
    %cst_93 = arith.constant dense<0.000000e+00> : vector<10x160xf32>
    %127 = tpu.matmul %124, %126, %cst_93 {dimension_numbers = #tpu.dot_dimension_numbers<[1], [0], [0], [1], [0, 0, 1, 1], [], []>} : vector<10x84xf32>, vector<84x160xf32>, vector<10x160xf32> -> vector<10x160xf32>
    %128 = vector.extract_strided_slice %118 {offsets = [1, 0], sizes = [10, 84], strides = [1, 1]} : vector<14x84xf32> to vector<10x84xf32>
    %c1_94 = arith.constant 1 : index
    %c0_95 = arith.constant 0 : index
    %c0_96 = arith.constant 0 : index
    %129 = vector.load %arg2[%c1_94, %c0_95, %c0_96] : memref<5x84x160xf32, #tpu.memory_space<vmem>>, vector<1x84x160xf32>
    %130 = vector.shape_cast %129 : vector<1x84x160xf32> to vector<84x160xf32>
    %cst_97 = arith.constant dense<0.000000e+00> : vector<10x160xf32>
    %131 = tpu.matmul %128, %130, %cst_97 {dimension_numbers = #tpu.dot_dimension_numbers<[1], [0], [0], [1], [0, 0, 1, 1], [], []>} : vector<10x84xf32>, vector<84x160xf32>, vector<10x160xf32> -> vector<10x160xf32>
    %132 = arith.addf %127, %131 : vector<10x160xf32>
    %133 = vector.extract_strided_slice %118 {offsets = [2, 0], sizes = [10, 84], strides = [1, 1]} : vector<14x84xf32> to vector<10x84xf32>
    %c2_98 = arith.constant 2 : index
    %c0_99 = arith.constant 0 : index
    %c0_100 = arith.constant 0 : index
    %134 = vector.load %arg2[%c2_98, %c0_99, %c0_100] : memref<5x84x160xf32, #tpu.memory_space<vmem>>, vector<1x84x160xf32>
    %135 = vector.shape_cast %134 : vector<1x84x160xf32> to vector<84x160xf32>
    %cst_101 = arith.constant dense<0.000000e+00> : vector<10x160xf32>
    %136 = tpu.matmul %133, %135, %cst_101 {dimension_numbers = #tpu.dot_dimension_numbers<[1], [0], [0], [1], [0, 0, 1, 1], [], []>} : vector<10x84xf32>, vector<84x160xf32>, vector<10x160xf32> -> vector<10x160xf32>
    %137 = arith.addf %132, %136 : vector<10x160xf32>
    %138 = vector.extract_strided_slice %118 {offsets = [3, 0], sizes = [10, 84], strides = [1, 1]} : vector<14x84xf32> to vector<10x84xf32>
    %c3_102 = arith.constant 3 : index
    %c0_103 = arith.constant 0 : index
    %c0_104 = arith.constant 0 : index
    %139 = vector.load %arg2[%c3_102, %c0_103, %c0_104] : memref<5x84x160xf32, #tpu.memory_space<vmem>>, vector<1x84x160xf32>
    %140 = vector.shape_cast %139 : vector<1x84x160xf32> to vector<84x160xf32>
    %cst_105 = arith.constant dense<0.000000e+00> : vector<10x160xf32>
    %141 = tpu.matmul %138, %140, %cst_105 {dimension_numbers = #tpu.dot_dimension_numbers<[1], [0], [0], [1], [0, 0, 1, 1], [], []>} : vector<10x84xf32>, vector<84x160xf32>, vector<10x160xf32> -> vector<10x160xf32>
    %142 = arith.addf %137, %141 : vector<10x160xf32>
    %143 = vector.extract_strided_slice %118 {offsets = [4, 0], sizes = [10, 84], strides = [1, 1]} : vector<14x84xf32> to vector<10x84xf32>
    %c4_106 = arith.constant 4 : index
    %c0_107 = arith.constant 0 : index
    %c0_108 = arith.constant 0 : index
    %144 = vector.load %arg2[%c4_106, %c0_107, %c0_108] : memref<5x84x160xf32, #tpu.memory_space<vmem>>, vector<1x84x160xf32>
    %145 = vector.shape_cast %144 : vector<1x84x160xf32> to vector<84x160xf32>
    %cst_109 = arith.constant dense<0.000000e+00> : vector<10x160xf32>
    %146 = tpu.matmul %143, %145, %cst_109 {dimension_numbers = #tpu.dot_dimension_numbers<[1], [0], [0], [1], [0, 0, 1, 1], [], []>} : vector<10x84xf32>, vector<84x160xf32>, vector<10x160xf32> -> vector<10x160xf32>
    %147 = arith.addf %142, %146 : vector<10x160xf32>
    %c0_110 = arith.constant 0 : index
    %c0_111 = arith.constant 0 : index
    %148 = vector.load %arg7[%c0_110, %c0_111] : memref<160x80xf32, #tpu.memory_space<vmem>>, vector<160x80xf32>
    %cst_112 = arith.constant dense<0.000000e+00> : vector<10x80xf32>
    %149 = tpu.matmul %147, %148, %cst_112 {dimension_numbers = #tpu.dot_dimension_numbers<[1], [0], [0], [1], [0, 0, 1, 1], [], []>} : vector<10x160xf32>, vector<160x80xf32>, vector<10x80xf32> -> vector<10x80xf32>
    %c0_113 = arith.constant 0 : index
    %c0_114 = arith.constant 0 : index
    %150 = vector.load %arg8[%c0_113, %c0_114] : memref<160x80xf32, #tpu.memory_space<vmem>>, vector<160x80xf32>
    %cst_115 = arith.constant dense<0.000000e+00> : vector<10x80xf32>
    %151 = tpu.matmul %147, %150, %cst_115 {dimension_numbers = #tpu.dot_dimension_numbers<[1], [0], [0], [1], [0, 0, 1, 1], [], []>} : vector<10x160xf32>, vector<160x80xf32>, vector<10x80xf32> -> vector<10x80xf32>
    %152 = arith.maximumf %149, %151 : vector<10x80xf32>
    %c0_116 = arith.constant 0 : index
    %c0_117 = arith.constant 0 : index
    %153 = vector.load %arg9[%c0_116, %c0_117] : memref<5x10xf32, #tpu.memory_space<vmem>>, vector<5x10xf32>
    %cst_118 = arith.constant dense<0.000000e+00> : vector<5x80xf32>
    %154 = tpu.matmul %153, %152, %cst_118 {dimension_numbers = #tpu.dot_dimension_numbers<[1], [0], [0], [1], [0, 0, 1, 1], [], []>} : vector<5x10xf32>, vector<10x80xf32>, vector<5x80xf32> -> vector<5x80xf32>
    %c0_119 = arith.constant 0 : index
    %c0_120 = arith.constant 0 : index
    %155 = vector.load %arg10[%c0_119, %c0_120] : memref<5x10xf32, #tpu.memory_space<vmem>>, vector<5x10xf32>
    %cst_121 = arith.constant dense<0.000000e+00> : vector<5x80xf32>
    %156 = tpu.matmul %155, %152, %cst_121 {dimension_numbers = #tpu.dot_dimension_numbers<[1], [0], [0], [1], [0, 0, 1, 1], [], []>} : vector<5x10xf32>, vector<10x80xf32>, vector<5x80xf32> -> vector<5x80xf32>
    %157 = arith.maximumf %154, %156 : vector<5x80xf32>
    %158 = vector.broadcast %123 : vector<1x80xf32> to vector<5x80xf32>
    %159 = arith.addf %157, %158 : vector<5x80xf32>
    %cst_122 = arith.constant 0.000000e+00 : f32
    %160 = vector.broadcast %cst_122 : f32 to vector<5x80xf32>
    %161 = arith.maximumf %159, %160 : vector<5x80xf32>
    %162 = vector.extract_strided_slice %122 {offsets = [0, 0], sizes = [10, 84], strides = [1, 1]} : vector<14x84xf32> to vector<10x84xf32>
    %c0_123 = arith.constant 0 : index
    %c0_124 = arith.constant 0 : index
    %c0_125 = arith.constant 0 : index
    %163 = vector.load %arg2[%c0_123, %c0_124, %c0_125] : memref<5x84x160xf32, #tpu.memory_space<vmem>>, vector<1x84x160xf32>
    %164 = vector.shape_cast %163 : vector<1x84x160xf32> to vector<84x160xf32>
    %cst_126 = arith.constant dense<0.000000e+00> : vector<10x160xf32>
    %165 = tpu.matmul %162, %164, %cst_126 {dimension_numbers = #tpu.dot_dimension_numbers<[1], [0], [0], [1], [0, 0, 1, 1], [], []>} : vector<10x84xf32>, vector<84x160xf32>, vector<10x160xf32> -> vector<10x160xf32>
    %166 = vector.extract_strided_slice %122 {offsets = [1, 0], sizes = [10, 84], strides = [1, 1]} : vector<14x84xf32> to vector<10x84xf32>
    %c1_127 = arith.constant 1 : index
    %c0_128 = arith.constant 0 : index
    %c0_129 = arith.constant 0 : index
    %167 = vector.load %arg2[%c1_127, %c0_128, %c0_129] : memref<5x84x160xf32, #tpu.memory_space<vmem>>, vector<1x84x160xf32>
    %168 = vector.shape_cast %167 : vector<1x84x160xf32> to vector<84x160xf32>
    %cst_130 = arith.constant dense<0.000000e+00> : vector<10x160xf32>
    %169 = tpu.matmul %166, %168, %cst_130 {dimension_numbers = #tpu.dot_dimension_numbers<[1], [0], [0], [1], [0, 0, 1, 1], [], []>} : vector<10x84xf32>, vector<84x160xf32>, vector<10x160xf32> -> vector<10x160xf32>
    %170 = arith.addf %165, %169 : vector<10x160xf32>
    %171 = vector.extract_strided_slice %122 {offsets = [2, 0], sizes = [10, 84], strides = [1, 1]} : vector<14x84xf32> to vector<10x84xf32>
    %c2_131 = arith.constant 2 : index
    %c0_132 = arith.constant 0 : index
    %c0_133 = arith.constant 0 : index
    %172 = vector.load %arg2[%c2_131, %c0_132, %c0_133] : memref<5x84x160xf32, #tpu.memory_space<vmem>>, vector<1x84x160xf32>
    %173 = vector.shape_cast %172 : vector<1x84x160xf32> to vector<84x160xf32>
    %cst_134 = arith.constant dense<0.000000e+00> : vector<10x160xf32>
    %174 = tpu.matmul %171, %173, %cst_134 {dimension_numbers = #tpu.dot_dimension_numbers<[1], [0], [0], [1], [0, 0, 1, 1], [], []>} : vector<10x84xf32>, vector<84x160xf32>, vector<10x160xf32> -> vector<10x160xf32>
    %175 = arith.addf %170, %174 : vector<10x160xf32>
    %176 = vector.extract_strided_slice %122 {offsets = [3, 0], sizes = [10, 84], strides = [1, 1]} : vector<14x84xf32> to vector<10x84xf32>
    %c3_135 = arith.constant 3 : index
    %c0_136 = arith.constant 0 : index
    %c0_137 = arith.constant 0 : index
    %177 = vector.load %arg2[%c3_135, %c0_136, %c0_137] : memref<5x84x160xf32, #tpu.memory_space<vmem>>, vector<1x84x160xf32>
    %178 = vector.shape_cast %177 : vector<1x84x160xf32> to vector<84x160xf32>
    %cst_138 = arith.constant dense<0.000000e+00> : vector<10x160xf32>
    %179 = tpu.matmul %176, %178, %cst_138 {dimension_numbers = #tpu.dot_dimension_numbers<[1], [0], [0], [1], [0, 0, 1, 1], [], []>} : vector<10x84xf32>, vector<84x160xf32>, vector<10x160xf32> -> vector<10x160xf32>
    %180 = arith.addf %175, %179 : vector<10x160xf32>
    %181 = vector.extract_strided_slice %122 {offsets = [4, 0], sizes = [10, 84], strides = [1, 1]} : vector<14x84xf32> to vector<10x84xf32>
    %c4_139 = arith.constant 4 : index
    %c0_140 = arith.constant 0 : index
    %c0_141 = arith.constant 0 : index
    %182 = vector.load %arg2[%c4_139, %c0_140, %c0_141] : memref<5x84x160xf32, #tpu.memory_space<vmem>>, vector<1x84x160xf32>
    %183 = vector.shape_cast %182 : vector<1x84x160xf32> to vector<84x160xf32>
    %cst_142 = arith.constant dense<0.000000e+00> : vector<10x160xf32>
    %184 = tpu.matmul %181, %183, %cst_142 {dimension_numbers = #tpu.dot_dimension_numbers<[1], [0], [0], [1], [0, 0, 1, 1], [], []>} : vector<10x84xf32>, vector<84x160xf32>, vector<10x160xf32> -> vector<10x160xf32>
    %185 = arith.addf %180, %184 : vector<10x160xf32>
    %c0_143 = arith.constant 0 : index
    %c0_144 = arith.constant 0 : index
    %186 = vector.load %arg7[%c0_143, %c0_144] : memref<160x80xf32, #tpu.memory_space<vmem>>, vector<160x80xf32>
    %cst_145 = arith.constant dense<0.000000e+00> : vector<10x80xf32>
    %187 = tpu.matmul %185, %186, %cst_145 {dimension_numbers = #tpu.dot_dimension_numbers<[1], [0], [0], [1], [0, 0, 1, 1], [], []>} : vector<10x160xf32>, vector<160x80xf32>, vector<10x80xf32> -> vector<10x80xf32>
    %c0_146 = arith.constant 0 : index
    %c0_147 = arith.constant 0 : index
    %188 = vector.load %arg8[%c0_146, %c0_147] : memref<160x80xf32, #tpu.memory_space<vmem>>, vector<160x80xf32>
    %cst_148 = arith.constant dense<0.000000e+00> : vector<10x80xf32>
    %189 = tpu.matmul %185, %188, %cst_148 {dimension_numbers = #tpu.dot_dimension_numbers<[1], [0], [0], [1], [0, 0, 1, 1], [], []>} : vector<10x160xf32>, vector<160x80xf32>, vector<10x80xf32> -> vector<10x80xf32>
    %190 = arith.maximumf %187, %189 : vector<10x80xf32>
    %c0_149 = arith.constant 0 : index
    %c0_150 = arith.constant 0 : index
    %191 = vector.load %arg9[%c0_149, %c0_150] : memref<5x10xf32, #tpu.memory_space<vmem>>, vector<5x10xf32>
    %cst_151 = arith.constant dense<0.000000e+00> : vector<5x80xf32>
    %192 = tpu.matmul %191, %190, %cst_151 {dimension_numbers = #tpu.dot_dimension_numbers<[1], [0], [0], [1], [0, 0, 1, 1], [], []>} : vector<5x10xf32>, vector<10x80xf32>, vector<5x80xf32> -> vector<5x80xf32>
    %c0_152 = arith.constant 0 : index
    %c0_153 = arith.constant 0 : index
    %193 = vector.load %arg10[%c0_152, %c0_153] : memref<5x10xf32, #tpu.memory_space<vmem>>, vector<5x10xf32>
    %cst_154 = arith.constant dense<0.000000e+00> : vector<5x80xf32>
    %194 = tpu.matmul %193, %190, %cst_154 {dimension_numbers = #tpu.dot_dimension_numbers<[1], [0], [0], [1], [0, 0, 1, 1], [], []>} : vector<5x10xf32>, vector<10x80xf32>, vector<5x80xf32> -> vector<5x80xf32>
    %195 = arith.maximumf %192, %194 : vector<5x80xf32>
    %196 = vector.broadcast %123 : vector<1x80xf32> to vector<5x80xf32>
    %197 = arith.addf %195, %196 : vector<5x80xf32>
    %cst_155 = arith.constant 0.000000e+00 : f32
    %198 = vector.broadcast %cst_155 : f32 to vector<5x80xf32>
    %199 = arith.maximumf %197, %198 : vector<5x80xf32>
    %c0_156 = arith.constant 0 : index
    %c0_157 = arith.constant 0 : index
    %200 = vector.load %arg19[%c0_156, %c0_157] : memref<1x16xf32, #tpu.memory_space<vmem>>, vector<1x16xf32>
    %c0_158 = arith.constant 0 : index
    %c0_159 = arith.constant 0 : index
    %201 = vector.load %arg20[%c0_158, %c0_159] : memref<1x16xf32, #tpu.memory_space<vmem>>, vector<1x16xf32>
    %c0_160 = arith.constant 0 : index
    %c0_161 = arith.constant 0 : index
    %202 = vector.load %arg13[%c0_160, %c0_161] : memref<80x16xf32, #tpu.memory_space<vmem>>, vector<80x16xf32>
    %c0_162 = arith.constant 0 : index
    %c0_163 = arith.constant 0 : index
    %203 = vector.load %arg14[%c0_162, %c0_163] : memref<16x80xf32, #tpu.memory_space<vmem>>, vector<16x80xf32>
    %cst_164 = arith.constant dense<0.000000e+00> : vector<80xf32>
    %204 = vector.multi_reduction <add>, %161, %cst_164 [0] : vector<5x80xf32> to vector<80xf32>
    %205 = vector.shape_cast %204 : vector<80xf32> to vector<1x80xf32>
    %206 = arith.mulf %161, %161 : vector<5x80xf32>
    %cst_165 = arith.constant dense<0.000000e+00> : vector<80xf32>
    %207 = vector.multi_reduction <add>, %206, %cst_165 [0] : vector<5x80xf32> to vector<80xf32>
    %208 = vector.shape_cast %207 : vector<80xf32> to vector<1x80xf32>
    %cst_166 = arith.constant dense<0.000000e+00> : vector<80xf32>
    %209 = vector.multi_reduction <add>, %199, %cst_166 [0] : vector<5x80xf32> to vector<80xf32>
    %210 = vector.shape_cast %209 : vector<80xf32> to vector<1x80xf32>
    %211 = arith.addf %205, %210 : vector<1x80xf32>
    %212 = arith.mulf %199, %199 : vector<5x80xf32>
    %cst_167 = arith.constant dense<0.000000e+00> : vector<80xf32>
    %213 = vector.multi_reduction <add>, %212, %cst_167 [0] : vector<5x80xf32> to vector<80xf32>
    %214 = vector.shape_cast %213 : vector<80xf32> to vector<1x80xf32>
    %215 = arith.addf %208, %214 : vector<1x80xf32>
    %cst_168 = arith.constant dense<0.000000e+00> : vector<1x16xf32>
    %216 = tpu.matmul %211, %202, %cst_168 {dimension_numbers = #tpu.dot_dimension_numbers<[1], [0], [0], [1], [0, 0, 1, 1], [], []>} : vector<1x80xf32>, vector<80x16xf32>, vector<1x16xf32> -> vector<1x16xf32>
    %cst_169 = arith.constant 5.000000e+01 : f32
    %217 = vector.broadcast %cst_169 : f32 to vector<1x16xf32>
    %218 = arith.divf %216, %217 : vector<1x16xf32>
    %cst_170 = arith.constant dense<0.000000e+00> : vector<1x16xf32>
    %219 = tpu.matmul %215, %202, %cst_170 {dimension_numbers = #tpu.dot_dimension_numbers<[1], [0], [0], [1], [0, 0, 1, 1], [], []>} : vector<1x80xf32>, vector<80x16xf32>, vector<1x16xf32> -> vector<1x16xf32>
    %cst_171 = arith.constant 5.000000e+01 : f32
    %220 = vector.broadcast %cst_171 : f32 to vector<1x16xf32>
    %221 = arith.divf %219, %220 : vector<1x16xf32>
    %222 = arith.mulf %218, %218 : vector<1x16xf32>
    %223 = arith.subf %221, %222 : vector<1x16xf32>
    %cst_172 = arith.constant 0.000000e+00 : f32
    %224 = vector.broadcast %cst_172 : f32 to vector<1x16xf32>
    %225 = arith.maximumf %223, %224 : vector<1x16xf32>
    %cst_173 = arith.constant 9.99999974E-6 : f32
    %226 = vector.broadcast %cst_173 : f32 to vector<1x16xf32>
    %227 = arith.addf %225, %226 : vector<1x16xf32>
    %228 = math.rsqrt %227 : vector<1x16xf32>
    %229 = arith.mulf %200, %228 : vector<1x16xf32>
    %230 = arith.mulf %218, %229 : vector<1x16xf32>
    %231 = arith.subf %201, %230 : vector<1x16xf32>
    %cst_174 = arith.constant dense<0.000000e+00> : vector<1x80xf32>
    %232 = tpu.matmul %229, %203, %cst_174 {dimension_numbers = #tpu.dot_dimension_numbers<[1], [0], [0], [1], [0, 0, 1, 1], [], []>} : vector<1x16xf32>, vector<16x80xf32>, vector<1x80xf32> -> vector<1x80xf32>
    %cst_175 = arith.constant dense<0.000000e+00> : vector<1x80xf32>
    %233 = tpu.matmul %231, %203, %cst_175 {dimension_numbers = #tpu.dot_dimension_numbers<[1], [0], [0], [1], [0, 0, 1, 1], [], []>} : vector<1x16xf32>, vector<16x80xf32>, vector<1x80xf32> -> vector<1x80xf32>
    %234 = vector.broadcast %232 : vector<1x80xf32> to vector<5x80xf32>
    %235 = arith.mulf %161, %234 : vector<5x80xf32>
    %236 = vector.broadcast %233 : vector<1x80xf32> to vector<5x80xf32>
    %237 = arith.addf %235, %236 : vector<5x80xf32>
    %238 = vector.broadcast %232 : vector<1x80xf32> to vector<5x80xf32>
    %239 = arith.mulf %199, %238 : vector<5x80xf32>
    %240 = vector.broadcast %233 : vector<1x80xf32> to vector<5x80xf32>
    %241 = arith.addf %239, %240 : vector<5x80xf32>
    %c0_176 = arith.constant 0 : index
    %c0_177 = arith.constant 0 : index
    %242 = vector.load %arg22[%c0_176, %c0_177] : memref<1x120xf32, #tpu.memory_space<vmem>>, vector<1x120xf32>
    %243 = vector.extract_strided_slice %237 {offsets = [0, 0], sizes = [1, 80], strides = [1, 1]} : vector<5x80xf32> to vector<1x80xf32>
    %c0_178 = arith.constant 0 : index
    %c0_179 = arith.constant 0 : index
    %244 = vector.load %arg21[%c0_178, %c0_179] : memref<400x120xf32, #tpu.memory_space<vmem>>, vector<80x120xf32>
    %cst_180 = arith.constant dense<0.000000e+00> : vector<1x120xf32>
    %245 = tpu.matmul %243, %244, %cst_180 {dimension_numbers = #tpu.dot_dimension_numbers<[1], [0], [0], [1], [0, 0, 1, 1], [], []>} : vector<1x80xf32>, vector<80x120xf32>, vector<1x120xf32> -> vector<1x120xf32>
    %246 = arith.addf %242, %245 : vector<1x120xf32>
    %247 = vector.extract_strided_slice %237 {offsets = [1, 0], sizes = [1, 80], strides = [1, 1]} : vector<5x80xf32> to vector<1x80xf32>
    %c80 = arith.constant 80 : index
    %c0_181 = arith.constant 0 : index
    %248 = vector.load %arg21[%c80, %c0_181] : memref<400x120xf32, #tpu.memory_space<vmem>>, vector<80x120xf32>
    %cst_182 = arith.constant dense<0.000000e+00> : vector<1x120xf32>
    %249 = tpu.matmul %247, %248, %cst_182 {dimension_numbers = #tpu.dot_dimension_numbers<[1], [0], [0], [1], [0, 0, 1, 1], [], []>} : vector<1x80xf32>, vector<80x120xf32>, vector<1x120xf32> -> vector<1x120xf32>
    %250 = arith.addf %246, %249 : vector<1x120xf32>
    %251 = vector.extract_strided_slice %237 {offsets = [2, 0], sizes = [1, 80], strides = [1, 1]} : vector<5x80xf32> to vector<1x80xf32>
    %c160 = arith.constant 160 : index
    %c0_183 = arith.constant 0 : index
    %252 = vector.load %arg21[%c160, %c0_183] : memref<400x120xf32, #tpu.memory_space<vmem>>, vector<80x120xf32>
    %cst_184 = arith.constant dense<0.000000e+00> : vector<1x120xf32>
    %253 = tpu.matmul %251, %252, %cst_184 {dimension_numbers = #tpu.dot_dimension_numbers<[1], [0], [0], [1], [0, 0, 1, 1], [], []>} : vector<1x80xf32>, vector<80x120xf32>, vector<1x120xf32> -> vector<1x120xf32>
    %254 = arith.addf %250, %253 : vector<1x120xf32>
    %255 = vector.extract_strided_slice %237 {offsets = [3, 0], sizes = [1, 80], strides = [1, 1]} : vector<5x80xf32> to vector<1x80xf32>
    %c240 = arith.constant 240 : index
    %c0_185 = arith.constant 0 : index
    %256 = vector.load %arg21[%c240, %c0_185] : memref<400x120xf32, #tpu.memory_space<vmem>>, vector<80x120xf32>
    %cst_186 = arith.constant dense<0.000000e+00> : vector<1x120xf32>
    %257 = tpu.matmul %255, %256, %cst_186 {dimension_numbers = #tpu.dot_dimension_numbers<[1], [0], [0], [1], [0, 0, 1, 1], [], []>} : vector<1x80xf32>, vector<80x120xf32>, vector<1x120xf32> -> vector<1x120xf32>
    %258 = arith.addf %254, %257 : vector<1x120xf32>
    %259 = vector.extract_strided_slice %237 {offsets = [4, 0], sizes = [1, 80], strides = [1, 1]} : vector<5x80xf32> to vector<1x80xf32>
    %c320 = arith.constant 320 : index
    %c0_187 = arith.constant 0 : index
    %260 = vector.load %arg21[%c320, %c0_187] : memref<400x120xf32, #tpu.memory_space<vmem>>, vector<80x120xf32>
    %cst_188 = arith.constant dense<0.000000e+00> : vector<1x120xf32>
    %261 = tpu.matmul %259, %260, %cst_188 {dimension_numbers = #tpu.dot_dimension_numbers<[1], [0], [0], [1], [0, 0, 1, 1], [], []>} : vector<1x80xf32>, vector<80x120xf32>, vector<1x120xf32> -> vector<1x120xf32>
    %262 = arith.addf %258, %261 : vector<1x120xf32>
    %cst_189 = arith.constant 0.000000e+00 : f32
    %263 = vector.broadcast %cst_189 : f32 to vector<1x120xf32>
    %264 = arith.maximumf %262, %263 : vector<1x120xf32>
    %265 = vector.extract_strided_slice %241 {offsets = [0, 0], sizes = [1, 80], strides = [1, 1]} : vector<5x80xf32> to vector<1x80xf32>
    %c0_190 = arith.constant 0 : index
    %c0_191 = arith.constant 0 : index
    %266 = vector.load %arg21[%c0_190, %c0_191] : memref<400x120xf32, #tpu.memory_space<vmem>>, vector<80x120xf32>
    %cst_192 = arith.constant dense<0.000000e+00> : vector<1x120xf32>
    %267 = tpu.matmul %265, %266, %cst_192 {dimension_numbers = #tpu.dot_dimension_numbers<[1], [0], [0], [1], [0, 0, 1, 1], [], []>} : vector<1x80xf32>, vector<80x120xf32>, vector<1x120xf32> -> vector<1x120xf32>
    %268 = arith.addf %242, %267 : vector<1x120xf32>
    %269 = vector.extract_strided_slice %241 {offsets = [1, 0], sizes = [1, 80], strides = [1, 1]} : vector<5x80xf32> to vector<1x80xf32>
    %c80_193 = arith.constant 80 : index
    %c0_194 = arith.constant 0 : index
    %270 = vector.load %arg21[%c80_193, %c0_194] : memref<400x120xf32, #tpu.memory_space<vmem>>, vector<80x120xf32>
    %cst_195 = arith.constant dense<0.000000e+00> : vector<1x120xf32>
    %271 = tpu.matmul %269, %270, %cst_195 {dimension_numbers = #tpu.dot_dimension_numbers<[1], [0], [0], [1], [0, 0, 1, 1], [], []>} : vector<1x80xf32>, vector<80x120xf32>, vector<1x120xf32> -> vector<1x120xf32>
    %272 = arith.addf %268, %271 : vector<1x120xf32>
    %273 = vector.extract_strided_slice %241 {offsets = [2, 0], sizes = [1, 80], strides = [1, 1]} : vector<5x80xf32> to vector<1x80xf32>
    %c160_196 = arith.constant 160 : index
    %c0_197 = arith.constant 0 : index
    %274 = vector.load %arg21[%c160_196, %c0_197] : memref<400x120xf32, #tpu.memory_space<vmem>>, vector<80x120xf32>
    %cst_198 = arith.constant dense<0.000000e+00> : vector<1x120xf32>
    %275 = tpu.matmul %273, %274, %cst_198 {dimension_numbers = #tpu.dot_dimension_numbers<[1], [0], [0], [1], [0, 0, 1, 1], [], []>} : vector<1x80xf32>, vector<80x120xf32>, vector<1x120xf32> -> vector<1x120xf32>
    %276 = arith.addf %272, %275 : vector<1x120xf32>
    %277 = vector.extract_strided_slice %241 {offsets = [3, 0], sizes = [1, 80], strides = [1, 1]} : vector<5x80xf32> to vector<1x80xf32>
    %c240_199 = arith.constant 240 : index
    %c0_200 = arith.constant 0 : index
    %278 = vector.load %arg21[%c240_199, %c0_200] : memref<400x120xf32, #tpu.memory_space<vmem>>, vector<80x120xf32>
    %cst_201 = arith.constant dense<0.000000e+00> : vector<1x120xf32>
    %279 = tpu.matmul %277, %278, %cst_201 {dimension_numbers = #tpu.dot_dimension_numbers<[1], [0], [0], [1], [0, 0, 1, 1], [], []>} : vector<1x80xf32>, vector<80x120xf32>, vector<1x120xf32> -> vector<1x120xf32>
    %280 = arith.addf %276, %279 : vector<1x120xf32>
    %281 = vector.extract_strided_slice %241 {offsets = [4, 0], sizes = [1, 80], strides = [1, 1]} : vector<5x80xf32> to vector<1x80xf32>
    %c320_202 = arith.constant 320 : index
    %c0_203 = arith.constant 0 : index
    %282 = vector.load %arg21[%c320_202, %c0_203] : memref<400x120xf32, #tpu.memory_space<vmem>>, vector<80x120xf32>
    %cst_204 = arith.constant dense<0.000000e+00> : vector<1x120xf32>
    %283 = tpu.matmul %281, %282, %cst_204 {dimension_numbers = #tpu.dot_dimension_numbers<[1], [0], [0], [1], [0, 0, 1, 1], [], []>} : vector<1x80xf32>, vector<80x120xf32>, vector<1x120xf32> -> vector<1x120xf32>
    %284 = arith.addf %280, %283 : vector<1x120xf32>
    %cst_205 = arith.constant 0.000000e+00 : f32
    %285 = vector.broadcast %cst_205 : f32 to vector<1x120xf32>
    %286 = arith.maximumf %284, %285 : vector<1x120xf32>
    %c0_206 = arith.constant 0 : index
    %c0_207 = arith.constant 0 : index
    %287 = vector.load %arg23[%c0_206, %c0_207] : memref<1x120xf32, #tpu.memory_space<vmem>>, vector<1x120xf32>
    %c0_208 = arith.constant 0 : index
    %c0_209 = arith.constant 0 : index
    %288 = vector.load %arg24[%c0_208, %c0_209] : memref<1x120xf32, #tpu.memory_space<vmem>>, vector<1x120xf32>
    %289 = arith.mulf %264, %264 : vector<1x120xf32>
    %290 = arith.addf %264, %286 : vector<1x120xf32>
    %291 = arith.mulf %286, %286 : vector<1x120xf32>
    %292 = arith.addf %289, %291 : vector<1x120xf32>
    %cst_210 = arith.constant 5.000000e-01 : f32
    %293 = vector.broadcast %cst_210 : f32 to vector<1x120xf32>
    %294 = arith.mulf %290, %293 : vector<1x120xf32>
    %cst_211 = arith.constant 5.000000e-01 : f32
    %295 = vector.broadcast %cst_211 : f32 to vector<1x120xf32>
    %296 = arith.mulf %292, %295 : vector<1x120xf32>
    %297 = arith.mulf %294, %294 : vector<1x120xf32>
    %298 = arith.subf %296, %297 : vector<1x120xf32>
    %cst_212 = arith.constant 0.000000e+00 : f32
    %299 = vector.broadcast %cst_212 : f32 to vector<1x120xf32>
    %300 = arith.maximumf %298, %299 : vector<1x120xf32>
    %cst_213 = arith.constant 9.99999974E-6 : f32
    %301 = vector.broadcast %cst_213 : f32 to vector<1x120xf32>
    %302 = arith.addf %300, %301 : vector<1x120xf32>
    %303 = math.rsqrt %302 : vector<1x120xf32>
    %304 = arith.mulf %287, %303 : vector<1x120xf32>
    %305 = arith.mulf %294, %304 : vector<1x120xf32>
    %306 = arith.subf %288, %305 : vector<1x120xf32>
    %307 = arith.mulf %264, %304 : vector<1x120xf32>
    %308 = arith.addf %307, %306 : vector<1x120xf32>
    %309 = arith.mulf %286, %304 : vector<1x120xf32>
    %310 = arith.addf %309, %306 : vector<1x120xf32>
    %c0_214 = arith.constant 0 : index
    %c0_215 = arith.constant 0 : index
    %311 = vector.load %arg25[%c0_214, %c0_215] : memref<120x84xf32, #tpu.memory_space<vmem>>, vector<120x84xf32>
    %c0_216 = arith.constant 0 : index
    %c0_217 = arith.constant 0 : index
    %312 = vector.load %arg26[%c0_216, %c0_217] : memref<1x84xf32, #tpu.memory_space<vmem>>, vector<1x84xf32>
    %cst_218 = arith.constant dense<0.000000e+00> : vector<1x84xf32>
    %313 = tpu.matmul %308, %311, %cst_218 {dimension_numbers = #tpu.dot_dimension_numbers<[1], [0], [0], [1], [0, 0, 1, 1], [], []>} : vector<1x120xf32>, vector<120x84xf32>, vector<1x84xf32> -> vector<1x84xf32>
    %314 = arith.addf %313, %312 : vector<1x84xf32>
    %cst_219 = arith.constant 0.000000e+00 : f32
    %315 = vector.broadcast %cst_219 : f32 to vector<1x84xf32>
    %316 = arith.maximumf %314, %315 : vector<1x84xf32>
    %cst_220 = arith.constant dense<0.000000e+00> : vector<1x84xf32>
    %317 = tpu.matmul %310, %311, %cst_220 {dimension_numbers = #tpu.dot_dimension_numbers<[1], [0], [0], [1], [0, 0, 1, 1], [], []>} : vector<1x120xf32>, vector<120x84xf32>, vector<1x84xf32> -> vector<1x84xf32>
    %318 = arith.addf %317, %312 : vector<1x84xf32>
    %cst_221 = arith.constant 0.000000e+00 : f32
    %319 = vector.broadcast %cst_221 : f32 to vector<1x84xf32>
    %320 = arith.maximumf %318, %319 : vector<1x84xf32>
    %c0_222 = arith.constant 0 : index
    %c0_223 = arith.constant 0 : index
    %321 = vector.load %arg27[%c0_222, %c0_223] : memref<1x84xf32, #tpu.memory_space<vmem>>, vector<1x84xf32>
    %c0_224 = arith.constant 0 : index
    %c0_225 = arith.constant 0 : index
    %322 = vector.load %arg28[%c0_224, %c0_225] : memref<1x84xf32, #tpu.memory_space<vmem>>, vector<1x84xf32>
    %323 = arith.mulf %316, %316 : vector<1x84xf32>
    %324 = arith.addf %316, %320 : vector<1x84xf32>
    %325 = arith.mulf %320, %320 : vector<1x84xf32>
    %326 = arith.addf %323, %325 : vector<1x84xf32>
    %cst_226 = arith.constant 5.000000e-01 : f32
    %327 = vector.broadcast %cst_226 : f32 to vector<1x84xf32>
    %328 = arith.mulf %324, %327 : vector<1x84xf32>
    %cst_227 = arith.constant 5.000000e-01 : f32
    %329 = vector.broadcast %cst_227 : f32 to vector<1x84xf32>
    %330 = arith.mulf %326, %329 : vector<1x84xf32>
    %331 = arith.mulf %328, %328 : vector<1x84xf32>
    %332 = arith.subf %330, %331 : vector<1x84xf32>
    %cst_228 = arith.constant 0.000000e+00 : f32
    %333 = vector.broadcast %cst_228 : f32 to vector<1x84xf32>
    %334 = arith.maximumf %332, %333 : vector<1x84xf32>
    %cst_229 = arith.constant 9.99999974E-6 : f32
    %335 = vector.broadcast %cst_229 : f32 to vector<1x84xf32>
    %336 = arith.addf %334, %335 : vector<1x84xf32>
    %337 = math.rsqrt %336 : vector<1x84xf32>
    %338 = arith.mulf %321, %337 : vector<1x84xf32>
    %339 = arith.mulf %328, %338 : vector<1x84xf32>
    %340 = arith.subf %322, %339 : vector<1x84xf32>
    %341 = arith.mulf %316, %338 : vector<1x84xf32>
    %342 = arith.addf %341, %340 : vector<1x84xf32>
    %343 = arith.mulf %320, %338 : vector<1x84xf32>
    %344 = arith.addf %343, %340 : vector<1x84xf32>
    %c0_230 = arith.constant 0 : index
    %c0_231 = arith.constant 0 : index
    %345 = vector.load %arg29[%c0_230, %c0_231] : memref<2x84xf32, #tpu.memory_space<vmem>>, vector<1x84xf32>
    tpu.vector_store %arg29[%c0_230, %c0_231], %342 {strides = array<i32>} : memref<2x84xf32, #tpu.memory_space<vmem>>, vector<1x84xf32>,
    %c1_232 = arith.constant 1 : index
    %c0_233 = arith.constant 0 : index
    %346 = vector.load %arg29[%c1_232, %c0_233] : memref<2x84xf32, #tpu.memory_space<vmem>>, vector<1x84xf32>
    tpu.vector_store %arg29[%c1_232, %c0_233], %344 {strides = array<i32>} : memref<2x84xf32, #tpu.memory_space<vmem>>, vector<1x84xf32>,
    return
  }
}

</mosaic_0001>

<llo_original>
// kernel: tile.13
$region0: #{tile.13}
  #allocation0 [shape = 's32[1]{0}', space=sflag, size = 0x4, scoped, tag = 'scoped memory for tile.13']
  %s0 = inlined_call_operand.vmem [shape: f32[6], index: 0, kind: input, shape index: {}]
  %s1 = inlined_call_operand.vmem [shape: f32[14,6], index: 1, kind: output, shape index: {}]
  // Predicated region
  $region2: #{tile.13} parent=0 // pred_check
    _
  $region3: #{tile.13} parent=0 // pred_check_branch
    %3 = sbr.rel (0) target = $region5
  $region4: #{tile.13} parent=0 // pred_region
    _
  $region5: #{tile.13} parent=0 // pred_fallthru
    _
  %v4 = vld [vmem:[%s0] ss:$0 sm:$0xff]
  %5 = vst [vmem:[%s1] sm:$0xff] %v4
  %s6 = scalar_lea.vmem %s1, 8
  %7 = vst [vmem:[%s6] sm:$0xff] %v4

// kernel: tile.14
$region0: #{tile.14}
  %s0 = inlined_call_operand.vmem [shape: f32[14,6], index: 0, kind: input, shape index: {}]
  %s1 = inlined_call_operand.vmem [shape: f32[1,84], index: 1, kind: output, shape index: {}]
  $region1: #{tile.14} parent=0
    #allocation0 [shape = 'u8[4096]{0}', space=vmem, size = 0x1000, scoped, tag = 'scoped mem for output reshape']
    %v2 = vld [vmem:[%s0] sm:$0x1]
    %vm3 = vcmask 48128
    %4 = vst.msk [vmem:[#allocation0] sm:$0x1] %vm3, %v2
    %s5 = scalar_lea.vmem %s0, 13
    %v6 = vld [vmem:[%s5] sm:$0x1]
    %7 = vrot.lane.b32.xlu0 %v6, 78
    %v8 = vpop.permute.xlu0 %7
    %vm9 = vcmask 687728
    %10 = vst.msk [vmem:[#allocation0] sm:$0x1] %vm9, %v8
    %s11 = scalar_lea.vmem %s0, 12
    %v12 = vld [vmem:[%s11] sm:$0x1]
    %13 = vrot.lane.b32.xlu0 %v12, 72
    %v14 = vpop.permute.xlu0 %13
    %vm15 = vcmask 638528
    %16 = vst.msk [vmem:[#allocation0] sm:$0x1] %vm15, %v14
    %s17 = scalar_lea.vmem %s0, 11
    %v18 = vld [vmem:[%s17] sm:$0x1]
    %19 = vrot.lane.b32.xlu0 %v18, 66
    %v20 = vpop.permute.xlu0 %19
    %vm21 = vcmask 589328
    %22 = vst.msk [vmem:[#allocation0] sm:$0x1] %vm21, %v20
    %s23 = scalar_lea.vmem %s0, 10
    %v24 = vld [vmem:[%s23] sm:$0x1]
    %25 = vrot.lane.b32.xlu0 %v24, 60
    %v26 = vpop.permute.xlu0 %25
    %vm27 = vcmask 540128
    %28 = vst.msk [vmem:[#allocation0] sm:$0x1] %vm27, %v26
    %s29 = scalar_lea.vmem %s0, 9
    %v30 = vld [vmem:[%s29] sm:$0x1]
    %31 = vrot.lane.b32.xlu0 %v30, 54
    %v32 = vpop.permute.xlu0 %31
    %vm33 = vcmask 490928
    %34 = vst.msk [vmem:[#allocation0] sm:$0x1] %vm33, %v32
    %s35 = scalar_lea.vmem %s0, 8
    %v36 = vld [vmem:[%s35] sm:$0x1]
    %37 = vrot.lane.b32.xlu0 %v36, 48
    %v38 = vpop.permute.xlu0 %37
    %vm39 = vcmask 441728
    %40 = vst.msk [vmem:[#allocation0] sm:$0x1] %vm39, %v38
    %s41 = scalar_lea.vmem %s0, 7
    %v42 = vld [vmem:[%s41] sm:$0x1]
    %43 = vrot.lane.b32.xlu0 %v42, 42
    %v44 = vpop.permute.xlu0 %43
    %vm45 = vcmask 392528
    %46 = vst.msk [vmem:[#allocation0] sm:$0x1] %vm45, %v44
    %s47 = scalar_lea.vmem %s0, 6
    %v48 = vld [vmem:[%s47] sm:$0x1]
    %49 = vrot.lane.b32.xlu0 %v48, 36
    %v50 = vpop.permute.xlu0 %49
    %vm51 = vcmask 343328
    %52 = vst.msk [vmem:[#allocation0] sm:$0x1] %vm51, %v50
    %s53 = scalar_lea.vmem %s0, 5
    %v54 = vld [vmem:[%s53] sm:$0x1]
    %55 = vrot.lane.b32.xlu0 %v54, 30
    %v56 = vpop.permute.xlu0 %55
    %vm57 = vcmask 294128
    %58 = vst.msk [vmem:[#allocation0] sm:$0x1] %vm57, %v56
    %s59 = scalar_lea.vmem %s0, 4
    %v60 = vld [vmem:[%s59] sm:$0x1]
    %61 = vrot.lane.b32.xlu0 %v60, 24
    %v62 = vpop.permute.xlu0 %61
    %vm63 = vcmask 244928
    %64 = vst.msk [vmem:[#allocation0] sm:$0x1] %vm63, %v62
    %s65 = scalar_lea.vmem %s0, 3
    %v66 = vld [vmem:[%s65] sm:$0x1]
    %67 = vrot.lane.b32.xlu0 %v66, 18
    %v68 = vpop.permute.xlu0 %67
    %vm69 = vcmask 195728
    %70 = vst.msk [vmem:[#allocation0] sm:$0x1] %vm69, %v68
    %s71 = scalar_lea.vmem %s0, 2
    %v72 = vld [vmem:[%s71] sm:$0x1]
    %73 = vrot.lane.b32.xlu0 %v72, 12
    %v74 = vpop.permute.xlu0 %73
    %vm75 = vcmask 146528
    %76 = vst.msk [vmem:[#allocation0] sm:$0x1] %vm75, %v74
    %s77 = scalar_lea.vmem %s0, 1
    %v78 = vld [vmem:[%s77] sm:$0x1]
    %79 = vrot.lane.b32.xlu0 %v78, 6
    %v80 = vpop.permute.xlu0 %79
    %vm81 = vcmask 97328
    %82 = vst.msk [vmem:[#allocation0] sm:$0x1] %vm81, %v80
    %s84 = sshllo.u32 0, 1
    %v86 = vld [vmem:[#allocation0] sm:%s84]
    %s87 = sshllo.u32 0, 1
    %88 = vst [vmem:[%s1] sm:%s87] %v86

// kernel: tile.18
$region0: #{tile.18}
  #allocation0 [shape = 's32[1]{0}', space=sflag, size = 0x4, scoped, tag = 'scoped memory for tile.18']
  %s0 = inlined_call_operand.vmem [shape: f32[16], index: 0, kind: input, shape index: {}]
  %s1 = inlined_call_operand.vmem [shape: f32[5,16], index: 1, kind: output, shape index: {}]
  // Predicated region
  $region2: #{tile.18} parent=0 // pred_check
    _
  $region3: #{tile.18} parent=0 // pred_check_branch
    %3 = sbr.rel (0) target = $region5
  $region4: #{tile.18} parent=0 // pred_region
    _
  $region5: #{tile.18} parent=0 // pred_fallthru
    _
  %v4 = vld [vmem:[%s0] ss:$0 sm:$0xff]
  %5 = vst [vmem:[%s1] sm:$0xff] %v4

// kernel: tile.19
$region0: #{tile.19}
  %s0 = inlined_call_operand.vmem [shape: f32[5,16], index: 0, kind: input, shape index: {}]
  %s1 = inlined_call_operand.vmem [shape: f32[1,80], index: 1, kind: output, shape index: {}]
  $region1: #{tile.19} parent=0
    #allocation0 [shape = 'u8[4096]{0}', space=vmem, size = 0x1000, scoped, tag = 'scoped mem for output reshape']
    %v2 = vld [vmem:[%s0] sm:$0x1]
    %vm3 = vcmask 130048
    %4 = vst.msk [vmem:[#allocation0] sm:$0x1] %vm3, %v2
    %s5 = scalar_lea.vmem %s0, 4
    %v6 = vld [vmem:[%s5] sm:$0x1]
    %7 = vrot.lane.b32.xlu0 %v6, 64
    %v8 = vpop.permute.xlu0 %7
    %vm9 = vcmask 654848
    %10 = vst.msk [vmem:[#allocation0] sm:$0x1] %vm9, %v8
    %s11 = scalar_lea.vmem %s0, 3
    %v12 = vld [vmem:[%s11] sm:$0x1]
    %13 = vrot.lane.b32.xlu0 %v12, 48
    %v14 = vpop.permute.xlu0 %13
    %vm15 = vcmask 523648
    %16 = vst.msk [vmem:[#allocation0] sm:$0x1] %vm15, %v14
    %s17 = scalar_lea.vmem %s0, 2
    %v18 = vld [vmem:[%s17] sm:$0x1]
    %19 = vrot.lane.b32.xlu0 %v18, 32
    %v20 = vpop.permute.xlu0 %19
    %vm21 = vcmask 392448
    %22 = vst.msk [vmem:[#allocation0] sm:$0x1] %vm21, %v20
    %s23 = scalar_lea.vmem %s0, 1
    %v24 = vld [vmem:[%s23] sm:$0x1]
    %25 = vrot.lane.b32.xlu0 %v24, 16
    %v26 = vpop.permute.xlu0 %25
    %vm27 = vcmask 261248
    %28 = vst.msk [vmem:[#allocation0] sm:$0x1] %vm27, %v26
    %s30 = sshllo.u32 0, 1
    %v32 = vld [vmem:[#allocation0] sm:%s30]
    %s33 = sshllo.u32 0, 1
    %34 = vst [vmem:[%s1] sm:%s33] %v32

// kernel: simple_cnn_h2_forward.1
$region0: #{simple_cnn_h2_forward.1}
  #allocation0 [shape = 'u32[]', space=smem, size = 0x4, offset = 0x4, fixed_abs, tag = 'smem constant byte address 0x4 - core index']
  #allocation1 [shape = 'u32[144,128]{1,0:T(1,128)}', space=vmem, size = 0x12000, scoped, tag = 'internal scratch']
  %s0 = inlined_call_operand.smem [shape: u32[30], index: -1, kind: input, shape index: {}]
  %s1 = sld [smem:[%s0]]
  %s2 = scalar_lea.smem %s0, 1
  %s3 = sld [smem:[%s2]]
  %s4 = scalar_lea.smem %s0, 2
  %s5 = sld [smem:[%s4]]
  %s6 = scalar_lea.smem %s0, 3
  %s7 = sld [smem:[%s6]]
  %s8 = scalar_lea.smem %s0, 4
  %s9 = sld [smem:[%s8]]
  %s10 = scalar_lea.smem %s0, 5
  %s11 = sld [smem:[%s10]]
  %s12 = scalar_lea.smem %s0, 6
  %s13 = sld [smem:[%s12]]
  %s14 = scalar_lea.smem %s0, 7
  %s15 = sld [smem:[%s14]]
  %s16 = scalar_lea.smem %s0, 8
  %s17 = sld [smem:[%s16]]
  %s18 = scalar_lea.smem %s0, 9
  %s19 = sld [smem:[%s18]]
  %s20 = scalar_lea.smem %s0, 10
  %s21 = sld [smem:[%s20]]
  %s22 = scalar_lea.smem %s0, 11
  %s23 = sld [smem:[%s22]]
  %s24 = scalar_lea.smem %s0, 12
  %s25 = sld [smem:[%s24]]
  %s26 = scalar_lea.smem %s0, 13
  %s27 = sld [smem:[%s26]]
  %s28 = scalar_lea.smem %s0, 14
  %s29 = sld [smem:[%s28]]
  %s30 = scalar_lea.smem %s0, 15
  %s31 = sld [smem:[%s30]]
  %s32 = scalar_lea.smem %s0, 16
  %s33 = sld [smem:[%s32]]
  %s34 = scalar_lea.smem %s0, 17
  %s35 = sld [smem:[%s34]]
  %s36 = scalar_lea.smem %s0, 18
  %s37 = sld [smem:[%s36]]
  %s38 = scalar_lea.smem %s0, 19
  %s39 = sld [smem:[%s38]]
  %s40 = scalar_lea.smem %s0, 20
  %s41 = sld [smem:[%s40]]
  %s42 = scalar_lea.smem %s0, 21
  %s43 = sld [smem:[%s42]]
  %s44 = scalar_lea.smem %s0, 22
  %s45 = sld [smem:[%s44]]
  %s46 = scalar_lea.smem %s0, 23
  %s47 = sld [smem:[%s46]]
  %s48 = scalar_lea.smem %s0, 24
  %s49 = sld [smem:[%s48]]
  %s50 = scalar_lea.smem %s0, 25
  %s51 = sld [smem:[%s50]]
  %s52 = scalar_lea.smem %s0, 26
  %s53 = sld [smem:[%s52]]
  %s54 = scalar_lea.smem %s0, 27
  %s55 = sld [smem:[%s54]]
  %s56 = scalar_lea.smem %s0, 28
  %s57 = sld [smem:[%s56]]
  %s58 = scalar_lea.smem %s0, 29
  %s59 = sld [smem:[%s58]]
  %s60 = sld [smem:[#allocation0]]
  $region126: #{simple_cnn_h2_forward.1} parent=0
    _
  %s62 = ssub.s32 1, %s60
  %s63 = scalar_select 0, %s62, %s60
  $region1: #{simple_cnn_h2_forward.1} parent=0
    #allocation2 [shape = 'u8[1024]{0}', space=vmem, size = 0x400, scoped, tag = 'output window, operand 0, single buffered']
    #allocation3 [shape = 's32[1]{0}', space=sflag, size = 0x4, scoped, tag = 'scoped memory for simple_cnn_h2_forward.1']
    %64 = vsyncpa [#allocation3], 0
    // Predicated region
    $region2: #{simple_cnn_h2_forward.1} parent=1 // pred_check
      _
    $region3: #{simple_cnn_h2_forward.1} parent=1 // pred_check_branch
      %66 = sbr.rel (0) target = $region5
    $region4: #{simple_cnn_h2_forward.1} parent=1 // pred_region
      _
    $region5: #{simple_cnn_h2_forward.1} parent=1 // pred_fallthru
      _
    // Predicated region
    $region6: #{simple_cnn_h2_forward.1} parent=1 // pred_check
      _
    $region7: #{simple_cnn_h2_forward.1} parent=1 // pred_check_branch
      %68 = sbr.rel (0) target = $region9
    $region8: #{simple_cnn_h2_forward.1} parent=1 // pred_region
      _
    $region9: #{simple_cnn_h2_forward.1} parent=1 // pred_fallthru
      _
    // Predicated region
    $region10: #{simple_cnn_h2_forward.1} parent=1 // pred_check
      _
    $region11: #{simple_cnn_h2_forward.1} parent=1 // pred_check_branch
      %70 = sbr.rel (0) target = $region13
    $region12: #{simple_cnn_h2_forward.1} parent=1 // pred_region
      _
    $region13: #{simple_cnn_h2_forward.1} parent=1 // pred_fallthru
      _
    // Predicated region
    $region14: #{simple_cnn_h2_forward.1} parent=1 // pred_check
      _
    $region15: #{simple_cnn_h2_forward.1} parent=1 // pred_check_branch
      %72 = sbr.rel (0) target = $region17
    $region16: #{simple_cnn_h2_forward.1} parent=1 // pred_region
      _
    $region17: #{simple_cnn_h2_forward.1} parent=1 // pred_fallthru
      _
    // Predicated region
    $region18: #{simple_cnn_h2_forward.1} parent=1 // pred_check
      _
    $region19: #{simple_cnn_h2_forward.1} parent=1 // pred_check_branch
      %74 = sbr.rel (0) target = $region21
    $region20: #{simple_cnn_h2_forward.1} parent=1 // pred_region
      _
    $region21: #{simple_cnn_h2_forward.1} parent=1 // pred_fallthru
      _
    // Predicated region
    $region22: #{simple_cnn_h2_forward.1} parent=1 // pred_check
      _
    $region23: #{simple_cnn_h2_forward.1} parent=1 // pred_check_branch
      %76 = sbr.rel (0) target = $region25
    $region24: #{simple_cnn_h2_forward.1} parent=1 // pred_region
      _
    $region25: #{simple_cnn_h2_forward.1} parent=1 // pred_fallthru
      _
    // Predicated region
    $region26: #{simple_cnn_h2_forward.1} parent=1 // pred_check
      _
    $region27: #{simple_cnn_h2_forward.1} parent=1 // pred_check_branch
      %78 = sbr.rel (0) target = $region29
    $region28: #{simple_cnn_h2_forward.1} parent=1 // pred_region
      _
    $region29: #{simple_cnn_h2_forward.1} parent=1 // pred_fallthru
      _
    // Predicated region
    $region30: #{simple_cnn_h2_forward.1} parent=1 // pred_check
      _
    $region31: #{simple_cnn_h2_forward.1} parent=1 // pred_check_branch
      %80 = sbr.rel (0) target = $region33
    $region32: #{simple_cnn_h2_forward.1} parent=1 // pred_region
      _
    $region33: #{simple_cnn_h2_forward.1} parent=1 // pred_fallthru
      _
    // Predicated region
    $region34: #{simple_cnn_h2_forward.1} parent=1 // pred_check
      _
    $region35: #{simple_cnn_h2_forward.1} parent=1 // pred_check_branch
      %82 = sbr.rel (0) target = $region37
    $region36: #{simple_cnn_h2_forward.1} parent=1 // pred_region
      _
    $region37: #{simple_cnn_h2_forward.1} parent=1 // pred_fallthru
      _
    // Predicated region
    $region38: #{simple_cnn_h2_forward.1} parent=1 // pred_check
      _
    $region39: #{simple_cnn_h2_forward.1} parent=1 // pred_check_branch
      %84 = sbr.rel (0) target = $region41
    $region40: #{simple_cnn_h2_forward.1} parent=1 // pred_region
      _
    $region41: #{simple_cnn_h2_forward.1} parent=1 // pred_fallthru
      _
    // Predicated region
    $region42: #{simple_cnn_h2_forward.1} parent=1 // pred_check
      _
    $region43: #{simple_cnn_h2_forward.1} parent=1 // pred_check_branch
      %86 = sbr.rel (0) target = $region45
    $region44: #{simple_cnn_h2_forward.1} parent=1 // pred_region
      _
    $region45: #{simple_cnn_h2_forward.1} parent=1 // pred_fallthru
      _
    // Predicated region
    $region46: #{simple_cnn_h2_forward.1} parent=1 // pred_check
      _
    $region47: #{simple_cnn_h2_forward.1} parent=1 // pred_check_branch
      %88 = sbr.rel (0) target = $region49
    $region48: #{simple_cnn_h2_forward.1} parent=1 // pred_region
      _
    $region49: #{simple_cnn_h2_forward.1} parent=1 // pred_fallthru
      _
    // Predicated region
    $region50: #{simple_cnn_h2_forward.1} parent=1 // pred_check
      _
    $region51: #{simple_cnn_h2_forward.1} parent=1 // pred_check_branch
      %90 = sbr.rel (0) target = $region53
    $region52: #{simple_cnn_h2_forward.1} parent=1 // pred_region
      _
    $region53: #{simple_cnn_h2_forward.1} parent=1 // pred_fallthru
      _
    // Predicated region
    $region54: #{simple_cnn_h2_forward.1} parent=1 // pred_check
      _
    $region55: #{simple_cnn_h2_forward.1} parent=1 // pred_check_branch
      %92 = sbr.rel (0) target = $region57
    $region56: #{simple_cnn_h2_forward.1} parent=1 // pred_region
      _
    $region57: #{simple_cnn_h2_forward.1} parent=1 // pred_fallthru
      _
    // Predicated region
    $region58: #{simple_cnn_h2_forward.1} parent=1 // pred_check
      _
    $region59: #{simple_cnn_h2_forward.1} parent=1 // pred_check_branch
      %94 = sbr.rel (0) target = $region61
    $region60: #{simple_cnn_h2_forward.1} parent=1 // pred_region
      _
    $region61: #{simple_cnn_h2_forward.1} parent=1 // pred_fallthru
      _
    // Predicated region
    $region62: #{simple_cnn_h2_forward.1} parent=1 // pred_check
      _
    $region63: #{simple_cnn_h2_forward.1} parent=1 // pred_check_branch
      %96 = sbr.rel (0) target = $region65
    $region64: #{simple_cnn_h2_forward.1} parent=1 // pred_region
      _
    $region65: #{simple_cnn_h2_forward.1} parent=1 // pred_fallthru
      _
    // Predicated region
    $region66: #{simple_cnn_h2_forward.1} parent=1 // pred_check
      _
    $region67: #{simple_cnn_h2_forward.1} parent=1 // pred_check_branch
      %98 = sbr.rel (0) target = $region69
    $region68: #{simple_cnn_h2_forward.1} parent=1 // pred_region
      _
    $region69: #{simple_cnn_h2_forward.1} parent=1 // pred_fallthru
      _
    // Predicated region
    $region70: #{simple_cnn_h2_forward.1} parent=1 // pred_check
      _
    $region71: #{simple_cnn_h2_forward.1} parent=1 // pred_check_branch
      %100 = sbr.rel (0) target = $region73
    $region72: #{simple_cnn_h2_forward.1} parent=1 // pred_region
      _
    $region73: #{simple_cnn_h2_forward.1} parent=1 // pred_fallthru
      _
    // Predicated region
    $region74: #{simple_cnn_h2_forward.1} parent=1 // pred_check
      _
    $region75: #{simple_cnn_h2_forward.1} parent=1 // pred_check_branch
      %102 = sbr.rel (0) target = $region77
    $region76: #{simple_cnn_h2_forward.1} parent=1 // pred_region
      _
    $region77: #{simple_cnn_h2_forward.1} parent=1 // pred_fallthru
      _
    // Predicated region
    $region78: #{simple_cnn_h2_forward.1} parent=1 // pred_check
      _
    $region79: #{simple_cnn_h2_forward.1} parent=1 // pred_check_branch
      %104 = sbr.rel (0) target = $region81
    $region80: #{simple_cnn_h2_forward.1} parent=1 // pred_region
      _
    $region81: #{simple_cnn_h2_forward.1} parent=1 // pred_fallthru
      _
    // Predicated region
    $region82: #{simple_cnn_h2_forward.1} parent=1 // pred_check
      _
    $region83: #{simple_cnn_h2_forward.1} parent=1 // pred_check_branch
      %106 = sbr.rel (0) target = $region85
    $region84: #{simple_cnn_h2_forward.1} parent=1 // pred_region
      _
    $region85: #{simple_cnn_h2_forward.1} parent=1 // pred_fallthru
      _
    // Predicated region
    $region86: #{simple_cnn_h2_forward.1} parent=1 // pred_check
      _
    $region87: #{simple_cnn_h2_forward.1} parent=1 // pred_check_branch
      %108 = sbr.rel (0) target = $region89
    $region88: #{simple_cnn_h2_forward.1} parent=1 // pred_region
      _
    $region89: #{simple_cnn_h2_forward.1} parent=1 // pred_fallthru
      _
    // Predicated region
    $region90: #{simple_cnn_h2_forward.1} parent=1 // pred_check
      _
    $region91: #{simple_cnn_h2_forward.1} parent=1 // pred_check_branch
      %110 = sbr.rel (0) target = $region93
    $region92: #{simple_cnn_h2_forward.1} parent=1 // pred_region
      _
    $region93: #{simple_cnn_h2_forward.1} parent=1 // pred_fallthru
      _
    // Predicated region
    $region94: #{simple_cnn_h2_forward.1} parent=1 // pred_check
      _
    $region95: #{simple_cnn_h2_forward.1} parent=1 // pred_check_branch
      %112 = sbr.rel (0) target = $region97
    $region96: #{simple_cnn_h2_forward.1} parent=1 // pred_region
      _
    $region97: #{simple_cnn_h2_forward.1} parent=1 // pred_fallthru
      _
    // Predicated region
    $region98: #{simple_cnn_h2_forward.1} parent=1 // pred_check
      _
    $region99: #{simple_cnn_h2_forward.1} parent=1 // pred_check_branch
      %114 = sbr.rel (0) target = $region101
    $region100: #{simple_cnn_h2_forward.1} parent=1 // pred_region
      _
    $region101: #{simple_cnn_h2_forward.1} parent=1 // pred_fallthru
      _
    // Predicated region
    $region102: #{simple_cnn_h2_forward.1} parent=1 // pred_check
      _
    $region103: #{simple_cnn_h2_forward.1} parent=1 // pred_check_branch
      %116 = sbr.rel (0) target = $region105
    $region104: #{simple_cnn_h2_forward.1} parent=1 // pred_region
      _
    $region105: #{simple_cnn_h2_forward.1} parent=1 // pred_fallthru
      _
    // Predicated region
    $region106: #{simple_cnn_h2_forward.1} parent=1 // pred_check
      _
    $region107: #{simple_cnn_h2_forward.1} parent=1 // pred_check_branch
      %118 = sbr.rel (0) target = $region109
    $region108: #{simple_cnn_h2_forward.1} parent=1 // pred_region
      _
    $region109: #{simple_cnn_h2_forward.1} parent=1 // pred_fallthru
      _
    // Predicated region
    $region110: #{simple_cnn_h2_forward.1} parent=1 // pred_check
      _
    $region111: #{simple_cnn_h2_forward.1} parent=1 // pred_check_branch
      %120 = sbr.rel (0) target = $region113
    $region112: #{simple_cnn_h2_forward.1} parent=1 // pred_region
      _
    $region113: #{simple_cnn_h2_forward.1} parent=1 // pred_fallthru
      _
    // Predicated region
    $region114: #{simple_cnn_h2_forward.1} parent=1 // pred_check
      _
    $region115: #{simple_cnn_h2_forward.1} parent=1 // pred_check_branch
      %122 = sbr.rel (0) target = $region117
    $region116: #{simple_cnn_h2_forward.1} parent=1 // pred_region
      _
    $region117: #{simple_cnn_h2_forward.1} parent=1 // pred_fallthru
      _
    %v123 = vld [vmem:[%s31] sm:$0x1]
    %v124 = vld [vmem:[%s1] sm:$0xff]
    %v125 = vld [vmem:[%s1 + $0x8] sm:$0xff]
    %v126 = vld [vmem:[%s1 + $0x10] sm:$0xff]
    %v127 = vld [vmem:[%s1 + $0x18] sm:$0xff]
    %v128 = vld [vmem:[%s3] sm:$0xff]
    %v129 = vld [vmem:[%s3 + $0x8] sm:$0xff]
    %v130 = vld [vmem:[%s3 + $0x10] sm:$0xff]
    %v131 = vld [vmem:[%s3 + $0x18] sm:$0xff]
    %v132 = vld [vmem:[%s3 + $0x20] sm:$0xff]
    %v133 = vld [vmem:[%s3 + $0x28] sm:$0xff]
    %v134 = vld [vmem:[%s3 + $0x30] sm:$0xff]
    %v135 = vld [vmem:[%s3 + $0x38] sm:$0xff]
    %v136 = vld [vmem:[%s3 + $0x40] sm:$0xff]
    %v137 = vld [vmem:[%s3 + $0x48] sm:$0xff]
    %v138 = vld [vmem:[%s3 + $0x50] sm:$0xff]
    %v139 = vld [vmem:[%s3 + $0x58] sm:$0xff]
    %v140 = vld [vmem:[%s3 + $0x60] sm:$0xff]
    %v141 = vld [vmem:[%s3 + $0x68] sm:$0xff]
    %v142 = vld [vmem:[%s3 + $0x70] sm:$0xff]
    %v143 = vld [vmem:[%s3 + $0x78] sm:$0xff]
    %v144 = vld [vmem:[%s3 + $0x80] sm:$0xff]
    %v145 = vld [vmem:[%s3 + $0x88] sm:$0xff]
    %v146 = vld [vmem:[%s3 + $0x90] sm:$0xff]
    %v147 = vld [vmem:[%s3 + $0x98] sm:$0xff]
    %v148 = vld [vmem:[%s3 + $0xa0] sm:$0xff]
    %v149 = vld [vmem:[%s3 + $0xa8] sm:$0xff]
    %v150 = vld [vmem:[%s3 + $0xb0] sm:$0xff]
    %v151 = vld [vmem:[%s3 + $0xb8] sm:$0xff]
    %s152 = scalar_lea.vmem %s3, 192
    %v153 = vld [vmem:[%s152] sm:$0xff]
    %v154 = vld [vmem:[%s152 + $0x8] sm:$0xff]
    %v155 = vld [vmem:[%s152 + $0x10] sm:$0xff]
    %v156 = vld [vmem:[%s152 + $0x18] sm:$0xff]
    %v157 = vld [vmem:[%s152 + $0x20] sm:$0xff]
    %v158 = vld [vmem:[%s152 + $0x28] sm:$0xff]
    %v159 = vld [vmem:[%s152 + $0x30] sm:$0xff]
    %v160 = vld [vmem:[%s152 + $0x38] sm:$0xff]
    %v161 = vld [vmem:[%s152 + $0x40] sm:$0xff]
    %v162 = vld [vmem:[%s152 + $0x48] sm:$0xff]
    %v163 = vld [vmem:[%s152 + $0x50] sm:$0xff]
    %v164 = vld [vmem:[%s152 + $0x58] sm:$0xff]
    %v165 = vld [vmem:[%s152 + $0x60] sm:$0xff]
    %v166 = vld [vmem:[%s152 + $0x68] sm:$0xff]
    %v167 = vld [vmem:[%s152 + $0x70] sm:$0xff]
    %v168 = vld [vmem:[%s152 + $0x78] sm:$0xff]
    %v169 = vld [vmem:[%s152 + $0x80] sm:$0xff]
    %v170 = vld [vmem:[%s152 + $0x88] sm:$0xff]
    %v171 = vld [vmem:[%s152 + $0x90] sm:$0xff]
    %v172 = vld [vmem:[%s152 + $0x98] sm:$0xff]
    %v173 = vld [vmem:[%s152 + $0xa0] sm:$0xff]
    %v174 = vld [vmem:[%s152 + $0xa8] sm:$0xff]
    %v175 = vld [vmem:[%s152 + $0xb0] sm:$0xff]
    %v176 = vld [vmem:[%s152 + $0xb8] sm:$0xff]
    %vm181 = vcmask 1046528
    %v182 = vrot.slane %v124, 1
    %v183 = vrot.slane %v125, 1
    %v184 = vsel %vm181, %v182, %v183
    %v185 = vrot.slane %v126, 1
    %v186 = vsel %vm181, %v183, %v185
    %v187 = vrot.slane %v127, 1
    %v188 = vsel %vm181, %v185, %v187
    %vm189 = vcmask 785408
    %v190 = vsel %vm189, %v184, 0
    %v192 = vsel %vm189, %v186, 0
    %v194 = vsel %vm189, %v188, 0
    %v196 = vsel %vm189, %v187, 0
    %198 = vmatprep.subr.mxu0 %v154
    %199 = vmatpush1.msra.mxu0 %v153
    %200 = vmatprep.subr.mxu0 %v156
    %201 = vmatpush1.msra.mxu0 %v155
    %202 = vmatprep.subr.mxu0 %v158
    %203 = vmatpush1.msra.mxu0 %v157
    %204 = vmatprep.subr.mxu0 %v160
    %205 = vmatpush1.msra.mxu0 %v159
    %206 = vmatprep.subr.mxu0 %v162
    %207 = vmatpush1.msra.mxu0 %v161
    %208 = vmatprep.subr.mxu0 %v164
    %209 = vmatpush1.msra.mxu0 %v163
    %210 = vmatprep.subr.mxu0 %v166
    %211 = vmatpush1.msra.mxu0 %v165
    %212 = vmatprep.subr.mxu0 %v168
    %213 = vmatpush1.msra.mxu0 %v167
    %214 = vmatprep.subr.mxu0 %v170
    %215 = vmatpush1.msra.mxu0 %v169
    %216 = vmatprep.subr.mxu0 %v172
    %217 = vmatpush1.msra.mxu0 %v171
    %218 = vmatprep.subr.mxu0 %v174
    %219 = vmatpush1.msra.mxu0 %v173
    %220 = vmatprep.subr.mxu0 %v176
    %221 = vmatpush1.msra.mxu0 %v175
    %222 = vmatprep.subr.mxu0 0.0
    %223 = vmatpush1.msra.mxu0 0.0
    %224 = vmatprep.subr.mxu0 0.0
    %225 = vmatpush1.msra.mxu0 0.0
    %226 = vmatprep.subr.mxu0 0.0
    %227 = vmatpush1.msra.mxu0 0.0
    %228 = vmatprep.subr.mxu0 0.0
    %229 = vmatpush1.msra.mxu0 0.0
    %230 = vmatprep.subr.mxu0 0.0
    %231 = vmatpush1.msra.mxu0 0.0
    %232 = vmatprep.subr.mxu0 0.0
    %233 = vmatpush1.msra.mxu0 0.0
    %234 = vmatprep.subr.mxu0 0.0
    %235 = vmatpush1.msra.mxu0 0.0
    %236 = vmatprep.subr.mxu0 0.0
    %237 = vmatpush1.msra.mxu0 0.0
    %238 = vmatprep.subr.mxu0 0.0
    %239 = vmatpush1.msra.mxu0 0.0
    %240 = vmatprep.subr.mxu0 0.0
    %241 = vmatpush1.msra.mxu0 0.0
    %242 = vmatprep.subr.mxu0 0.0
    %243 = vmatpush1.msra.mxu0 0.0
    %244 = vmatprep.subr.mxu0 0.0
    %245 = vmatpush1.msra.mxu0 0.0
    %246 = vmatprep.subr.mxu0 0.0
    %247 = vmatpush1.msra.mxu0 0.0
    %248 = vmatprep.subr.mxu0 0.0
    %249 = vmatpush1.msra.mxu0 0.0
    %250 = vmatprep.subr.mxu0 0.0
    %251 = vmatpush1.msra.mxu0 0.0
    %252 = vmatprep.subr.mxu0 0.0
    %253 = vmatpush1.msra.mxu0 0.0
    %254 = vmatprep.subr.mxu0 0.0
    %255 = vmatpush1.msra.mxu0 0.0
    %256 = vmatprep.subr.mxu0 0.0
    %257 = vmatpush1.msra.mxu0 0.0
    %258 = vmatprep.subr.mxu0 0.0
    %259 = vmatpush1.msra.mxu0 0.0
    %260 = vmatprep.subr.mxu0 0.0
    %261 = vmatpush1.msra.mxu0 0.0
    %262 = vmatprep.mubr.f32.mxu0 0.0
    %263 = vmatmul.mubr.f32.gmra.mrb[0].mxu0 %v190
    %v264 = vpop.f32.mrb[0].mxu0
    %v265 = vadd.f32 0.0, %v264
    %v266 = vpop.f32.mrb[0].mxu0
    %v267 = vadd.f32 0.0, %v266
    %268 = vmatprep.mubr.f32.mxu0 0.0
    %269 = vmatmul.mubr.f32.gmra.mrb[0].mxu0 %v192
    %v270 = vpop.f32.mrb[0].mxu0
    %v271 = vadd.f32 0.0, %v270
    %v272 = vpop.f32.mrb[0].mxu0
    %v273 = vadd.f32 0.0, %v272
    %274 = vmatprep.mubr.f32.mxu0 0.0
    %275 = vmatmul.mubr.f32.gmra.mrb[0].mxu0 %v194
    %v276 = vpop.f32.mrb[0].mxu0
    %v277 = vadd.f32 0.0, %v276
    %v278 = vpop.f32.mrb[0].mxu0
    %v279 = vadd.f32 0.0, %v278
    %280 = vmatprep.mubr.f32.mxu0 0.0
    %281 = vmatmul.mubr.f32.gmra.mrb[0].mxu0 %v196
    %v282 = vpop.f32.mrb[0].mxu0
    %v283 = vadd.f32 0.0, %v282
    %v284 = vpop.f32.mrb[0].mxu0
    %v285 = vadd.f32 0.0, %v284
    %286 = vdwg.mxu0
    %v287 = vsel %vm189, %v124, 0
    %v289 = vsel %vm189, %v125, 0
    %v291 = vsel %vm189, %v126, 0
    %v293 = vsel %vm189, %v127, 0
    %295 = vmatprep.subr.mxu0 %v129
    %296 = vmatpush1.msra.mxu0 %v128
    %297 = vmatprep.subr.mxu0 %v131
    %298 = vmatpush1.msra.mxu0 %v130
    %299 = vmatprep.subr.mxu0 %v133
    %300 = vmatpush1.msra.mxu0 %v132
    %301 = vmatprep.subr.mxu0 %v135
    %302 = vmatpush1.msra.mxu0 %v134
    %303 = vmatprep.subr.mxu0 %v137
    %304 = vmatpush1.msra.mxu0 %v136
    %305 = vmatprep.subr.mxu0 %v139
    %306 = vmatpush1.msra.mxu0 %v138
    %307 = vmatprep.subr.mxu0 %v141
    %308 = vmatpush1.msra.mxu0 %v140
    %309 = vmatprep.subr.mxu0 %v143
    %310 = vmatpush1.msra.mxu0 %v142
    %311 = vmatprep.subr.mxu0 %v145
    %312 = vmatpush1.msra.mxu0 %v144
    %313 = vmatprep.subr.mxu0 %v147
    %314 = vmatpush1.msra.mxu0 %v146
    %315 = vmatprep.subr.mxu0 %v149
    %316 = vmatpush1.msra.mxu0 %v148
    %317 = vmatprep.subr.mxu0 %v151
    %318 = vmatpush1.msra.mxu0 %v150
    %319 = vmatprep.subr.mxu0 0.0
    %320 = vmatpush1.msra.mxu0 0.0
    %321 = vmatprep.subr.mxu0 0.0
    %322 = vmatpush1.msra.mxu0 0.0
    %323 = vmatprep.subr.mxu0 0.0
    %324 = vmatpush1.msra.mxu0 0.0
    %325 = vmatprep.subr.mxu0 0.0
    %326 = vmatpush1.msra.mxu0 0.0
    %327 = vmatprep.subr.mxu0 0.0
    %328 = vmatpush1.msra.mxu0 0.0
    %329 = vmatprep.subr.mxu0 0.0
    %330 = vmatpush1.msra.mxu0 0.0
    %331 = vmatprep.subr.mxu0 0.0
    %332 = vmatpush1.msra.mxu0 0.0
    %333 = vmatprep.subr.mxu0 0.0
    %334 = vmatpush1.msra.mxu0 0.0
    %335 = vmatprep.subr.mxu0 0.0
    %336 = vmatpush1.msra.mxu0 0.0
    %337 = vmatprep.subr.mxu0 0.0
    %338 = vmatpush1.msra.mxu0 0.0
    %339 = vmatprep.subr.mxu0 0.0
    %340 = vmatpush1.msra.mxu0 0.0
    %341 = vmatprep.subr.mxu0 0.0
    %342 = vmatpush1.msra.mxu0 0.0
    %343 = vmatprep.subr.mxu0 0.0
    %344 = vmatpush1.msra.mxu0 0.0
    %345 = vmatprep.subr.mxu0 0.0
    %346 = vmatpush1.msra.mxu0 0.0
    %347 = vmatprep.subr.mxu0 0.0
    %348 = vmatpush1.msra.mxu0 0.0
    %349 = vmatprep.subr.mxu0 0.0
    %350 = vmatpush1.msra.mxu0 0.0
    %351 = vmatprep.subr.mxu0 0.0
    %352 = vmatpush1.msra.mxu0 0.0
    %353 = vmatprep.subr.mxu0 0.0
    %354 = vmatpush1.msra.mxu0 0.0
    %355 = vmatprep.subr.mxu0 0.0
    %356 = vmatpush1.msra.mxu0 0.0
    %357 = vmatprep.subr.mxu0 0.0
    %358 = vmatpush1.msra.mxu0 0.0
    %359 = vmatprep.mubr.f32.mxu0 0.0
    %360 = vmatmul.mubr.f32.gmra.mrb[0].mxu0 %v287
    %v361 = vpop.f32.mrb[0].mxu0
    %v362 = vadd.f32 %v265, %v361
    %v363 = vpop.f32.mrb[0].mxu0
    %v364 = vadd.f32 %v267, %v363
    %365 = vmatprep.mubr.f32.mxu0 0.0
    %366 = vmatmul.mubr.f32.gmra.mrb[0].mxu0 %v289
    %v367 = vpop.f32.mrb[0].mxu0
    %v368 = vadd.f32 %v271, %v367
    %v369 = vpop.f32.mrb[0].mxu0
    %v370 = vadd.f32 %v273, %v369
    %371 = vmatprep.mubr.f32.mxu0 0.0
    %372 = vmatmul.mubr.f32.gmra.mrb[0].mxu0 %v291
    %v373 = vpop.f32.mrb[0].mxu0
    %v374 = vadd.f32 %v277, %v373
    %v375 = vpop.f32.mrb[0].mxu0
    %v376 = vadd.f32 %v279, %v375
    %377 = vmatprep.mubr.f32.mxu0 0.0
    %378 = vmatmul.mubr.f32.gmra.mrb[0].mxu0 %v293
    %v379 = vpop.f32.mrb[0].mxu0
    %v380 = vadd.f32 %v283, %v379
    %v381 = vpop.f32.mrb[0].mxu0
    %v382 = vadd.f32 %v285, %v381
    %383 = vdwg.mxu0
    %s384 = scalar_lea.vmem %s3, 384
    %v385 = vld [vmem:[%s384] sm:$0xff]
    %v386 = vld [vmem:[%s384 + $0x8] sm:$0xff]
    %v387 = vld [vmem:[%s384 + $0x10] sm:$0xff]
    %v388 = vld [vmem:[%s384 + $0x18] sm:$0xff]
    %v389 = vld [vmem:[%s384 + $0x20] sm:$0xff]
    %v390 = vld [vmem:[%s384 + $0x28] sm:$0xff]
    %v391 = vld [vmem:[%s384 + $0x30] sm:$0xff]
    %v392 = vld [vmem:[%s384 + $0x38] sm:$0xff]
    %v393 = vld [vmem:[%s384 + $0x40] sm:$0xff]
    %v394 = vld [vmem:[%s384 + $0x48] sm:$0xff]
    %v395 = vld [vmem:[%s384 + $0x50] sm:$0xff]
    %v396 = vld [vmem:[%s384 + $0x58] sm:$0xff]
    %v397 = vld [vmem:[%s384 + $0x60] sm:$0xff]
    %v398 = vld [vmem:[%s384 + $0x68] sm:$0xff]
    %v399 = vld [vmem:[%s384 + $0x70] sm:$0xff]
    %v400 = vld [vmem:[%s384 + $0x78] sm:$0xff]
    %v401 = vld [vmem:[%s384 + $0x80] sm:$0xff]
    %v402 = vld [vmem:[%s384 + $0x88] sm:$0xff]
    %v403 = vld [vmem:[%s384 + $0x90] sm:$0xff]
    %v404 = vld [vmem:[%s384 + $0x98] sm:$0xff]
    %v405 = vld [vmem:[%s384 + $0xa0] sm:$0xff]
    %v406 = vld [vmem:[%s384 + $0xa8] sm:$0xff]
    %v407 = vld [vmem:[%s384 + $0xb0] sm:$0xff]
    %v408 = vld [vmem:[%s384 + $0xb8] sm:$0xff]
    %vm409 = vcmask 1045504
    %v410 = vrot.slane %v124, 2
    %v411 = vrot.slane %v125, 2
    %v412 = vsel %vm409, %v410, %v411
    %v413 = vrot.slane %v126, 2
    %v414 = vsel %vm409, %v411, %v413
    %v415 = vrot.slane %v127, 2
    %v416 = vsel %vm409, %v413, %v415
    %v417 = vsel %vm189, %v412, 0
    %v419 = vsel %vm189, %v414, 0
    %v421 = vsel %vm189, %v416, 0
    %v423 = vsel %vm189, %v415, 0
    %425 = vmatprep.subr.mxu0 %v386
    %426 = vmatpush1.msra.mxu0 %v385
    %427 = vmatprep.subr.mxu0 %v388
    %428 = vmatpush1.msra.mxu0 %v387
    %429 = vmatprep.subr.mxu0 %v390
    %430 = vmatpush1.msra.mxu0 %v389
    %431 = vmatprep.subr.mxu0 %v392
    %432 = vmatpush1.msra.mxu0 %v391
    %433 = vmatprep.subr.mxu0 %v394
    %434 = vmatpush1.msra.mxu0 %v393
    %435 = vmatprep.subr.mxu0 %v396
    %436 = vmatpush1.msra.mxu0 %v395
    %437 = vmatprep.subr.mxu0 %v398
    %438 = vmatpush1.msra.mxu0 %v397
    %439 = vmatprep.subr.mxu0 %v400
    %440 = vmatpush1.msra.mxu0 %v399
    %441 = vmatprep.subr.mxu0 %v402
    %442 = vmatpush1.msra.mxu0 %v401
    %443 = vmatprep.subr.mxu0 %v404
    %444 = vmatpush1.msra.mxu0 %v403
    %445 = vmatprep.subr.mxu0 %v406
    %446 = vmatpush1.msra.mxu0 %v405
    %447 = vmatprep.subr.mxu0 %v408
    %448 = vmatpush1.msra.mxu0 %v407
    %449 = vmatprep.subr.mxu0 0.0
    %450 = vmatpush1.msra.mxu0 0.0
    %451 = vmatprep.subr.mxu0 0.0
    %452 = vmatpush1.msra.mxu0 0.0
    %453 = vmatprep.subr.mxu0 0.0
    %454 = vmatpush1.msra.mxu0 0.0
    %455 = vmatprep.subr.mxu0 0.0
    %456 = vmatpush1.msra.mxu0 0.0
    %457 = vmatprep.subr.mxu0 0.0
    %458 = vmatpush1.msra.mxu0 0.0
    %459 = vmatprep.subr.mxu0 0.0
    %460 = vmatpush1.msra.mxu0 0.0
    %461 = vmatprep.subr.mxu0 0.0
    %462 = vmatpush1.msra.mxu0 0.0
    %463 = vmatprep.subr.mxu0 0.0
    %464 = vmatpush1.msra.mxu0 0.0
    %465 = vmatprep.subr.mxu0 0.0
    %466 = vmatpush1.msra.mxu0 0.0
    %467 = vmatprep.subr.mxu0 0.0
    %468 = vmatpush1.msra.mxu0 0.0
    %469 = vmatprep.subr.mxu0 0.0
    %470 = vmatpush1.msra.mxu0 0.0
    %471 = vmatprep.subr.mxu0 0.0
    %472 = vmatpush1.msra.mxu0 0.0
    %473 = vmatprep.subr.mxu0 0.0
    %474 = vmatpush1.msra.mxu0 0.0
    %475 = vmatprep.subr.mxu0 0.0
    %476 = vmatpush1.msra.mxu0 0.0
    %477 = vmatprep.subr.mxu0 0.0
    %478 = vmatpush1.msra.mxu0 0.0
    %479 = vmatprep.subr.mxu0 0.0
    %480 = vmatpush1.msra.mxu0 0.0
    %481 = vmatprep.subr.mxu0 0.0
    %482 = vmatpush1.msra.mxu0 0.0
    %483 = vmatprep.subr.mxu0 0.0
    %484 = vmatpush1.msra.mxu0 0.0
    %485 = vmatprep.subr.mxu0 0.0
    %486 = vmatpush1.msra.mxu0 0.0
    %487 = vmatprep.subr.mxu0 0.0
    %488 = vmatpush1.msra.mxu0 0.0
    %489 = vmatprep.mubr.f32.mxu0 0.0
    %490 = vmatmul.mubr.f32.gmra.mrb[0].mxu0 %v417
    %v491 = vpop.f32.mrb[0].mxu0
    %v492 = vadd.f32 0.0, %v491
    %v493 = vpop.f32.mrb[0].mxu0
    %v494 = vadd.f32 0.0, %v493
    %495 = vmatprep.mubr.f32.mxu0 0.0
    %496 = vmatmul.mubr.f32.gmra.mrb[0].mxu0 %v419
    %v497 = vpop.f32.mrb[0].mxu0
    %v498 = vadd.f32 0.0, %v497
    %v499 = vpop.f32.mrb[0].mxu0
    %v500 = vadd.f32 0.0, %v499
    %501 = vmatprep.mubr.f32.mxu0 0.0
    %502 = vmatmul.mubr.f32.gmra.mrb[0].mxu0 %v421
    %v503 = vpop.f32.mrb[0].mxu0
    %v504 = vadd.f32 0.0, %v503
    %v505 = vpop.f32.mrb[0].mxu0
    %v506 = vadd.f32 0.0, %v505
    %507 = vmatprep.mubr.f32.mxu0 0.0
    %508 = vmatmul.mubr.f32.gmra.mrb[0].mxu0 %v423
    %v509 = vpop.f32.mrb[0].mxu0
    %v510 = vadd.f32 0.0, %v509
    %v511 = vpop.f32.mrb[0].mxu0
    %v512 = vadd.f32 0.0, %v511
    %513 = vdwg.mxu0
    %v514 = vadd.f32 %v362, %v492
    %v515 = vadd.f32 %v364, %v494
    %v516 = vadd.f32 %v368, %v498
    %v517 = vadd.f32 %v370, %v500
    %v518 = vadd.f32 %v374, %v504
    %v519 = vadd.f32 %v376, %v506
    %v520 = vadd.f32 %v380, %v510
    %v521 = vadd.f32 %v382, %v512
    %s522 = scalar_lea.vmem %s3, 576
    %v523 = vld [vmem:[%s522] sm:$0xff]
    %v524 = vld [vmem:[%s522 + $0x8] sm:$0xff]
    %v525 = vld [vmem:[%s522 + $0x10] sm:$0xff]
    %v526 = vld [vmem:[%s522 + $0x18] sm:$0xff]
    %v527 = vld [vmem:[%s522 + $0x20] sm:$0xff]
    %v528 = vld [vmem:[%s522 + $0x28] sm:$0xff]
    %v529 = vld [vmem:[%s522 + $0x30] sm:$0xff]
    %v530 = vld [vmem:[%s522 + $0x38] sm:$0xff]
    %v531 = vld [vmem:[%s522 + $0x40] sm:$0xff]
    %v532 = vld [vmem:[%s522 + $0x48] sm:$0xff]
    %v533 = vld [vmem:[%s522 + $0x50] sm:$0xff]
    %v534 = vld [vmem:[%s522 + $0x58] sm:$0xff]
    %v535 = vld [vmem:[%s522 + $0x60] sm:$0xff]
    %v536 = vld [vmem:[%s522 + $0x68] sm:$0xff]
    %v537 = vld [vmem:[%s522 + $0x70] sm:$0xff]
    %v538 = vld [vmem:[%s522 + $0x78] sm:$0xff]
    %v539 = vld [vmem:[%s522 + $0x80] sm:$0xff]
    %v540 = vld [vmem:[%s522 + $0x88] sm:$0xff]
    %v541 = vld [vmem:[%s522 + $0x90] sm:$0xff]
    %v542 = vld [vmem:[%s522 + $0x98] sm:$0xff]
    %v543 = vld [vmem:[%s522 + $0xa0] sm:$0xff]
    %v544 = vld [vmem:[%s522 + $0xa8] sm:$0xff]
    %v545 = vld [vmem:[%s522 + $0xb0] sm:$0xff]
    %v546 = vld [vmem:[%s522 + $0xb8] sm:$0xff]
    %vm547 = vcmask 1044480
    %v548 = vrot.slane %v124, 3
    %v549 = vrot.slane %v125, 3
    %v550 = vsel %vm547, %v548, %v549
    %v551 = vrot.slane %v126, 3
    %v552 = vsel %vm547, %v549, %v551
    %v553 = vrot.slane %v127, 3
    %v554 = vsel %vm547, %v551, %v553
    %v555 = vsel %vm189, %v550, 0
    %v557 = vsel %vm189, %v552, 0
    %v559 = vsel %vm189, %v554, 0
    %v561 = vsel %vm189, %v553, 0
    %563 = vmatprep.subr.mxu0 %v524
    %564 = vmatpush1.msra.mxu0 %v523
    %565 = vmatprep.subr.mxu0 %v526
    %566 = vmatpush1.msra.mxu0 %v525
    %567 = vmatprep.subr.mxu0 %v528
    %568 = vmatpush1.msra.mxu0 %v527
    %569 = vmatprep.subr.mxu0 %v530
    %570 = vmatpush1.msra.mxu0 %v529
    %571 = vmatprep.subr.mxu0 %v532
    %572 = vmatpush1.msra.mxu0 %v531
    %573 = vmatprep.subr.mxu0 %v534
    %574 = vmatpush1.msra.mxu0 %v533
    %575 = vmatprep.subr.mxu0 %v536
    %576 = vmatpush1.msra.mxu0 %v535
    %577 = vmatprep.subr.mxu0 %v538
    %578 = vmatpush1.msra.mxu0 %v537
    %579 = vmatprep.subr.mxu0 %v540
    %580 = vmatpush1.msra.mxu0 %v539
    %581 = vmatprep.subr.mxu0 %v542
    %582 = vmatpush1.msra.mxu0 %v541
    %583 = vmatprep.subr.mxu0 %v544
    %584 = vmatpush1.msra.mxu0 %v543
    %585 = vmatprep.subr.mxu0 %v546
    %586 = vmatpush1.msra.mxu0 %v545
    %587 = vmatprep.subr.mxu0 0.0
    %588 = vmatpush1.msra.mxu0 0.0
    %589 = vmatprep.subr.mxu0 0.0
    %590 = vmatpush1.msra.mxu0 0.0
    %591 = vmatprep.subr.mxu0 0.0
    %592 = vmatpush1.msra.mxu0 0.0
    %593 = vmatprep.subr.mxu0 0.0
    %594 = vmatpush1.msra.mxu0 0.0
    %595 = vmatprep.subr.mxu0 0.0
    %596 = vmatpush1.msra.mxu0 0.0
    %597 = vmatprep.subr.mxu0 0.0
    %598 = vmatpush1.msra.mxu0 0.0
    %599 = vmatprep.subr.mxu0 0.0
    %600 = vmatpush1.msra.mxu0 0.0
    %601 = vmatprep.subr.mxu0 0.0
    %602 = vmatpush1.msra.mxu0 0.0
    %603 = vmatprep.subr.mxu0 0.0
    %604 = vmatpush1.msra.mxu0 0.0
    %605 = vmatprep.subr.mxu0 0.0
    %606 = vmatpush1.msra.mxu0 0.0
    %607 = vmatprep.subr.mxu0 0.0
    %608 = vmatpush1.msra.mxu0 0.0
    %609 = vmatprep.subr.mxu0 0.0
    %610 = vmatpush1.msra.mxu0 0.0
    %611 = vmatprep.subr.mxu0 0.0
    %612 = vmatpush1.msra.mxu0 0.0
    %613 = vmatprep.subr.mxu0 0.0
    %614 = vmatpush1.msra.mxu0 0.0
    %615 = vmatprep.subr.mxu0 0.0
    %616 = vmatpush1.msra.mxu0 0.0
    %617 = vmatprep.subr.mxu0 0.0
    %618 = vmatpush1.msra.mxu0 0.0
    %619 = vmatprep.subr.mxu0 0.0
    %620 = vmatpush1.msra.mxu0 0.0
    %621 = vmatprep.subr.mxu0 0.0
    %622 = vmatpush1.msra.mxu0 0.0
    %623 = vmatprep.subr.mxu0 0.0
    %624 = vmatpush1.msra.mxu0 0.0
    %625 = vmatprep.subr.mxu0 0.0
    %626 = vmatpush1.msra.mxu0 0.0
    %627 = vmatprep.mubr.f32.mxu0 0.0
    %628 = vmatmul.mubr.f32.gmra.mrb[0].mxu0 %v555
    %v629 = vpop.f32.mrb[0].mxu0
    %v630 = vadd.f32 0.0, %v629
    %v631 = vpop.f32.mrb[0].mxu0
    %v632 = vadd.f32 0.0, %v631
    %633 = vmatprep.mubr.f32.mxu0 0.0
    %634 = vmatmul.mubr.f32.gmra.mrb[0].mxu0 %v557
    %v635 = vpop.f32.mrb[0].mxu0
    %v636 = vadd.f32 0.0, %v635
    %v637 = vpop.f32.mrb[0].mxu0
    %v638 = vadd.f32 0.0, %v637
    %639 = vmatprep.mubr.f32.mxu0 0.0
    %640 = vmatmul.mubr.f32.gmra.mrb[0].mxu0 %v559
    %v641 = vpop.f32.mrb[0].mxu0
    %v642 = vadd.f32 0.0, %v641
    %v643 = vpop.f32.mrb[0].mxu0
    %v644 = vadd.f32 0.0, %v643
    %645 = vmatprep.mubr.f32.mxu0 0.0
    %646 = vmatmul.mubr.f32.gmra.mrb[0].mxu0 %v561
    %v647 = vpop.f32.mrb[0].mxu0
    %v648 = vadd.f32 0.0, %v647
    %v649 = vpop.f32.mrb[0].mxu0
    %v650 = vadd.f32 0.0, %v649
    %651 = vdwg.mxu0
    %v652 = vadd.f32 %v514, %v630
    %v653 = vadd.f32 %v515, %v632
    %v654 = vadd.f32 %v516, %v636
    %v655 = vadd.f32 %v517, %v638
    %v656 = vadd.f32 %v518, %v642
    %v657 = vadd.f32 %v519, %v644
    %v658 = vadd.f32 %v520, %v648
    %v659 = vadd.f32 %v521, %v650
    %s660 = scalar_lea.vmem %s3, 768
    %v661 = vld [vmem:[%s660] sm:$0xff]
    %v662 = vld [vmem:[%s660 + $0x8] sm:$0xff]
    %v663 = vld [vmem:[%s660 + $0x10] sm:$0xff]
    %v664 = vld [vmem:[%s660 + $0x18] sm:$0xff]
    %v665 = vld [vmem:[%s660 + $0x20] sm:$0xff]
    %v666 = vld [vmem:[%s660 + $0x28] sm:$0xff]
    %v667 = vld [vmem:[%s660 + $0x30] sm:$0xff]
    %v668 = vld [vmem:[%s660 + $0x38] sm:$0xff]
    %v669 = vld [vmem:[%s660 + $0x40] sm:$0xff]
    %v670 = vld [vmem:[%s660 + $0x48] sm:$0xff]
    %v671 = vld [vmem:[%s660 + $0x50] sm:$0xff]
    %v672 = vld [vmem:[%s660 + $0x58] sm:$0xff]
    %v673 = vld [vmem:[%s660 + $0x60] sm:$0xff]
    %v674 = vld [vmem:[%s660 + $0x68] sm:$0xff]
    %v675 = vld [vmem:[%s660 + $0x70] sm:$0xff]
    %v676 = vld [vmem:[%s660 + $0x78] sm:$0xff]
    %v677 = vld [vmem:[%s660 + $0x80] sm:$0xff]
    %v678 = vld [vmem:[%s660 + $0x88] sm:$0xff]
    %v679 = vld [vmem:[%s660 + $0x90] sm:$0xff]
    %v680 = vld [vmem:[%s660 + $0x98] sm:$0xff]
    %v681 = vld [vmem:[%s660 + $0xa0] sm:$0xff]
    %v682 = vld [vmem:[%s660 + $0xa8] sm:$0xff]
    %v683 = vld [vmem:[%s660 + $0xb0] sm:$0xff]
    %v684 = vld [vmem:[%s660 + $0xb8] sm:$0xff]
    %vm685 = vcmask 1043456
    %v686 = vrot.slane %v124, 4
    %v687 = vrot.slane %v125, 4
    %v688 = vsel %vm685, %v686, %v687
    %v689 = vrot.slane %v126, 4
    %v690 = vsel %vm685, %v687, %v689
    %v691 = vrot.slane %v127, 4
    %v692 = vsel %vm685, %v689, %v691
    %v693 = vsel %vm189, %v688, 0
    %v695 = vsel %vm189, %v690, 0
    %v697 = vsel %vm189, %v692, 0
    %v699 = vsel %vm189, %v691, 0
    %701 = vmatprep.subr.mxu0 %v662
    %702 = vmatpush1.msra.mxu0 %v661
    %703 = vmatprep.subr.mxu0 %v664
    %704 = vmatpush1.msra.mxu0 %v663
    %705 = vmatprep.subr.mxu0 %v666
    %706 = vmatpush1.msra.mxu0 %v665
    %707 = vmatprep.subr.mxu0 %v668
    %708 = vmatpush1.msra.mxu0 %v667
    %709 = vmatprep.subr.mxu0 %v670
    %710 = vmatpush1.msra.mxu0 %v669
    %711 = vmatprep.subr.mxu0 %v672
    %712 = vmatpush1.msra.mxu0 %v671
    %713 = vmatprep.subr.mxu0 %v674
    %714 = vmatpush1.msra.mxu0 %v673
    %715 = vmatprep.subr.mxu0 %v676
    %716 = vmatpush1.msra.mxu0 %v675
    %717 = vmatprep.subr.mxu0 %v678
    %718 = vmatpush1.msra.mxu0 %v677
    %719 = vmatprep.subr.mxu0 %v680
    %720 = vmatpush1.msra.mxu0 %v679
    %721 = vmatprep.subr.mxu0 %v682
    %722 = vmatpush1.msra.mxu0 %v681
    %723 = vmatprep.subr.mxu0 %v684
    %724 = vmatpush1.msra.mxu0 %v683
    %725 = vmatprep.subr.mxu0 0.0
    %726 = vmatpush1.msra.mxu0 0.0
    %727 = vmatprep.subr.mxu0 0.0
    %728 = vmatpush1.msra.mxu0 0.0
    %729 = vmatprep.subr.mxu0 0.0
    %730 = vmatpush1.msra.mxu0 0.0
    %731 = vmatprep.subr.mxu0 0.0
    %732 = vmatpush1.msra.mxu0 0.0
    %733 = vmatprep.subr.mxu0 0.0
    %734 = vmatpush1.msra.mxu0 0.0
    %735 = vmatprep.subr.mxu0 0.0
    %736 = vmatpush1.msra.mxu0 0.0
    %737 = vmatprep.subr.mxu0 0.0
    %738 = vmatpush1.msra.mxu0 0.0
    %739 = vmatprep.subr.mxu0 0.0
    %740 = vmatpush1.msra.mxu0 0.0
    %741 = vmatprep.subr.mxu0 0.0
    %742 = vmatpush1.msra.mxu0 0.0
    %743 = vmatprep.subr.mxu0 0.0
    %744 = vmatpush1.msra.mxu0 0.0
    %745 = vmatprep.subr.mxu0 0.0
    %746 = vmatpush1.msra.mxu0 0.0
    %747 = vmatprep.subr.mxu0 0.0
    %748 = vmatpush1.msra.mxu0 0.0
    %749 = vmatprep.subr.mxu0 0.0
    %750 = vmatpush1.msra.mxu0 0.0
    %751 = vmatprep.subr.mxu0 0.0
    %752 = vmatpush1.msra.mxu0 0.0
    %753 = vmatprep.subr.mxu0 0.0
    %754 = vmatpush1.msra.mxu0 0.0
    %755 = vmatprep.subr.mxu0 0.0
    %756 = vmatpush1.msra.mxu0 0.0
    %757 = vmatprep.subr.mxu0 0.0
    %758 = vmatpush1.msra.mxu0 0.0
    %759 = vmatprep.subr.mxu0 0.0
    %760 = vmatpush1.msra.mxu0 0.0
    %761 = vmatprep.subr.mxu0 0.0
    %762 = vmatpush1.msra.mxu0 0.0
    %763 = vmatprep.subr.mxu0 0.0
    %764 = vmatpush1.msra.mxu0 0.0
    %765 = vmatprep.mubr.f32.mxu0 0.0
    %766 = vmatmul.mubr.f32.gmra.mrb[0].mxu0 %v693
    %v767 = vpop.f32.mrb[0].mxu0
    %v768 = vadd.f32 0.0, %v767
    %v769 = vpop.f32.mrb[0].mxu0
    %v770 = vadd.f32 0.0, %v769
    %771 = vmatprep.mubr.f32.mxu0 0.0
    %772 = vmatmul.mubr.f32.gmra.mrb[0].mxu0 %v695
    %v773 = vpop.f32.mrb[0].mxu0
    %v774 = vadd.f32 0.0, %v773
    %v775 = vpop.f32.mrb[0].mxu0
    %v776 = vadd.f32 0.0, %v775
    %777 = vmatprep.mubr.f32.mxu0 0.0
    %778 = vmatmul.mubr.f32.gmra.mrb[0].mxu0 %v697
    %v779 = vpop.f32.mrb[0].mxu0
    %v780 = vadd.f32 0.0, %v779
    %v781 = vpop.f32.mrb[0].mxu0
    %v782 = vadd.f32 0.0, %v781
    %783 = vmatprep.mubr.f32.mxu0 0.0
    %784 = vmatmul.mubr.f32.gmra.mrb[0].mxu0 %v699
    %v785 = vpop.f32.mrb[0].mxu0
    %v786 = vadd.f32 0.0, %v785
    %v787 = vpop.f32.mrb[0].mxu0
    %v788 = vadd.f32 0.0, %v787
    %789 = vdwg.mxu0
    %v790 = vadd.f32 %v652, %v768
    %v791 = vadd.f32 %v653, %v770
    %v792 = vadd.f32 %v654, %v774
    %v793 = vadd.f32 %v655, %v776
    %v794 = vadd.f32 %v656, %v780
    %v795 = vadd.f32 %v657, %v782
    %v796 = vadd.f32 %v658, %v786
    %v797 = vadd.f32 %v659, %v788
    %v798 = vld [vmem:[%s7] sm:$0xff]
    %v799 = vld [vmem:[%s7 + $0x8] sm:$0xff]
    %v800 = vld [vmem:[%s7 + $0x10] sm:$0xff]
    %v801 = vld [vmem:[%s7 + $0x18] sm:$0xff]
    %v802 = vld [vmem:[%s7 + $0x20] sm:$0xff]
    %v803 = vld [vmem:[%s7 + $0x28] sm:$0xff]
    %v804 = vld [vmem:[%s7 + $0x30] sm:$0xff]
    %v805 = vld [vmem:[%s7 + $0x38] sm:$0xff]
    %v806 = vld [vmem:[%s7 + $0x40] sm:$0xff]
    %v807 = vld [vmem:[%s7 + $0x48] sm:$0xff]
    %v808 = vld [vmem:[%s7 + $0x50] sm:$0xff]
    %v809 = vld [vmem:[%s7 + $0x58] sm:$0xff]
    %v810 = vld [vmem:[%s7 + $0x60] sm:$0xff]
    %v811 = vld [vmem:[%s7 + $0x68] sm:$0xff]
    %v812 = vld [vmem:[%s7 + $0x70] sm:$0xff]
    %v813 = vld [vmem:[%s7 + $0x78] sm:$0xff]
    %v814 = vld [vmem:[%s7 + $0x80] sm:$0xff]
    %v815 = vld [vmem:[%s7 + $0x88] sm:$0xff]
    %v816 = vld [vmem:[%s7 + $0x90] sm:$0xff]
    %v817 = vld [vmem:[%s7 + $0x98] sm:$0xff]
    %v818 = vld [vmem:[%s7 + $0xa0] sm:$0xff]
    %vm819 = vcmask 326656
    %v821 = vsel %vm819, %v791, 0
    %v824 = vsel %vm819, %v793, 0
    %v827 = vsel %vm819, %v795, 0
    %v830 = vsel %vm819, %v797, 0
    %832 = vmatprep.subr.mxu0 0.0
    %833 = vmatpush1.msra.mxu0 %v798
    %834 = vmatprep.subr.mxu0 0.0
    %835 = vmatpush1.msra.mxu0 %v799
    %836 = vmatprep.subr.mxu0 0.0
    %837 = vmatpush1.msra.mxu0 %v800
    %838 = vmatprep.subr.mxu0 0.0
    %839 = vmatpush1.msra.mxu0 %v801
    %840 = vmatprep.subr.mxu0 0.0
    %841 = vmatpush1.msra.mxu0 %v802
    %842 = vmatprep.subr.mxu0 0.0
    %843 = vmatpush1.msra.mxu0 %v803
    %844 = vmatprep.subr.mxu0 0.0
    %845 = vmatpush1.msra.mxu0 %v804
    %846 = vmatprep.subr.mxu0 0.0
    %847 = vmatpush1.msra.mxu0 %v805
    %848 = vmatprep.subr.mxu0 0.0
    %849 = vmatpush1.msra.mxu0 %v806
    %850 = vmatprep.subr.mxu0 0.0
    %851 = vmatpush1.msra.mxu0 %v807
    %852 = vmatprep.subr.mxu0 0.0
    %853 = vmatpush1.msra.mxu0 %v808
    %854 = vmatprep.subr.mxu0 0.0
    %855 = vmatpush1.msra.mxu0 %v809
    %856 = vmatprep.subr.mxu0 0.0
    %857 = vmatpush1.msra.mxu0 %v810
    %858 = vmatprep.subr.mxu0 0.0
    %859 = vmatpush1.msra.mxu0 %v811
    %860 = vmatprep.subr.mxu0 0.0
    %861 = vmatpush1.msra.mxu0 %v812
    %862 = vmatprep.subr.mxu0 0.0
    %863 = vmatpush1.msra.mxu0 %v813
    %864 = vmatprep.subr.mxu0 0.0
    %865 = vmatpush1.msra.mxu0 %v814
    %866 = vmatprep.subr.mxu0 0.0
    %867 = vmatpush1.msra.mxu0 %v815
    %868 = vmatprep.subr.mxu0 0.0
    %869 = vmatpush1.msra.mxu0 %v816
    %870 = vmatprep.subr.mxu0 0.0
    %871 = vmatpush1.msra.mxu0 %v817
    %872 = vmatprep.subr.mxu0 0.0
    %873 = vmatpush1.msra.mxu0 %v818
    %874 = vmatprep.subr.mxu0 0.0
    %875 = vmatpush1.msra.mxu0 0.0
    %876 = vmatprep.subr.mxu0 0.0
    %877 = vmatpush1.msra.mxu0 0.0
    %878 = vmatprep.subr.mxu0 0.0
    %879 = vmatpush1.msra.mxu0 0.0
    %880 = vmatprep.subr.mxu0 0.0
    %881 = vmatpush1.msra.mxu0 0.0
    %882 = vmatprep.subr.mxu0 0.0
    %883 = vmatpush1.msra.mxu0 0.0
    %884 = vmatprep.subr.mxu0 0.0
    %885 = vmatpush1.msra.mxu0 0.0
    %886 = vmatprep.subr.mxu0 0.0
    %887 = vmatpush1.msra.mxu0 0.0
    %888 = vmatprep.subr.mxu0 0.0
    %889 = vmatpush1.msra.mxu0 0.0
    %890 = vmatprep.subr.mxu0 0.0
    %891 = vmatpush1.msra.mxu0 0.0
    %892 = vmatprep.subr.mxu0 0.0
    %893 = vmatpush1.msra.mxu0 0.0
    %894 = vmatprep.subr.mxu0 0.0
    %895 = vmatpush1.msra.mxu0 0.0
    %896 = vmatprep.mubr.f32.mxu0 %v821
    %897 = vmatmul.mubr.f32.gmra.mrb[0].mxu0 %v790
    %v898 = vpop.f32.mrb[0].mxu0
    %v899 = vadd.f32 0.0, %v898
    %v900 = vpop.f32.mrb[0].mxu0
    %901 = vmatprep.mubr.f32.mxu0 %v824
    %902 = vmatmul.mubr.f32.gmra.mrb[0].mxu0 %v792
    %v903 = vpop.f32.mrb[0].mxu0
    %v904 = vadd.f32 0.0, %v903
    %v905 = vpop.f32.mrb[0].mxu0
    %906 = vmatprep.mubr.f32.mxu0 %v827
    %907 = vmatmul.mubr.f32.gmra.mrb[0].mxu0 %v794
    %v908 = vpop.f32.mrb[0].mxu0
    %v909 = vadd.f32 0.0, %v908
    %v910 = vpop.f32.mrb[0].mxu0
    %911 = vmatprep.mubr.f32.mxu0 %v830
    %912 = vmatmul.mubr.f32.gmra.mrb[0].mxu0 %v796
    %v913 = vpop.f32.mrb[0].mxu0
    %v914 = vadd.f32 0.0, %v913
    %v915 = vpop.f32.mrb[0].mxu0
    %916 = vdwg.mxu0
    %v917 = vld [vmem:[%s9] sm:$0xff]
    %v918 = vld [vmem:[%s9 + $0x8] sm:$0xff]
    %v919 = vld [vmem:[%s9 + $0x10] sm:$0xff]
    %v920 = vld [vmem:[%s9 + $0x18] sm:$0xff]
    %v921 = vld [vmem:[%s9 + $0x20] sm:$0xff]
    %v922 = vld [vmem:[%s9 + $0x28] sm:$0xff]
    %v923 = vld [vmem:[%s9 + $0x30] sm:$0xff]
    %v924 = vld [vmem:[%s9 + $0x38] sm:$0xff]
    %v925 = vld [vmem:[%s9 + $0x40] sm:$0xff]
    %v926 = vld [vmem:[%s9 + $0x48] sm:$0xff]
    %v927 = vld [vmem:[%s9 + $0x50] sm:$0xff]
    %v928 = vld [vmem:[%s9 + $0x58] sm:$0xff]
    %v929 = vld [vmem:[%s9 + $0x60] sm:$0xff]
    %v930 = vld [vmem:[%s9 + $0x68] sm:$0xff]
    %v931 = vld [vmem:[%s9 + $0x70] sm:$0xff]
    %v932 = vld [vmem:[%s9 + $0x78] sm:$0xff]
    %v933 = vld [vmem:[%s9 + $0x80] sm:$0xff]
    %v934 = vld [vmem:[%s9 + $0x88] sm:$0xff]
    %v935 = vld [vmem:[%s9 + $0x90] sm:$0xff]
    %v936 = vld [vmem:[%s9 + $0x98] sm:$0xff]
    %v937 = vld [vmem:[%s9 + $0xa0] sm:$0xff]
    %938 = vmatprep.subr.mxu0 0.0
    %939 = vmatpush1.msra.mxu0 %v917
    %940 = vmatprep.subr.mxu0 0.0
    %941 = vmatpush1.msra.mxu0 %v918
    %942 = vmatprep.subr.mxu0 0.0
    %943 = vmatpush1.msra.mxu0 %v919
    %944 = vmatprep.subr.mxu0 0.0
    %945 = vmatpush1.msra.mxu0 %v920
    %946 = vmatprep.subr.mxu0 0.0
    %947 = vmatpush1.msra.mxu0 %v921
    %948 = vmatprep.subr.mxu0 0.0
    %949 = vmatpush1.msra.mxu0 %v922
    %950 = vmatprep.subr.mxu0 0.0
    %951 = vmatpush1.msra.mxu0 %v923
    %952 = vmatprep.subr.mxu0 0.0
    %953 = vmatpush1.msra.mxu0 %v924
    %954 = vmatprep.subr.mxu0 0.0
    %955 = vmatpush1.msra.mxu0 %v925
    %956 = vmatprep.subr.mxu0 0.0
    %957 = vmatpush1.msra.mxu0 %v926
    %958 = vmatprep.subr.mxu0 0.0
    %959 = vmatpush1.msra.mxu0 %v927
    %960 = vmatprep.subr.mxu0 0.0
    %961 = vmatpush1.msra.mxu0 %v928
    %962 = vmatprep.subr.mxu0 0.0
    %963 = vmatpush1.msra.mxu0 %v929
    %964 = vmatprep.subr.mxu0 0.0
    %965 = vmatpush1.msra.mxu0 %v930
    %966 = vmatprep.subr.mxu0 0.0
    %967 = vmatpush1.msra.mxu0 %v931
    %968 = vmatprep.subr.mxu0 0.0
    %969 = vmatpush1.msra.mxu0 %v932
    %970 = vmatprep.subr.mxu0 0.0
    %971 = vmatpush1.msra.mxu0 %v933
    %972 = vmatprep.subr.mxu0 0.0
    %973 = vmatpush1.msra.mxu0 %v934
    %974 = vmatprep.subr.mxu0 0.0
    %975 = vmatpush1.msra.mxu0 %v935
    %976 = vmatprep.subr.mxu0 0.0
    %977 = vmatpush1.msra.mxu0 %v936
    %978 = vmatprep.subr.mxu0 0.0
    %979 = vmatpush1.msra.mxu0 %v937
    %980 = vmatprep.subr.mxu0 0.0
    %981 = vmatpush1.msra.mxu0 0.0
    %982 = vmatprep.subr.mxu0 0.0
    %983 = vmatpush1.msra.mxu0 0.0
    %984 = vmatprep.subr.mxu0 0.0
    %985 = vmatpush1.msra.mxu0 0.0
    %986 = vmatprep.subr.mxu0 0.0
    %987 = vmatpush1.msra.mxu0 0.0
    %988 = vmatprep.subr.mxu0 0.0
    %989 = vmatpush1.msra.mxu0 0.0
    %990 = vmatprep.subr.mxu0 0.0
    %991 = vmatpush1.msra.mxu0 0.0
    %992 = vmatprep.subr.mxu0 0.0
    %993 = vmatpush1.msra.mxu0 0.0
    %994 = vmatprep.subr.mxu0 0.0
    %995 = vmatpush1.msra.mxu0 0.0
    %996 = vmatprep.subr.mxu0 0.0
    %997 = vmatpush1.msra.mxu0 0.0
    %998 = vmatprep.subr.mxu0 0.0
    %999 = vmatpush1.msra.mxu0 0.0
    %1000 = vmatprep.subr.mxu0 0.0
    %1001 = vmatpush1.msra.mxu0 0.0
    %1002 = vmatprep.mubr.f32.mxu0 %v821
    %1003 = vmatmul.mubr.f32.gmra.mrb[0].mxu0 %v790
    %v1004 = vpop.f32.mrb[0].mxu0
    %v1005 = vadd.f32 0.0, %v1004
    %v1006 = vpop.f32.mrb[0].mxu0
    %1007 = vmatprep.mubr.f32.mxu0 %v824
    %1008 = vmatmul.mubr.f32.gmra.mrb[0].mxu0 %v792
    %v1009 = vpop.f32.mrb[0].mxu0
    %v1010 = vadd.f32 0.0, %v1009
    %v1011 = vpop.f32.mrb[0].mxu0
    %1012 = vmatprep.mubr.f32.mxu0 %v827
    %1013 = vmatmul.mubr.f32.gmra.mrb[0].mxu0 %v794
    %v1014 = vpop.f32.mrb[0].mxu0
    %v1015 = vadd.f32 0.0, %v1014
    %v1016 = vpop.f32.mrb[0].mxu0
    %1017 = vmatprep.mubr.f32.mxu0 %v830
    %1018 = vmatmul.mubr.f32.gmra.mrb[0].mxu0 %v796
    %v1019 = vpop.f32.mrb[0].mxu0
    %v1020 = vadd.f32 0.0, %v1019
    %v1021 = vpop.f32.mrb[0].mxu0
    %1022 = vdwg.mxu0
    %v1023 = vmax.f32 %v899, %v1005
    %v1024 = vmax.f32 %v904, %v1010
    %v1025 = vmax.f32 %v909, %v1015
    %v1026 = vmax.f32 %v914, %v1020
    %v1027 = vld [vmem:[%s11] sm:$0xff]
    %v1028 = vld [vmem:[%s11 + $0x8] sm:$0x3f]
    %vm1029 = vcmask 228352
    %v1031 = vsel %vm1029, %v1027, 0
    %v1034 = vsel %vm1029, %v1028, 0
    %v1037 = vsel %vm685, %v1026, 0
    %1039 = vmatprep.subr.mxu0 0.0
    %1040 = vmatpush1.msra.mxu0 %v1023
    %1041 = vmatprep.subr.mxu0 0.0
    %1042 = vmatpush1.msra.mxu0 %v1024
    %1043 = vmatprep.subr.mxu0 0.0
    %1044 = vmatpush1.msra.mxu0 %v1025
    %1045 = vmatprep.subr.mxu0 0.0
    %1046 = vmatpush1.msra.mxu0 %v1037
    %1047 = vmatprep.subr.mxu0 0.0
    %1048 = vmatpush1.msra.mxu0 0.0
    %1049 = vmatprep.subr.mxu0 0.0
    %1050 = vmatpush1.msra.mxu0 0.0
    %1051 = vmatprep.subr.mxu0 0.0
    %1052 = vmatpush1.msra.mxu0 0.0
    %1053 = vmatprep.subr.mxu0 0.0
    %1054 = vmatpush1.msra.mxu0 0.0
    %1055 = vmatprep.subr.mxu0 0.0
    %1056 = vmatpush1.msra.mxu0 0.0
    %1057 = vmatprep.subr.mxu0 0.0
    %1058 = vmatpush1.msra.mxu0 0.0
    %1059 = vmatprep.subr.mxu0 0.0
    %1060 = vmatpush1.msra.mxu0 0.0
    %1061 = vmatprep.subr.mxu0 0.0
    %1062 = vmatpush1.msra.mxu0 0.0
    %1063 = vmatprep.subr.mxu0 0.0
    %1064 = vmatpush1.msra.mxu0 0.0
    %1065 = vmatprep.subr.mxu0 0.0
    %1066 = vmatpush1.msra.mxu0 0.0
    %1067 = vmatprep.subr.mxu0 0.0
    %1068 = vmatpush1.msra.mxu0 0.0
    %1069 = vmatprep.subr.mxu0 0.0
    %1070 = vmatpush1.msra.mxu0 0.0
    %1071 = vmatprep.subr.mxu0 0.0
    %1072 = vmatpush1.msra.mxu0 0.0
    %1073 = vmatprep.subr.mxu0 0.0
    %1074 = vmatpush1.msra.mxu0 0.0
    %1075 = vmatprep.subr.mxu0 0.0
    %1076 = vmatpush1.msra.mxu0 0.0
    %1077 = vmatprep.subr.mxu0 0.0
    %1078 = vmatpush1.msra.mxu0 0.0
    %1079 = vmatprep.subr.mxu0 0.0
    %1080 = vmatpush1.msra.mxu0 0.0
    %1081 = vmatprep.subr.mxu0 0.0
    %1082 = vmatpush1.msra.mxu0 0.0
    %1083 = vmatprep.subr.mxu0 0.0
    %1084 = vmatpush1.msra.mxu0 0.0
    %1085 = vmatprep.subr.mxu0 0.0
    %1086 = vmatpush1.msra.mxu0 0.0
    %1087 = vmatprep.subr.mxu0 0.0
    %1088 = vmatpush1.msra.mxu0 0.0
    %1089 = vmatprep.subr.mxu0 0.0
    %1090 = vmatpush1.msra.mxu0 0.0
    %1091 = vmatprep.subr.mxu0 0.0
    %1092 = vmatpush1.msra.mxu0 0.0
    %1093 = vmatprep.subr.mxu0 0.0
    %1094 = vmatpush1.msra.mxu0 0.0
    %1095 = vmatprep.subr.mxu0 0.0
    %1096 = vmatpush1.msra.mxu0 0.0
    %1097 = vmatprep.subr.mxu0 0.0
    %1098 = vmatpush1.msra.mxu0 0.0
    %1099 = vmatprep.subr.mxu0 0.0
    %1100 = vmatpush1.msra.mxu0 0.0
    %1101 = vmatprep.subr.mxu0 0.0
    %1102 = vmatpush1.msra.mxu0 0.0
    %1103 = vmatprep.mubr.f32.mxu0 0.0
    %1104 = vmatmul.mubr.f32.gmra.mrb[0].mxu0 %v1031
    %v1105 = vpop.f32.mrb[0].mxu0
    %v1106 = vadd.f32 0.0, %v1105
    %v1107 = vpop.f32.mrb[0].mxu0
    %1108 = vmatprep.mubr.f32.mxu0 0.0
    %1109 = vmatmul.mubr.f32.gmra.mrb[0].mxu0 %v1034
    %v1110 = vpop.f32.mrb[0].mxu0
    %v1111 = vadd.f32 0.0, %v1110
    %v1112 = vpop.f32.mrb[0].mxu0
    %1113 = vdwg.mxu0
    %v1114 = vld [vmem:[%s13] sm:$0xff]
    %v1115 = vld [vmem:[%s13 + $0x8] sm:$0x3f]
    %v1117 = vsel %vm1029, %v1114, 0
    %v1120 = vsel %vm1029, %v1115, 0
    %1122 = vmatprep.subr.mxu0 0.0
    %1123 = vmatpush1.msra.mxu0 %v1023
    %1124 = vmatprep.subr.mxu0 0.0
    %1125 = vmatpush1.msra.mxu0 %v1024
    %1126 = vmatprep.subr.mxu0 0.0
    %1127 = vmatpush1.msra.mxu0 %v1025
    %1128 = vmatprep.subr.mxu0 0.0
    %1129 = vmatpush1.msra.mxu0 %v1037
    %1130 = vmatprep.subr.mxu0 0.0
    %1131 = vmatpush1.msra.mxu0 0.0
    %1132 = vmatprep.subr.mxu0 0.0
    %1133 = vmatpush1.msra.mxu0 0.0
    %1134 = vmatprep.subr.mxu0 0.0
    %1135 = vmatpush1.msra.mxu0 0.0
    %1136 = vmatprep.subr.mxu0 0.0
    %1137 = vmatpush1.msra.mxu0 0.0
    %1138 = vmatprep.subr.mxu0 0.0
    %1139 = vmatpush1.msra.mxu0 0.0
    %1140 = vmatprep.subr.mxu0 0.0
    %1141 = vmatpush1.msra.mxu0 0.0
    %1142 = vmatprep.subr.mxu0 0.0
    %1143 = vmatpush1.msra.mxu0 0.0
    %1144 = vmatprep.subr.mxu0 0.0
    %1145 = vmatpush1.msra.mxu0 0.0
    %1146 = vmatprep.subr.mxu0 0.0
    %1147 = vmatpush1.msra.mxu0 0.0
    %1148 = vmatprep.subr.mxu0 0.0
    %1149 = vmatpush1.msra.mxu0 0.0
    %1150 = vmatprep.subr.mxu0 0.0
    %1151 = vmatpush1.msra.mxu0 0.0
    %1152 = vmatprep.subr.mxu0 0.0
    %1153 = vmatpush1.msra.mxu0 0.0
    %1154 = vmatprep.subr.mxu0 0.0
    %1155 = vmatpush1.msra.mxu0 0.0
    %1156 = vmatprep.subr.mxu0 0.0
    %1157 = vmatpush1.msra.mxu0 0.0
    %1158 = vmatprep.subr.mxu0 0.0
    %1159 = vmatpush1.msra.mxu0 0.0
    %1160 = vmatprep.subr.mxu0 0.0
    %1161 = vmatpush1.msra.mxu0 0.0
    %1162 = vmatprep.subr.mxu0 0.0
    %1163 = vmatpush1.msra.mxu0 0.0
    %1164 = vmatprep.subr.mxu0 0.0
    %1165 = vmatpush1.msra.mxu0 0.0
    %1166 = vmatprep.subr.mxu0 0.0
    %1167 = vmatpush1.msra.mxu0 0.0
    %1168 = vmatprep.subr.mxu0 0.0
    %1169 = vmatpush1.msra.mxu0 0.0
    %1170 = vmatprep.subr.mxu0 0.0
    %1171 = vmatpush1.msra.mxu0 0.0
    %1172 = vmatprep.subr.mxu0 0.0
    %1173 = vmatpush1.msra.mxu0 0.0
    %1174 = vmatprep.subr.mxu0 0.0
    %1175 = vmatpush1.msra.mxu0 0.0
    %1176 = vmatprep.subr.mxu0 0.0
    %1177 = vmatpush1.msra.mxu0 0.0
    %1178 = vmatprep.subr.mxu0 0.0
    %1179 = vmatpush1.msra.mxu0 0.0
    %1180 = vmatprep.subr.mxu0 0.0
    %1181 = vmatpush1.msra.mxu0 0.0
    %1182 = vmatprep.subr.mxu0 0.0
    %1183 = vmatpush1.msra.mxu0 0.0
    %1184 = vmatprep.subr.mxu0 0.0
    %1185 = vmatpush1.msra.mxu0 0.0
    %1186 = vmatprep.mubr.f32.mxu0 0.0
    %1187 = vmatmul.mubr.f32.gmra.mrb[0].mxu0 %v1117
    %v1188 = vpop.f32.mrb[0].mxu0
    %v1189 = vadd.f32 0.0, %v1188
    %v1190 = vpop.f32.mrb[0].mxu0
    %1191 = vmatprep.mubr.f32.mxu0 0.0
    %1192 = vmatmul.mubr.f32.gmra.mrb[0].mxu0 %v1120
    %v1193 = vpop.f32.mrb[0].mxu0
    %v1194 = vadd.f32 0.0, %v1193
    %v1195 = vpop.f32.mrb[0].mxu0
    %1196 = vdwg.mxu0
    %v1197 = vmax.f32 %v1106, %v1189
    %v1198 = vmax.f32 %v1111, %v1194
    %v1200 = vlaneseq
    %v1201 = vshrl.u32 %v1200, 7
    %v1202 = vsub.s32 0, %v1201
    %v1203 = vrot.slane %v123, %v1202
    %v1205 = vadd.f32 %v1197, %v1203
    %v1206 = vadd.f32 %v1198, %v1203
    %v1207 = vmax.f32 %v1205, 0.0
    %v1208 = vmax.f32 %v1206, 0.0
    %s1209 = scalar_lea.vmem %s1, 32
    %v1210 = vld [vmem:[%s1209] sm:$0xff]
    %v1211 = vld [vmem:[%s1209 + $0x8] sm:$0xff]
    %v1212 = vld [vmem:[%s1209 + $0x10] sm:$0xff]
    %v1213 = vld [vmem:[%s1209 + $0x18] sm:$0xff]
    %v1218 = vrot.slane %v1210, 1
    %v1219 = vrot.slane %v1211, 1
    %v1220 = vsel %vm181, %v1218, %v1219
    %v1221 = vrot.slane %v1212, 1
    %v1222 = vsel %vm181, %v1219, %v1221
    %v1223 = vrot.slane %v1213, 1
    %v1224 = vsel %vm181, %v1221, %v1223
    %v1225 = vsel %vm189, %v1220, 0
    %v1227 = vsel %vm189, %v1222, 0
    %v1229 = vsel %vm189, %v1224, 0
    %v1231 = vsel %vm189, %v1223, 0
    %1233 = vmatprep.subr.mxu0 %v154
    %1234 = vmatpush1.msra.mxu0 %v153
    %1235 = vmatprep.subr.mxu0 %v156
    %1236 = vmatpush1.msra.mxu0 %v155
    %1237 = vmatprep.subr.mxu0 %v158
    %1238 = vmatpush1.msra.mxu0 %v157
    %1239 = vmatprep.subr.mxu0 %v160
    %1240 = vmatpush1.msra.mxu0 %v159
    %1241 = vmatprep.subr.mxu0 %v162
    %1242 = vmatpush1.msra.mxu0 %v161
    %1243 = vmatprep.subr.mxu0 %v164
    %1244 = vmatpush1.msra.mxu0 %v163
    %1245 = vmatprep.subr.mxu0 %v166
    %1246 = vmatpush1.msra.mxu0 %v165
    %1247 = vmatprep.subr.mxu0 %v168
    %1248 = vmatpush1.msra.mxu0 %v167
    %1249 = vmatprep.subr.mxu0 %v170
    %1250 = vmatpush1.msra.mxu0 %v169
    %1251 = vmatprep.subr.mxu0 %v172
    %1252 = vmatpush1.msra.mxu0 %v171
    %1253 = vmatprep.subr.mxu0 %v174
    %1254 = vmatpush1.msra.mxu0 %v173
    %1255 = vmatprep.subr.mxu0 %v176
    %1256 = vmatpush1.msra.mxu0 %v175
    %1257 = vmatprep.subr.mxu0 0.0
    %1258 = vmatpush1.msra.mxu0 0.0
    %1259 = vmatprep.subr.mxu0 0.0
    %1260 = vmatpush1.msra.mxu0 0.0
    %1261 = vmatprep.subr.mxu0 0.0
    %1262 = vmatpush1.msra.mxu0 0.0
    %1263 = vmatprep.subr.mxu0 0.0
    %1264 = vmatpush1.msra.mxu0 0.0
    %1265 = vmatprep.subr.mxu0 0.0
    %1266 = vmatpush1.msra.mxu0 0.0
    %1267 = vmatprep.subr.mxu0 0.0
    %1268 = vmatpush1.msra.mxu0 0.0
    %1269 = vmatprep.subr.mxu0 0.0
    %1270 = vmatpush1.msra.mxu0 0.0
    %1271 = vmatprep.subr.mxu0 0.0
    %1272 = vmatpush1.msra.mxu0 0.0
    %1273 = vmatprep.subr.mxu0 0.0
    %1274 = vmatpush1.msra.mxu0 0.0
    %1275 = vmatprep.subr.mxu0 0.0
    %1276 = vmatpush1.msra.mxu0 0.0
    %1277 = vmatprep.subr.mxu0 0.0
    %1278 = vmatpush1.msra.mxu0 0.0
    %1279 = vmatprep.subr.mxu0 0.0
    %1280 = vmatpush1.msra.mxu0 0.0
    %1281 = vmatprep.subr.mxu0 0.0
    %1282 = vmatpush1.msra.mxu0 0.0
    %1283 = vmatprep.subr.mxu0 0.0
    %1284 = vmatpush1.msra.mxu0 0.0
    %1285 = vmatprep.subr.mxu0 0.0
    %1286 = vmatpush1.msra.mxu0 0.0
    %1287 = vmatprep.subr.mxu0 0.0
    %1288 = vmatpush1.msra.mxu0 0.0
    %1289 = vmatprep.subr.mxu0 0.0
    %1290 = vmatpush1.msra.mxu0 0.0
    %1291 = vmatprep.subr.mxu0 0.0
    %1292 = vmatpush1.msra.mxu0 0.0
    %1293 = vmatprep.subr.mxu0 0.0
    %1294 = vmatpush1.msra.mxu0 0.0
    %1295 = vmatprep.subr.mxu0 0.0
    %1296 = vmatpush1.msra.mxu0 0.0
    %1297 = vmatprep.mubr.f32.mxu0 0.0
    %1298 = vmatmul.mubr.f32.gmra.mrb[0].mxu0 %v1225
    %v1299 = vpop.f32.mrb[0].mxu0
    %v1300 = vadd.f32 0.0, %v1299
    %v1301 = vpop.f32.mrb[0].mxu0
    %v1302 = vadd.f32 0.0, %v1301
    %1303 = vmatprep.mubr.f32.mxu0 0.0
    %1304 = vmatmul.mubr.f32.gmra.mrb[0].mxu0 %v1227
    %v1305 = vpop.f32.mrb[0].mxu0
    %v1306 = vadd.f32 0.0, %v1305
    %v1307 = vpop.f32.mrb[0].mxu0
    %v1308 = vadd.f32 0.0, %v1307
    %1309 = vmatprep.mubr.f32.mxu0 0.0
    %1310 = vmatmul.mubr.f32.gmra.mrb[0].mxu0 %v1229
    %v1311 = vpop.f32.mrb[0].mxu0
    %v1312 = vadd.f32 0.0, %v1311
    %v1313 = vpop.f32.mrb[0].mxu0
    %v1314 = vadd.f32 0.0, %v1313
    %1315 = vmatprep.mubr.f32.mxu0 0.0
    %1316 = vmatmul.mubr.f32.gmra.mrb[0].mxu0 %v1231
    %v1317 = vpop.f32.mrb[0].mxu0
    %v1318 = vadd.f32 0.0, %v1317
    %v1319 = vpop.f32.mrb[0].mxu0
    %v1320 = vadd.f32 0.0, %v1319
    %1321 = vdwg.mxu0
    %v1322 = vsel %vm189, %v1210, 0
    %v1324 = vsel %vm189, %v1211, 0
    %v1326 = vsel %vm189, %v1212, 0
    %v1328 = vsel %vm189, %v1213, 0
    %1330 = vmatprep.subr.mxu0 %v129
    %1331 = vmatpush1.msra.mxu0 %v128
    %1332 = vmatprep.subr.mxu0 %v131
    %1333 = vmatpush1.msra.mxu0 %v130
    %1334 = vmatprep.subr.mxu0 %v133
    %1335 = vmatpush1.msra.mxu0 %v132
    %1336 = vmatprep.subr.mxu0 %v135
    %1337 = vmatpush1.msra.mxu0 %v134
    %1338 = vmatprep.subr.mxu0 %v137
    %1339 = vmatpush1.msra.mxu0 %v136
    %1340 = vmatprep.subr.mxu0 %v139
    %1341 = vmatpush1.msra.mxu0 %v138
    %1342 = vmatprep.subr.mxu0 %v141
    %1343 = vmatpush1.msra.mxu0 %v140
    %1344 = vmatprep.subr.mxu0 %v143
    %1345 = vmatpush1.msra.mxu0 %v142
    %1346 = vmatprep.subr.mxu0 %v145
    %1347 = vmatpush1.msra.mxu0 %v144
    %1348 = vmatprep.subr.mxu0 %v147
    %1349 = vmatpush1.msra.mxu0 %v146
    %1350 = vmatprep.subr.mxu0 %v149
    %1351 = vmatpush1.msra.mxu0 %v148
    %1352 = vmatprep.subr.mxu0 %v151
    %1353 = vmatpush1.msra.mxu0 %v150
    %1354 = vmatprep.subr.mxu0 0.0
    %1355 = vmatpush1.msra.mxu0 0.0
    %1356 = vmatprep.subr.mxu0 0.0
    %1357 = vmatpush1.msra.mxu0 0.0
    %1358 = vmatprep.subr.mxu0 0.0
    %1359 = vmatpush1.msra.mxu0 0.0
    %1360 = vmatprep.subr.mxu0 0.0
    %1361 = vmatpush1.msra.mxu0 0.0
    %1362 = vmatprep.subr.mxu0 0.0
    %1363 = vmatpush1.msra.mxu0 0.0
    %1364 = vmatprep.subr.mxu0 0.0
    %1365 = vmatpush1.msra.mxu0 0.0
    %1366 = vmatprep.subr.mxu0 0.0
    %1367 = vmatpush1.msra.mxu0 0.0
    %1368 = vmatprep.subr.mxu0 0.0
    %1369 = vmatpush1.msra.mxu0 0.0
    %1370 = vmatprep.subr.mxu0 0.0
    %1371 = vmatpush1.msra.mxu0 0.0
    %1372 = vmatprep.subr.mxu0 0.0
    %1373 = vmatpush1.msra.mxu0 0.0
    %1374 = vmatprep.subr.mxu0 0.0
    %1375 = vmatpush1.msra.mxu0 0.0
    %1376 = vmatprep.subr.mxu0 0.0
    %1377 = vmatpush1.msra.mxu0 0.0
    %1378 = vmatprep.subr.mxu0 0.0
    %1379 = vmatpush1.msra.mxu0 0.0
    %1380 = vmatprep.subr.mxu0 0.0
    %1381 = vmatpush1.msra.mxu0 0.0
    %1382 = vmatprep.subr.mxu0 0.0
    %1383 = vmatpush1.msra.mxu0 0.0
    %1384 = vmatprep.subr.mxu0 0.0
    %1385 = vmatpush1.msra.mxu0 0.0
    %1386 = vmatprep.subr.mxu0 0.0
    %1387 = vmatpush1.msra.mxu0 0.0
    %1388 = vmatprep.subr.mxu0 0.0
    %1389 = vmatpush1.msra.mxu0 0.0
    %1390 = vmatprep.subr.mxu0 0.0
    %1391 = vmatpush1.msra.mxu0 0.0
    %1392 = vmatprep.subr.mxu0 0.0
    %1393 = vmatpush1.msra.mxu0 0.0
    %1394 = vmatprep.mubr.f32.mxu0 0.0
    %1395 = vmatmul.mubr.f32.gmra.mrb[0].mxu0 %v1322
    %v1396 = vpop.f32.mrb[0].mxu0
    %v1397 = vadd.f32 %v1300, %v1396
    %v1398 = vpop.f32.mrb[0].mxu0
    %v1399 = vadd.f32 %v1302, %v1398
    %1400 = vmatprep.mubr.f32.mxu0 0.0
    %1401 = vmatmul.mubr.f32.gmra.mrb[0].mxu0 %v1324
    %v1402 = vpop.f32.mrb[0].mxu0
    %v1403 = vadd.f32 %v1306, %v1402
    %v1404 = vpop.f32.mrb[0].mxu0
    %v1405 = vadd.f32 %v1308, %v1404
    %1406 = vmatprep.mubr.f32.mxu0 0.0
    %1407 = vmatmul.mubr.f32.gmra.mrb[0].mxu0 %v1326
    %v1408 = vpop.f32.mrb[0].mxu0
    %v1409 = vadd.f32 %v1312, %v1408
    %v1410 = vpop.f32.mrb[0].mxu0
    %v1411 = vadd.f32 %v1314, %v1410
    %1412 = vmatprep.mubr.f32.mxu0 0.0
    %1413 = vmatmul.mubr.f32.gmra.mrb[0].mxu0 %v1328
    %v1414 = vpop.f32.mrb[0].mxu0
    %v1415 = vadd.f32 %v1318, %v1414
    %v1416 = vpop.f32.mrb[0].mxu0
    %v1417 = vadd.f32 %v1320, %v1416
    %1418 = vdwg.mxu0
    %v1419 = vrot.slane %v1210, 2
    %v1420 = vrot.slane %v1211, 2
    %v1421 = vsel %vm409, %v1419, %v1420
    %v1422 = vrot.slane %v1212, 2
    %v1423 = vsel %vm409, %v1420, %v1422
    %v1424 = vrot.slane %v1213, 2
    %v1425 = vsel %vm409, %v1422, %v1424
    %v1426 = vsel %vm189, %v1421, 0
    %v1428 = vsel %vm189, %v1423, 0
    %v1430 = vsel %vm189, %v1425, 0
    %v1432 = vsel %vm189, %v1424, 0
    %1434 = vmatprep.subr.mxu0 %v386
    %1435 = vmatpush1.msra.mxu0 %v385
    %1436 = vmatprep.subr.mxu0 %v388
    %1437 = vmatpush1.msra.mxu0 %v387
    %1438 = vmatprep.subr.mxu0 %v390
    %1439 = vmatpush1.msra.mxu0 %v389
    %1440 = vmatprep.subr.mxu0 %v392
    %1441 = vmatpush1.msra.mxu0 %v391
    %1442 = vmatprep.subr.mxu0 %v394
    %1443 = vmatpush1.msra.mxu0 %v393
    %1444 = vmatprep.subr.mxu0 %v396
    %1445 = vmatpush1.msra.mxu0 %v395
    %1446 = vmatprep.subr.mxu0 %v398
    %1447 = vmatpush1.msra.mxu0 %v397
    %1448 = vmatprep.subr.mxu0 %v400
    %1449 = vmatpush1.msra.mxu0 %v399
    %1450 = vmatprep.subr.mxu0 %v402
    %1451 = vmatpush1.msra.mxu0 %v401
    %1452 = vmatprep.subr.mxu0 %v404
    %1453 = vmatpush1.msra.mxu0 %v403
    %1454 = vmatprep.subr.mxu0 %v406
    %1455 = vmatpush1.msra.mxu0 %v405
    %1456 = vmatprep.subr.mxu0 %v408
    %1457 = vmatpush1.msra.mxu0 %v407
    %1458 = vmatprep.subr.mxu0 0.0
    %1459 = vmatpush1.msra.mxu0 0.0
    %1460 = vmatprep.subr.mxu0 0.0
    %1461 = vmatpush1.msra.mxu0 0.0
    %1462 = vmatprep.subr.mxu0 0.0
    %1463 = vmatpush1.msra.mxu0 0.0
    %1464 = vmatprep.subr.mxu0 0.0
    %1465 = vmatpush1.msra.mxu0 0.0
    %1466 = vmatprep.subr.mxu0 0.0
    %1467 = vmatpush1.msra.mxu0 0.0
    %1468 = vmatprep.subr.mxu0 0.0
    %1469 = vmatpush1.msra.mxu0 0.0
    %1470 = vmatprep.subr.mxu0 0.0
    %1471 = vmatpush1.msra.mxu0 0.0
    %1472 = vmatprep.subr.mxu0 0.0
    %1473 = vmatpush1.msra.mxu0 0.0
    %1474 = vmatprep.subr.mxu0 0.0
    %1475 = vmatpush1.msra.mxu0 0.0
    %1476 = vmatprep.subr.mxu0 0.0
    %1477 = vmatpush1.msra.mxu0 0.0
    %1478 = vmatprep.subr.mxu0 0.0
    %1479 = vmatpush1.msra.mxu0 0.0
    %1480 = vmatprep.subr.mxu0 0.0
    %1481 = vmatpush1.msra.mxu0 0.0
    %1482 = vmatprep.subr.mxu0 0.0
    %1483 = vmatpush1.msra.mxu0 0.0
    %1484 = vmatprep.subr.mxu0 0.0
    %1485 = vmatpush1.msra.mxu0 0.0
    %1486 = vmatprep.subr.mxu0 0.0
    %1487 = vmatpush1.msra.mxu0 0.0
    %1488 = vmatprep.subr.mxu0 0.0
    %1489 = vmatpush1.msra.mxu0 0.0
    %1490 = vmatprep.subr.mxu0 0.0
    %1491 = vmatpush1.msra.mxu0 0.0
    %1492 = vmatprep.subr.mxu0 0.0
    %1493 = vmatpush1.msra.mxu0 0.0
    %1494 = vmatprep.subr.mxu0 0.0
    %1495 = vmatpush1.msra.mxu0 0.0
    %1496 = vmatprep.subr.mxu0 0.0
    %1497 = vmatpush1.msra.mxu0 0.0
    %1498 = vmatprep.mubr.f32.mxu0 0.0
    %1499 = vmatmul.mubr.f32.gmra.mrb[0].mxu0 %v1426
    %v1500 = vpop.f32.mrb[0].mxu0
    %v1501 = vadd.f32 0.0, %v1500
    %v1502 = vpop.f32.mrb[0].mxu0
    %v1503 = vadd.f32 0.0, %v1502
    %1504 = vmatprep.mubr.f32.mxu0 0.0
    %1505 = vmatmul.mubr.f32.gmra.mrb[0].mxu0 %v1428
    %v1506 = vpop.f32.mrb[0].mxu0
    %v1507 = vadd.f32 0.0, %v1506
    %v1508 = vpop.f32.mrb[0].mxu0
    %v1509 = vadd.f32 0.0, %v1508
    %1510 = vmatprep.mubr.f32.mxu0 0.0
    %1511 = vmatmul.mubr.f32.gmra.mrb[0].mxu0 %v1430
    %v1512 = vpop.f32.mrb[0].mxu0
    %v1513 = vadd.f32 0.0, %v1512
    %v1514 = vpop.f32.mrb[0].mxu0
    %v1515 = vadd.f32 0.0, %v1514
    %1516 = vmatprep.mubr.f32.mxu0 0.0
    %1517 = vmatmul.mubr.f32.gmra.mrb[0].mxu0 %v1432
    %v1518 = vpop.f32.mrb[0].mxu0
    %v1519 = vadd.f32 0.0, %v1518
    %v1520 = vpop.f32.mrb[0].mxu0
    %v1521 = vadd.f32 0.0, %v1520
    %1522 = vdwg.mxu0
    %v1523 = vadd.f32 %v1397, %v1501
    %v1524 = vadd.f32 %v1399, %v1503
    %v1525 = vadd.f32 %v1403, %v1507
    %v1526 = vadd.f32 %v1405, %v1509
    %v1527 = vadd.f32 %v1409, %v1513
    %v1528 = vadd.f32 %v1411, %v1515
    %v1529 = vadd.f32 %v1415, %v1519
    %v1530 = vadd.f32 %v1417, %v1521
    %v1531 = vrot.slane %v1210, 3
    %v1532 = vrot.slane %v1211, 3
    %v1533 = vsel %vm547, %v1531, %v1532
    %v1534 = vrot.slane %v1212, 3
    %v1535 = vsel %vm547, %v1532, %v1534
    %v1536 = vrot.slane %v1213, 3
    %v1537 = vsel %vm547, %v1534, %v1536
    %v1538 = vsel %vm189, %v1533, 0
    %v1540 = vsel %vm189, %v1535, 0
    %v1542 = vsel %vm189, %v1537, 0
    %v1544 = vsel %vm189, %v1536, 0
    %1546 = vmatprep.subr.mxu0 %v524
    %1547 = vmatpush1.msra.mxu0 %v523
    %1548 = vmatprep.subr.mxu0 %v526
    %1549 = vmatpush1.msra.mxu0 %v525
    %1550 = vmatprep.subr.mxu0 %v528
    %1551 = vmatpush1.msra.mxu0 %v527
    %1552 = vmatprep.subr.mxu0 %v530
    %1553 = vmatpush1.msra.mxu0 %v529
    %1554 = vmatprep.subr.mxu0 %v532
    %1555 = vmatpush1.msra.mxu0 %v531
    %1556 = vmatprep.subr.mxu0 %v534
    %1557 = vmatpush1.msra.mxu0 %v533
    %1558 = vmatprep.subr.mxu0 %v536
    %1559 = vmatpush1.msra.mxu0 %v535
    %1560 = vmatprep.subr.mxu0 %v538
    %1561 = vmatpush1.msra.mxu0 %v537
    %1562 = vmatprep.subr.mxu0 %v540
    %1563 = vmatpush1.msra.mxu0 %v539
    %1564 = vmatprep.subr.mxu0 %v542
    %1565 = vmatpush1.msra.mxu0 %v541
    %1566 = vmatprep.subr.mxu0 %v544
    %1567 = vmatpush1.msra.mxu0 %v543
    %1568 = vmatprep.subr.mxu0 %v546
    %1569 = vmatpush1.msra.mxu0 %v545
    %1570 = vmatprep.subr.mxu0 0.0
    %1571 = vmatpush1.msra.mxu0 0.0
    %1572 = vmatprep.subr.mxu0 0.0
    %1573 = vmatpush1.msra.mxu0 0.0
    %1574 = vmatprep.subr.mxu0 0.0
    %1575 = vmatpush1.msra.mxu0 0.0
    %1576 = vmatprep.subr.mxu0 0.0
    %1577 = vmatpush1.msra.mxu0 0.0
    %1578 = vmatprep.subr.mxu0 0.0
    %1579 = vmatpush1.msra.mxu0 0.0
    %1580 = vmatprep.subr.mxu0 0.0
    %1581 = vmatpush1.msra.mxu0 0.0
    %1582 = vmatprep.subr.mxu0 0.0
    %1583 = vmatpush1.msra.mxu0 0.0
    %1584 = vmatprep.subr.mxu0 0.0
    %1585 = vmatpush1.msra.mxu0 0.0
    %1586 = vmatprep.subr.mxu0 0.0
    %1587 = vmatpush1.msra.mxu0 0.0
    %1588 = vmatprep.subr.mxu0 0.0
    %1589 = vmatpush1.msra.mxu0 0.0
    %1590 = vmatprep.subr.mxu0 0.0
    %1591 = vmatpush1.msra.mxu0 0.0
    %1592 = vmatprep.subr.mxu0 0.0
    %1593 = vmatpush1.msra.mxu0 0.0
    %1594 = vmatprep.subr.mxu0 0.0
    %1595 = vmatpush1.msra.mxu0 0.0
    %1596 = vmatprep.subr.mxu0 0.0
    %1597 = vmatpush1.msra.mxu0 0.0
    %1598 = vmatprep.subr.mxu0 0.0
    %1599 = vmatpush1.msra.mxu0 0.0
    %1600 = vmatprep.subr.mxu0 0.0
    %1601 = vmatpush1.msra.mxu0 0.0
    %1602 = vmatprep.subr.mxu0 0.0
    %1603 = vmatpush1.msra.mxu0 0.0
    %1604 = vmatprep.subr.mxu0 0.0
    %1605 = vmatpush1.msra.mxu0 0.0
    %1606 = vmatprep.subr.mxu0 0.0
    %1607 = vmatpush1.msra.mxu0 0.0
    %1608 = vmatprep.subr.mxu0 0.0
    %1609 = vmatpush1.msra.mxu0 0.0
    %1610 = vmatprep.mubr.f32.mxu0 0.0
    %1611 = vmatmul.mubr.f32.gmra.mrb[0].mxu0 %v1538
    %v1612 = vpop.f32.mrb[0].mxu0
    %v1613 = vadd.f32 0.0, %v1612
    %v1614 = vpop.f32.mrb[0].mxu0
    %v1615 = vadd.f32 0.0, %v1614
    %1616 = vmatprep.mubr.f32.mxu0 0.0
    %1617 = vmatmul.mubr.f32.gmra.mrb[0].mxu0 %v1540
    %v1618 = vpop.f32.mrb[0].mxu0
    %v1619 = vadd.f32 0.0, %v1618
    %v1620 = vpop.f32.mrb[0].mxu0
    %v1621 = vadd.f32 0.0, %v1620
    %1622 = vmatprep.mubr.f32.mxu0 0.0
    %1623 = vmatmul.mubr.f32.gmra.mrb[0].mxu0 %v1542
    %v1624 = vpop.f32.mrb[0].mxu0
    %v1625 = vadd.f32 0.0, %v1624
    %v1626 = vpop.f32.mrb[0].mxu0
    %v1627 = vadd.f32 0.0, %v1626
    %1628 = vmatprep.mubr.f32.mxu0 0.0
    %1629 = vmatmul.mubr.f32.gmra.mrb[0].mxu0 %v1544
    %v1630 = vpop.f32.mrb[0].mxu0
    %v1631 = vadd.f32 0.0, %v1630
    %v1632 = vpop.f32.mrb[0].mxu0
    %v1633 = vadd.f32 0.0, %v1632
    %1634 = vdwg.mxu0
    %v1635 = vadd.f32 %v1523, %v1613
    %v1636 = vadd.f32 %v1524, %v1615
    %v1637 = vadd.f32 %v1525, %v1619
    %v1638 = vadd.f32 %v1526, %v1621
    %v1639 = vadd.f32 %v1527, %v1625
    %v1640 = vadd.f32 %v1528, %v1627
    %v1641 = vadd.f32 %v1529, %v1631
    %v1642 = vadd.f32 %v1530, %v1633
    %v1643 = vrot.slane %v1210, 4
    %v1644 = vrot.slane %v1211, 4
    %v1645 = vsel %vm685, %v1643, %v1644
    %v1646 = vrot.slane %v1212, 4
    %v1647 = vsel %vm685, %v1644, %v1646
    %v1648 = vrot.slane %v1213, 4
    %v1649 = vsel %vm685, %v1646, %v1648
    %v1650 = vsel %vm189, %v1645, 0
    %v1652 = vsel %vm189, %v1647, 0
    %v1654 = vsel %vm189, %v1649, 0
    %v1656 = vsel %vm189, %v1648, 0
    %1658 = vmatprep.subr.mxu0 %v662
    %1659 = vmatpush1.msra.mxu0 %v661
    %1660 = vmatprep.subr.mxu0 %v664
    %1661 = vmatpush1.msra.mxu0 %v663
    %1662 = vmatprep.subr.mxu0 %v666
    %1663 = vmatpush1.msra.mxu0 %v665
    %1664 = vmatprep.subr.mxu0 %v668
    %1665 = vmatpush1.msra.mxu0 %v667
    %1666 = vmatprep.subr.mxu0 %v670
    %1667 = vmatpush1.msra.mxu0 %v669
    %1668 = vmatprep.subr.mxu0 %v672
    %1669 = vmatpush1.msra.mxu0 %v671
    %1670 = vmatprep.subr.mxu0 %v674
    %1671 = vmatpush1.msra.mxu0 %v673
    %1672 = vmatprep.subr.mxu0 %v676
    %1673 = vmatpush1.msra.mxu0 %v675
    %1674 = vmatprep.subr.mxu0 %v678
    %1675 = vmatpush1.msra.mxu0 %v677
    %1676 = vmatprep.subr.mxu0 %v680
    %1677 = vmatpush1.msra.mxu0 %v679
    %1678 = vmatprep.subr.mxu0 %v682
    %1679 = vmatpush1.msra.mxu0 %v681
    %1680 = vmatprep.subr.mxu0 %v684
    %1681 = vmatpush1.msra.mxu0 %v683
    %1682 = vmatprep.subr.mxu0 0.0
    %1683 = vmatpush1.msra.mxu0 0.0
    %1684 = vmatprep.subr.mxu0 0.0
    %1685 = vmatpush1.msra.mxu0 0.0
    %1686 = vmatprep.subr.mxu0 0.0
    %1687 = vmatpush1.msra.mxu0 0.0
    %1688 = vmatprep.subr.mxu0 0.0
    %1689 = vmatpush1.msra.mxu0 0.0
    %1690 = vmatprep.subr.mxu0 0.0
    %1691 = vmatpush1.msra.mxu0 0.0
    %1692 = vmatprep.subr.mxu0 0.0
    %1693 = vmatpush1.msra.mxu0 0.0
    %1694 = vmatprep.subr.mxu0 0.0
    %1695 = vmatpush1.msra.mxu0 0.0
    %1696 = vmatprep.subr.mxu0 0.0
    %1697 = vmatpush1.msra.mxu0 0.0
    %1698 = vmatprep.subr.mxu0 0.0
    %1699 = vmatpush1.msra.mxu0 0.0
    %1700 = vmatprep.subr.mxu0 0.0
    %1701 = vmatpush1.msra.mxu0 0.0
    %1702 = vmatprep.subr.mxu0 0.0
    %1703 = vmatpush1.msra.mxu0 0.0
    %1704 = vmatprep.subr.mxu0 0.0
    %1705 = vmatpush1.msra.mxu0 0.0
    %1706 = vmatprep.subr.mxu0 0.0
    %1707 = vmatpush1.msra.mxu0 0.0
    %1708 = vmatprep.subr.mxu0 0.0
    %1709 = vmatpush1.msra.mxu0 0.0
    %1710 = vmatprep.subr.mxu0 0.0
    %1711 = vmatpush1.msra.mxu0 0.0
    %1712 = vmatprep.subr.mxu0 0.0
    %1713 = vmatpush1.msra.mxu0 0.0
    %1714 = vmatprep.subr.mxu0 0.0
    %1715 = vmatpush1.msra.mxu0 0.0
    %1716 = vmatprep.subr.mxu0 0.0
    %1717 = vmatpush1.msra.mxu0 0.0
    %1718 = vmatprep.subr.mxu0 0.0
    %1719 = vmatpush1.msra.mxu0 0.0
    %1720 = vmatprep.subr.mxu0 0.0
    %1721 = vmatpush1.msra.mxu0 0.0
    %1722 = vmatprep.mubr.f32.mxu0 0.0
    %1723 = vmatmul.mubr.f32.gmra.mrb[0].mxu0 %v1650
    %v1724 = vpop.f32.mrb[0].mxu0
    %v1725 = vadd.f32 0.0, %v1724
    %v1726 = vpop.f32.mrb[0].mxu0
    %v1727 = vadd.f32 0.0, %v1726
    %1728 = vmatprep.mubr.f32.mxu0 0.0
    %1729 = vmatmul.mubr.f32.gmra.mrb[0].mxu0 %v1652
    %v1730 = vpop.f32.mrb[0].mxu0
    %v1731 = vadd.f32 0.0, %v1730
    %v1732 = vpop.f32.mrb[0].mxu0
    %v1733 = vadd.f32 0.0, %v1732
    %1734 = vmatprep.mubr.f32.mxu0 0.0
    %1735 = vmatmul.mubr.f32.gmra.mrb[0].mxu0 %v1654
    %v1736 = vpop.f32.mrb[0].mxu0
    %v1737 = vadd.f32 0.0, %v1736
    %v1738 = vpop.f32.mrb[0].mxu0
    %v1739 = vadd.f32 0.0, %v1738
    %1740 = vmatprep.mubr.f32.mxu0 0.0
    %1741 = vmatmul.mubr.f32.gmra.mrb[0].mxu0 %v1656
    %v1742 = vpop.f32.mrb[0].mxu0
    %v1743 = vadd.f32 0.0, %v1742
    %v1744 = vpop.f32.mrb[0].mxu0
    %v1745 = vadd.f32 0.0, %v1744
    %1746 = vdwg.mxu0
    %v1747 = vadd.f32 %v1635, %v1725
    %v1748 = vadd.f32 %v1636, %v1727
    %v1749 = vadd.f32 %v1637, %v1731
    %v1750 = vadd.f32 %v1638, %v1733
    %v1751 = vadd.f32 %v1639, %v1737
    %v1752 = vadd.f32 %v1640, %v1739
    %v1753 = vadd.f32 %v1641, %v1743
    %v1754 = vadd.f32 %v1642, %v1745
    %v1756 = vsel %vm819, %v1748, 0
    %v1759 = vsel %vm819, %v1750, 0
    %v1762 = vsel %vm819, %v1752, 0
    %v1765 = vsel %vm819, %v1754, 0
    %1767 = vmatprep.subr.mxu0 0.0
    %1768 = vmatpush1.msra.mxu0 %v798
    %1769 = vmatprep.subr.mxu0 0.0
    %1770 = vmatpush1.msra.mxu0 %v799
    %1771 = vmatprep.subr.mxu0 0.0
    %1772 = vmatpush1.msra.mxu0 %v800
    %1773 = vmatprep.subr.mxu0 0.0
    %1774 = vmatpush1.msra.mxu0 %v801
    %1775 = vmatprep.subr.mxu0 0.0
    %1776 = vmatpush1.msra.mxu0 %v802
    %1777 = vmatprep.subr.mxu0 0.0
    %1778 = vmatpush1.msra.mxu0 %v803
    %1779 = vmatprep.subr.mxu0 0.0
    %1780 = vmatpush1.msra.mxu0 %v804
    %1781 = vmatprep.subr.mxu0 0.0
    %1782 = vmatpush1.msra.mxu0 %v805
    %1783 = vmatprep.subr.mxu0 0.0
    %1784 = vmatpush1.msra.mxu0 %v806
    %1785 = vmatprep.subr.mxu0 0.0
    %1786 = vmatpush1.msra.mxu0 %v807
    %1787 = vmatprep.subr.mxu0 0.0
    %1788 = vmatpush1.msra.mxu0 %v808
    %1789 = vmatprep.subr.mxu0 0.0
    %1790 = vmatpush1.msra.mxu0 %v809
    %1791 = vmatprep.subr.mxu0 0.0
    %1792 = vmatpush1.msra.mxu0 %v810
    %1793 = vmatprep.subr.mxu0 0.0
    %1794 = vmatpush1.msra.mxu0 %v811
    %1795 = vmatprep.subr.mxu0 0.0
    %1796 = vmatpush1.msra.mxu0 %v812
    %1797 = vmatprep.subr.mxu0 0.0
    %1798 = vmatpush1.msra.mxu0 %v813
    %1799 = vmatprep.subr.mxu0 0.0
    %1800 = vmatpush1.msra.mxu0 %v814
    %1801 = vmatprep.subr.mxu0 0.0
    %1802 = vmatpush1.msra.mxu0 %v815
    %1803 = vmatprep.subr.mxu0 0.0
    %1804 = vmatpush1.msra.mxu0 %v816
    %1805 = vmatprep.subr.mxu0 0.0
    %1806 = vmatpush1.msra.mxu0 %v817
    %1807 = vmatprep.subr.mxu0 0.0
    %1808 = vmatpush1.msra.mxu0 %v818
    %1809 = vmatprep.subr.mxu0 0.0
    %1810 = vmatpush1.msra.mxu0 0.0
    %1811 = vmatprep.subr.mxu0 0.0
    %1812 = vmatpush1.msra.mxu0 0.0
    %1813 = vmatprep.subr.mxu0 0.0
    %1814 = vmatpush1.msra.mxu0 0.0
    %1815 = vmatprep.subr.mxu0 0.0
    %1816 = vmatpush1.msra.mxu0 0.0
    %1817 = vmatprep.subr.mxu0 0.0
    %1818 = vmatpush1.msra.mxu0 0.0
    %1819 = vmatprep.subr.mxu0 0.0
    %1820 = vmatpush1.msra.mxu0 0.0
    %1821 = vmatprep.subr.mxu0 0.0
    %1822 = vmatpush1.msra.mxu0 0.0
    %1823 = vmatprep.subr.mxu0 0.0
    %1824 = vmatpush1.msra.mxu0 0.0
    %1825 = vmatprep.subr.mxu0 0.0
    %1826 = vmatpush1.msra.mxu0 0.0
    %1827 = vmatprep.subr.mxu0 0.0
    %1828 = vmatpush1.msra.mxu0 0.0
    %1829 = vmatprep.subr.mxu0 0.0
    %1830 = vmatpush1.msra.mxu0 0.0
    %1831 = vmatprep.mubr.f32.mxu0 %v1756
    %1832 = vmatmul.mubr.f32.gmra.mrb[0].mxu0 %v1747
    %v1833 = vpop.f32.mrb[0].mxu0
    %v1834 = vadd.f32 0.0, %v1833
    %v1835 = vpop.f32.mrb[0].mxu0
    %1836 = vmatprep.mubr.f32.mxu0 %v1759
    %1837 = vmatmul.mubr.f32.gmra.mrb[0].mxu0 %v1749
    %v1838 = vpop.f32.mrb[0].mxu0
    %v1839 = vadd.f32 0.0, %v1838
    %v1840 = vpop.f32.mrb[0].mxu0
    %1841 = vmatprep.mubr.f32.mxu0 %v1762
    %1842 = vmatmul.mubr.f32.gmra.mrb[0].mxu0 %v1751
    %v1843 = vpop.f32.mrb[0].mxu0
    %v1844 = vadd.f32 0.0, %v1843
    %v1845 = vpop.f32.mrb[0].mxu0
    %1846 = vmatprep.mubr.f32.mxu0 %v1765
    %1847 = vmatmul.mubr.f32.gmra.mrb[0].mxu0 %v1753
    %v1848 = vpop.f32.mrb[0].mxu0
    %v1849 = vadd.f32 0.0, %v1848
    %v1850 = vpop.f32.mrb[0].mxu0
    %1851 = vdwg.mxu0
    %1852 = vmatprep.subr.mxu0 0.0
    %1853 = vmatpush1.msra.mxu0 %v917
    %1854 = vmatprep.subr.mxu0 0.0
    %1855 = vmatpush1.msra.mxu0 %v918
    %1856 = vmatprep.subr.mxu0 0.0
    %1857 = vmatpush1.msra.mxu0 %v919
    %1858 = vmatprep.subr.mxu0 0.0
    %1859 = vmatpush1.msra.mxu0 %v920
    %1860 = vmatprep.subr.mxu0 0.0
    %1861 = vmatpush1.msra.mxu0 %v921
    %1862 = vmatprep.subr.mxu0 0.0
    %1863 = vmatpush1.msra.mxu0 %v922
    %1864 = vmatprep.subr.mxu0 0.0
    %1865 = vmatpush1.msra.mxu0 %v923
    %1866 = vmatprep.subr.mxu0 0.0
    %1867 = vmatpush1.msra.mxu0 %v924
    %1868 = vmatprep.subr.mxu0 0.0
    %1869 = vmatpush1.msra.mxu0 %v925
    %1870 = vmatprep.subr.mxu0 0.0
    %1871 = vmatpush1.msra.mxu0 %v926
    %1872 = vmatprep.subr.mxu0 0.0
    %1873 = vmatpush1.msra.mxu0 %v927
    %1874 = vmatprep.subr.mxu0 0.0
    %1875 = vmatpush1.msra.mxu0 %v928
    %1876 = vmatprep.subr.mxu0 0.0
    %1877 = vmatpush1.msra.mxu0 %v929
    %1878 = vmatprep.subr.mxu0 0.0
    %1879 = vmatpush1.msra.mxu0 %v930
    %1880 = vmatprep.subr.mxu0 0.0
    %1881 = vmatpush1.msra.mxu0 %v931
    %1882 = vmatprep.subr.mxu0 0.0
    %1883 = vmatpush1.msra.mxu0 %v932
    %1884 = vmatprep.subr.mxu0 0.0
    %1885 = vmatpush1.msra.mxu0 %v933
    %1886 = vmatprep.subr.mxu0 0.0
    %1887 = vmatpush1.msra.mxu0 %v934
    %1888 = vmatprep.subr.mxu0 0.0
    %1889 = vmatpush1.msra.mxu0 %v935
    %1890 = vmatprep.subr.mxu0 0.0
    %1891 = vmatpush1.msra.mxu0 %v936
    %1892 = vmatprep.subr.mxu0 0.0
    %1893 = vmatpush1.msra.mxu0 %v937
    %1894 = vmatprep.subr.mxu0 0.0
    %1895 = vmatpush1.msra.mxu0 0.0
    %1896 = vmatprep.subr.mxu0 0.0
    %1897 = vmatpush1.msra.mxu0 0.0
    %1898 = vmatprep.subr.mxu0 0.0
    %1899 = vmatpush1.msra.mxu0 0.0
    %1900 = vmatprep.subr.mxu0 0.0
    %1901 = vmatpush1.msra.mxu0 0.0
    %1902 = vmatprep.subr.mxu0 0.0
    %1903 = vmatpush1.msra.mxu0 0.0
    %1904 = vmatprep.subr.mxu0 0.0
    %1905 = vmatpush1.msra.mxu0 0.0
    %1906 = vmatprep.subr.mxu0 0.0
    %1907 = vmatpush1.msra.mxu0 0.0
    %1908 = vmatprep.subr.mxu0 0.0
    %1909 = vmatpush1.msra.mxu0 0.0
    %1910 = vmatprep.subr.mxu0 0.0
    %1911 = vmatpush1.msra.mxu0 0.0
    %1912 = vmatprep.subr.mxu0 0.0
    %1913 = vmatpush1.msra.mxu0 0.0
    %1914 = vmatprep.subr.mxu0 0.0
    %1915 = vmatpush1.msra.mxu0 0.0
    %1916 = vmatprep.mubr.f32.mxu0 %v1756
    %1917 = vmatmul.mubr.f32.gmra.mrb[0].mxu0 %v1747
    %v1918 = vpop.f32.mrb[0].mxu0
    %v1919 = vadd.f32 0.0, %v1918
    %v1920 = vpop.f32.mrb[0].mxu0
    %1921 = vmatprep.mubr.f32.mxu0 %v1759
    %1922 = vmatmul.mubr.f32.gmra.mrb[0].mxu0 %v1749
    %v1923 = vpop.f32.mrb[0].mxu0
    %v1924 = vadd.f32 0.0, %v1923
    %v1925 = vpop.f32.mrb[0].mxu0
    %1926 = vmatprep.mubr.f32.mxu0 %v1762
    %1927 = vmatmul.mubr.f32.gmra.mrb[0].mxu0 %v1751
    %v1928 = vpop.f32.mrb[0].mxu0
    %v1929 = vadd.f32 0.0, %v1928
    %v1930 = vpop.f32.mrb[0].mxu0
    %1931 = vmatprep.mubr.f32.mxu0 %v1765
    %1932 = vmatmul.mubr.f32.gmra.mrb[0].mxu0 %v1753
    %v1933 = vpop.f32.mrb[0].mxu0
    %v1934 = vadd.f32 0.0, %v1933
    %v1935 = vpop.f32.mrb[0].mxu0
    %1936 = vdwg.mxu0
    %v1937 = vmax.f32 %v1834, %v1919
    %v1938 = vmax.f32 %v1839, %v1924
    %v1939 = vmax.f32 %v1844, %v1929
    %v1940 = vmax.f32 %v1849, %v1934
    %v1942 = vsel %vm685, %v1940, 0
    %1944 = vmatprep.subr.mxu0 0.0
    %1945 = vmatpush1.msra.mxu0 %v1937
    %1946 = vmatprep.subr.mxu0 0.0
    %1947 = vmatpush1.msra.mxu0 %v1938
    %1948 = vmatprep.subr.mxu0 0.0
    %1949 = vmatpush1.msra.mxu0 %v1939
    %1950 = vmatprep.subr.mxu0 0.0
    %1951 = vmatpush1.msra.mxu0 %v1942
    %1952 = vmatprep.subr.mxu0 0.0
    %1953 = vmatpush1.msra.mxu0 0.0
    %1954 = vmatprep.subr.mxu0 0.0
    %1955 = vmatpush1.msra.mxu0 0.0
    %1956 = vmatprep.subr.mxu0 0.0
    %1957 = vmatpush1.msra.mxu0 0.0
    %1958 = vmatprep.subr.mxu0 0.0
    %1959 = vmatpush1.msra.mxu0 0.0
    %1960 = vmatprep.subr.mxu0 0.0
    %1961 = vmatpush1.msra.mxu0 0.0
    %1962 = vmatprep.subr.mxu0 0.0
    %1963 = vmatpush1.msra.mxu0 0.0
    %1964 = vmatprep.subr.mxu0 0.0
    %1965 = vmatpush1.msra.mxu0 0.0
    %1966 = vmatprep.subr.mxu0 0.0
    %1967 = vmatpush1.msra.mxu0 0.0
    %1968 = vmatprep.subr.mxu0 0.0
    %1969 = vmatpush1.msra.mxu0 0.0
    %1970 = vmatprep.subr.mxu0 0.0
    %1971 = vmatpush1.msra.mxu0 0.0
    %1972 = vmatprep.subr.mxu0 0.0
    %1973 = vmatpush1.msra.mxu0 0.0
    %1974 = vmatprep.subr.mxu0 0.0
    %1975 = vmatpush1.msra.mxu0 0.0
    %1976 = vmatprep.subr.mxu0 0.0
    %1977 = vmatpush1.msra.mxu0 0.0
    %1978 = vmatprep.subr.mxu0 0.0
    %1979 = vmatpush1.msra.mxu0 0.0
    %1980 = vmatprep.subr.mxu0 0.0
    %1981 = vmatpush1.msra.mxu0 0.0
    %1982 = vmatprep.subr.mxu0 0.0
    %1983 = vmatpush1.msra.mxu0 0.0
    %1984 = vmatprep.subr.mxu0 0.0
    %1985 = vmatpush1.msra.mxu0 0.0
    %1986 = vmatprep.subr.mxu0 0.0
    %1987 = vmatpush1.msra.mxu0 0.0
    %1988 = vmatprep.subr.mxu0 0.0
    %1989 = vmatpush1.msra.mxu0 0.0
    %1990 = vmatprep.subr.mxu0 0.0
    %1991 = vmatpush1.msra.mxu0 0.0
    %1992 = vmatprep.subr.mxu0 0.0
    %1993 = vmatpush1.msra.mxu0 0.0
    %1994 = vmatprep.subr.mxu0 0.0
    %1995 = vmatpush1.msra.mxu0 0.0
    %1996 = vmatprep.subr.mxu0 0.0
    %1997 = vmatpush1.msra.mxu0 0.0
    %1998 = vmatprep.subr.mxu0 0.0
    %1999 = vmatpush1.msra.mxu0 0.0
    %2000 = vmatprep.subr.mxu0 0.0
    %2001 = vmatpush1.msra.mxu0 0.0
    %2002 = vmatprep.subr.mxu0 0.0
    %2003 = vmatpush1.msra.mxu0 0.0
    %2004 = vmatprep.subr.mxu0 0.0
    %2005 = vmatpush1.msra.mxu0 0.0
    %2006 = vmatprep.subr.mxu0 0.0
    %2007 = vmatpush1.msra.mxu0 0.0
    %2008 = vmatprep.mubr.f32.mxu0 0.0
    %2009 = vmatmul.mubr.f32.gmra.mrb[0].mxu0 %v1031
    %v2010 = vpop.f32.mrb[0].mxu0
    %v2011 = vadd.f32 0.0, %v2010
    %v2012 = vpop.f32.mrb[0].mxu0
    %2013 = vmatprep.mubr.f32.mxu0 0.0
    %2014 = vmatmul.mubr.f32.gmra.mrb[0].mxu0 %v1034
    %v2015 = vpop.f32.mrb[0].mxu0
    %v2016 = vadd.f32 0.0, %v2015
    %v2017 = vpop.f32.mrb[0].mxu0
    %2018 = vdwg.mxu0
    %2019 = vmatprep.subr.mxu0 0.0
    %2020 = vmatpush1.msra.mxu0 %v1937
    %2021 = vmatprep.subr.mxu0 0.0
    %2022 = vmatpush1.msra.mxu0 %v1938
    %2023 = vmatprep.subr.mxu0 0.0
    %2024 = vmatpush1.msra.mxu0 %v1939
    %2025 = vmatprep.subr.mxu0 0.0
    %2026 = vmatpush1.msra.mxu0 %v1942
    %2027 = vmatprep.subr.mxu0 0.0
    %2028 = vmatpush1.msra.mxu0 0.0
    %2029 = vmatprep.subr.mxu0 0.0
    %2030 = vmatpush1.msra.mxu0 0.0
    %2031 = vmatprep.subr.mxu0 0.0
    %2032 = vmatpush1.msra.mxu0 0.0
    %2033 = vmatprep.subr.mxu0 0.0
    %2034 = vmatpush1.msra.mxu0 0.0
    %2035 = vmatprep.subr.mxu0 0.0
    %2036 = vmatpush1.msra.mxu0 0.0
    %2037 = vmatprep.subr.mxu0 0.0
    %2038 = vmatpush1.msra.mxu0 0.0
    %2039 = vmatprep.subr.mxu0 0.0
    %2040 = vmatpush1.msra.mxu0 0.0
    %2041 = vmatprep.subr.mxu0 0.0
    %2042 = vmatpush1.msra.mxu0 0.0
    %2043 = vmatprep.subr.mxu0 0.0
    %2044 = vmatpush1.msra.mxu0 0.0
    %2045 = vmatprep.subr.mxu0 0.0
    %2046 = vmatpush1.msra.mxu0 0.0
    %2047 = vmatprep.subr.mxu0 0.0
    %2048 = vmatpush1.msra.mxu0 0.0
    %2049 = vmatprep.subr.mxu0 0.0
    %2050 = vmatpush1.msra.mxu0 0.0
    %2051 = vmatprep.subr.mxu0 0.0
    %2052 = vmatpush1.msra.mxu0 0.0
    %2053 = vmatprep.subr.mxu0 0.0
    %2054 = vmatpush1.msra.mxu0 0.0
    %2055 = vmatprep.subr.mxu0 0.0
    %2056 = vmatpush1.msra.mxu0 0.0
    %2057 = vmatprep.subr.mxu0 0.0
    %2058 = vmatpush1.msra.mxu0 0.0
    %2059 = vmatprep.subr.mxu0 0.0
    %2060 = vmatpush1.msra.mxu0 0.0
    %2061 = vmatprep.subr.mxu0 0.0
    %2062 = vmatpush1.msra.mxu0 0.0
    %2063 = vmatprep.subr.mxu0 0.0
    %2064 = vmatpush1.msra.mxu0 0.0
    %2065 = vmatprep.subr.mxu0 0.0
    %2066 = vmatpush1.msra.mxu0 0.0
    %2067 = vmatprep.subr.mxu0 0.0
    %2068 = vmatpush1.msra.mxu0 0.0
    %2069 = vmatprep.subr.mxu0 0.0
    %2070 = vmatpush1.msra.mxu0 0.0
    %2071 = vmatprep.subr.mxu0 0.0
    %2072 = vmatpush1.msra.mxu0 0.0
    %2073 = vmatprep.subr.mxu0 0.0
    %2074 = vmatpush1.msra.mxu0 0.0
    %2075 = vmatprep.subr.mxu0 0.0
    %2076 = vmatpush1.msra.mxu0 0.0
    %2077 = vmatprep.subr.mxu0 0.0
    %2078 = vmatpush1.msra.mxu0 0.0
    %2079 = vmatprep.subr.mxu0 0.0
    %2080 = vmatpush1.msra.mxu0 0.0
    %2081 = vmatprep.subr.mxu0 0.0
    %2082 = vmatpush1.msra.mxu0 0.0
    %2083 = vmatprep.mubr.f32.mxu0 0.0
    %2084 = vmatmul.mubr.f32.gmra.mrb[0].mxu0 %v1117
    %v2085 = vpop.f32.mrb[0].mxu0
    %v2086 = vadd.f32 0.0, %v2085
    %v2087 = vpop.f32.mrb[0].mxu0
    %2088 = vmatprep.mubr.f32.mxu0 0.0
    %2089 = vmatmul.mubr.f32.gmra.mrb[0].mxu0 %v1120
    %v2090 = vpop.f32.mrb[0].mxu0
    %v2091 = vadd.f32 0.0, %v2090
    %v2092 = vpop.f32.mrb[0].mxu0
    %2093 = vdwg.mxu0
    %v2094 = vmax.f32 %v2011, %v2086
    %v2095 = vmax.f32 %v2016, %v2091
    %v2096 = vadd.f32 %v2094, %v1203
    %v2097 = vadd.f32 %v2095, %v1203
    %v2098 = vmax.f32 %v2096, 0.0
    %v2099 = vmax.f32 %v2097, 0.0
    %v2100 = vld [vmem:[%s35] sm:$0x1]
    %v2101 = vld [vmem:[%s37] sm:$0x1]
    %v2102 = vld [vmem:[%s23] sm:$0xff]
    %v2103 = vld [vmem:[%s23 + $0x8] sm:$0xff]
    %v2104 = vld [vmem:[%s23 + $0x10] sm:$0xff]
    %v2105 = vld [vmem:[%s23 + $0x18] sm:$0xff]
    %v2106 = vld [vmem:[%s23 + $0x20] sm:$0xff]
    %v2107 = vld [vmem:[%s23 + $0x28] sm:$0xff]
    %v2108 = vld [vmem:[%s23 + $0x30] sm:$0xff]
    %v2109 = vld [vmem:[%s23 + $0x38] sm:$0xff]
    %v2110 = vld [vmem:[%s23 + $0x40] sm:$0xff]
    %v2111 = vld [vmem:[%s23 + $0x48] sm:$0xff]
    %v2112 = vld [vmem:[%s23 + $0x50] sm:$0xf]
    %v2113 = vld [vmem:[%s25] sm:$0x3f]
    %vm2114 = vcmask 687104
    %v2115 = vsel %vm2114, %v1207, 0.0
    %vm2116 = vcmask 685056
    %v2117 = vsel %vm2116, %v1208, 0.0
    %v2118 = vadd.f32 %v2115, %v2117
    %v2119 = vrot.slane %v2118, 4
    %v2120 = vadd.f32 %v2118, %v2119
    %v2121 = vrot.slane %v2120, 2
    %v2122 = vadd.f32 %v2120, %v2121
    %v2123 = vrot.slane %v2122, 1
    %v2124 = vadd.f32 %v2122, %v2123
    %v2125 = vmul.f32 %v1207, %v1207
    %v2126 = vmul.f32 %v1208, %v1208
    %v2127 = vsel %vm2114, %v2125, 0.0
    %v2128 = vsel %vm2116, %v2126, 0.0
    %v2129 = vadd.f32 %v2127, %v2128
    %v2130 = vrot.slane %v2129, 4
    %v2131 = vadd.f32 %v2129, %v2130
    %v2132 = vrot.slane %v2131, 2
    %v2133 = vadd.f32 %v2131, %v2132
    %v2134 = vrot.slane %v2133, 1
    %v2135 = vadd.f32 %v2133, %v2134
    %v2136 = vsel %vm2114, %v2098, 0.0
    %v2137 = vsel %vm2116, %v2099, 0.0
    %v2138 = vadd.f32 %v2136, %v2137
    %v2139 = vrot.slane %v2138, 4
    %v2140 = vadd.f32 %v2138, %v2139
    %v2141 = vrot.slane %v2140, 2
    %v2142 = vadd.f32 %v2140, %v2141
    %v2143 = vrot.slane %v2142, 1
    %v2144 = vadd.f32 %v2142, %v2143
    %v2145 = vadd.f32 %v2124, %v2144
    %v2146 = vmul.f32 %v2098, %v2098
    %v2147 = vmul.f32 %v2099, %v2099
    %v2148 = vsel %vm2114, %v2146, 0.0
    %v2149 = vsel %vm2116, %v2147, 0.0
    %v2150 = vadd.f32 %v2148, %v2149
    %v2151 = vrot.slane %v2150, 4
    %v2152 = vadd.f32 %v2150, %v2151
    %v2153 = vrot.slane %v2152, 2
    %v2154 = vadd.f32 %v2152, %v2153
    %v2155 = vrot.slane %v2154, 1
    %v2156 = vadd.f32 %v2154, %v2155
    %v2157 = vadd.f32 %v2135, %v2156
    %v2159 = vsel %vm2114, %v2145, 0
    %v2162 = vsel %vm685, %v2112, 0
    %2164 = vmatprep.subr.mxu0 0.0
    %2165 = vmatpush1.msra.mxu0 %v2102
    %2166 = vmatprep.subr.mxu0 0.0
    %2167 = vmatpush1.msra.mxu0 %v2103
    %2168 = vmatprep.subr.mxu0 0.0
    %2169 = vmatpush1.msra.mxu0 %v2104
    %2170 = vmatprep.subr.mxu0 0.0
    %2171 = vmatpush1.msra.mxu0 %v2105
    %2172 = vmatprep.subr.mxu0 0.0
    %2173 = vmatpush1.msra.mxu0 %v2106
    %2174 = vmatprep.subr.mxu0 0.0
    %2175 = vmatpush1.msra.mxu0 %v2107
    %2176 = vmatprep.subr.mxu0 0.0
    %2177 = vmatpush1.msra.mxu0 %v2108
    %2178 = vmatprep.subr.mxu0 0.0
    %2179 = vmatpush1.msra.mxu0 %v2109
    %2180 = vmatprep.subr.mxu0 0.0
    %2181 = vmatpush1.msra.mxu0 %v2110
    %2182 = vmatprep.subr.mxu0 0.0
    %2183 = vmatpush1.msra.mxu0 %v2111
    %2184 = vmatprep.subr.mxu0 0.0
    %2185 = vmatpush1.msra.mxu0 %v2162
    %2186 = vmatprep.subr.mxu0 0.0
    %2187 = vmatpush1.msra.mxu0 0.0
    %2188 = vmatprep.subr.mxu0 0.0
    %2189 = vmatpush1.msra.mxu0 0.0
    %2190 = vmatprep.subr.mxu0 0.0
    %2191 = vmatpush1.msra.mxu0 0.0
    %2192 = vmatprep.subr.mxu0 0.0
    %2193 = vmatpush1.msra.mxu0 0.0
    %2194 = vmatprep.subr.mxu0 0.0
    %2195 = vmatpush1.msra.mxu0 0.0
    %2196 = vmatprep.subr.mxu0 0.0
    %2197 = vmatpush1.msra.mxu0 0.0
    %2198 = vmatprep.subr.mxu0 0.0
    %2199 = vmatpush1.msra.mxu0 0.0
    %2200 = vmatprep.subr.mxu0 0.0
    %2201 = vmatpush1.msra.mxu0 0.0
    %2202 = vmatprep.subr.mxu0 0.0
    %2203 = vmatpush1.msra.mxu0 0.0
    %2204 = vmatprep.subr.mxu0 0.0
    %2205 = vmatpush1.msra.mxu0 0.0
    %2206 = vmatprep.subr.mxu0 0.0
    %2207 = vmatpush1.msra.mxu0 0.0
    %2208 = vmatprep.subr.mxu0 0.0
    %2209 = vmatpush1.msra.mxu0 0.0
    %2210 = vmatprep.subr.mxu0 0.0
    %2211 = vmatpush1.msra.mxu0 0.0
    %2212 = vmatprep.subr.mxu0 0.0
    %2213 = vmatpush1.msra.mxu0 0.0
    %2214 = vmatprep.subr.mxu0 0.0
    %2215 = vmatpush1.msra.mxu0 0.0
    %2216 = vmatprep.subr.mxu0 0.0
    %2217 = vmatpush1.msra.mxu0 0.0
    %2218 = vmatprep.subr.mxu0 0.0
    %2219 = vmatpush1.msra.mxu0 0.0
    %2220 = vmatprep.subr.mxu0 0.0
    %2221 = vmatpush1.msra.mxu0 0.0
    %2222 = vmatprep.subr.mxu0 0.0
    %2223 = vmatpush1.msra.mxu0 0.0
    %2224 = vmatprep.subr.mxu0 0.0
    %2225 = vmatpush1.msra.mxu0 0.0
    %2226 = vmatprep.subr.mxu0 0.0
    %2227 = vmatpush1.msra.mxu0 0.0
    %2228 = vmatprep.mubr.f32.mxu0 0.0
    %2229 = vmatmul.mubr.f32.gmra.mrb[0].mxu0 %v2159
    %v2230 = vpop.f32.mrb[0].mxu0
    %v2231 = vadd.f32 0.0, %v2230
    %v2232 = vpop.f32.mrb[0].mxu0
    %2233 = vdwg.mxu0
    %v2234 = vrcp.pop 392.0
    %v2235 = vmul.f32 %v2231, %v2234
    %v2237 = vsel %vm2114, %v2157, 0
    %2239 = vmatprep.subr.mxu0 0.0
    %2240 = vmatpush1.msra.mxu0 %v2102
    %2241 = vmatprep.subr.mxu0 0.0
    %2242 = vmatpush1.msra.mxu0 %v2103
    %2243 = vmatprep.subr.mxu0 0.0
    %2244 = vmatpush1.msra.mxu0 %v2104
    %2245 = vmatprep.subr.mxu0 0.0
    %2246 = vmatpush1.msra.mxu0 %v2105
    %2247 = vmatprep.subr.mxu0 0.0
    %2248 = vmatpush1.msra.mxu0 %v2106
    %2249 = vmatprep.subr.mxu0 0.0
    %2250 = vmatpush1.msra.mxu0 %v2107
    %2251 = vmatprep.subr.mxu0 0.0
    %2252 = vmatpush1.msra.mxu0 %v2108
    %2253 = vmatprep.subr.mxu0 0.0
    %2254 = vmatpush1.msra.mxu0 %v2109
    %2255 = vmatprep.subr.mxu0 0.0
    %2256 = vmatpush1.msra.mxu0 %v2110
    %2257 = vmatprep.subr.mxu0 0.0
    %2258 = vmatpush1.msra.mxu0 %v2111
    %2259 = vmatprep.subr.mxu0 0.0
    %2260 = vmatpush1.msra.mxu0 %v2162
    %2261 = vmatprep.subr.mxu0 0.0
    %2262 = vmatpush1.msra.mxu0 0.0
    %2263 = vmatprep.subr.mxu0 0.0
    %2264 = vmatpush1.msra.mxu0 0.0
    %2265 = vmatprep.subr.mxu0 0.0
    %2266 = vmatpush1.msra.mxu0 0.0
    %2267 = vmatprep.subr.mxu0 0.0
    %2268 = vmatpush1.msra.mxu0 0.0
    %2269 = vmatprep.subr.mxu0 0.0
    %2270 = vmatpush1.msra.mxu0 0.0
    %2271 = vmatprep.subr.mxu0 0.0
    %2272 = vmatpush1.msra.mxu0 0.0
    %2273 = vmatprep.subr.mxu0 0.0
    %2274 = vmatpush1.msra.mxu0 0.0
    %2275 = vmatprep.subr.mxu0 0.0
    %2276 = vmatpush1.msra.mxu0 0.0
    %2277 = vmatprep.subr.mxu0 0.0
    %2278 = vmatpush1.msra.mxu0 0.0
    %2279 = vmatprep.subr.mxu0 0.0
    %2280 = vmatpush1.msra.mxu0 0.0
    %2281 = vmatprep.subr.mxu0 0.0
    %2282 = vmatpush1.msra.mxu0 0.0
    %2283 = vmatprep.subr.mxu0 0.0
    %2284 = vmatpush1.msra.mxu0 0.0
    %2285 = vmatprep.subr.mxu0 0.0
    %2286 = vmatpush1.msra.mxu0 0.0
    %2287 = vmatprep.subr.mxu0 0.0
    %2288 = vmatpush1.msra.mxu0 0.0
    %2289 = vmatprep.subr.mxu0 0.0
    %2290 = vmatpush1.msra.mxu0 0.0
    %2291 = vmatprep.subr.mxu0 0.0
    %2292 = vmatpush1.msra.mxu0 0.0
    %2293 = vmatprep.subr.mxu0 0.0
    %2294 = vmatpush1.msra.mxu0 0.0
    %2295 = vmatprep.subr.mxu0 0.0
    %2296 = vmatpush1.msra.mxu0 0.0
    %2297 = vmatprep.subr.mxu0 0.0
    %2298 = vmatpush1.msra.mxu0 0.0
    %2299 = vmatprep.subr.mxu0 0.0
    %2300 = vmatpush1.msra.mxu0 0.0
    %2301 = vmatprep.subr.mxu0 0.0
    %2302 = vmatpush1.msra.mxu0 0.0
    %2303 = vmatprep.mubr.f32.mxu0 0.0
    %2304 = vmatmul.mubr.f32.gmra.mrb[0].mxu0 %v2237
    %v2305 = vpop.f32.mrb[0].mxu0
    %v2306 = vadd.f32 0.0, %v2305
    %v2307 = vpop.f32.mrb[0].mxu0
    %2308 = vdwg.mxu0
    %v2309 = vmul.f32 %v2306, %v2234
    %v2310 = vmul.f32 %v2235, %v2235
    %v2311 = vsub.f32 %v2309, %v2310
    %v2312 = vmax.f32 %v2311, 0.0
    %v2313 = vadd.f32 %v2312, 1e-05
    %v2314 = vrsqrt.pop %v2313
    %v2315 = vmul.f32 %v2100, %v2314
    %v2316 = vmul.f32 %v2235, %v2315
    %v2317 = vsub.f32 %v2101, %v2316
    %vm2318 = vcmask 48128
    %v2320 = vsel %vm2318, %v2315, 0
    %v2323 = vsel %vm409, %v2113, 0
    %2325 = vmatprep.subr.mxu0 0.0
    %2326 = vmatpush1.msra.mxu0 %v2323
    %2327 = vmatprep.subr.mxu0 0.0
    %2328 = vmatpush1.msra.mxu0 0.0
    %2329 = vmatprep.subr.mxu0 0.0
    %2330 = vmatpush1.msra.mxu0 0.0
    %2331 = vmatprep.subr.mxu0 0.0
    %2332 = vmatpush1.msra.mxu0 0.0
    %2333 = vmatprep.subr.mxu0 0.0
    %2334 = vmatpush1.msra.mxu0 0.0
    %2335 = vmatprep.subr.mxu0 0.0
    %2336 = vmatpush1.msra.mxu0 0.0
    %2337 = vmatprep.subr.mxu0 0.0
    %2338 = vmatpush1.msra.mxu0 0.0
    %2339 = vmatprep.subr.mxu0 0.0
    %2340 = vmatpush1.msra.mxu0 0.0
    %2341 = vmatprep.subr.mxu0 0.0
    %2342 = vmatpush1.msra.mxu0 0.0
    %2343 = vmatprep.subr.mxu0 0.0
    %2344 = vmatpush1.msra.mxu0 0.0
    %2345 = vmatprep.subr.mxu0 0.0
    %2346 = vmatpush1.msra.mxu0 0.0
    %2347 = vmatprep.subr.mxu0 0.0
    %2348 = vmatpush1.msra.mxu0 0.0
    %2349 = vmatprep.subr.mxu0 0.0
    %2350 = vmatpush1.msra.mxu0 0.0
    %2351 = vmatprep.subr.mxu0 0.0
    %2352 = vmatpush1.msra.mxu0 0.0
    %2353 = vmatprep.subr.mxu0 0.0
    %2354 = vmatpush1.msra.mxu0 0.0
    %2355 = vmatprep.subr.mxu0 0.0
    %2356 = vmatpush1.msra.mxu0 0.0
    %2357 = vmatprep.subr.mxu0 0.0
    %2358 = vmatpush1.msra.mxu0 0.0
    %2359 = vmatprep.subr.mxu0 0.0
    %2360 = vmatpush1.msra.mxu0 0.0
    %2361 = vmatprep.subr.mxu0 0.0
    %2362 = vmatpush1.msra.mxu0 0.0
    %2363 = vmatprep.subr.mxu0 0.0
    %2364 = vmatpush1.msra.mxu0 0.0
    %2365 = vmatprep.subr.mxu0 0.0
    %2366 = vmatpush1.msra.mxu0 0.0
    %2367 = vmatprep.subr.mxu0 0.0
    %2368 = vmatpush1.msra.mxu0 0.0
    %2369 = vmatprep.subr.mxu0 0.0
    %2370 = vmatpush1.msra.mxu0 0.0
    %2371 = vmatprep.subr.mxu0 0.0
    %2372 = vmatpush1.msra.mxu0 0.0
    %2373 = vmatprep.subr.mxu0 0.0
    %2374 = vmatpush1.msra.mxu0 0.0
    %2375 = vmatprep.subr.mxu0 0.0
    %2376 = vmatpush1.msra.mxu0 0.0
    %2377 = vmatprep.subr.mxu0 0.0
    %2378 = vmatpush1.msra.mxu0 0.0
    %2379 = vmatprep.subr.mxu0 0.0
    %2380 = vmatpush1.msra.mxu0 0.0
    %2381 = vmatprep.subr.mxu0 0.0
    %2382 = vmatpush1.msra.mxu0 0.0
    %2383 = vmatprep.subr.mxu0 0.0
    %2384 = vmatpush1.msra.mxu0 0.0
    %2385 = vmatprep.subr.mxu0 0.0
    %2386 = vmatpush1.msra.mxu0 0.0
    %2387 = vmatprep.subr.mxu0 0.0
    %2388 = vmatpush1.msra.mxu0 0.0
    %2389 = vmatprep.mubr.f32.mxu0 0.0
    %2390 = vmatmul.mubr.f32.gmra.mrb[0].mxu0 %v2320
    %v2391 = vpop.f32.mrb[0].mxu0
    %v2392 = vadd.f32 0.0, %v2391
    %v2393 = vpop.f32.mrb[0].mxu0
    %2394 = vdwg.mxu0
    %v2396 = vsel %vm2318, %v2317, 0
    %2398 = vmatprep.subr.mxu0 0.0
    %2399 = vmatpush1.msra.mxu0 %v2323
    %2400 = vmatprep.subr.mxu0 0.0
    %2401 = vmatpush1.msra.mxu0 0.0
    %2402 = vmatprep.subr.mxu0 0.0
    %2403 = vmatpush1.msra.mxu0 0.0
    %2404 = vmatprep.subr.mxu0 0.0
    %2405 = vmatpush1.msra.mxu0 0.0
    %2406 = vmatprep.subr.mxu0 0.0
    %2407 = vmatpush1.msra.mxu0 0.0
    %2408 = vmatprep.subr.mxu0 0.0
    %2409 = vmatpush1.msra.mxu0 0.0
    %2410 = vmatprep.subr.mxu0 0.0
    %2411 = vmatpush1.msra.mxu0 0.0
    %2412 = vmatprep.subr.mxu0 0.0
    %2413 = vmatpush1.msra.mxu0 0.0
    %2414 = vmatprep.subr.mxu0 0.0
    %2415 = vmatpush1.msra.mxu0 0.0
    %2416 = vmatprep.subr.mxu0 0.0
    %2417 = vmatpush1.msra.mxu0 0.0
    %2418 = vmatprep.subr.mxu0 0.0
    %2419 = vmatpush1.msra.mxu0 0.0
    %2420 = vmatprep.subr.mxu0 0.0
    %2421 = vmatpush1.msra.mxu0 0.0
    %2422 = vmatprep.subr.mxu0 0.0
    %2423 = vmatpush1.msra.mxu0 0.0
    %2424 = vmatprep.subr.mxu0 0.0
    %2425 = vmatpush1.msra.mxu0 0.0
    %2426 = vmatprep.subr.mxu0 0.0
    %2427 = vmatpush1.msra.mxu0 0.0
    %2428 = vmatprep.subr.mxu0 0.0
    %2429 = vmatpush1.msra.mxu0 0.0
    %2430 = vmatprep.subr.mxu0 0.0
    %2431 = vmatpush1.msra.mxu0 0.0
    %2432 = vmatprep.subr.mxu0 0.0
    %2433 = vmatpush1.msra.mxu0 0.0
    %2434 = vmatprep.subr.mxu0 0.0
    %2435 = vmatpush1.msra.mxu0 0.0
    %2436 = vmatprep.subr.mxu0 0.0
    %2437 = vmatpush1.msra.mxu0 0.0
    %2438 = vmatprep.subr.mxu0 0.0
    %2439 = vmatpush1.msra.mxu0 0.0
    %2440 = vmatprep.subr.mxu0 0.0
    %2441 = vmatpush1.msra.mxu0 0.0
    %2442 = vmatprep.subr.mxu0 0.0
    %2443 = vmatpush1.msra.mxu0 0.0
    %2444 = vmatprep.subr.mxu0 0.0
    %2445 = vmatpush1.msra.mxu0 0.0
    %2446 = vmatprep.subr.mxu0 0.0
    %2447 = vmatpush1.msra.mxu0 0.0
    %2448 = vmatprep.subr.mxu0 0.0
    %2449 = vmatpush1.msra.mxu0 0.0
    %2450 = vmatprep.subr.mxu0 0.0
    %2451 = vmatpush1.msra.mxu0 0.0
    %2452 = vmatprep.subr.mxu0 0.0
    %2453 = vmatpush1.msra.mxu0 0.0
    %2454 = vmatprep.subr.mxu0 0.0
    %2455 = vmatpush1.msra.mxu0 0.0
    %2456 = vmatprep.subr.mxu0 0.0
    %2457 = vmatpush1.msra.mxu0 0.0
    %2458 = vmatprep.subr.mxu0 0.0
    %2459 = vmatpush1.msra.mxu0 0.0
    %2460 = vmatprep.subr.mxu0 0.0
    %2461 = vmatpush1.msra.mxu0 0.0
    %2462 = vmatprep.mubr.f32.mxu0 0.0
    %2463 = vmatmul.mubr.f32.gmra.mrb[0].mxu0 %v2396
    %v2464 = vpop.f32.mrb[0].mxu0
    %v2465 = vadd.f32 0.0, %v2464
    %v2466 = vpop.f32.mrb[0].mxu0
    %2467 = vdwg.mxu0
    %v2468 = vlaneseq
    %v2469 = vshrl.u32 %v2468, 7
    %v2470 = vsub.s32 0, %v2469
    %v2471 = vrot.slane %v2392, %v2470
    %v2472 = vmul.f32 %v1207, %v2471
    %v2473 = vmul.f32 %v1208, %v2471
    %v2474 = vlaneseq
    %v2475 = vshrl.u32 %v2474, 7
    %v2476 = vsub.s32 0, %v2475
    %v2477 = vrot.slane %v2465, %v2476
    %v2478 = vadd.f32 %v2472, %v2477
    %v2479 = vadd.f32 %v2473, %v2477
    %v2480 = vmul.f32 %v2098, %v2471
    %v2481 = vmul.f32 %v2099, %v2471
    %v2482 = vadd.f32 %v2480, %v2477
    %v2483 = vadd.f32 %v2481, %v2477
    %v2484 = vld [vmem:[%s33] sm:$0x1]
    %v2485 = vld [vmem:[%s5] sm:$0xff]
    %v2486 = vld [vmem:[%s5 + $0x8] sm:$0xff]
    %v2487 = vld [vmem:[%s5 + $0x10] sm:$0xff]
    %v2488 = vld [vmem:[%s5 + $0x18] sm:$0xff]
    %v2489 = vld [vmem:[%s5 + $0x20] sm:$0xff]
    %v2490 = vld [vmem:[%s5 + $0x28] sm:$0xff]
    %v2491 = vld [vmem:[%s5 + $0x30] sm:$0xff]
    %v2492 = vld [vmem:[%s5 + $0x38] sm:$0xff]
    %v2493 = vld [vmem:[%s5 + $0x40] sm:$0xff]
    %v2494 = vld [vmem:[%s5 + $0x48] sm:$0xff]
    %v2495 = vld [vmem:[%s5 + $0x50] sm:$0xff]
    %v2496 = vld [vmem:[%s5 + $0x58] sm:$0xff]
    %v2497 = vld [vmem:[%s5 + $0x60] sm:$0xff]
    %v2498 = vld [vmem:[%s5 + $0x68] sm:$0xff]
    %v2499 = vld [vmem:[%s5 + $0x70] sm:$0xff]
    %v2500 = vld [vmem:[%s5 + $0x78] sm:$0xff]
    %v2501 = vld [vmem:[%s5 + $0x80] sm:$0xff]
    %v2502 = vld [vmem:[%s5 + $0x88] sm:$0xff]
    %v2503 = vld [vmem:[%s5 + $0x90] sm:$0xff]
    %v2504 = vld [vmem:[%s5 + $0x98] sm:$0xff]
    %v2505 = vld [vmem:[%s5 + $0xa0] sm:$0xf]
    %v2506 = vld [vmem:[%s5 + $0xa8] sm:$0xf]
    %s2507 = scalar_lea.vmem %s5, 176
    %v2508 = vld [vmem:[%s2507] sm:$0xff]
    %v2509 = vld [vmem:[%s2507 + $0x8] sm:$0xff]
    %v2510 = vld [vmem:[%s2507 + $0x10] sm:$0xff]
    %v2511 = vld [vmem:[%s2507 + $0x18] sm:$0xff]
    %v2512 = vld [vmem:[%s2507 + $0x20] sm:$0xff]
    %v2513 = vld [vmem:[%s2507 + $0x28] sm:$0xff]
    %v2514 = vld [vmem:[%s2507 + $0x30] sm:$0xff]
    %v2515 = vld [vmem:[%s2507 + $0x38] sm:$0xff]
    %v2516 = vld [vmem:[%s2507 + $0x40] sm:$0xff]
    %v2517 = vld [vmem:[%s2507 + $0x48] sm:$0xff]
    %v2518 = vld [vmem:[%s2507 + $0x50] sm:$0xff]
    %v2519 = vld [vmem:[%s2507 + $0x58] sm:$0xff]
    %v2520 = vld [vmem:[%s2507 + $0x60] sm:$0xff]
    %v2521 = vld [vmem:[%s2507 + $0x68] sm:$0xff]
    %v2522 = vld [vmem:[%s2507 + $0x70] sm:$0xff]
    %v2523 = vld [vmem:[%s2507 + $0x78] sm:$0xff]
    %v2524 = vld [vmem:[%s2507 + $0x80] sm:$0xff]
    %v2525 = vld [vmem:[%s2507 + $0x88] sm:$0xff]
    %v2526 = vld [vmem:[%s2507 + $0x90] sm:$0xff]
    %v2527 = vld [vmem:[%s2507 + $0x98] sm:$0xff]
    %v2528 = vld [vmem:[%s2507 + $0xa0] sm:$0xf]
    %v2529 = vld [vmem:[%s2507 + $0xa8] sm:$0xf]
    %v2532 = vrot.slane %v2478, 1
    %v2533 = vrot.slane %v2479, 1
    %v2534 = vsel %vm181, %v2532, %v2533
    %v2535 = vsel %vm2114, %v2534, 0
    %v2537 = vsel %vm2114, %v2533, 0
    %v2540 = vsel %vm685, %v2528, 0
    %v2543 = vsel %vm685, %v2529, 0
    %2545 = vmatprep.subr.mxu0 %v2509
    %2546 = vmatpush1.msra.mxu0 %v2508
    %2547 = vmatprep.subr.mxu0 %v2511
    %2548 = vmatpush1.msra.mxu0 %v2510
    %2549 = vmatprep.subr.mxu0 %v2513
    %2550 = vmatpush1.msra.mxu0 %v2512
    %2551 = vmatprep.subr.mxu0 %v2515
    %2552 = vmatpush1.msra.mxu0 %v2514
    %2553 = vmatprep.subr.mxu0 %v2517
    %2554 = vmatpush1.msra.mxu0 %v2516
    %2555 = vmatprep.subr.mxu0 %v2519
    %2556 = vmatpush1.msra.mxu0 %v2518
    %2557 = vmatprep.subr.mxu0 %v2521
    %2558 = vmatpush1.msra.mxu0 %v2520
    %2559 = vmatprep.subr.mxu0 %v2523
    %2560 = vmatpush1.msra.mxu0 %v2522
    %2561 = vmatprep.subr.mxu0 %v2525
    %2562 = vmatpush1.msra.mxu0 %v2524
    %2563 = vmatprep.subr.mxu0 %v2527
    %2564 = vmatpush1.msra.mxu0 %v2526
    %2565 = vmatprep.subr.mxu0 %v2543
    %2566 = vmatpush1.msra.mxu0 %v2540
    %2567 = vmatprep.subr.mxu0 0.0
    %2568 = vmatpush1.msra.mxu0 0.0
    %2569 = vmatprep.subr.mxu0 0.0
    %2570 = vmatpush1.msra.mxu0 0.0
    %2571 = vmatprep.subr.mxu0 0.0
    %2572 = vmatpush1.msra.mxu0 0.0
    %2573 = vmatprep.subr.mxu0 0.0
    %2574 = vmatpush1.msra.mxu0 0.0
    %2575 = vmatprep.subr.mxu0 0.0
    %2576 = vmatpush1.msra.mxu0 0.0
    %2577 = vmatprep.subr.mxu0 0.0
    %2578 = vmatpush1.msra.mxu0 0.0
    %2579 = vmatprep.subr.mxu0 0.0
    %2580 = vmatpush1.msra.mxu0 0.0
    %2581 = vmatprep.subr.mxu0 0.0
    %2582 = vmatpush1.msra.mxu0 0.0
    %2583 = vmatprep.subr.mxu0 0.0
    %2584 = vmatpush1.msra.mxu0 0.0
    %2585 = vmatprep.subr.mxu0 0.0
    %2586 = vmatpush1.msra.mxu0 0.0
    %2587 = vmatprep.subr.mxu0 0.0
    %2588 = vmatpush1.msra.mxu0 0.0
    %2589 = vmatprep.subr.mxu0 0.0
    %2590 = vmatpush1.msra.mxu0 0.0
    %2591 = vmatprep.subr.mxu0 0.0
    %2592 = vmatpush1.msra.mxu0 0.0
    %2593 = vmatprep.subr.mxu0 0.0
    %2594 = vmatpush1.msra.mxu0 0.0
    %2595 = vmatprep.subr.mxu0 0.0
    %2596 = vmatpush1.msra.mxu0 0.0
    %2597 = vmatprep.subr.mxu0 0.0
    %2598 = vmatpush1.msra.mxu0 0.0
    %2599 = vmatprep.subr.mxu0 0.0
    %2600 = vmatpush1.msra.mxu0 0.0
    %2601 = vmatprep.subr.mxu0 0.0
    %2602 = vmatpush1.msra.mxu0 0.0
    %2603 = vmatprep.subr.mxu0 0.0
    %2604 = vmatpush1.msra.mxu0 0.0
    %2605 = vmatprep.subr.mxu0 0.0
    %2606 = vmatpush1.msra.mxu0 0.0
    %2607 = vmatprep.subr.mxu0 0.0
    %2608 = vmatpush1.msra.mxu0 0.0
    %2609 = vmatprep.mubr.f32.mxu0 0.0
    %2610 = vmatmul.mubr.f32.gmra.mrb[0].mxu0 %v2535
    %v2611 = vpop.f32.mrb[0].mxu0
    %v2612 = vadd.f32 0.0, %v2611
    %v2613 = vpop.f32.mrb[0].mxu0
    %v2614 = vadd.f32 0.0, %v2613
    %2615 = vmatprep.mubr.f32.mxu0 0.0
    %2616 = vmatmul.mubr.f32.gmra.mrb[0].mxu0 %v2537
    %v2617 = vpop.f32.mrb[0].mxu0
    %v2618 = vadd.f32 0.0, %v2617
    %v2619 = vpop.f32.mrb[0].mxu0
    %v2620 = vadd.f32 0.0, %v2619
    %2621 = vdwg.mxu0
    %v2622 = vsel %vm2114, %v2478, 0
    %v2624 = vsel %vm2114, %v2479, 0
    %v2627 = vsel %vm685, %v2505, 0
    %v2630 = vsel %vm685, %v2506, 0
    %2632 = vmatprep.subr.mxu0 %v2486
    %2633 = vmatpush1.msra.mxu0 %v2485
    %2634 = vmatprep.subr.mxu0 %v2488
    %2635 = vmatpush1.msra.mxu0 %v2487
    %2636 = vmatprep.subr.mxu0 %v2490
    %2637 = vmatpush1.msra.mxu0 %v2489
    %2638 = vmatprep.subr.mxu0 %v2492
    %2639 = vmatpush1.msra.mxu0 %v2491
    %2640 = vmatprep.subr.mxu0 %v2494
    %2641 = vmatpush1.msra.mxu0 %v2493
    %2642 = vmatprep.subr.mxu0 %v2496
    %2643 = vmatpush1.msra.mxu0 %v2495
    %2644 = vmatprep.subr.mxu0 %v2498
    %2645 = vmatpush1.msra.mxu0 %v2497
    %2646 = vmatprep.subr.mxu0 %v2500
    %2647 = vmatpush1.msra.mxu0 %v2499
    %2648 = vmatprep.subr.mxu0 %v2502
    %2649 = vmatpush1.msra.mxu0 %v2501
    %2650 = vmatprep.subr.mxu0 %v2504
    %2651 = vmatpush1.msra.mxu0 %v2503
    %2652 = vmatprep.subr.mxu0 %v2630
    %2653 = vmatpush1.msra.mxu0 %v2627
    %2654 = vmatprep.subr.mxu0 0.0
    %2655 = vmatpush1.msra.mxu0 0.0
    %2656 = vmatprep.subr.mxu0 0.0
    %2657 = vmatpush1.msra.mxu0 0.0
    %2658 = vmatprep.subr.mxu0 0.0
    %2659 = vmatpush1.msra.mxu0 0.0
    %2660 = vmatprep.subr.mxu0 0.0
    %2661 = vmatpush1.msra.mxu0 0.0
    %2662 = vmatprep.subr.mxu0 0.0
    %2663 = vmatpush1.msra.mxu0 0.0
    %2664 = vmatprep.subr.mxu0 0.0
    %2665 = vmatpush1.msra.mxu0 0.0
    %2666 = vmatprep.subr.mxu0 0.0
    %2667 = vmatpush1.msra.mxu0 0.0
    %2668 = vmatprep.subr.mxu0 0.0
    %2669 = vmatpush1.msra.mxu0 0.0
    %2670 = vmatprep.subr.mxu0 0.0
    %2671 = vmatpush1.msra.mxu0 0.0
    %2672 = vmatprep.subr.mxu0 0.0
    %2673 = vmatpush1.msra.mxu0 0.0
    %2674 = vmatprep.subr.mxu0 0.0
    %2675 = vmatpush1.msra.mxu0 0.0
    %2676 = vmatprep.subr.mxu0 0.0
    %2677 = vmatpush1.msra.mxu0 0.0
    %2678 = vmatprep.subr.mxu0 0.0
    %2679 = vmatpush1.msra.mxu0 0.0
    %2680 = vmatprep.subr.mxu0 0.0
    %2681 = vmatpush1.msra.mxu0 0.0
    %2682 = vmatprep.subr.mxu0 0.0
    %2683 = vmatpush1.msra.mxu0 0.0
    %2684 = vmatprep.subr.mxu0 0.0
    %2685 = vmatpush1.msra.mxu0 0.0
    %2686 = vmatprep.subr.mxu0 0.0
    %2687 = vmatpush1.msra.mxu0 0.0
    %2688 = vmatprep.subr.mxu0 0.0
    %2689 = vmatpush1.msra.mxu0 0.0
    %2690 = vmatprep.subr.mxu0 0.0
    %2691 = vmatpush1.msra.mxu0 0.0
    %2692 = vmatprep.subr.mxu0 0.0
    %2693 = vmatpush1.msra.mxu0 0.0
    %2694 = vmatprep.subr.mxu0 0.0
    %2695 = vmatpush1.msra.mxu0 0.0
    %2696 = vmatprep.mubr.f32.mxu0 0.0
    %2697 = vmatmul.mubr.f32.gmra.mrb[0].mxu0 %v2622
    %v2698 = vpop.f32.mrb[0].mxu0
    %v2699 = vadd.f32 %v2612, %v2698
    %v2700 = vpop.f32.mrb[0].mxu0
    %v2701 = vadd.f32 %v2614, %v2700
    %2702 = vmatprep.mubr.f32.mxu0 0.0
    %2703 = vmatmul.mubr.f32.gmra.mrb[0].mxu0 %v2624
    %v2704 = vpop.f32.mrb[0].mxu0
    %v2705 = vadd.f32 %v2618, %v2704
    %v2706 = vpop.f32.mrb[0].mxu0
    %v2707 = vadd.f32 %v2620, %v2706
    %2708 = vdwg.mxu0
    %s2709 = scalar_lea.vmem %s5, 352
    %v2710 = vld [vmem:[%s2709] sm:$0xff]
    %v2711 = vld [vmem:[%s2709 + $0x8] sm:$0xff]
    %v2712 = vld [vmem:[%s2709 + $0x10] sm:$0xff]
    %v2713 = vld [vmem:[%s2709 + $0x18] sm:$0xff]
    %v2714 = vld [vmem:[%s2709 + $0x20] sm:$0xff]
    %v2715 = vld [vmem:[%s2709 + $0x28] sm:$0xff]
    %v2716 = vld [vmem:[%s2709 + $0x30] sm:$0xff]
    %v2717 = vld [vmem:[%s2709 + $0x38] sm:$0xff]
    %v2718 = vld [vmem:[%s2709 + $0x40] sm:$0xff]
    %v2719 = vld [vmem:[%s2709 + $0x48] sm:$0xff]
    %v2720 = vld [vmem:[%s2709 + $0x50] sm:$0xff]
    %v2721 = vld [vmem:[%s2709 + $0x58] sm:$0xff]
    %v2722 = vld [vmem:[%s2709 + $0x60] sm:$0xff]
    %v2723 = vld [vmem:[%s2709 + $0x68] sm:$0xff]
    %v2724 = vld [vmem:[%s2709 + $0x70] sm:$0xff]
    %v2725 = vld [vmem:[%s2709 + $0x78] sm:$0xff]
    %v2726 = vld [vmem:[%s2709 + $0x80] sm:$0xff]
    %v2727 = vld [vmem:[%s2709 + $0x88] sm:$0xff]
    %v2728 = vld [vmem:[%s2709 + $0x90] sm:$0xff]
    %v2729 = vld [vmem:[%s2709 + $0x98] sm:$0xff]
    %v2730 = vld [vmem:[%s2709 + $0xa0] sm:$0xf]
    %v2731 = vld [vmem:[%s2709 + $0xa8] sm:$0xf]
    %v2732 = vrot.slane %v2478, 2
    %v2733 = vrot.slane %v2479, 2
    %v2734 = vsel %vm409, %v2732, %v2733
    %v2735 = vsel %vm2114, %v2734, 0
    %v2737 = vsel %vm2114, %v2733, 0
    %v2740 = vsel %vm685, %v2730, 0
    %v2743 = vsel %vm685, %v2731, 0
    %2745 = vmatprep.subr.mxu0 %v2711
    %2746 = vmatpush1.msra.mxu0 %v2710
    %2747 = vmatprep.subr.mxu0 %v2713
    %2748 = vmatpush1.msra.mxu0 %v2712
    %2749 = vmatprep.subr.mxu0 %v2715
    %2750 = vmatpush1.msra.mxu0 %v2714
    %2751 = vmatprep.subr.mxu0 %v2717
    %2752 = vmatpush1.msra.mxu0 %v2716
    %2753 = vmatprep.subr.mxu0 %v2719
    %2754 = vmatpush1.msra.mxu0 %v2718
    %2755 = vmatprep.subr.mxu0 %v2721
    %2756 = vmatpush1.msra.mxu0 %v2720
    %2757 = vmatprep.subr.mxu0 %v2723
    %2758 = vmatpush1.msra.mxu0 %v2722
    %2759 = vmatprep.subr.mxu0 %v2725
    %2760 = vmatpush1.msra.mxu0 %v2724
    %2761 = vmatprep.subr.mxu0 %v2727
    %2762 = vmatpush1.msra.mxu0 %v2726
    %2763 = vmatprep.subr.mxu0 %v2729
    %2764 = vmatpush1.msra.mxu0 %v2728
    %2765 = vmatprep.subr.mxu0 %v2743
    %2766 = vmatpush1.msra.mxu0 %v2740
    %2767 = vmatprep.subr.mxu0 0.0
    %2768 = vmatpush1.msra.mxu0 0.0
    %2769 = vmatprep.subr.mxu0 0.0
    %2770 = vmatpush1.msra.mxu0 0.0
    %2771 = vmatprep.subr.mxu0 0.0
    %2772 = vmatpush1.msra.mxu0 0.0
    %2773 = vmatprep.subr.mxu0 0.0
    %2774 = vmatpush1.msra.mxu0 0.0
    %2775 = vmatprep.subr.mxu0 0.0
    %2776 = vmatpush1.msra.mxu0 0.0
    %2777 = vmatprep.subr.mxu0 0.0
    %2778 = vmatpush1.msra.mxu0 0.0
    %2779 = vmatprep.subr.mxu0 0.0
    %2780 = vmatpush1.msra.mxu0 0.0
    %2781 = vmatprep.subr.mxu0 0.0
    %2782 = vmatpush1.msra.mxu0 0.0
    %2783 = vmatprep.subr.mxu0 0.0
    %2784 = vmatpush1.msra.mxu0 0.0
    %2785 = vmatprep.subr.mxu0 0.0
    %2786 = vmatpush1.msra.mxu0 0.0
    %2787 = vmatprep.subr.mxu0 0.0
    %2788 = vmatpush1.msra.mxu0 0.0
    %2789 = vmatprep.subr.mxu0 0.0
    %2790 = vmatpush1.msra.mxu0 0.0
    %2791 = vmatprep.subr.mxu0 0.0
    %2792 = vmatpush1.msra.mxu0 0.0
    %2793 = vmatprep.subr.mxu0 0.0
    %2794 = vmatpush1.msra.mxu0 0.0
    %2795 = vmatprep.subr.mxu0 0.0
    %2796 = vmatpush1.msra.mxu0 0.0
    %2797 = vmatprep.subr.mxu0 0.0
    %2798 = vmatpush1.msra.mxu0 0.0
    %2799 = vmatprep.subr.mxu0 0.0
    %2800 = vmatpush1.msra.mxu0 0.0
    %2801 = vmatprep.subr.mxu0 0.0
    %2802 = vmatpush1.msra.mxu0 0.0
    %2803 = vmatprep.subr.mxu0 0.0
    %2804 = vmatpush1.msra.mxu0 0.0
    %2805 = vmatprep.subr.mxu0 0.0
    %2806 = vmatpush1.msra.mxu0 0.0
    %2807 = vmatprep.subr.mxu0 0.0
    %2808 = vmatpush1.msra.mxu0 0.0
    %2809 = vmatprep.mubr.f32.mxu0 0.0
    %2810 = vmatmul.mubr.f32.gmra.mrb[0].mxu0 %v2735
    %v2811 = vpop.f32.mrb[0].mxu0
    %v2812 = vadd.f32 0.0, %v2811
    %v2813 = vpop.f32.mrb[0].mxu0
    %v2814 = vadd.f32 0.0, %v2813
    %2815 = vmatprep.mubr.f32.mxu0 0.0
    %2816 = vmatmul.mubr.f32.gmra.mrb[0].mxu0 %v2737
    %v2817 = vpop.f32.mrb[0].mxu0
    %v2818 = vadd.f32 0.0, %v2817
    %v2819 = vpop.f32.mrb[0].mxu0
    %v2820 = vadd.f32 0.0, %v2819
    %2821 = vdwg.mxu0
    %v2822 = vadd.f32 %v2699, %v2812
    %v2823 = vadd.f32 %v2701, %v2814
    %v2824 = vadd.f32 %v2705, %v2818
    %v2825 = vadd.f32 %v2707, %v2820
    %s2826 = scalar_lea.vmem %s5, 528
    %v2827 = vld [vmem:[%s2826] sm:$0xff]
    %v2828 = vld [vmem:[%s2826 + $0x8] sm:$0xff]
    %v2829 = vld [vmem:[%s2826 + $0x10] sm:$0xff]
    %v2830 = vld [vmem:[%s2826 + $0x18] sm:$0xff]
    %v2831 = vld [vmem:[%s2826 + $0x20] sm:$0xff]
    %v2832 = vld [vmem:[%s2826 + $0x28] sm:$0xff]
    %v2833 = vld [vmem:[%s2826 + $0x30] sm:$0xff]
    %v2834 = vld [vmem:[%s2826 + $0x38] sm:$0xff]
    %v2835 = vld [vmem:[%s2826 + $0x40] sm:$0xff]
    %v2836 = vld [vmem:[%s2826 + $0x48] sm:$0xff]
    %v2837 = vld [vmem:[%s2826 + $0x50] sm:$0xff]
    %v2838 = vld [vmem:[%s2826 + $0x58] sm:$0xff]
    %v2839 = vld [vmem:[%s2826 + $0x60] sm:$0xff]
    %v2840 = vld [vmem:[%s2826 + $0x68] sm:$0xff]
    %v2841 = vld [vmem:[%s2826 + $0x70] sm:$0xff]
    %v2842 = vld [vmem:[%s2826 + $0x78] sm:$0xff]
    %v2843 = vld [vmem:[%s2826 + $0x80] sm:$0xff]
    %v2844 = vld [vmem:[%s2826 + $0x88] sm:$0xff]
    %v2845 = vld [vmem:[%s2826 + $0x90] sm:$0xff]
    %v2846 = vld [vmem:[%s2826 + $0x98] sm:$0xff]
    %v2847 = vld [vmem:[%s2826 + $0xa0] sm:$0xf]
    %v2848 = vld [vmem:[%s2826 + $0xa8] sm:$0xf]
    %v2849 = vrot.slane %v2478, 3
    %v2850 = vrot.slane %v2479, 3
    %v2851 = vsel %vm547, %v2849, %v2850
    %v2852 = vsel %vm2114, %v2851, 0
    %v2854 = vsel %vm2114, %v2850, 0
    %v2857 = vsel %vm685, %v2847, 0
    %v2860 = vsel %vm685, %v2848, 0
    %2862 = vmatprep.subr.mxu0 %v2828
    %2863 = vmatpush1.msra.mxu0 %v2827
    %2864 = vmatprep.subr.mxu0 %v2830
    %2865 = vmatpush1.msra.mxu0 %v2829
    %2866 = vmatprep.subr.mxu0 %v2832
    %2867 = vmatpush1.msra.mxu0 %v2831
    %2868 = vmatprep.subr.mxu0 %v2834
    %2869 = vmatpush1.msra.mxu0 %v2833
    %2870 = vmatprep.subr.mxu0 %v2836
    %2871 = vmatpush1.msra.mxu0 %v2835
    %2872 = vmatprep.subr.mxu0 %v2838
    %2873 = vmatpush1.msra.mxu0 %v2837
    %2874 = vmatprep.subr.mxu0 %v2840
    %2875 = vmatpush1.msra.mxu0 %v2839
    %2876 = vmatprep.subr.mxu0 %v2842
    %2877 = vmatpush1.msra.mxu0 %v2841
    %2878 = vmatprep.subr.mxu0 %v2844
    %2879 = vmatpush1.msra.mxu0 %v2843
    %2880 = vmatprep.subr.mxu0 %v2846
    %2881 = vmatpush1.msra.mxu0 %v2845
    %2882 = vmatprep.subr.mxu0 %v2860
    %2883 = vmatpush1.msra.mxu0 %v2857
    %2884 = vmatprep.subr.mxu0 0.0
    %2885 = vmatpush1.msra.mxu0 0.0
    %2886 = vmatprep.subr.mxu0 0.0
    %2887 = vmatpush1.msra.mxu0 0.0
    %2888 = vmatprep.subr.mxu0 0.0
    %2889 = vmatpush1.msra.mxu0 0.0
    %2890 = vmatprep.subr.mxu0 0.0
    %2891 = vmatpush1.msra.mxu0 0.0
    %2892 = vmatprep.subr.mxu0 0.0
    %2893 = vmatpush1.msra.mxu0 0.0
    %2894 = vmatprep.subr.mxu0 0.0
    %2895 = vmatpush1.msra.mxu0 0.0
    %2896 = vmatprep.subr.mxu0 0.0
    %2897 = vmatpush1.msra.mxu0 0.0
    %2898 = vmatprep.subr.mxu0 0.0
    %2899 = vmatpush1.msra.mxu0 0.0
    %2900 = vmatprep.subr.mxu0 0.0
    %2901 = vmatpush1.msra.mxu0 0.0
    %2902 = vmatprep.subr.mxu0 0.0
    %2903 = vmatpush1.msra.mxu0 0.0
    %2904 = vmatprep.subr.mxu0 0.0
    %2905 = vmatpush1.msra.mxu0 0.0
    %2906 = vmatprep.subr.mxu0 0.0
    %2907 = vmatpush1.msra.mxu0 0.0
    %2908 = vmatprep.subr.mxu0 0.0
    %2909 = vmatpush1.msra.mxu0 0.0
    %2910 = vmatprep.subr.mxu0 0.0
    %2911 = vmatpush1.msra.mxu0 0.0
    %2912 = vmatprep.subr.mxu0 0.0
    %2913 = vmatpush1.msra.mxu0 0.0
    %2914 = vmatprep.subr.mxu0 0.0
    %2915 = vmatpush1.msra.mxu0 0.0
    %2916 = vmatprep.subr.mxu0 0.0
    %2917 = vmatpush1.msra.mxu0 0.0
    %2918 = vmatprep.subr.mxu0 0.0
    %2919 = vmatpush1.msra.mxu0 0.0
    %2920 = vmatprep.subr.mxu0 0.0
    %2921 = vmatpush1.msra.mxu0 0.0
    %2922 = vmatprep.subr.mxu0 0.0
    %2923 = vmatpush1.msra.mxu0 0.0
    %2924 = vmatprep.subr.mxu0 0.0
    %2925 = vmatpush1.msra.mxu0 0.0
    %2926 = vmatprep.mubr.f32.mxu0 0.0
    %2927 = vmatmul.mubr.f32.gmra.mrb[0].mxu0 %v2852
    %v2928 = vpop.f32.mrb[0].mxu0
    %v2929 = vadd.f32 0.0, %v2928
    %v2930 = vpop.f32.mrb[0].mxu0
    %v2931 = vadd.f32 0.0, %v2930
    %2932 = vmatprep.mubr.f32.mxu0 0.0
    %2933 = vmatmul.mubr.f32.gmra.mrb[0].mxu0 %v2854
    %v2934 = vpop.f32.mrb[0].mxu0
    %v2935 = vadd.f32 0.0, %v2934
    %v2936 = vpop.f32.mrb[0].mxu0
    %v2937 = vadd.f32 0.0, %v2936
    %2938 = vdwg.mxu0
    %v2939 = vadd.f32 %v2822, %v2929
    %v2940 = vadd.f32 %v2823, %v2931
    %v2941 = vadd.f32 %v2824, %v2935
    %v2942 = vadd.f32 %v2825, %v2937
    %s2943 = scalar_lea.vmem %s5, 704
    %v2944 = vld [vmem:[%s2943] sm:$0xff]
    %v2945 = vld [vmem:[%s2943 + $0x8] sm:$0xff]
    %v2946 = vld [vmem:[%s2943 + $0x10] sm:$0xff]
    %v2947 = vld [vmem:[%s2943 + $0x18] sm:$0xff]
    %v2948 = vld [vmem:[%s2943 + $0x20] sm:$0xff]
    %v2949 = vld [vmem:[%s2943 + $0x28] sm:$0xff]
    %v2950 = vld [vmem:[%s2943 + $0x30] sm:$0xff]
    %v2951 = vld [vmem:[%s2943 + $0x38] sm:$0xff]
    %v2952 = vld [vmem:[%s2943 + $0x40] sm:$0xff]
    %v2953 = vld [vmem:[%s2943 + $0x48] sm:$0xff]
    %v2954 = vld [vmem:[%s2943 + $0x50] sm:$0xff]
    %v2955 = vld [vmem:[%s2943 + $0x58] sm:$0xff]
    %v2956 = vld [vmem:[%s2943 + $0x60] sm:$0xff]
    %v2957 = vld [vmem:[%s2943 + $0x68] sm:$0xff]
    %v2958 = vld [vmem:[%s2943 + $0x70] sm:$0xff]
    %v2959 = vld [vmem:[%s2943 + $0x78] sm:$0xff]
    %v2960 = vld [vmem:[%s2943 + $0x80] sm:$0xff]
    %v2961 = vld [vmem:[%s2943 + $0x88] sm:$0xff]
    %v2962 = vld [vmem:[%s2943 + $0x90] sm:$0xff]
    %v2963 = vld [vmem:[%s2943 + $0x98] sm:$0xff]
    %v2964 = vld [vmem:[%s2943 + $0xa0] sm:$0xf]
    %v2965 = vld [vmem:[%s2943 + $0xa8] sm:$0xf]
    %v2966 = vrot.slane %v2478, 4
    %v2967 = vrot.slane %v2479, 4
    %v2968 = vsel %vm685, %v2966, %v2967
    %v2969 = vsel %vm2114, %v2968, 0
    %v2971 = vsel %vm2114, %v2967, 0
    %v2974 = vsel %vm685, %v2964, 0
    %v2977 = vsel %vm685, %v2965, 0
    %2979 = vmatprep.subr.mxu0 %v2945
    %2980 = vmatpush1.msra.mxu0 %v2944
    %2981 = vmatprep.subr.mxu0 %v2947
    %2982 = vmatpush1.msra.mxu0 %v2946
    %2983 = vmatprep.subr.mxu0 %v2949
    %2984 = vmatpush1.msra.mxu0 %v2948
    %2985 = vmatprep.subr.mxu0 %v2951
    %2986 = vmatpush1.msra.mxu0 %v2950
    %2987 = vmatprep.subr.mxu0 %v2953
    %2988 = vmatpush1.msra.mxu0 %v2952
    %2989 = vmatprep.subr.mxu0 %v2955
    %2990 = vmatpush1.msra.mxu0 %v2954
    %2991 = vmatprep.subr.mxu0 %v2957
    %2992 = vmatpush1.msra.mxu0 %v2956
    %2993 = vmatprep.subr.mxu0 %v2959
    %2994 = vmatpush1.msra.mxu0 %v2958
    %2995 = vmatprep.subr.mxu0 %v2961
    %2996 = vmatpush1.msra.mxu0 %v2960
    %2997 = vmatprep.subr.mxu0 %v2963
    %2998 = vmatpush1.msra.mxu0 %v2962
    %2999 = vmatprep.subr.mxu0 %v2977
    %3000 = vmatpush1.msra.mxu0 %v2974
    %3001 = vmatprep.subr.mxu0 0.0
    %3002 = vmatpush1.msra.mxu0 0.0
    %3003 = vmatprep.subr.mxu0 0.0
    %3004 = vmatpush1.msra.mxu0 0.0
    %3005 = vmatprep.subr.mxu0 0.0
    %3006 = vmatpush1.msra.mxu0 0.0
    %3007 = vmatprep.subr.mxu0 0.0
    %3008 = vmatpush1.msra.mxu0 0.0
    %3009 = vmatprep.subr.mxu0 0.0
    %3010 = vmatpush1.msra.mxu0 0.0
    %3011 = vmatprep.subr.mxu0 0.0
    %3012 = vmatpush1.msra.mxu0 0.0
    %3013 = vmatprep.subr.mxu0 0.0
    %3014 = vmatpush1.msra.mxu0 0.0
    %3015 = vmatprep.subr.mxu0 0.0
    %3016 = vmatpush1.msra.mxu0 0.0
    %3017 = vmatprep.subr.mxu0 0.0
    %3018 = vmatpush1.msra.mxu0 0.0
    %3019 = vmatprep.subr.mxu0 0.0
    %3020 = vmatpush1.msra.mxu0 0.0
    %3021 = vmatprep.subr.mxu0 0.0
    %3022 = vmatpush1.msra.mxu0 0.0
    %3023 = vmatprep.subr.mxu0 0.0
    %3024 = vmatpush1.msra.mxu0 0.0
    %3025 = vmatprep.subr.mxu0 0.0
    %3026 = vmatpush1.msra.mxu0 0.0
    %3027 = vmatprep.subr.mxu0 0.0
    %3028 = vmatpush1.msra.mxu0 0.0
    %3029 = vmatprep.subr.mxu0 0.0
    %3030 = vmatpush1.msra.mxu0 0.0
    %3031 = vmatprep.subr.mxu0 0.0
    %3032 = vmatpush1.msra.mxu0 0.0
    %3033 = vmatprep.subr.mxu0 0.0
    %3034 = vmatpush1.msra.mxu0 0.0
    %3035 = vmatprep.subr.mxu0 0.0
    %3036 = vmatpush1.msra.mxu0 0.0
    %3037 = vmatprep.subr.mxu0 0.0
    %3038 = vmatpush1.msra.mxu0 0.0
    %3039 = vmatprep.subr.mxu0 0.0
    %3040 = vmatpush1.msra.mxu0 0.0
    %3041 = vmatprep.subr.mxu0 0.0
    %3042 = vmatpush1.msra.mxu0 0.0
    %3043 = vmatprep.mubr.f32.mxu0 0.0
    %3044 = vmatmul.mubr.f32.gmra.mrb[0].mxu0 %v2969
    %v3045 = vpop.f32.mrb[0].mxu0
    %v3046 = vadd.f32 0.0, %v3045
    %v3047 = vpop.f32.mrb[0].mxu0
    %v3048 = vadd.f32 0.0, %v3047
    %3049 = vmatprep.mubr.f32.mxu0 0.0
    %3050 = vmatmul.mubr.f32.gmra.mrb[0].mxu0 %v2971
    %v3051 = vpop.f32.mrb[0].mxu0
    %v3052 = vadd.f32 0.0, %v3051
    %v3053 = vpop.f32.mrb[0].mxu0
    %v3054 = vadd.f32 0.0, %v3053
    %3055 = vdwg.mxu0
    %v3056 = vadd.f32 %v2939, %v3046
    %v3057 = vadd.f32 %v2940, %v3048
    %v3058 = vadd.f32 %v2941, %v3052
    %v3059 = vadd.f32 %v2942, %v3054
    %v3060 = vld [vmem:[%s15] sm:$0xff]
    %v3061 = vld [vmem:[%s15 + $0x8] sm:$0xff]
    %v3062 = vld [vmem:[%s15 + $0x10] sm:$0xff]
    %v3063 = vld [vmem:[%s15 + $0x18] sm:$0xff]
    %v3064 = vld [vmem:[%s15 + $0x20] sm:$0xff]
    %v3065 = vld [vmem:[%s15 + $0x28] sm:$0xff]
    %v3066 = vld [vmem:[%s15 + $0x30] sm:$0xff]
    %v3067 = vld [vmem:[%s15 + $0x38] sm:$0xff]
    %v3068 = vld [vmem:[%s15 + $0x40] sm:$0xff]
    %v3069 = vld [vmem:[%s15 + $0x48] sm:$0xff]
    %v3070 = vld [vmem:[%s15 + $0x50] sm:$0xff]
    %v3071 = vld [vmem:[%s15 + $0x58] sm:$0xff]
    %v3072 = vld [vmem:[%s15 + $0x60] sm:$0xff]
    %v3073 = vld [vmem:[%s15 + $0x68] sm:$0xff]
    %v3074 = vld [vmem:[%s15 + $0x70] sm:$0xff]
    %v3075 = vld [vmem:[%s15 + $0x78] sm:$0xff]
    %v3076 = vld [vmem:[%s15 + $0x80] sm:$0xff]
    %v3077 = vld [vmem:[%s15 + $0x88] sm:$0xff]
    %v3078 = vld [vmem:[%s15 + $0x90] sm:$0xff]
    %v3079 = vld [vmem:[%s15 + $0x98] sm:$0xff]
    %vm3080 = vcmask 261120
    %v3082 = vsel %vm3080, %v3057, 0
    %v3085 = vsel %vm3080, %v3059, 0
    %3087 = vmatprep.subr.mxu0 0.0
    %3088 = vmatpush1.msra.mxu0 %v3060
    %3089 = vmatprep.subr.mxu0 0.0
    %3090 = vmatpush1.msra.mxu0 %v3061
    %3091 = vmatprep.subr.mxu0 0.0
    %3092 = vmatpush1.msra.mxu0 %v3062
    %3093 = vmatprep.subr.mxu0 0.0
    %3094 = vmatpush1.msra.mxu0 %v3063
    %3095 = vmatprep.subr.mxu0 0.0
    %3096 = vmatpush1.msra.mxu0 %v3064
    %3097 = vmatprep.subr.mxu0 0.0
    %3098 = vmatpush1.msra.mxu0 %v3065
    %3099 = vmatprep.subr.mxu0 0.0
    %3100 = vmatpush1.msra.mxu0 %v3066
    %3101 = vmatprep.subr.mxu0 0.0
    %3102 = vmatpush1.msra.mxu0 %v3067
    %3103 = vmatprep.subr.mxu0 0.0
    %3104 = vmatpush1.msra.mxu0 %v3068
    %3105 = vmatprep.subr.mxu0 0.0
    %3106 = vmatpush1.msra.mxu0 %v3069
    %3107 = vmatprep.subr.mxu0 0.0
    %3108 = vmatpush1.msra.mxu0 %v3070
    %3109 = vmatprep.subr.mxu0 0.0
    %3110 = vmatpush1.msra.mxu0 %v3071
    %3111 = vmatprep.subr.mxu0 0.0
    %3112 = vmatpush1.msra.mxu0 %v3072
    %3113 = vmatprep.subr.mxu0 0.0
    %3114 = vmatpush1.msra.mxu0 %v3073
    %3115 = vmatprep.subr.mxu0 0.0
    %3116 = vmatpush1.msra.mxu0 %v3074
    %3117 = vmatprep.subr.mxu0 0.0
    %3118 = vmatpush1.msra.mxu0 %v3075
    %3119 = vmatprep.subr.mxu0 0.0
    %3120 = vmatpush1.msra.mxu0 %v3076
    %3121 = vmatprep.subr.mxu0 0.0
    %3122 = vmatpush1.msra.mxu0 %v3077
    %3123 = vmatprep.subr.mxu0 0.0
    %3124 = vmatpush1.msra.mxu0 %v3078
    %3125 = vmatprep.subr.mxu0 0.0
    %3126 = vmatpush1.msra.mxu0 %v3079
    %3127 = vmatprep.subr.mxu0 0.0
    %3128 = vmatpush1.msra.mxu0 0.0
    %3129 = vmatprep.subr.mxu0 0.0
    %3130 = vmatpush1.msra.mxu0 0.0
    %3131 = vmatprep.subr.mxu0 0.0
    %3132 = vmatpush1.msra.mxu0 0.0
    %3133 = vmatprep.subr.mxu0 0.0
    %3134 = vmatpush1.msra.mxu0 0.0
    %3135 = vmatprep.subr.mxu0 0.0
    %3136 = vmatpush1.msra.mxu0 0.0
    %3137 = vmatprep.subr.mxu0 0.0
    %3138 = vmatpush1.msra.mxu0 0.0
    %3139 = vmatprep.subr.mxu0 0.0
    %3140 = vmatpush1.msra.mxu0 0.0
    %3141 = vmatprep.subr.mxu0 0.0
    %3142 = vmatpush1.msra.mxu0 0.0
    %3143 = vmatprep.subr.mxu0 0.0
    %3144 = vmatpush1.msra.mxu0 0.0
    %3145 = vmatprep.subr.mxu0 0.0
    %3146 = vmatpush1.msra.mxu0 0.0
    %3147 = vmatprep.subr.mxu0 0.0
    %3148 = vmatpush1.msra.mxu0 0.0
    %3149 = vmatprep.subr.mxu0 0.0
    %3150 = vmatpush1.msra.mxu0 0.0
    %3151 = vmatprep.mubr.f32.mxu0 %v3082
    %3152 = vmatmul.mubr.f32.gmra.mrb[0].mxu0 %v3056
    %v3153 = vpop.f32.mrb[0].mxu0
    %v3154 = vadd.f32 0.0, %v3153
    %v3155 = vpop.f32.mrb[0].mxu0
    %3156 = vmatprep.mubr.f32.mxu0 %v3085
    %3157 = vmatmul.mubr.f32.gmra.mrb[0].mxu0 %v3058
    %v3158 = vpop.f32.mrb[0].mxu0
    %v3159 = vadd.f32 0.0, %v3158
    %v3160 = vpop.f32.mrb[0].mxu0
    %3161 = vdwg.mxu0
    %v3162 = vld [vmem:[%s17] sm:$0xff]
    %v3163 = vld [vmem:[%s17 + $0x8] sm:$0xff]
    %v3164 = vld [vmem:[%s17 + $0x10] sm:$0xff]
    %v3165 = vld [vmem:[%s17 + $0x18] sm:$0xff]
    %v3166 = vld [vmem:[%s17 + $0x20] sm:$0xff]
    %v3167 = vld [vmem:[%s17 + $0x28] sm:$0xff]
    %v3168 = vld [vmem:[%s17 + $0x30] sm:$0xff]
    %v3169 = vld [vmem:[%s17 + $0x38] sm:$0xff]
    %v3170 = vld [vmem:[%s17 + $0x40] sm:$0xff]
    %v3171 = vld [vmem:[%s17 + $0x48] sm:$0xff]
    %v3172 = vld [vmem:[%s17 + $0x50] sm:$0xff]
    %v3173 = vld [vmem:[%s17 + $0x58] sm:$0xff]
    %v3174 = vld [vmem:[%s17 + $0x60] sm:$0xff]
    %v3175 = vld [vmem:[%s17 + $0x68] sm:$0xff]
    %v3176 = vld [vmem:[%s17 + $0x70] sm:$0xff]
    %v3177 = vld [vmem:[%s17 + $0x78] sm:$0xff]
    %v3178 = vld [vmem:[%s17 + $0x80] sm:$0xff]
    %v3179 = vld [vmem:[%s17 + $0x88] sm:$0xff]
    %v3180 = vld [vmem:[%s17 + $0x90] sm:$0xff]
    %v3181 = vld [vmem:[%s17 + $0x98] sm:$0xff]
    %3182 = vmatprep.subr.mxu0 0.0
    %3183 = vmatpush1.msra.mxu0 %v3162
    %3184 = vmatprep.subr.mxu0 0.0
    %3185 = vmatpush1.msra.mxu0 %v3163
    %3186 = vmatprep.subr.mxu0 0.0
    %3187 = vmatpush1.msra.mxu0 %v3164
    %3188 = vmatprep.subr.mxu0 0.0
    %3189 = vmatpush1.msra.mxu0 %v3165
    %3190 = vmatprep.subr.mxu0 0.0
    %3191 = vmatpush1.msra.mxu0 %v3166
    %3192 = vmatprep.subr.mxu0 0.0
    %3193 = vmatpush1.msra.mxu0 %v3167
    %3194 = vmatprep.subr.mxu0 0.0
    %3195 = vmatpush1.msra.mxu0 %v3168
    %3196 = vmatprep.subr.mxu0 0.0
    %3197 = vmatpush1.msra.mxu0 %v3169
    %3198 = vmatprep.subr.mxu0 0.0
    %3199 = vmatpush1.msra.mxu0 %v3170
    %3200 = vmatprep.subr.mxu0 0.0
    %3201 = vmatpush1.msra.mxu0 %v3171
    %3202 = vmatprep.subr.mxu0 0.0
    %3203 = vmatpush1.msra.mxu0 %v3172
    %3204 = vmatprep.subr.mxu0 0.0
    %3205 = vmatpush1.msra.mxu0 %v3173
    %3206 = vmatprep.subr.mxu0 0.0
    %3207 = vmatpush1.msra.mxu0 %v3174
    %3208 = vmatprep.subr.mxu0 0.0
    %3209 = vmatpush1.msra.mxu0 %v3175
    %3210 = vmatprep.subr.mxu0 0.0
    %3211 = vmatpush1.msra.mxu0 %v3176
    %3212 = vmatprep.subr.mxu0 0.0
    %3213 = vmatpush1.msra.mxu0 %v3177
    %3214 = vmatprep.subr.mxu0 0.0
    %3215 = vmatpush1.msra.mxu0 %v3178
    %3216 = vmatprep.subr.mxu0 0.0
    %3217 = vmatpush1.msra.mxu0 %v3179
    %3218 = vmatprep.subr.mxu0 0.0
    %3219 = vmatpush1.msra.mxu0 %v3180
    %3220 = vmatprep.subr.mxu0 0.0
    %3221 = vmatpush1.msra.mxu0 %v3181
    %3222 = vmatprep.subr.mxu0 0.0
    %3223 = vmatpush1.msra.mxu0 0.0
    %3224 = vmatprep.subr.mxu0 0.0
    %3225 = vmatpush1.msra.mxu0 0.0
    %3226 = vmatprep.subr.mxu0 0.0
    %3227 = vmatpush1.msra.mxu0 0.0
    %3228 = vmatprep.subr.mxu0 0.0
    %3229 = vmatpush1.msra.mxu0 0.0
    %3230 = vmatprep.subr.mxu0 0.0
    %3231 = vmatpush1.msra.mxu0 0.0
    %3232 = vmatprep.subr.mxu0 0.0
    %3233 = vmatpush1.msra.mxu0 0.0
    %3234 = vmatprep.subr.mxu0 0.0
    %3235 = vmatpush1.msra.mxu0 0.0
    %3236 = vmatprep.subr.mxu0 0.0
    %3237 = vmatpush1.msra.mxu0 0.0
    %3238 = vmatprep.subr.mxu0 0.0
    %3239 = vmatpush1.msra.mxu0 0.0
    %3240 = vmatprep.subr.mxu0 0.0
    %3241 = vmatpush1.msra.mxu0 0.0
    %3242 = vmatprep.subr.mxu0 0.0
    %3243 = vmatpush1.msra.mxu0 0.0
    %3244 = vmatprep.subr.mxu0 0.0
    %3245 = vmatpush1.msra.mxu0 0.0
    %3246 = vmatprep.mubr.f32.mxu0 %v3082
    %3247 = vmatmul.mubr.f32.gmra.mrb[0].mxu0 %v3056
    %v3248 = vpop.f32.mrb[0].mxu0
    %v3249 = vadd.f32 0.0, %v3248
    %v3250 = vpop.f32.mrb[0].mxu0
    %3251 = vmatprep.mubr.f32.mxu0 %v3085
    %3252 = vmatmul.mubr.f32.gmra.mrb[0].mxu0 %v3058
    %v3253 = vpop.f32.mrb[0].mxu0
    %v3254 = vadd.f32 0.0, %v3253
    %v3255 = vpop.f32.mrb[0].mxu0
    %3256 = vdwg.mxu0
    %v3257 = vmax.f32 %v3154, %v3249
    %v3258 = vmax.f32 %v3159, %v3254
    %v3259 = vld [vmem:[%s19] sm:$0x1f]
    %vm3260 = vcmask 80896
    %v3262 = vsel %vm3260, %v3259, 0
    %vm3264 = vcmask 1041408
    %v3266 = vsel %vm3264, %v3258, 0
    %3268 = vmatprep.subr.mxu0 0.0
    %3269 = vmatpush1.msra.mxu0 %v3257
    %3270 = vmatprep.subr.mxu0 0.0
    %3271 = vmatpush1.msra.mxu0 %v3266
    %3272 = vmatprep.subr.mxu0 0.0
    %3273 = vmatpush1.msra.mxu0 0.0
    %3274 = vmatprep.subr.mxu0 0.0
    %3275 = vmatpush1.msra.mxu0 0.0
    %3276 = vmatprep.subr.mxu0 0.0
    %3277 = vmatpush1.msra.mxu0 0.0
    %3278 = vmatprep.subr.mxu0 0.0
    %3279 = vmatpush1.msra.mxu0 0.0
    %3280 = vmatprep.subr.mxu0 0.0
    %3281 = vmatpush1.msra.mxu0 0.0
    %3282 = vmatprep.subr.mxu0 0.0
    %3283 = vmatpush1.msra.mxu0 0.0
    %3284 = vmatprep.subr.mxu0 0.0
    %3285 = vmatpush1.msra.mxu0 0.0
    %3286 = vmatprep.subr.mxu0 0.0
    %3287 = vmatpush1.msra.mxu0 0.0
    %3288 = vmatprep.subr.mxu0 0.0
    %3289 = vmatpush1.msra.mxu0 0.0
    %3290 = vmatprep.subr.mxu0 0.0
    %3291 = vmatpush1.msra.mxu0 0.0
    %3292 = vmatprep.subr.mxu0 0.0
    %3293 = vmatpush1.msra.mxu0 0.0
    %3294 = vmatprep.subr.mxu0 0.0
    %3295 = vmatpush1.msra.mxu0 0.0
    %3296 = vmatprep.subr.mxu0 0.0
    %3297 = vmatpush1.msra.mxu0 0.0
    %3298 = vmatprep.subr.mxu0 0.0
    %3299 = vmatpush1.msra.mxu0 0.0
    %3300 = vmatprep.subr.mxu0 0.0
    %3301 = vmatpush1.msra.mxu0 0.0
    %3302 = vmatprep.subr.mxu0 0.0
    %3303 = vmatpush1.msra.mxu0 0.0
    %3304 = vmatprep.subr.mxu0 0.0
    %3305 = vmatpush1.msra.mxu0 0.0
    %3306 = vmatprep.subr.mxu0 0.0
    %3307 = vmatpush1.msra.mxu0 0.0
    %3308 = vmatprep.subr.mxu0 0.0
    %3309 = vmatpush1.msra.mxu0 0.0
    %3310 = vmatprep.subr.mxu0 0.0
    %3311 = vmatpush1.msra.mxu0 0.0
    %3312 = vmatprep.subr.mxu0 0.0
    %3313 = vmatpush1.msra.mxu0 0.0
    %3314 = vmatprep.subr.mxu0 0.0
    %3315 = vmatpush1.msra.mxu0 0.0
    %3316 = vmatprep.subr.mxu0 0.0
    %3317 = vmatpush1.msra.mxu0 0.0
    %3318 = vmatprep.subr.mxu0 0.0
    %3319 = vmatpush1.msra.mxu0 0.0
    %3320 = vmatprep.subr.mxu0 0.0
    %3321 = vmatpush1.msra.mxu0 0.0
    %3322 = vmatprep.subr.mxu0 0.0
    %3323 = vmatpush1.msra.mxu0 0.0
    %3324 = vmatprep.subr.mxu0 0.0
    %3325 = vmatpush1.msra.mxu0 0.0
    %3326 = vmatprep.subr.mxu0 0.0
    %3327 = vmatpush1.msra.mxu0 0.0
    %3328 = vmatprep.subr.mxu0 0.0
    %3329 = vmatpush1.msra.mxu0 0.0
    %3330 = vmatprep.subr.mxu0 0.0
    %3331 = vmatpush1.msra.mxu0 0.0
    %3332 = vmatprep.mubr.f32.mxu0 0.0
    %3333 = vmatmul.mubr.f32.gmra.mrb[0].mxu0 %v3262
    %v3334 = vpop.f32.mrb[0].mxu0
    %v3335 = vadd.f32 0.0, %v3334
    %v3336 = vpop.f32.mrb[0].mxu0
    %3337 = vdwg.mxu0
    %v3338 = vld [vmem:[%s21] sm:$0x1f]
    %v3340 = vsel %vm3260, %v3338, 0
    %3342 = vmatprep.subr.mxu0 0.0
    %3343 = vmatpush1.msra.mxu0 %v3257
    %3344 = vmatprep.subr.mxu0 0.0
    %3345 = vmatpush1.msra.mxu0 %v3266
    %3346 = vmatprep.subr.mxu0 0.0
    %3347 = vmatpush1.msra.mxu0 0.0
    %3348 = vmatprep.subr.mxu0 0.0
    %3349 = vmatpush1.msra.mxu0 0.0
    %3350 = vmatprep.subr.mxu0 0.0
    %3351 = vmatpush1.msra.mxu0 0.0
    %3352 = vmatprep.subr.mxu0 0.0
    %3353 = vmatpush1.msra.mxu0 0.0
    %3354 = vmatprep.subr.mxu0 0.0
    %3355 = vmatpush1.msra.mxu0 0.0
    %3356 = vmatprep.subr.mxu0 0.0
    %3357 = vmatpush1.msra.mxu0 0.0
    %3358 = vmatprep.subr.mxu0 0.0
    %3359 = vmatpush1.msra.mxu0 0.0
    %3360 = vmatprep.subr.mxu0 0.0
    %3361 = vmatpush1.msra.mxu0 0.0
    %3362 = vmatprep.subr.mxu0 0.0
    %3363 = vmatpush1.msra.mxu0 0.0
    %3364 = vmatprep.subr.mxu0 0.0
    %3365 = vmatpush1.msra.mxu0 0.0
    %3366 = vmatprep.subr.mxu0 0.0
    %3367 = vmatpush1.msra.mxu0 0.0
    %3368 = vmatprep.subr.mxu0 0.0
    %3369 = vmatpush1.msra.mxu0 0.0
    %3370 = vmatprep.subr.mxu0 0.0
    %3371 = vmatpush1.msra.mxu0 0.0
    %3372 = vmatprep.subr.mxu0 0.0
    %3373 = vmatpush1.msra.mxu0 0.0
    %3374 = vmatprep.subr.mxu0 0.0
    %3375 = vmatpush1.msra.mxu0 0.0
    %3376 = vmatprep.subr.mxu0 0.0
    %3377 = vmatpush1.msra.mxu0 0.0
    %3378 = vmatprep.subr.mxu0 0.0
    %3379 = vmatpush1.msra.mxu0 0.0
    %3380 = vmatprep.subr.mxu0 0.0
    %3381 = vmatpush1.msra.mxu0 0.0
    %3382 = vmatprep.subr.mxu0 0.0
    %3383 = vmatpush1.msra.mxu0 0.0
    %3384 = vmatprep.subr.mxu0 0.0
    %3385 = vmatpush1.msra.mxu0 0.0
    %3386 = vmatprep.subr.mxu0 0.0
    %3387 = vmatpush1.msra.mxu0 0.0
    %3388 = vmatprep.subr.mxu0 0.0
    %3389 = vmatpush1.msra.mxu0 0.0
    %3390 = vmatprep.subr.mxu0 0.0
    %3391 = vmatpush1.msra.mxu0 0.0
    %3392 = vmatprep.subr.mxu0 0.0
    %3393 = vmatpush1.msra.mxu0 0.0
    %3394 = vmatprep.subr.mxu0 0.0
    %3395 = vmatpush1.msra.mxu0 0.0
    %3396 = vmatprep.subr.mxu0 0.0
    %3397 = vmatpush1.msra.mxu0 0.0
    %3398 = vmatprep.subr.mxu0 0.0
    %3399 = vmatpush1.msra.mxu0 0.0
    %3400 = vmatprep.subr.mxu0 0.0
    %3401 = vmatpush1.msra.mxu0 0.0
    %3402 = vmatprep.subr.mxu0 0.0
    %3403 = vmatpush1.msra.mxu0 0.0
    %3404 = vmatprep.subr.mxu0 0.0
    %3405 = vmatpush1.msra.mxu0 0.0
    %3406 = vmatprep.mubr.f32.mxu0 0.0
    %3407 = vmatmul.mubr.f32.gmra.mrb[0].mxu0 %v3340
    %v3408 = vpop.f32.mrb[0].mxu0
    %v3409 = vadd.f32 0.0, %v3408
    %v3410 = vpop.f32.mrb[0].mxu0
    %3411 = vdwg.mxu0
    %v3412 = vmax.f32 %v3335, %v3409
    %v3414 = vlaneseq
    %v3415 = vshrl.u32 %v3414, 7
    %v3416 = vsub.s32 0, %v3415
    %v3417 = vrot.slane %v2484, %v3416
    %v3419 = vadd.f32 %v3412, %v3417
    %v3420 = vmax.f32 %v3419, 0.0
    %v3423 = vrot.slane %v2482, 1
    %v3424 = vrot.slane %v2483, 1
    %v3425 = vsel %vm181, %v3423, %v3424
    %v3426 = vsel %vm2114, %v3425, 0
    %v3428 = vsel %vm2114, %v3424, 0
    %3430 = vmatprep.subr.mxu0 %v2509
    %3431 = vmatpush1.msra.mxu0 %v2508
    %3432 = vmatprep.subr.mxu0 %v2511
    %3433 = vmatpush1.msra.mxu0 %v2510
    %3434 = vmatprep.subr.mxu0 %v2513
    %3435 = vmatpush1.msra.mxu0 %v2512
    %3436 = vmatprep.subr.mxu0 %v2515
    %3437 = vmatpush1.msra.mxu0 %v2514
    %3438 = vmatprep.subr.mxu0 %v2517
    %3439 = vmatpush1.msra.mxu0 %v2516
    %3440 = vmatprep.subr.mxu0 %v2519
    %3441 = vmatpush1.msra.mxu0 %v2518
    %3442 = vmatprep.subr.mxu0 %v2521
    %3443 = vmatpush1.msra.mxu0 %v2520
    %3444 = vmatprep.subr.mxu0 %v2523
    %3445 = vmatpush1.msra.mxu0 %v2522
    %3446 = vmatprep.subr.mxu0 %v2525
    %3447 = vmatpush1.msra.mxu0 %v2524
    %3448 = vmatprep.subr.mxu0 %v2527
    %3449 = vmatpush1.msra.mxu0 %v2526
    %3450 = vmatprep.subr.mxu0 %v2543
    %3451 = vmatpush1.msra.mxu0 %v2540
    %3452 = vmatprep.subr.mxu0 0.0
    %3453 = vmatpush1.msra.mxu0 0.0
    %3454 = vmatprep.subr.mxu0 0.0
    %3455 = vmatpush1.msra.mxu0 0.0
    %3456 = vmatprep.subr.mxu0 0.0
    %3457 = vmatpush1.msra.mxu0 0.0
    %3458 = vmatprep.subr.mxu0 0.0
    %3459 = vmatpush1.msra.mxu0 0.0
    %3460 = vmatprep.subr.mxu0 0.0
    %3461 = vmatpush1.msra.mxu0 0.0
    %3462 = vmatprep.subr.mxu0 0.0
    %3463 = vmatpush1.msra.mxu0 0.0
    %3464 = vmatprep.subr.mxu0 0.0
    %3465 = vmatpush1.msra.mxu0 0.0
    %3466 = vmatprep.subr.mxu0 0.0
    %3467 = vmatpush1.msra.mxu0 0.0
    %3468 = vmatprep.subr.mxu0 0.0
    %3469 = vmatpush1.msra.mxu0 0.0
    %3470 = vmatprep.subr.mxu0 0.0
    %3471 = vmatpush1.msra.mxu0 0.0
    %3472 = vmatprep.subr.mxu0 0.0
    %3473 = vmatpush1.msra.mxu0 0.0
    %3474 = vmatprep.subr.mxu0 0.0
    %3475 = vmatpush1.msra.mxu0 0.0
    %3476 = vmatprep.subr.mxu0 0.0
    %3477 = vmatpush1.msra.mxu0 0.0
    %3478 = vmatprep.subr.mxu0 0.0
    %3479 = vmatpush1.msra.mxu0 0.0
    %3480 = vmatprep.subr.mxu0 0.0
    %3481 = vmatpush1.msra.mxu0 0.0
    %3482 = vmatprep.subr.mxu0 0.0
    %3483 = vmatpush1.msra.mxu0 0.0
    %3484 = vmatprep.subr.mxu0 0.0
    %3485 = vmatpush1.msra.mxu0 0.0
    %3486 = vmatprep.subr.mxu0 0.0
    %3487 = vmatpush1.msra.mxu0 0.0
    %3488 = vmatprep.subr.mxu0 0.0
    %3489 = vmatpush1.msra.mxu0 0.0
    %3490 = vmatprep.subr.mxu0 0.0
    %3491 = vmatpush1.msra.mxu0 0.0
    %3492 = vmatprep.subr.mxu0 0.0
    %3493 = vmatpush1.msra.mxu0 0.0
    %3494 = vmatprep.mubr.f32.mxu0 0.0
    %3495 = vmatmul.mubr.f32.gmra.mrb[0].mxu0 %v3426
    %v3496 = vpop.f32.mrb[0].mxu0
    %v3497 = vadd.f32 0.0, %v3496
    %v3498 = vpop.f32.mrb[0].mxu0
    %v3499 = vadd.f32 0.0, %v3498
    %3500 = vmatprep.mubr.f32.mxu0 0.0
    %3501 = vmatmul.mubr.f32.gmra.mrb[0].mxu0 %v3428
    %v3502 = vpop.f32.mrb[0].mxu0
    %v3503 = vadd.f32 0.0, %v3502
    %v3504 = vpop.f32.mrb[0].mxu0
    %v3505 = vadd.f32 0.0, %v3504
    %3506 = vdwg.mxu0
    %v3507 = vsel %vm2114, %v2482, 0
    %v3509 = vsel %vm2114, %v2483, 0
    %3511 = vmatprep.subr.mxu0 %v2486
    %3512 = vmatpush1.msra.mxu0 %v2485
    %3513 = vmatprep.subr.mxu0 %v2488
    %3514 = vmatpush1.msra.mxu0 %v2487
    %3515 = vmatprep.subr.mxu0 %v2490
    %3516 = vmatpush1.msra.mxu0 %v2489
    %3517 = vmatprep.subr.mxu0 %v2492
    %3518 = vmatpush1.msra.mxu0 %v2491
    %3519 = vmatprep.subr.mxu0 %v2494
    %3520 = vmatpush1.msra.mxu0 %v2493
    %3521 = vmatprep.subr.mxu0 %v2496
    %3522 = vmatpush1.msra.mxu0 %v2495
    %3523 = vmatprep.subr.mxu0 %v2498
    %3524 = vmatpush1.msra.mxu0 %v2497
    %3525 = vmatprep.subr.mxu0 %v2500
    %3526 = vmatpush1.msra.mxu0 %v2499
    %3527 = vmatprep.subr.mxu0 %v2502
    %3528 = vmatpush1.msra.mxu0 %v2501
    %3529 = vmatprep.subr.mxu0 %v2504
    %3530 = vmatpush1.msra.mxu0 %v2503
    %3531 = vmatprep.subr.mxu0 %v2630
    %3532 = vmatpush1.msra.mxu0 %v2627
    %3533 = vmatprep.subr.mxu0 0.0
    %3534 = vmatpush1.msra.mxu0 0.0
    %3535 = vmatprep.subr.mxu0 0.0
    %3536 = vmatpush1.msra.mxu0 0.0
    %3537 = vmatprep.subr.mxu0 0.0
    %3538 = vmatpush1.msra.mxu0 0.0
    %3539 = vmatprep.subr.mxu0 0.0
    %3540 = vmatpush1.msra.mxu0 0.0
    %3541 = vmatprep.subr.mxu0 0.0
    %3542 = vmatpush1.msra.mxu0 0.0
    %3543 = vmatprep.subr.mxu0 0.0
    %3544 = vmatpush1.msra.mxu0 0.0
    %3545 = vmatprep.subr.mxu0 0.0
    %3546 = vmatpush1.msra.mxu0 0.0
    %3547 = vmatprep.subr.mxu0 0.0
    %3548 = vmatpush1.msra.mxu0 0.0
    %3549 = vmatprep.subr.mxu0 0.0
    %3550 = vmatpush1.msra.mxu0 0.0
    %3551 = vmatprep.subr.mxu0 0.0
    %3552 = vmatpush1.msra.mxu0 0.0
    %3553 = vmatprep.subr.mxu0 0.0
    %3554 = vmatpush1.msra.mxu0 0.0
    %3555 = vmatprep.subr.mxu0 0.0
    %3556 = vmatpush1.msra.mxu0 0.0
    %3557 = vmatprep.subr.mxu0 0.0
    %3558 = vmatpush1.msra.mxu0 0.0
    %3559 = vmatprep.subr.mxu0 0.0
    %3560 = vmatpush1.msra.mxu0 0.0
    %3561 = vmatprep.subr.mxu0 0.0
    %3562 = vmatpush1.msra.mxu0 0.0
    %3563 = vmatprep.subr.mxu0 0.0
    %3564 = vmatpush1.msra.mxu0 0.0
    %3565 = vmatprep.subr.mxu0 0.0
    %3566 = vmatpush1.msra.mxu0 0.0
    %3567 = vmatprep.subr.mxu0 0.0
    %3568 = vmatpush1.msra.mxu0 0.0
    %3569 = vmatprep.subr.mxu0 0.0
    %3570 = vmatpush1.msra.mxu0 0.0
    %3571 = vmatprep.subr.mxu0 0.0
    %3572 = vmatpush1.msra.mxu0 0.0
    %3573 = vmatprep.subr.mxu0 0.0
    %3574 = vmatpush1.msra.mxu0 0.0
    %3575 = vmatprep.mubr.f32.mxu0 0.0
    %3576 = vmatmul.mubr.f32.gmra.mrb[0].mxu0 %v3507
    %v3577 = vpop.f32.mrb[0].mxu0
    %v3578 = vadd.f32 %v3497, %v3577
    %v3579 = vpop.f32.mrb[0].mxu0
    %v3580 = vadd.f32 %v3499, %v3579
    %3581 = vmatprep.mubr.f32.mxu0 0.0
    %3582 = vmatmul.mubr.f32.gmra.mrb[0].mxu0 %v3509
    %v3583 = vpop.f32.mrb[0].mxu0
    %v3584 = vadd.f32 %v3503, %v3583
    %v3585 = vpop.f32.mrb[0].mxu0
    %v3586 = vadd.f32 %v3505, %v3585
    %3587 = vdwg.mxu0
    %v3588 = vrot.slane %v2482, 2
    %v3589 = vrot.slane %v2483, 2
    %v3590 = vsel %vm409, %v3588, %v3589
    %v3591 = vsel %vm2114, %v3590, 0
    %v3593 = vsel %vm2114, %v3589, 0
    %3595 = vmatprep.subr.mxu0 %v2711
    %3596 = vmatpush1.msra.mxu0 %v2710
    %3597 = vmatprep.subr.mxu0 %v2713
    %3598 = vmatpush1.msra.mxu0 %v2712
    %3599 = vmatprep.subr.mxu0 %v2715
    %3600 = vmatpush1.msra.mxu0 %v2714
    %3601 = vmatprep.subr.mxu0 %v2717
    %3602 = vmatpush1.msra.mxu0 %v2716
    %3603 = vmatprep.subr.mxu0 %v2719
    %3604 = vmatpush1.msra.mxu0 %v2718
    %3605 = vmatprep.subr.mxu0 %v2721
    %3606 = vmatpush1.msra.mxu0 %v2720
    %3607 = vmatprep.subr.mxu0 %v2723
    %3608 = vmatpush1.msra.mxu0 %v2722
    %3609 = vmatprep.subr.mxu0 %v2725
    %3610 = vmatpush1.msra.mxu0 %v2724
    %3611 = vmatprep.subr.mxu0 %v2727
    %3612 = vmatpush1.msra.mxu0 %v2726
    %3613 = vmatprep.subr.mxu0 %v2729
    %3614 = vmatpush1.msra.mxu0 %v2728
    %3615 = vmatprep.subr.mxu0 %v2743
    %3616 = vmatpush1.msra.mxu0 %v2740
    %3617 = vmatprep.subr.mxu0 0.0
    %3618 = vmatpush1.msra.mxu0 0.0
    %3619 = vmatprep.subr.mxu0 0.0
    %3620 = vmatpush1.msra.mxu0 0.0
    %3621 = vmatprep.subr.mxu0 0.0
    %3622 = vmatpush1.msra.mxu0 0.0
    %3623 = vmatprep.subr.mxu0 0.0
    %3624 = vmatpush1.msra.mxu0 0.0
    %3625 = vmatprep.subr.mxu0 0.0
    %3626 = vmatpush1.msra.mxu0 0.0
    %3627 = vmatprep.subr.mxu0 0.0
    %3628 = vmatpush1.msra.mxu0 0.0
    %3629 = vmatprep.subr.mxu0 0.0
    %3630 = vmatpush1.msra.mxu0 0.0
    %3631 = vmatprep.subr.mxu0 0.0
    %3632 = vmatpush1.msra.mxu0 0.0
    %3633 = vmatprep.subr.mxu0 0.0
    %3634 = vmatpush1.msra.mxu0 0.0
    %3635 = vmatprep.subr.mxu0 0.0
    %3636 = vmatpush1.msra.mxu0 0.0
    %3637 = vmatprep.subr.mxu0 0.0
    %3638 = vmatpush1.msra.mxu0 0.0
    %3639 = vmatprep.subr.mxu0 0.0
    %3640 = vmatpush1.msra.mxu0 0.0
    %3641 = vmatprep.subr.mxu0 0.0
    %3642 = vmatpush1.msra.mxu0 0.0
    %3643 = vmatprep.subr.mxu0 0.0
    %3644 = vmatpush1.msra.mxu0 0.0
    %3645 = vmatprep.subr.mxu0 0.0
    %3646 = vmatpush1.msra.mxu0 0.0
    %3647 = vmatprep.subr.mxu0 0.0
    %3648 = vmatpush1.msra.mxu0 0.0
    %3649 = vmatprep.subr.mxu0 0.0
    %3650 = vmatpush1.msra.mxu0 0.0
    %3651 = vmatprep.subr.mxu0 0.0
    %3652 = vmatpush1.msra.mxu0 0.0
    %3653 = vmatprep.subr.mxu0 0.0
    %3654 = vmatpush1.msra.mxu0 0.0
    %3655 = vmatprep.subr.mxu0 0.0
    %3656 = vmatpush1.msra.mxu0 0.0
    %3657 = vmatprep.subr.mxu0 0.0
    %3658 = vmatpush1.msra.mxu0 0.0
    %3659 = vmatprep.mubr.f32.mxu0 0.0
    %3660 = vmatmul.mubr.f32.gmra.mrb[0].mxu0 %v3591
    %v3661 = vpop.f32.mrb[0].mxu0
    %v3662 = vadd.f32 0.0, %v3661
    %v3663 = vpop.f32.mrb[0].mxu0
    %v3664 = vadd.f32 0.0, %v3663
    %3665 = vmatprep.mubr.f32.mxu0 0.0
    %3666 = vmatmul.mubr.f32.gmra.mrb[0].mxu0 %v3593
    %v3667 = vpop.f32.mrb[0].mxu0
    %v3668 = vadd.f32 0.0, %v3667
    %v3669 = vpop.f32.mrb[0].mxu0
    %v3670 = vadd.f32 0.0, %v3669
    %3671 = vdwg.mxu0
    %v3672 = vadd.f32 %v3578, %v3662
    %v3673 = vadd.f32 %v3580, %v3664
    %v3674 = vadd.f32 %v3584, %v3668
    %v3675 = vadd.f32 %v3586, %v3670
    %v3676 = vrot.slane %v2482, 3
    %v3677 = vrot.slane %v2483, 3
    %v3678 = vsel %vm547, %v3676, %v3677
    %v3679 = vsel %vm2114, %v3678, 0
    %v3681 = vsel %vm2114, %v3677, 0
    %3683 = vmatprep.subr.mxu0 %v2828
    %3684 = vmatpush1.msra.mxu0 %v2827
    %3685 = vmatprep.subr.mxu0 %v2830
    %3686 = vmatpush1.msra.mxu0 %v2829
    %3687 = vmatprep.subr.mxu0 %v2832
    %3688 = vmatpush1.msra.mxu0 %v2831
    %3689 = vmatprep.subr.mxu0 %v2834
    %3690 = vmatpush1.msra.mxu0 %v2833
    %3691 = vmatprep.subr.mxu0 %v2836
    %3692 = vmatpush1.msra.mxu0 %v2835
    %3693 = vmatprep.subr.mxu0 %v2838
    %3694 = vmatpush1.msra.mxu0 %v2837
    %3695 = vmatprep.subr.mxu0 %v2840
    %3696 = vmatpush1.msra.mxu0 %v2839
    %3697 = vmatprep.subr.mxu0 %v2842
    %3698 = vmatpush1.msra.mxu0 %v2841
    %3699 = vmatprep.subr.mxu0 %v2844
    %3700 = vmatpush1.msra.mxu0 %v2843
    %3701 = vmatprep.subr.mxu0 %v2846
    %3702 = vmatpush1.msra.mxu0 %v2845
    %3703 = vmatprep.subr.mxu0 %v2860
    %3704 = vmatpush1.msra.mxu0 %v2857
    %3705 = vmatprep.subr.mxu0 0.0
    %3706 = vmatpush1.msra.mxu0 0.0
    %3707 = vmatprep.subr.mxu0 0.0
    %3708 = vmatpush1.msra.mxu0 0.0
    %3709 = vmatprep.subr.mxu0 0.0
    %3710 = vmatpush1.msra.mxu0 0.0
    %3711 = vmatprep.subr.mxu0 0.0
    %3712 = vmatpush1.msra.mxu0 0.0
    %3713 = vmatprep.subr.mxu0 0.0
    %3714 = vmatpush1.msra.mxu0 0.0
    %3715 = vmatprep.subr.mxu0 0.0
    %3716 = vmatpush1.msra.mxu0 0.0
    %3717 = vmatprep.subr.mxu0 0.0
    %3718 = vmatpush1.msra.mxu0 0.0
    %3719 = vmatprep.subr.mxu0 0.0
    %3720 = vmatpush1.msra.mxu0 0.0
    %3721 = vmatprep.subr.mxu0 0.0
    %3722 = vmatpush1.msra.mxu0 0.0
    %3723 = vmatprep.subr.mxu0 0.0
    %3724 = vmatpush1.msra.mxu0 0.0
    %3725 = vmatprep.subr.mxu0 0.0
    %3726 = vmatpush1.msra.mxu0 0.0
    %3727 = vmatprep.subr.mxu0 0.0
    %3728 = vmatpush1.msra.mxu0 0.0
    %3729 = vmatprep.subr.mxu0 0.0
    %3730 = vmatpush1.msra.mxu0 0.0
    %3731 = vmatprep.subr.mxu0 0.0
    %3732 = vmatpush1.msra.mxu0 0.0
    %3733 = vmatprep.subr.mxu0 0.0
    %3734 = vmatpush1.msra.mxu0 0.0
    %3735 = vmatprep.subr.mxu0 0.0
    %3736 = vmatpush1.msra.mxu0 0.0
    %3737 = vmatprep.subr.mxu0 0.0
    %3738 = vmatpush1.msra.mxu0 0.0
    %3739 = vmatprep.subr.mxu0 0.0
    %3740 = vmatpush1.msra.mxu0 0.0
    %3741 = vmatprep.subr.mxu0 0.0
    %3742 = vmatpush1.msra.mxu0 0.0
    %3743 = vmatprep.subr.mxu0 0.0
    %3744 = vmatpush1.msra.mxu0 0.0
    %3745 = vmatprep.subr.mxu0 0.0
    %3746 = vmatpush1.msra.mxu0 0.0
    %3747 = vmatprep.mubr.f32.mxu0 0.0
    %3748 = vmatmul.mubr.f32.gmra.mrb[0].mxu0 %v3679
    %v3749 = vpop.f32.mrb[0].mxu0
    %v3750 = vadd.f32 0.0, %v3749
    %v3751 = vpop.f32.mrb[0].mxu0
    %v3752 = vadd.f32 0.0, %v3751
    %3753 = vmatprep.mubr.f32.mxu0 0.0
    %3754 = vmatmul.mubr.f32.gmra.mrb[0].mxu0 %v3681
    %v3755 = vpop.f32.mrb[0].mxu0
    %v3756 = vadd.f32 0.0, %v3755
    %v3757 = vpop.f32.mrb[0].mxu0
    %v3758 = vadd.f32 0.0, %v3757
    %3759 = vdwg.mxu0
    %v3760 = vadd.f32 %v3672, %v3750
    %v3761 = vadd.f32 %v3673, %v3752
    %v3762 = vadd.f32 %v3674, %v3756
    %v3763 = vadd.f32 %v3675, %v3758
    %v3764 = vrot.slane %v2482, 4
    %v3765 = vrot.slane %v2483, 4
    %v3766 = vsel %vm685, %v3764, %v3765
    %v3767 = vsel %vm2114, %v3766, 0
    %v3769 = vsel %vm2114, %v3765, 0
    %3771 = vmatprep.subr.mxu0 %v2945
    %3772 = vmatpush1.msra.mxu0 %v2944
    %3773 = vmatprep.subr.mxu0 %v2947
    %3774 = vmatpush1.msra.mxu0 %v2946
    %3775 = vmatprep.subr.mxu0 %v2949
    %3776 = vmatpush1.msra.mxu0 %v2948
    %3777 = vmatprep.subr.mxu0 %v2951
    %3778 = vmatpush1.msra.mxu0 %v2950
    %3779 = vmatprep.subr.mxu0 %v2953
    %3780 = vmatpush1.msra.mxu0 %v2952
    %3781 = vmatprep.subr.mxu0 %v2955
    %3782 = vmatpush1.msra.mxu0 %v2954
    %3783 = vmatprep.subr.mxu0 %v2957
    %3784 = vmatpush1.msra.mxu0 %v2956
    %3785 = vmatprep.subr.mxu0 %v2959
    %3786 = vmatpush1.msra.mxu0 %v2958
    %3787 = vmatprep.subr.mxu0 %v2961
    %3788 = vmatpush1.msra.mxu0 %v2960
    %3789 = vmatprep.subr.mxu0 %v2963
    %3790 = vmatpush1.msra.mxu0 %v2962
    %3791 = vmatprep.subr.mxu0 %v2977
    %3792 = vmatpush1.msra.mxu0 %v2974
    %3793 = vmatprep.subr.mxu0 0.0
    %3794 = vmatpush1.msra.mxu0 0.0
    %3795 = vmatprep.subr.mxu0 0.0
    %3796 = vmatpush1.msra.mxu0 0.0
    %3797 = vmatprep.subr.mxu0 0.0
    %3798 = vmatpush1.msra.mxu0 0.0
    %3799 = vmatprep.subr.mxu0 0.0
    %3800 = vmatpush1.msra.mxu0 0.0
    %3801 = vmatprep.subr.mxu0 0.0
    %3802 = vmatpush1.msra.mxu0 0.0
    %3803 = vmatprep.subr.mxu0 0.0
    %3804 = vmatpush1.msra.mxu0 0.0
    %3805 = vmatprep.subr.mxu0 0.0
    %3806 = vmatpush1.msra.mxu0 0.0
    %3807 = vmatprep.subr.mxu0 0.0
    %3808 = vmatpush1.msra.mxu0 0.0
    %3809 = vmatprep.subr.mxu0 0.0
    %3810 = vmatpush1.msra.mxu0 0.0
    %3811 = vmatprep.subr.mxu0 0.0
    %3812 = vmatpush1.msra.mxu0 0.0
    %3813 = vmatprep.subr.mxu0 0.0
    %3814 = vmatpush1.msra.mxu0 0.0
    %3815 = vmatprep.subr.mxu0 0.0
    %3816 = vmatpush1.msra.mxu0 0.0
    %3817 = vmatprep.subr.mxu0 0.0
    %3818 = vmatpush1.msra.mxu0 0.0
    %3819 = vmatprep.subr.mxu0 0.0
    %3820 = vmatpush1.msra.mxu0 0.0
    %3821 = vmatprep.subr.mxu0 0.0
    %3822 = vmatpush1.msra.mxu0 0.0
    %3823 = vmatprep.subr.mxu0 0.0
    %3824 = vmatpush1.msra.mxu0 0.0
    %3825 = vmatprep.subr.mxu0 0.0
    %3826 = vmatpush1.msra.mxu0 0.0
    %3827 = vmatprep.subr.mxu0 0.0
    %3828 = vmatpush1.msra.mxu0 0.0
    %3829 = vmatprep.subr.mxu0 0.0
    %3830 = vmatpush1.msra.mxu0 0.0
    %3831 = vmatprep.subr.mxu0 0.0
    %3832 = vmatpush1.msra.mxu0 0.0
    %3833 = vmatprep.subr.mxu0 0.0
    %3834 = vmatpush1.msra.mxu0 0.0
    %3835 = vmatprep.mubr.f32.mxu0 0.0
    %3836 = vmatmul.mubr.f32.gmra.mrb[0].mxu0 %v3767
    %v3837 = vpop.f32.mrb[0].mxu0
    %v3838 = vadd.f32 0.0, %v3837
    %v3839 = vpop.f32.mrb[0].mxu0
    %v3840 = vadd.f32 0.0, %v3839
    %3841 = vmatprep.mubr.f32.mxu0 0.0
    %3842 = vmatmul.mubr.f32.gmra.mrb[0].mxu0 %v3769
    %v3843 = vpop.f32.mrb[0].mxu0
    %v3844 = vadd.f32 0.0, %v3843
    %v3845 = vpop.f32.mrb[0].mxu0
    %v3846 = vadd.f32 0.0, %v3845
    %3847 = vdwg.mxu0
    %v3848 = vadd.f32 %v3760, %v3838
    %v3849 = vadd.f32 %v3761, %v3840
    %v3850 = vadd.f32 %v3762, %v3844
    %v3851 = vadd.f32 %v3763, %v3846
    %v3853 = vsel %vm3080, %v3849, 0
    %v3856 = vsel %vm3080, %v3851, 0
    %3858 = vmatprep.subr.mxu0 0.0
    %3859 = vmatpush1.msra.mxu0 %v3060
    %3860 = vmatprep.subr.mxu0 0.0
    %3861 = vmatpush1.msra.mxu0 %v3061
    %3862 = vmatprep.subr.mxu0 0.0
    %3863 = vmatpush1.msra.mxu0 %v3062
    %3864 = vmatprep.subr.mxu0 0.0
    %3865 = vmatpush1.msra.mxu0 %v3063
    %3866 = vmatprep.subr.mxu0 0.0
    %3867 = vmatpush1.msra.mxu0 %v3064
    %3868 = vmatprep.subr.mxu0 0.0
    %3869 = vmatpush1.msra.mxu0 %v3065
    %3870 = vmatprep.subr.mxu0 0.0
    %3871 = vmatpush1.msra.mxu0 %v3066
    %3872 = vmatprep.subr.mxu0 0.0
    %3873 = vmatpush1.msra.mxu0 %v3067
    %3874 = vmatprep.subr.mxu0 0.0
    %3875 = vmatpush1.msra.mxu0 %v3068
    %3876 = vmatprep.subr.mxu0 0.0
    %3877 = vmatpush1.msra.mxu0 %v3069
    %3878 = vmatprep.subr.mxu0 0.0
    %3879 = vmatpush1.msra.mxu0 %v3070
    %3880 = vmatprep.subr.mxu0 0.0
    %3881 = vmatpush1.msra.mxu0 %v3071
    %3882 = vmatprep.subr.mxu0 0.0
    %3883 = vmatpush1.msra.mxu0 %v3072
    %3884 = vmatprep.subr.mxu0 0.0
    %3885 = vmatpush1.msra.mxu0 %v3073
    %3886 = vmatprep.subr.mxu0 0.0
    %3887 = vmatpush1.msra.mxu0 %v3074
    %3888 = vmatprep.subr.mxu0 0.0
    %3889 = vmatpush1.msra.mxu0 %v3075
    %3890 = vmatprep.subr.mxu0 0.0
    %3891 = vmatpush1.msra.mxu0 %v3076
    %3892 = vmatprep.subr.mxu0 0.0
    %3893 = vmatpush1.msra.mxu0 %v3077
    %3894 = vmatprep.subr.mxu0 0.0
    %3895 = vmatpush1.msra.mxu0 %v3078
    %3896 = vmatprep.subr.mxu0 0.0
    %3897 = vmatpush1.msra.mxu0 %v3079
    %3898 = vmatprep.subr.mxu0 0.0
    %3899 = vmatpush1.msra.mxu0 0.0
    %3900 = vmatprep.subr.mxu0 0.0
    %3901 = vmatpush1.msra.mxu0 0.0
    %3902 = vmatprep.subr.mxu0 0.0
    %3903 = vmatpush1.msra.mxu0 0.0
    %3904 = vmatprep.subr.mxu0 0.0
    %3905 = vmatpush1.msra.mxu0 0.0
    %3906 = vmatprep.subr.mxu0 0.0
    %3907 = vmatpush1.msra.mxu0 0.0
    %3908 = vmatprep.subr.mxu0 0.0
    %3909 = vmatpush1.msra.mxu0 0.0
    %3910 = vmatprep.subr.mxu0 0.0
    %3911 = vmatpush1.msra.mxu0 0.0
    %3912 = vmatprep.subr.mxu0 0.0
    %3913 = vmatpush1.msra.mxu0 0.0
    %3914 = vmatprep.subr.mxu0 0.0
    %3915 = vmatpush1.msra.mxu0 0.0
    %3916 = vmatprep.subr.mxu0 0.0
    %3917 = vmatpush1.msra.mxu0 0.0
    %3918 = vmatprep.subr.mxu0 0.0
    %3919 = vmatpush1.msra.mxu0 0.0
    %3920 = vmatprep.subr.mxu0 0.0
    %3921 = vmatpush1.msra.mxu0 0.0
    %3922 = vmatprep.mubr.f32.mxu0 %v3853
    %3923 = vmatmul.mubr.f32.gmra.mrb[0].mxu0 %v3848
    %v3924 = vpop.f32.mrb[0].mxu0
    %v3925 = vadd.f32 0.0, %v3924
    %v3926 = vpop.f32.mrb[0].mxu0
    %3927 = vmatprep.mubr.f32.mxu0 %v3856
    %3928 = vmatmul.mubr.f32.gmra.mrb[0].mxu0 %v3850
    %v3929 = vpop.f32.mrb[0].mxu0
    %v3930 = vadd.f32 0.0, %v3929
    %v3931 = vpop.f32.mrb[0].mxu0
    %3932 = vdwg.mxu0
    %3933 = vmatprep.subr.mxu0 0.0
    %3934 = vmatpush1.msra.mxu0 %v3162
    %3935 = vmatprep.subr.mxu0 0.0
    %3936 = vmatpush1.msra.mxu0 %v3163
    %3937 = vmatprep.subr.mxu0 0.0
    %3938 = vmatpush1.msra.mxu0 %v3164
    %3939 = vmatprep.subr.mxu0 0.0
    %3940 = vmatpush1.msra.mxu0 %v3165
    %3941 = vmatprep.subr.mxu0 0.0
    %3942 = vmatpush1.msra.mxu0 %v3166
    %3943 = vmatprep.subr.mxu0 0.0
    %3944 = vmatpush1.msra.mxu0 %v3167
    %3945 = vmatprep.subr.mxu0 0.0
    %3946 = vmatpush1.msra.mxu0 %v3168
    %3947 = vmatprep.subr.mxu0 0.0
    %3948 = vmatpush1.msra.mxu0 %v3169
    %3949 = vmatprep.subr.mxu0 0.0
    %3950 = vmatpush1.msra.mxu0 %v3170
    %3951 = vmatprep.subr.mxu0 0.0
    %3952 = vmatpush1.msra.mxu0 %v3171
    %3953 = vmatprep.subr.mxu0 0.0
    %3954 = vmatpush1.msra.mxu0 %v3172
    %3955 = vmatprep.subr.mxu0 0.0
    %3956 = vmatpush1.msra.mxu0 %v3173
    %3957 = vmatprep.subr.mxu0 0.0
    %3958 = vmatpush1.msra.mxu0 %v3174
    %3959 = vmatprep.subr.mxu0 0.0
    %3960 = vmatpush1.msra.mxu0 %v3175
    %3961 = vmatprep.subr.mxu0 0.0
    %3962 = vmatpush1.msra.mxu0 %v3176
    %3963 = vmatprep.subr.mxu0 0.0
    %3964 = vmatpush1.msra.mxu0 %v3177
    %3965 = vmatprep.subr.mxu0 0.0
    %3966 = vmatpush1.msra.mxu0 %v3178
    %3967 = vmatprep.subr.mxu0 0.0
    %3968 = vmatpush1.msra.mxu0 %v3179
    %3969 = vmatprep.subr.mxu0 0.0
    %3970 = vmatpush1.msra.mxu0 %v3180
    %3971 = vmatprep.subr.mxu0 0.0
    %3972 = vmatpush1.msra.mxu0 %v3181
    %3973 = vmatprep.subr.mxu0 0.0
    %3974 = vmatpush1.msra.mxu0 0.0
    %3975 = vmatprep.subr.mxu0 0.0
    %3976 = vmatpush1.msra.mxu0 0.0
    %3977 = vmatprep.subr.mxu0 0.0
    %3978 = vmatpush1.msra.mxu0 0.0
    %3979 = vmatprep.subr.mxu0 0.0
    %3980 = vmatpush1.msra.mxu0 0.0
    %3981 = vmatprep.subr.mxu0 0.0
    %3982 = vmatpush1.msra.mxu0 0.0
    %3983 = vmatprep.subr.mxu0 0.0
    %3984 = vmatpush1.msra.mxu0 0.0
    %3985 = vmatprep.subr.mxu0 0.0
    %3986 = vmatpush1.msra.mxu0 0.0
    %3987 = vmatprep.subr.mxu0 0.0
    %3988 = vmatpush1.msra.mxu0 0.0
    %3989 = vmatprep.subr.mxu0 0.0
    %3990 = vmatpush1.msra.mxu0 0.0
    %3991 = vmatprep.subr.mxu0 0.0
    %3992 = vmatpush1.msra.mxu0 0.0
    %3993 = vmatprep.subr.mxu0 0.0
    %3994 = vmatpush1.msra.mxu0 0.0
    %3995 = vmatprep.subr.mxu0 0.0
    %3996 = vmatpush1.msra.mxu0 0.0
    %3997 = vmatprep.mubr.f32.mxu0 %v3853
    %3998 = vmatmul.mubr.f32.gmra.mrb[0].mxu0 %v3848
    %v3999 = vpop.f32.mrb[0].mxu0
    %v4000 = vadd.f32 0.0, %v3999
    %v4001 = vpop.f32.mrb[0].mxu0
    %4002 = vmatprep.mubr.f32.mxu0 %v3856
    %4003 = vmatmul.mubr.f32.gmra.mrb[0].mxu0 %v3850
    %v4004 = vpop.f32.mrb[0].mxu0
    %v4005 = vadd.f32 0.0, %v4004
    %v4006 = vpop.f32.mrb[0].mxu0
    %4007 = vdwg.mxu0
    %v4008 = vmax.f32 %v3925, %v4000
    %v4009 = vmax.f32 %v3930, %v4005
    %v4011 = vsel %vm3264, %v4009, 0
    %4013 = vmatprep.subr.mxu0 0.0
    %4014 = vmatpush1.msra.mxu0 %v4008
    %4015 = vmatprep.subr.mxu0 0.0
    %4016 = vmatpush1.msra.mxu0 %v4011
    %4017 = vmatprep.subr.mxu0 0.0
    %4018 = vmatpush1.msra.mxu0 0.0
    %4019 = vmatprep.subr.mxu0 0.0
    %4020 = vmatpush1.msra.mxu0 0.0
    %4021 = vmatprep.subr.mxu0 0.0
    %4022 = vmatpush1.msra.mxu0 0.0
    %4023 = vmatprep.subr.mxu0 0.0
    %4024 = vmatpush1.msra.mxu0 0.0
    %4025 = vmatprep.subr.mxu0 0.0
    %4026 = vmatpush1.msra.mxu0 0.0
    %4027 = vmatprep.subr.mxu0 0.0
    %4028 = vmatpush1.msra.mxu0 0.0
    %4029 = vmatprep.subr.mxu0 0.0
    %4030 = vmatpush1.msra.mxu0 0.0
    %4031 = vmatprep.subr.mxu0 0.0
    %4032 = vmatpush1.msra.mxu0 0.0
    %4033 = vmatprep.subr.mxu0 0.0
    %4034 = vmatpush1.msra.mxu0 0.0
    %4035 = vmatprep.subr.mxu0 0.0
    %4036 = vmatpush1.msra.mxu0 0.0
    %4037 = vmatprep.subr.mxu0 0.0
    %4038 = vmatpush1.msra.mxu0 0.0
    %4039 = vmatprep.subr.mxu0 0.0
    %4040 = vmatpush1.msra.mxu0 0.0
    %4041 = vmatprep.subr.mxu0 0.0
    %4042 = vmatpush1.msra.mxu0 0.0
    %4043 = vmatprep.subr.mxu0 0.0
    %4044 = vmatpush1.msra.mxu0 0.0
    %4045 = vmatprep.subr.mxu0 0.0
    %4046 = vmatpush1.msra.mxu0 0.0
    %4047 = vmatprep.subr.mxu0 0.0
    %4048 = vmatpush1.msra.mxu0 0.0
    %4049 = vmatprep.subr.mxu0 0.0
    %4050 = vmatpush1.msra.mxu0 0.0
    %4051 = vmatprep.subr.mxu0 0.0
    %4052 = vmatpush1.msra.mxu0 0.0
    %4053 = vmatprep.subr.mxu0 0.0
    %4054 = vmatpush1.msra.mxu0 0.0
    %4055 = vmatprep.subr.mxu0 0.0
    %4056 = vmatpush1.msra.mxu0 0.0
    %4057 = vmatprep.subr.mxu0 0.0
    %4058 = vmatpush1.msra.mxu0 0.0
    %4059 = vmatprep.subr.mxu0 0.0
    %4060 = vmatpush1.msra.mxu0 0.0
    %4061 = vmatprep.subr.mxu0 0.0
    %4062 = vmatpush1.msra.mxu0 0.0
    %4063 = vmatprep.subr.mxu0 0.0
    %4064 = vmatpush1.msra.mxu0 0.0
    %4065 = vmatprep.subr.mxu0 0.0
    %4066 = vmatpush1.msra.mxu0 0.0
    %4067 = vmatprep.subr.mxu0 0.0
    %4068 = vmatpush1.msra.mxu0 0.0
    %4069 = vmatprep.subr.mxu0 0.0
    %4070 = vmatpush1.msra.mxu0 0.0
    %4071 = vmatprep.subr.mxu0 0.0
    %4072 = vmatpush1.msra.mxu0 0.0
    %4073 = vmatprep.subr.mxu0 0.0
    %4074 = vmatpush1.msra.mxu0 0.0
    %4075 = vmatprep.subr.mxu0 0.0
    %4076 = vmatpush1.msra.mxu0 0.0
    %4077 = vmatprep.mubr.f32.mxu0 0.0
    %4078 = vmatmul.mubr.f32.gmra.mrb[0].mxu0 %v3262
    %v4079 = vpop.f32.mrb[0].mxu0
    %v4080 = vadd.f32 0.0, %v4079
    %v4081 = vpop.f32.mrb[0].mxu0
    %4082 = vdwg.mxu0
    %4083 = vmatprep.subr.mxu0 0.0
    %4084 = vmatpush1.msra.mxu0 %v4008
    %4085 = vmatprep.subr.mxu0 0.0
    %4086 = vmatpush1.msra.mxu0 %v4011
    %4087 = vmatprep.subr.mxu0 0.0
    %4088 = vmatpush1.msra.mxu0 0.0
    %4089 = vmatprep.subr.mxu0 0.0
    %4090 = vmatpush1.msra.mxu0 0.0
    %4091 = vmatprep.subr.mxu0 0.0
    %4092 = vmatpush1.msra.mxu0 0.0
    %4093 = vmatprep.subr.mxu0 0.0
    %4094 = vmatpush1.msra.mxu0 0.0
    %4095 = vmatprep.subr.mxu0 0.0
    %4096 = vmatpush1.msra.mxu0 0.0
    %4097 = vmatprep.subr.mxu0 0.0
    %4098 = vmatpush1.msra.mxu0 0.0
    %4099 = vmatprep.subr.mxu0 0.0
    %4100 = vmatpush1.msra.mxu0 0.0
    %4101 = vmatprep.subr.mxu0 0.0
    %4102 = vmatpush1.msra.mxu0 0.0
    %4103 = vmatprep.subr.mxu0 0.0
    %4104 = vmatpush1.msra.mxu0 0.0
    %4105 = vmatprep.subr.mxu0 0.0
    %4106 = vmatpush1.msra.mxu0 0.0
    %4107 = vmatprep.subr.mxu0 0.0
    %4108 = vmatpush1.msra.mxu0 0.0
    %4109 = vmatprep.subr.mxu0 0.0
    %4110 = vmatpush1.msra.mxu0 0.0
    %4111 = vmatprep.subr.mxu0 0.0
    %4112 = vmatpush1.msra.mxu0 0.0
    %4113 = vmatprep.subr.mxu0 0.0
    %4114 = vmatpush1.msra.mxu0 0.0
    %4115 = vmatprep.subr.mxu0 0.0
    %4116 = vmatpush1.msra.mxu0 0.0
    %4117 = vmatprep.subr.mxu0 0.0
    %4118 = vmatpush1.msra.mxu0 0.0
    %4119 = vmatprep.subr.mxu0 0.0
    %4120 = vmatpush1.msra.mxu0 0.0
    %4121 = vmatprep.subr.mxu0 0.0
    %4122 = vmatpush1.msra.mxu0 0.0
    %4123 = vmatprep.subr.mxu0 0.0
    %4124 = vmatpush1.msra.mxu0 0.0
    %4125 = vmatprep.subr.mxu0 0.0
    %4126 = vmatpush1.msra.mxu0 0.0
    %4127 = vmatprep.subr.mxu0 0.0
    %4128 = vmatpush1.msra.mxu0 0.0
    %4129 = vmatprep.subr.mxu0 0.0
    %4130 = vmatpush1.msra.mxu0 0.0
    %4131 = vmatprep.subr.mxu0 0.0
    %4132 = vmatpush1.msra.mxu0 0.0
    %4133 = vmatprep.subr.mxu0 0.0
    %4134 = vmatpush1.msra.mxu0 0.0
    %4135 = vmatprep.subr.mxu0 0.0
    %4136 = vmatpush1.msra.mxu0 0.0
    %4137 = vmatprep.subr.mxu0 0.0
    %4138 = vmatpush1.msra.mxu0 0.0
    %4139 = vmatprep.subr.mxu0 0.0
    %4140 = vmatpush1.msra.mxu0 0.0
    %4141 = vmatprep.subr.mxu0 0.0
    %4142 = vmatpush1.msra.mxu0 0.0
    %4143 = vmatprep.subr.mxu0 0.0
    %4144 = vmatpush1.msra.mxu0 0.0
    %4145 = vmatprep.subr.mxu0 0.0
    %4146 = vmatpush1.msra.mxu0 0.0
    %4147 = vmatprep.mubr.f32.mxu0 0.0
    %4148 = vmatmul.mubr.f32.gmra.mrb[0].mxu0 %v3340
    %v4149 = vpop.f32.mrb[0].mxu0
    %v4150 = vadd.f32 0.0, %v4149
    %v4151 = vpop.f32.mrb[0].mxu0
    %4152 = vdwg.mxu0
    %v4153 = vmax.f32 %v4080, %v4150
    %v4154 = vadd.f32 %v4153, %v3417
    %v4155 = vmax.f32 %v4154, 0.0
    %v4156 = vld [vmem:[%s39] sm:$0x1]
    %v4157 = vld [vmem:[%s41] sm:$0x1]
    %v4158 = vld [vmem:[%s27] sm:$0xff]
    %v4159 = vld [vmem:[%s27 + $0x8] sm:$0xff]
    %v4160 = vld [vmem:[%s27 + $0x10] sm:$0xff]
    %v4161 = vld [vmem:[%s27 + $0x18] sm:$0xff]
    %v4162 = vld [vmem:[%s27 + $0x20] sm:$0xff]
    %v4163 = vld [vmem:[%s27 + $0x28] sm:$0xff]
    %v4164 = vld [vmem:[%s27 + $0x30] sm:$0xff]
    %v4165 = vld [vmem:[%s27 + $0x38] sm:$0xff]
    %v4166 = vld [vmem:[%s27 + $0x40] sm:$0xff]
    %v4167 = vld [vmem:[%s27 + $0x48] sm:$0xff]
    %v4168 = vld [vmem:[%s29] sm:$0xff]
    %v4169 = vld [vmem:[%s29 + $0x8] sm:$0xff]
    %vm4170 = vcmask 651264
    %v4171 = vsel %vm4170, %v3420, 0.0
    %v4172 = vrot.slane %v4171, 4
    %v4173 = vadd.f32 %v4171, %v4172
    %v4174 = vrot.slane %v4173, 2
    %v4175 = vadd.f32 %v4173, %v4174
    %v4176 = vrot.slane %v4175, 1
    %v4177 = vadd.f32 %v4175, %v4176
    %v4178 = vmul.f32 %v3420, %v3420
    %v4179 = vsel %vm4170, %v4178, 0.0
    %v4180 = vrot.slane %v4179, 4
    %v4181 = vadd.f32 %v4179, %v4180
    %v4182 = vrot.slane %v4181, 2
    %v4183 = vadd.f32 %v4181, %v4182
    %v4184 = vrot.slane %v4183, 1
    %v4185 = vadd.f32 %v4183, %v4184
    %v4186 = vsel %vm4170, %v4155, 0.0
    %v4187 = vrot.slane %v4186, 4
    %v4188 = vadd.f32 %v4186, %v4187
    %v4189 = vrot.slane %v4188, 2
    %v4190 = vadd.f32 %v4188, %v4189
    %v4191 = vrot.slane %v4190, 1
    %v4192 = vadd.f32 %v4190, %v4191
    %v4193 = vadd.f32 %v4177, %v4192
    %v4194 = vmul.f32 %v4155, %v4155
    %v4195 = vsel %vm4170, %v4194, 0.0
    %v4196 = vrot.slane %v4195, 4
    %v4197 = vadd.f32 %v4195, %v4196
    %v4198 = vrot.slane %v4197, 2
    %v4199 = vadd.f32 %v4197, %v4198
    %v4200 = vrot.slane %v4199, 1
    %v4201 = vadd.f32 %v4199, %v4200
    %v4202 = vadd.f32 %v4185, %v4201
    %vm4203 = vcmask 654336
    %v4205 = vsel %vm4203, %v4193, 0
    %4207 = vmatprep.subr.mxu0 0.0
    %4208 = vmatpush1.msra.mxu0 %v4158
    %4209 = vmatprep.subr.mxu0 0.0
    %4210 = vmatpush1.msra.mxu0 %v4159
    %4211 = vmatprep.subr.mxu0 0.0
    %4212 = vmatpush1.msra.mxu0 %v4160
    %4213 = vmatprep.subr.mxu0 0.0
    %4214 = vmatpush1.msra.mxu0 %v4161
    %4215 = vmatprep.subr.mxu0 0.0
    %4216 = vmatpush1.msra.mxu0 %v4162
    %4217 = vmatprep.subr.mxu0 0.0
    %4218 = vmatpush1.msra.mxu0 %v4163
    %4219 = vmatprep.subr.mxu0 0.0
    %4220 = vmatpush1.msra.mxu0 %v4164
    %4221 = vmatprep.subr.mxu0 0.0
    %4222 = vmatpush1.msra.mxu0 %v4165
    %4223 = vmatprep.subr.mxu0 0.0
    %4224 = vmatpush1.msra.mxu0 %v4166
    %4225 = vmatprep.subr.mxu0 0.0
    %4226 = vmatpush1.msra.mxu0 %v4167
    %4227 = vmatprep.subr.mxu0 0.0
    %4228 = vmatpush1.msra.mxu0 0.0
    %4229 = vmatprep.subr.mxu0 0.0
    %4230 = vmatpush1.msra.mxu0 0.0
    %4231 = vmatprep.subr.mxu0 0.0
    %4232 = vmatpush1.msra.mxu0 0.0
    %4233 = vmatprep.subr.mxu0 0.0
    %4234 = vmatpush1.msra.mxu0 0.0
    %4235 = vmatprep.subr.mxu0 0.0
    %4236 = vmatpush1.msra.mxu0 0.0
    %4237 = vmatprep.subr.mxu0 0.0
    %4238 = vmatpush1.msra.mxu0 0.0
    %4239 = vmatprep.subr.mxu0 0.0
    %4240 = vmatpush1.msra.mxu0 0.0
    %4241 = vmatprep.subr.mxu0 0.0
    %4242 = vmatpush1.msra.mxu0 0.0
    %4243 = vmatprep.subr.mxu0 0.0
    %4244 = vmatpush1.msra.mxu0 0.0
    %4245 = vmatprep.subr.mxu0 0.0
    %4246 = vmatpush1.msra.mxu0 0.0
    %4247 = vmatprep.subr.mxu0 0.0
    %4248 = vmatpush1.msra.mxu0 0.0
    %4249 = vmatprep.subr.mxu0 0.0
    %4250 = vmatpush1.msra.mxu0 0.0
    %4251 = vmatprep.subr.mxu0 0.0
    %4252 = vmatpush1.msra.mxu0 0.0
    %4253 = vmatprep.subr.mxu0 0.0
    %4254 = vmatpush1.msra.mxu0 0.0
    %4255 = vmatprep.subr.mxu0 0.0
    %4256 = vmatpush1.msra.mxu0 0.0
    %4257 = vmatprep.subr.mxu0 0.0
    %4258 = vmatpush1.msra.mxu0 0.0
    %4259 = vmatprep.subr.mxu0 0.0
    %4260 = vmatpush1.msra.mxu0 0.0
    %4261 = vmatprep.subr.mxu0 0.0
    %4262 = vmatpush1.msra.mxu0 0.0
    %4263 = vmatprep.subr.mxu0 0.0
    %4264 = vmatpush1.msra.mxu0 0.0
    %4265 = vmatprep.subr.mxu0 0.0
    %4266 = vmatpush1.msra.mxu0 0.0
    %4267 = vmatprep.subr.mxu0 0.0
    %4268 = vmatpush1.msra.mxu0 0.0
    %4269 = vmatprep.subr.mxu0 0.0
    %4270 = vmatpush1.msra.mxu0 0.0
    %4271 = vmatprep.mubr.f32.mxu0 0.0
    %4272 = vmatmul.mubr.f32.gmra.mrb[0].mxu0 %v4205
    %v4273 = vpop.f32.mrb[0].mxu0
    %v4274 = vadd.f32 0.0, %v4273
    %v4275 = vpop.f32.mrb[0].mxu0
    %4276 = vdwg.mxu0
    %v4277 = vrcp.pop 50.0
    %v4278 = vmul.f32 %v4274, %v4277
    %v4280 = vsel %vm4203, %v4202, 0
    %4282 = vmatprep.subr.mxu0 0.0
    %4283 = vmatpush1.msra.mxu0 %v4158
    %4284 = vmatprep.subr.mxu0 0.0
    %4285 = vmatpush1.msra.mxu0 %v4159
    %4286 = vmatprep.subr.mxu0 0.0
    %4287 = vmatpush1.msra.mxu0 %v4160
    %4288 = vmatprep.subr.mxu0 0.0
    %4289 = vmatpush1.msra.mxu0 %v4161
    %4290 = vmatprep.subr.mxu0 0.0
    %4291 = vmatpush1.msra.mxu0 %v4162
    %4292 = vmatprep.subr.mxu0 0.0
    %4293 = vmatpush1.msra.mxu0 %v4163
    %4294 = vmatprep.subr.mxu0 0.0
    %4295 = vmatpush1.msra.mxu0 %v4164
    %4296 = vmatprep.subr.mxu0 0.0
    %4297 = vmatpush1.msra.mxu0 %v4165
    %4298 = vmatprep.subr.mxu0 0.0
    %4299 = vmatpush1.msra.mxu0 %v4166
    %4300 = vmatprep.subr.mxu0 0.0
    %4301 = vmatpush1.msra.mxu0 %v4167
    %4302 = vmatprep.subr.mxu0 0.0
    %4303 = vmatpush1.msra.mxu0 0.0
    %4304 = vmatprep.subr.mxu0 0.0
    %4305 = vmatpush1.msra.mxu0 0.0
    %4306 = vmatprep.subr.mxu0 0.0
    %4307 = vmatpush1.msra.mxu0 0.0
    %4308 = vmatprep.subr.mxu0 0.0
    %4309 = vmatpush1.msra.mxu0 0.0
    %4310 = vmatprep.subr.mxu0 0.0
    %4311 = vmatpush1.msra.mxu0 0.0
    %4312 = vmatprep.subr.mxu0 0.0
    %4313 = vmatpush1.msra.mxu0 0.0
    %4314 = vmatprep.subr.mxu0 0.0
    %4315 = vmatpush1.msra.mxu0 0.0
    %4316 = vmatprep.subr.mxu0 0.0
    %4317 = vmatpush1.msra.mxu0 0.0
    %4318 = vmatprep.subr.mxu0 0.0
    %4319 = vmatpush1.msra.mxu0 0.0
    %4320 = vmatprep.subr.mxu0 0.0
    %4321 = vmatpush1.msra.mxu0 0.0
    %4322 = vmatprep.subr.mxu0 0.0
    %4323 = vmatpush1.msra.mxu0 0.0
    %4324 = vmatprep.subr.mxu0 0.0
    %4325 = vmatpush1.msra.mxu0 0.0
    %4326 = vmatprep.subr.mxu0 0.0
    %4327 = vmatpush1.msra.mxu0 0.0
    %4328 = vmatprep.subr.mxu0 0.0
    %4329 = vmatpush1.msra.mxu0 0.0
    %4330 = vmatprep.subr.mxu0 0.0
    %4331 = vmatpush1.msra.mxu0 0.0
    %4332 = vmatprep.subr.mxu0 0.0
    %4333 = vmatpush1.msra.mxu0 0.0
    %4334 = vmatprep.subr.mxu0 0.0
    %4335 = vmatpush1.msra.mxu0 0.0
    %4336 = vmatprep.subr.mxu0 0.0
    %4337 = vmatpush1.msra.mxu0 0.0
    %4338 = vmatprep.subr.mxu0 0.0
    %4339 = vmatpush1.msra.mxu0 0.0
    %4340 = vmatprep.subr.mxu0 0.0
    %4341 = vmatpush1.msra.mxu0 0.0
    %4342 = vmatprep.subr.mxu0 0.0
    %4343 = vmatpush1.msra.mxu0 0.0
    %4344 = vmatprep.subr.mxu0 0.0
    %4345 = vmatpush1.msra.mxu0 0.0
    %4346 = vmatprep.mubr.f32.mxu0 0.0
    %4347 = vmatmul.mubr.f32.gmra.mrb[0].mxu0 %v4280
    %v4348 = vpop.f32.mrb[0].mxu0
    %v4349 = vadd.f32 0.0, %v4348
    %v4350 = vpop.f32.mrb[0].mxu0
    %4351 = vdwg.mxu0
    %v4352 = vmul.f32 %v4349, %v4277
    %v4353 = vmul.f32 %v4278, %v4278
    %v4354 = vsub.f32 %v4352, %v4353
    %v4355 = vmax.f32 %v4354, 0.0
    %v4356 = vadd.f32 %v4355, 1e-05
    %v4357 = vrsqrt.pop %v4356
    %v4358 = vmul.f32 %v4156, %v4357
    %v4359 = vmul.f32 %v4278, %v4358
    %v4360 = vsub.f32 %v4157, %v4359
    %vm4361 = vcmask 130048
    %v4363 = vsel %vm4361, %v4358, 0
    %4365 = vmatprep.subr.mxu0 0.0
    %4366 = vmatpush1.msra.mxu0 %v4168
    %4367 = vmatprep.subr.mxu0 0.0
    %4368 = vmatpush1.msra.mxu0 %v4169
    %4369 = vmatprep.subr.mxu0 0.0
    %4370 = vmatpush1.msra.mxu0 0.0
    %4371 = vmatprep.subr.mxu0 0.0
    %4372 = vmatpush1.msra.mxu0 0.0
    %4373 = vmatprep.subr.mxu0 0.0
    %4374 = vmatpush1.msra.mxu0 0.0
    %4375 = vmatprep.subr.mxu0 0.0
    %4376 = vmatpush1.msra.mxu0 0.0
    %4377 = vmatprep.subr.mxu0 0.0
    %4378 = vmatpush1.msra.mxu0 0.0
    %4379 = vmatprep.subr.mxu0 0.0
    %4380 = vmatpush1.msra.mxu0 0.0
    %4381 = vmatprep.subr.mxu0 0.0
    %4382 = vmatpush1.msra.mxu0 0.0
    %4383 = vmatprep.subr.mxu0 0.0
    %4384 = vmatpush1.msra.mxu0 0.0
    %4385 = vmatprep.subr.mxu0 0.0
    %4386 = vmatpush1.msra.mxu0 0.0
    %4387 = vmatprep.subr.mxu0 0.0
    %4388 = vmatpush1.msra.mxu0 0.0
    %4389 = vmatprep.subr.mxu0 0.0
    %4390 = vmatpush1.msra.mxu0 0.0
    %4391 = vmatprep.subr.mxu0 0.0
    %4392 = vmatpush1.msra.mxu0 0.0
    %4393 = vmatprep.subr.mxu0 0.0
    %4394 = vmatpush1.msra.mxu0 0.0
    %4395 = vmatprep.subr.mxu0 0.0
    %4396 = vmatpush1.msra.mxu0 0.0
    %4397 = vmatprep.subr.mxu0 0.0
    %4398 = vmatpush1.msra.mxu0 0.0
    %4399 = vmatprep.subr.mxu0 0.0
    %4400 = vmatpush1.msra.mxu0 0.0
    %4401 = vmatprep.subr.mxu0 0.0
    %4402 = vmatpush1.msra.mxu0 0.0
    %4403 = vmatprep.subr.mxu0 0.0
    %4404 = vmatpush1.msra.mxu0 0.0
    %4405 = vmatprep.subr.mxu0 0.0
    %4406 = vmatpush1.msra.mxu0 0.0
    %4407 = vmatprep.subr.mxu0 0.0
    %4408 = vmatpush1.msra.mxu0 0.0
    %4409 = vmatprep.subr.mxu0 0.0
    %4410 = vmatpush1.msra.mxu0 0.0
    %4411 = vmatprep.subr.mxu0 0.0
    %4412 = vmatpush1.msra.mxu0 0.0
    %4413 = vmatprep.subr.mxu0 0.0
    %4414 = vmatpush1.msra.mxu0 0.0
    %4415 = vmatprep.subr.mxu0 0.0
    %4416 = vmatpush1.msra.mxu0 0.0
    %4417 = vmatprep.subr.mxu0 0.0
    %4418 = vmatpush1.msra.mxu0 0.0
    %4419 = vmatprep.subr.mxu0 0.0
    %4420 = vmatpush1.msra.mxu0 0.0
    %4421 = vmatprep.subr.mxu0 0.0
    %4422 = vmatpush1.msra.mxu0 0.0
    %4423 = vmatprep.subr.mxu0 0.0
    %4424 = vmatpush1.msra.mxu0 0.0
    %4425 = vmatprep.subr.mxu0 0.0
    %4426 = vmatpush1.msra.mxu0 0.0
    %4427 = vmatprep.subr.mxu0 0.0
    %4428 = vmatpush1.msra.mxu0 0.0
    %4429 = vmatprep.mubr.f32.mxu0 0.0
    %4430 = vmatmul.mubr.f32.gmra.mrb[0].mxu0 %v4363
    %v4431 = vpop.f32.mrb[0].mxu0
    %v4432 = vadd.f32 0.0, %v4431
    %v4433 = vpop.f32.mrb[0].mxu0
    %4434 = vdwg.mxu0
    %v4436 = vsel %vm4361, %v4360, 0
    %4438 = vmatprep.subr.mxu0 0.0
    %4439 = vmatpush1.msra.mxu0 %v4168
    %4440 = vmatprep.subr.mxu0 0.0
    %4441 = vmatpush1.msra.mxu0 %v4169
    %4442 = vmatprep.subr.mxu0 0.0
    %4443 = vmatpush1.msra.mxu0 0.0
    %4444 = vmatprep.subr.mxu0 0.0
    %4445 = vmatpush1.msra.mxu0 0.0
    %4446 = vmatprep.subr.mxu0 0.0
    %4447 = vmatpush1.msra.mxu0 0.0
    %4448 = vmatprep.subr.mxu0 0.0
    %4449 = vmatpush1.msra.mxu0 0.0
    %4450 = vmatprep.subr.mxu0 0.0
    %4451 = vmatpush1.msra.mxu0 0.0
    %4452 = vmatprep.subr.mxu0 0.0
    %4453 = vmatpush1.msra.mxu0 0.0
    %4454 = vmatprep.subr.mxu0 0.0
    %4455 = vmatpush1.msra.mxu0 0.0
    %4456 = vmatprep.subr.mxu0 0.0
    %4457 = vmatpush1.msra.mxu0 0.0
    %4458 = vmatprep.subr.mxu0 0.0
    %4459 = vmatpush1.msra.mxu0 0.0
    %4460 = vmatprep.subr.mxu0 0.0
    %4461 = vmatpush1.msra.mxu0 0.0
    %4462 = vmatprep.subr.mxu0 0.0
    %4463 = vmatpush1.msra.mxu0 0.0
    %4464 = vmatprep.subr.mxu0 0.0
    %4465 = vmatpush1.msra.mxu0 0.0
    %4466 = vmatprep.subr.mxu0 0.0
    %4467 = vmatpush1.msra.mxu0 0.0
    %4468 = vmatprep.subr.mxu0 0.0
    %4469 = vmatpush1.msra.mxu0 0.0
    %4470 = vmatprep.subr.mxu0 0.0
    %4471 = vmatpush1.msra.mxu0 0.0
    %4472 = vmatprep.subr.mxu0 0.0
    %4473 = vmatpush1.msra.mxu0 0.0
    %4474 = vmatprep.subr.mxu0 0.0
    %4475 = vmatpush1.msra.mxu0 0.0
    %4476 = vmatprep.subr.mxu0 0.0
    %4477 = vmatpush1.msra.mxu0 0.0
    %4478 = vmatprep.subr.mxu0 0.0
    %4479 = vmatpush1.msra.mxu0 0.0
    %4480 = vmatprep.subr.mxu0 0.0
    %4481 = vmatpush1.msra.mxu0 0.0
    %4482 = vmatprep.subr.mxu0 0.0
    %4483 = vmatpush1.msra.mxu0 0.0
    %4484 = vmatprep.subr.mxu0 0.0
    %4485 = vmatpush1.msra.mxu0 0.0
    %4486 = vmatprep.subr.mxu0 0.0
    %4487 = vmatpush1.msra.mxu0 0.0
    %4488 = vmatprep.subr.mxu0 0.0
    %4489 = vmatpush1.msra.mxu0 0.0
    %4490 = vmatprep.subr.mxu0 0.0
    %4491 = vmatpush1.msra.mxu0 0.0
    %4492 = vmatprep.subr.mxu0 0.0
    %4493 = vmatpush1.msra.mxu0 0.0
    %4494 = vmatprep.subr.mxu0 0.0
    %4495 = vmatpush1.msra.mxu0 0.0
    %4496 = vmatprep.subr.mxu0 0.0
    %4497 = vmatpush1.msra.mxu0 0.0
    %4498 = vmatprep.subr.mxu0 0.0
    %4499 = vmatpush1.msra.mxu0 0.0
    %4500 = vmatprep.subr.mxu0 0.0
    %4501 = vmatpush1.msra.mxu0 0.0
    %4502 = vmatprep.mubr.f32.mxu0 0.0
    %4503 = vmatmul.mubr.f32.gmra.mrb[0].mxu0 %v4436
    %v4504 = vpop.f32.mrb[0].mxu0
    %v4505 = vadd.f32 0.0, %v4504
    %v4506 = vpop.f32.mrb[0].mxu0
    %4507 = vdwg.mxu0
    %v4508 = vlaneseq
    %v4509 = vshrl.u32 %v4508, 7
    %v4510 = vsub.s32 0, %v4509
    %v4511 = vrot.slane %v4432, %v4510
    %v4512 = vmul.f32 %v3420, %v4511
    %v4513 = vlaneseq
    %v4514 = vshrl.u32 %v4513, 7
    %v4515 = vsub.s32 0, %v4514
    %v4516 = vrot.slane %v4505, %v4515
    %v4517 = vadd.f32 %v4512, %v4516
    %v4518 = vmul.f32 %v4155, %v4511
    %v4519 = vadd.f32 %v4518, %v4516
    %v4520 = vld [vmem:[%s45] sm:$0x1]
    %v4521 = vld [vmem:[%s43] sm:$0xff]
    %v4522 = vld [vmem:[%s43 + $0x8] sm:$0xff]
    %v4523 = vld [vmem:[%s43 + $0x10] sm:$0xff]
    %v4524 = vld [vmem:[%s43 + $0x18] sm:$0xff]
    %v4525 = vld [vmem:[%s43 + $0x20] sm:$0xff]
    %v4526 = vld [vmem:[%s43 + $0x28] sm:$0xff]
    %v4527 = vld [vmem:[%s43 + $0x30] sm:$0xff]
    %v4528 = vld [vmem:[%s43 + $0x38] sm:$0xff]
    %v4529 = vld [vmem:[%s43 + $0x40] sm:$0xff]
    %v4530 = vld [vmem:[%s43 + $0x48] sm:$0xff]
    %v4532 = vsel %vm4203, %v4517, 0
    %4534 = vmatprep.subr.mxu0 0.0
    %4535 = vmatpush1.msra.mxu0 %v4521
    %4536 = vmatprep.subr.mxu0 0.0
    %4537 = vmatpush1.msra.mxu0 %v4522
    %4538 = vmatprep.subr.mxu0 0.0
    %4539 = vmatpush1.msra.mxu0 %v4523
    %4540 = vmatprep.subr.mxu0 0.0
    %4541 = vmatpush1.msra.mxu0 %v4524
    %4542 = vmatprep.subr.mxu0 0.0
    %4543 = vmatpush1.msra.mxu0 %v4525
    %4544 = vmatprep.subr.mxu0 0.0
    %4545 = vmatpush1.msra.mxu0 %v4526
    %4546 = vmatprep.subr.mxu0 0.0
    %4547 = vmatpush1.msra.mxu0 %v4527
    %4548 = vmatprep.subr.mxu0 0.0
    %4549 = vmatpush1.msra.mxu0 %v4528
    %4550 = vmatprep.subr.mxu0 0.0
    %4551 = vmatpush1.msra.mxu0 %v4529
    %4552 = vmatprep.subr.mxu0 0.0
    %4553 = vmatpush1.msra.mxu0 %v4530
    %4554 = vmatprep.subr.mxu0 0.0
    %4555 = vmatpush1.msra.mxu0 0.0
    %4556 = vmatprep.subr.mxu0 0.0
    %4557 = vmatpush1.msra.mxu0 0.0
    %4558 = vmatprep.subr.mxu0 0.0
    %4559 = vmatpush1.msra.mxu0 0.0
    %4560 = vmatprep.subr.mxu0 0.0
    %4561 = vmatpush1.msra.mxu0 0.0
    %4562 = vmatprep.subr.mxu0 0.0
    %4563 = vmatpush1.msra.mxu0 0.0
    %4564 = vmatprep.subr.mxu0 0.0
    %4565 = vmatpush1.msra.mxu0 0.0
    %4566 = vmatprep.subr.mxu0 0.0
    %4567 = vmatpush1.msra.mxu0 0.0
    %4568 = vmatprep.subr.mxu0 0.0
    %4569 = vmatpush1.msra.mxu0 0.0
    %4570 = vmatprep.subr.mxu0 0.0
    %4571 = vmatpush1.msra.mxu0 0.0
    %4572 = vmatprep.subr.mxu0 0.0
    %4573 = vmatpush1.msra.mxu0 0.0
    %4574 = vmatprep.subr.mxu0 0.0
    %4575 = vmatpush1.msra.mxu0 0.0
    %4576 = vmatprep.subr.mxu0 0.0
    %4577 = vmatpush1.msra.mxu0 0.0
    %4578 = vmatprep.subr.mxu0 0.0
    %4579 = vmatpush1.msra.mxu0 0.0
    %4580 = vmatprep.subr.mxu0 0.0
    %4581 = vmatpush1.msra.mxu0 0.0
    %4582 = vmatprep.subr.mxu0 0.0
    %4583 = vmatpush1.msra.mxu0 0.0
    %4584 = vmatprep.subr.mxu0 0.0
    %4585 = vmatpush1.msra.mxu0 0.0
    %4586 = vmatprep.subr.mxu0 0.0
    %4587 = vmatpush1.msra.mxu0 0.0
    %4588 = vmatprep.subr.mxu0 0.0
    %4589 = vmatpush1.msra.mxu0 0.0
    %4590 = vmatprep.subr.mxu0 0.0
    %4591 = vmatpush1.msra.mxu0 0.0
    %4592 = vmatprep.subr.mxu0 0.0
    %4593 = vmatpush1.msra.mxu0 0.0
    %4594 = vmatprep.subr.mxu0 0.0
    %4595 = vmatpush1.msra.mxu0 0.0
    %4596 = vmatprep.subr.mxu0 0.0
    %4597 = vmatpush1.msra.mxu0 0.0
    %4598 = vmatprep.mubr.f32.mxu0 0.0
    %4599 = vmatmul.mubr.f32.gmra.mrb[0].mxu0 %v4532
    %v4600 = vpop.f32.mrb[0].mxu0
    %v4601 = vadd.f32 0.0, %v4600
    %v4602 = vpop.f32.mrb[0].mxu0
    %4603 = vdwg.mxu0
    %v4604 = vadd.f32 %v4520, %v4601
    %v4605 = vld [vmem:[%s43 + $0x50] sm:$0xff]
    %v4606 = vld [vmem:[%s43 + $0x58] sm:$0xff]
    %v4607 = vld [vmem:[%s43 + $0x60] sm:$0xff]
    %v4608 = vld [vmem:[%s43 + $0x68] sm:$0xff]
    %v4609 = vld [vmem:[%s43 + $0x70] sm:$0xff]
    %v4610 = vld [vmem:[%s43 + $0x78] sm:$0xff]
    %v4611 = vld [vmem:[%s43 + $0x80] sm:$0xff]
    %v4612 = vld [vmem:[%s43 + $0x88] sm:$0xff]
    %v4613 = vld [vmem:[%s43 + $0x90] sm:$0xff]
    %v4614 = vld [vmem:[%s43 + $0x98] sm:$0xff]
    %v4615 = vrot.slane %v4517, 1
    %v4616 = vsel %vm4203, %v4615, 0
    %4618 = vmatprep.subr.mxu0 0.0
    %4619 = vmatpush1.msra.mxu0 %v4605
    %4620 = vmatprep.subr.mxu0 0.0
    %4621 = vmatpush1.msra.mxu0 %v4606
    %4622 = vmatprep.subr.mxu0 0.0
    %4623 = vmatpush1.msra.mxu0 %v4607
    %4624 = vmatprep.subr.mxu0 0.0
    %4625 = vmatpush1.msra.mxu0 %v4608
    %4626 = vmatprep.subr.mxu0 0.0
    %4627 = vmatpush1.msra.mxu0 %v4609
    %4628 = vmatprep.subr.mxu0 0.0
    %4629 = vmatpush1.msra.mxu0 %v4610
    %4630 = vmatprep.subr.mxu0 0.0
    %4631 = vmatpush1.msra.mxu0 %v4611
    %4632 = vmatprep.subr.mxu0 0.0
    %4633 = vmatpush1.msra.mxu0 %v4612
    %4634 = vmatprep.subr.mxu0 0.0
    %4635 = vmatpush1.msra.mxu0 %v4613
    %4636 = vmatprep.subr.mxu0 0.0
    %4637 = vmatpush1.msra.mxu0 %v4614
    %4638 = vmatprep.subr.mxu0 0.0
    %4639 = vmatpush1.msra.mxu0 0.0
    %4640 = vmatprep.subr.mxu0 0.0
    %4641 = vmatpush1.msra.mxu0 0.0
    %4642 = vmatprep.subr.mxu0 0.0
    %4643 = vmatpush1.msra.mxu0 0.0
    %4644 = vmatprep.subr.mxu0 0.0
    %4645 = vmatpush1.msra.mxu0 0.0
    %4646 = vmatprep.subr.mxu0 0.0
    %4647 = vmatpush1.msra.mxu0 0.0
    %4648 = vmatprep.subr.mxu0 0.0
    %4649 = vmatpush1.msra.mxu0 0.0
    %4650 = vmatprep.subr.mxu0 0.0
    %4651 = vmatpush1.msra.mxu0 0.0
    %4652 = vmatprep.subr.mxu0 0.0
    %4653 = vmatpush1.msra.mxu0 0.0
    %4654 = vmatprep.subr.mxu0 0.0
    %4655 = vmatpush1.msra.mxu0 0.0
    %4656 = vmatprep.subr.mxu0 0.0
    %4657 = vmatpush1.msra.mxu0 0.0
    %4658 = vmatprep.subr.mxu0 0.0
    %4659 = vmatpush1.msra.mxu0 0.0
    %4660 = vmatprep.subr.mxu0 0.0
    %4661 = vmatpush1.msra.mxu0 0.0
    %4662 = vmatprep.subr.mxu0 0.0
    %4663 = vmatpush1.msra.mxu0 0.0
    %4664 = vmatprep.subr.mxu0 0.0
    %4665 = vmatpush1.msra.mxu0 0.0
    %4666 = vmatprep.subr.mxu0 0.0
    %4667 = vmatpush1.msra.mxu0 0.0
    %4668 = vmatprep.subr.mxu0 0.0
    %4669 = vmatpush1.msra.mxu0 0.0
    %4670 = vmatprep.subr.mxu0 0.0
    %4671 = vmatpush1.msra.mxu0 0.0
    %4672 = vmatprep.subr.mxu0 0.0
    %4673 = vmatpush1.msra.mxu0 0.0
    %4674 = vmatprep.subr.mxu0 0.0
    %4675 = vmatpush1.msra.mxu0 0.0
    %4676 = vmatprep.subr.mxu0 0.0
    %4677 = vmatpush1.msra.mxu0 0.0
    %4678 = vmatprep.subr.mxu0 0.0
    %4679 = vmatpush1.msra.mxu0 0.0
    %4680 = vmatprep.subr.mxu0 0.0
    %4681 = vmatpush1.msra.mxu0 0.0
    %4682 = vmatprep.mubr.f32.mxu0 0.0
    %4683 = vmatmul.mubr.f32.gmra.mrb[0].mxu0 %v4616
    %v4684 = vpop.f32.mrb[0].mxu0
    %v4685 = vadd.f32 0.0, %v4684
    %v4686 = vpop.f32.mrb[0].mxu0
    %4687 = vdwg.mxu0
    %v4688 = vadd.f32 %v4604, %v4685
    %v4689 = vld [vmem:[%s43 + $0xa0] sm:$0xff]
    %v4690 = vld [vmem:[%s43 + $0xa8] sm:$0xff]
    %v4691 = vld [vmem:[%s43 + $0xb0] sm:$0xff]
    %v4692 = vld [vmem:[%s43 + $0xb8] sm:$0xff]
    %v4693 = vld [vmem:[%s43 + $0xc0] sm:$0xff]
    %v4694 = vld [vmem:[%s43 + $0xc8] sm:$0xff]
    %v4695 = vld [vmem:[%s43 + $0xd0] sm:$0xff]
    %v4696 = vld [vmem:[%s43 + $0xd8] sm:$0xff]
    %v4697 = vld [vmem:[%s43 + $0xe0] sm:$0xff]
    %v4698 = vld [vmem:[%s43 + $0xe8] sm:$0xff]
    %v4699 = vrot.slane %v4517, 2
    %v4700 = vsel %vm4203, %v4699, 0
    %4702 = vmatprep.subr.mxu0 0.0
    %4703 = vmatpush1.msra.mxu0 %v4689
    %4704 = vmatprep.subr.mxu0 0.0
    %4705 = vmatpush1.msra.mxu0 %v4690
    %4706 = vmatprep.subr.mxu0 0.0
    %4707 = vmatpush1.msra.mxu0 %v4691
    %4708 = vmatprep.subr.mxu0 0.0
    %4709 = vmatpush1.msra.mxu0 %v4692
    %4710 = vmatprep.subr.mxu0 0.0
    %4711 = vmatpush1.msra.mxu0 %v4693
    %4712 = vmatprep.subr.mxu0 0.0
    %4713 = vmatpush1.msra.mxu0 %v4694
    %4714 = vmatprep.subr.mxu0 0.0
    %4715 = vmatpush1.msra.mxu0 %v4695
    %4716 = vmatprep.subr.mxu0 0.0
    %4717 = vmatpush1.msra.mxu0 %v4696
    %4718 = vmatprep.subr.mxu0 0.0
    %4719 = vmatpush1.msra.mxu0 %v4697
    %4720 = vmatprep.subr.mxu0 0.0
    %4721 = vmatpush1.msra.mxu0 %v4698
    %4722 = vmatprep.subr.mxu0 0.0
    %4723 = vmatpush1.msra.mxu0 0.0
    %4724 = vmatprep.subr.mxu0 0.0
    %4725 = vmatpush1.msra.mxu0 0.0
    %4726 = vmatprep.subr.mxu0 0.0
    %4727 = vmatpush1.msra.mxu0 0.0
    %4728 = vmatprep.subr.mxu0 0.0
    %4729 = vmatpush1.msra.mxu0 0.0
    %4730 = vmatprep.subr.mxu0 0.0
    %4731 = vmatpush1.msra.mxu0 0.0
    %4732 = vmatprep.subr.mxu0 0.0
    %4733 = vmatpush1.msra.mxu0 0.0
    %4734 = vmatprep.subr.mxu0 0.0
    %4735 = vmatpush1.msra.mxu0 0.0
    %4736 = vmatprep.subr.mxu0 0.0
    %4737 = vmatpush1.msra.mxu0 0.0
    %4738 = vmatprep.subr.mxu0 0.0
    %4739 = vmatpush1.msra.mxu0 0.0
    %4740 = vmatprep.subr.mxu0 0.0
    %4741 = vmatpush1.msra.mxu0 0.0
    %4742 = vmatprep.subr.mxu0 0.0
    %4743 = vmatpush1.msra.mxu0 0.0
    %4744 = vmatprep.subr.mxu0 0.0
    %4745 = vmatpush1.msra.mxu0 0.0
    %4746 = vmatprep.subr.mxu0 0.0
    %4747 = vmatpush1.msra.mxu0 0.0
    %4748 = vmatprep.subr.mxu0 0.0
    %4749 = vmatpush1.msra.mxu0 0.0
    %4750 = vmatprep.subr.mxu0 0.0
    %4751 = vmatpush1.msra.mxu0 0.0
    %4752 = vmatprep.subr.mxu0 0.0
    %4753 = vmatpush1.msra.mxu0 0.0
    %4754 = vmatprep.subr.mxu0 0.0
    %4755 = vmatpush1.msra.mxu0 0.0
    %4756 = vmatprep.subr.mxu0 0.0
    %4757 = vmatpush1.msra.mxu0 0.0
    %4758 = vmatprep.subr.mxu0 0.0
    %4759 = vmatpush1.msra.mxu0 0.0
    %4760 = vmatprep.subr.mxu0 0.0
    %4761 = vmatpush1.msra.mxu0 0.0
    %4762 = vmatprep.subr.mxu0 0.0
    %4763 = vmatpush1.msra.mxu0 0.0
    %4764 = vmatprep.subr.mxu0 0.0
    %4765 = vmatpush1.msra.mxu0 0.0
    %4766 = vmatprep.mubr.f32.mxu0 0.0
    %4767 = vmatmul.mubr.f32.gmra.mrb[0].mxu0 %v4700
    %v4768 = vpop.f32.mrb[0].mxu0
    %v4769 = vadd.f32 0.0, %v4768
    %v4770 = vpop.f32.mrb[0].mxu0
    %4771 = vdwg.mxu0
    %v4772 = vadd.f32 %v4688, %v4769
    %v4773 = vld [vmem:[%s43 + $0xf0] sm:$0xff]
    %v4774 = vld [vmem:[%s43 + $0xf8] sm:$0xff]
    %v4775 = vld [vmem:[%s43 + $0x100] sm:$0xff]
    %v4776 = vld [vmem:[%s43 + $0x108] sm:$0xff]
    %v4777 = vld [vmem:[%s43 + $0x110] sm:$0xff]
    %v4778 = vld [vmem:[%s43 + $0x118] sm:$0xff]
    %v4779 = vld [vmem:[%s43 + $0x120] sm:$0xff]
    %v4780 = vld [vmem:[%s43 + $0x128] sm:$0xff]
    %v4781 = vld [vmem:[%s43 + $0x130] sm:$0xff]
    %v4782 = vld [vmem:[%s43 + $0x138] sm:$0xff]
    %v4783 = vrot.slane %v4517, 3
    %v4784 = vsel %vm4203, %v4783, 0
    %4786 = vmatprep.subr.mxu0 0.0
    %4787 = vmatpush1.msra.mxu0 %v4773
    %4788 = vmatprep.subr.mxu0 0.0
    %4789 = vmatpush1.msra.mxu0 %v4774
    %4790 = vmatprep.subr.mxu0 0.0
    %4791 = vmatpush1.msra.mxu0 %v4775
    %4792 = vmatprep.subr.mxu0 0.0
    %4793 = vmatpush1.msra.mxu0 %v4776
    %4794 = vmatprep.subr.mxu0 0.0
    %4795 = vmatpush1.msra.mxu0 %v4777
    %4796 = vmatprep.subr.mxu0 0.0
    %4797 = vmatpush1.msra.mxu0 %v4778
    %4798 = vmatprep.subr.mxu0 0.0
    %4799 = vmatpush1.msra.mxu0 %v4779
    %4800 = vmatprep.subr.mxu0 0.0
    %4801 = vmatpush1.msra.mxu0 %v4780
    %4802 = vmatprep.subr.mxu0 0.0
    %4803 = vmatpush1.msra.mxu0 %v4781
    %4804 = vmatprep.subr.mxu0 0.0
    %4805 = vmatpush1.msra.mxu0 %v4782
    %4806 = vmatprep.subr.mxu0 0.0
    %4807 = vmatpush1.msra.mxu0 0.0
    %4808 = vmatprep.subr.mxu0 0.0
    %4809 = vmatpush1.msra.mxu0 0.0
    %4810 = vmatprep.subr.mxu0 0.0
    %4811 = vmatpush1.msra.mxu0 0.0
    %4812 = vmatprep.subr.mxu0 0.0
    %4813 = vmatpush1.msra.mxu0 0.0
    %4814 = vmatprep.subr.mxu0 0.0
    %4815 = vmatpush1.msra.mxu0 0.0
    %4816 = vmatprep.subr.mxu0 0.0
    %4817 = vmatpush1.msra.mxu0 0.0
    %4818 = vmatprep.subr.mxu0 0.0
    %4819 = vmatpush1.msra.mxu0 0.0
    %4820 = vmatprep.subr.mxu0 0.0
    %4821 = vmatpush1.msra.mxu0 0.0
    %4822 = vmatprep.subr.mxu0 0.0
    %4823 = vmatpush1.msra.mxu0 0.0
    %4824 = vmatprep.subr.mxu0 0.0
    %4825 = vmatpush1.msra.mxu0 0.0
    %4826 = vmatprep.subr.mxu0 0.0
    %4827 = vmatpush1.msra.mxu0 0.0
    %4828 = vmatprep.subr.mxu0 0.0
    %4829 = vmatpush1.msra.mxu0 0.0
    %4830 = vmatprep.subr.mxu0 0.0
    %4831 = vmatpush1.msra.mxu0 0.0
    %4832 = vmatprep.subr.mxu0 0.0
    %4833 = vmatpush1.msra.mxu0 0.0
    %4834 = vmatprep.subr.mxu0 0.0
    %4835 = vmatpush1.msra.mxu0 0.0
    %4836 = vmatprep.subr.mxu0 0.0
    %4837 = vmatpush1.msra.mxu0 0.0
    %4838 = vmatprep.subr.mxu0 0.0
    %4839 = vmatpush1.msra.mxu0 0.0
    %4840 = vmatprep.subr.mxu0 0.0
    %4841 = vmatpush1.msra.mxu0 0.0
    %4842 = vmatprep.subr.mxu0 0.0
    %4843 = vmatpush1.msra.mxu0 0.0
    %4844 = vmatprep.subr.mxu0 0.0
    %4845 = vmatpush1.msra.mxu0 0.0
    %4846 = vmatprep.subr.mxu0 0.0
    %4847 = vmatpush1.msra.mxu0 0.0
    %4848 = vmatprep.subr.mxu0 0.0
    %4849 = vmatpush1.msra.mxu0 0.0
    %4850 = vmatprep.mubr.f32.mxu0 0.0
    %4851 = vmatmul.mubr.f32.gmra.mrb[0].mxu0 %v4784
    %v4852 = vpop.f32.mrb[0].mxu0
    %v4853 = vadd.f32 0.0, %v4852
    %v4854 = vpop.f32.mrb[0].mxu0
    %4855 = vdwg.mxu0
    %v4856 = vadd.f32 %v4772, %v4853
    %v4857 = vld [vmem:[%s43 + $0x140] sm:$0xff]
    %v4858 = vld [vmem:[%s43 + $0x148] sm:$0xff]
    %v4859 = vld [vmem:[%s43 + $0x150] sm:$0xff]
    %v4860 = vld [vmem:[%s43 + $0x158] sm:$0xff]
    %v4861 = vld [vmem:[%s43 + $0x160] sm:$0xff]
    %v4862 = vld [vmem:[%s43 + $0x168] sm:$0xff]
    %v4863 = vld [vmem:[%s43 + $0x170] sm:$0xff]
    %v4864 = vld [vmem:[%s43 + $0x178] sm:$0xff]
    %v4865 = vld [vmem:[%s43 + $0x180] sm:$0xff]
    %v4866 = vld [vmem:[%s43 + $0x188] sm:$0xff]
    %v4867 = vrot.slane %v4517, 4
    %v4868 = vsel %vm4203, %v4867, 0
    %4870 = vmatprep.subr.mxu0 0.0
    %4871 = vmatpush1.msra.mxu0 %v4857
    %4872 = vmatprep.subr.mxu0 0.0
    %4873 = vmatpush1.msra.mxu0 %v4858
    %4874 = vmatprep.subr.mxu0 0.0
    %4875 = vmatpush1.msra.mxu0 %v4859
    %4876 = vmatprep.subr.mxu0 0.0
    %4877 = vmatpush1.msra.mxu0 %v4860
    %4878 = vmatprep.subr.mxu0 0.0
    %4879 = vmatpush1.msra.mxu0 %v4861
    %4880 = vmatprep.subr.mxu0 0.0
    %4881 = vmatpush1.msra.mxu0 %v4862
    %4882 = vmatprep.subr.mxu0 0.0
    %4883 = vmatpush1.msra.mxu0 %v4863
    %4884 = vmatprep.subr.mxu0 0.0
    %4885 = vmatpush1.msra.mxu0 %v4864
    %4886 = vmatprep.subr.mxu0 0.0
    %4887 = vmatpush1.msra.mxu0 %v4865
    %4888 = vmatprep.subr.mxu0 0.0
    %4889 = vmatpush1.msra.mxu0 %v4866
    %4890 = vmatprep.subr.mxu0 0.0
    %4891 = vmatpush1.msra.mxu0 0.0
    %4892 = vmatprep.subr.mxu0 0.0
    %4893 = vmatpush1.msra.mxu0 0.0
    %4894 = vmatprep.subr.mxu0 0.0
    %4895 = vmatpush1.msra.mxu0 0.0
    %4896 = vmatprep.subr.mxu0 0.0
    %4897 = vmatpush1.msra.mxu0 0.0
    %4898 = vmatprep.subr.mxu0 0.0
    %4899 = vmatpush1.msra.mxu0 0.0
    %4900 = vmatprep.subr.mxu0 0.0
    %4901 = vmatpush1.msra.mxu0 0.0
    %4902 = vmatprep.subr.mxu0 0.0
    %4903 = vmatpush1.msra.mxu0 0.0
    %4904 = vmatprep.subr.mxu0 0.0
    %4905 = vmatpush1.msra.mxu0 0.0
    %4906 = vmatprep.subr.mxu0 0.0
    %4907 = vmatpush1.msra.mxu0 0.0
    %4908 = vmatprep.subr.mxu0 0.0
    %4909 = vmatpush1.msra.mxu0 0.0
    %4910 = vmatprep.subr.mxu0 0.0
    %4911 = vmatpush1.msra.mxu0 0.0
    %4912 = vmatprep.subr.mxu0 0.0
    %4913 = vmatpush1.msra.mxu0 0.0
    %4914 = vmatprep.subr.mxu0 0.0
    %4915 = vmatpush1.msra.mxu0 0.0
    %4916 = vmatprep.subr.mxu0 0.0
    %4917 = vmatpush1.msra.mxu0 0.0
    %4918 = vmatprep.subr.mxu0 0.0
    %4919 = vmatpush1.msra.mxu0 0.0
    %4920 = vmatprep.subr.mxu0 0.0
    %4921 = vmatpush1.msra.mxu0 0.0
    %4922 = vmatprep.subr.mxu0 0.0
    %4923 = vmatpush1.msra.mxu0 0.0
    %4924 = vmatprep.subr.mxu0 0.0
    %4925 = vmatpush1.msra.mxu0 0.0
    %4926 = vmatprep.subr.mxu0 0.0
    %4927 = vmatpush1.msra.mxu0 0.0
    %4928 = vmatprep.subr.mxu0 0.0
    %4929 = vmatpush1.msra.mxu0 0.0
    %4930 = vmatprep.subr.mxu0 0.0
    %4931 = vmatpush1.msra.mxu0 0.0
    %4932 = vmatprep.subr.mxu0 0.0
    %4933 = vmatpush1.msra.mxu0 0.0
    %4934 = vmatprep.mubr.f32.mxu0 0.0
    %4935 = vmatmul.mubr.f32.gmra.mrb[0].mxu0 %v4868
    %v4936 = vpop.f32.mrb[0].mxu0
    %v4937 = vadd.f32 0.0, %v4936
    %v4938 = vpop.f32.mrb[0].mxu0
    %4939 = vdwg.mxu0
    %v4940 = vadd.f32 %v4856, %v4937
    %v4941 = vmax.f32 %v4940, 0.0
    %v4943 = vsel %vm4203, %v4519, 0
    %4945 = vmatprep.subr.mxu0 0.0
    %4946 = vmatpush1.msra.mxu0 %v4521
    %4947 = vmatprep.subr.mxu0 0.0
    %4948 = vmatpush1.msra.mxu0 %v4522
    %4949 = vmatprep.subr.mxu0 0.0
    %4950 = vmatpush1.msra.mxu0 %v4523
    %4951 = vmatprep.subr.mxu0 0.0
    %4952 = vmatpush1.msra.mxu0 %v4524
    %4953 = vmatprep.subr.mxu0 0.0
    %4954 = vmatpush1.msra.mxu0 %v4525
    %4955 = vmatprep.subr.mxu0 0.0
    %4956 = vmatpush1.msra.mxu0 %v4526
    %4957 = vmatprep.subr.mxu0 0.0
    %4958 = vmatpush1.msra.mxu0 %v4527
    %4959 = vmatprep.subr.mxu0 0.0
    %4960 = vmatpush1.msra.mxu0 %v4528
    %4961 = vmatprep.subr.mxu0 0.0
    %4962 = vmatpush1.msra.mxu0 %v4529
    %4963 = vmatprep.subr.mxu0 0.0
    %4964 = vmatpush1.msra.mxu0 %v4530
    %4965 = vmatprep.subr.mxu0 0.0
    %4966 = vmatpush1.msra.mxu0 0.0
    %4967 = vmatprep.subr.mxu0 0.0
    %4968 = vmatpush1.msra.mxu0 0.0
    %4969 = vmatprep.subr.mxu0 0.0
    %4970 = vmatpush1.msra.mxu0 0.0
    %4971 = vmatprep.subr.mxu0 0.0
    %4972 = vmatpush1.msra.mxu0 0.0
    %4973 = vmatprep.subr.mxu0 0.0
    %4974 = vmatpush1.msra.mxu0 0.0
    %4975 = vmatprep.subr.mxu0 0.0
    %4976 = vmatpush1.msra.mxu0 0.0
    %4977 = vmatprep.subr.mxu0 0.0
    %4978 = vmatpush1.msra.mxu0 0.0
    %4979 = vmatprep.subr.mxu0 0.0
    %4980 = vmatpush1.msra.mxu0 0.0
    %4981 = vmatprep.subr.mxu0 0.0
    %4982 = vmatpush1.msra.mxu0 0.0
    %4983 = vmatprep.subr.mxu0 0.0
    %4984 = vmatpush1.msra.mxu0 0.0
    %4985 = vmatprep.subr.mxu0 0.0
    %4986 = vmatpush1.msra.mxu0 0.0
    %4987 = vmatprep.subr.mxu0 0.0
    %4988 = vmatpush1.msra.mxu0 0.0
    %4989 = vmatprep.subr.mxu0 0.0
    %4990 = vmatpush1.msra.mxu0 0.0
    %4991 = vmatprep.subr.mxu0 0.0
    %4992 = vmatpush1.msra.mxu0 0.0
    %4993 = vmatprep.subr.mxu0 0.0
    %4994 = vmatpush1.msra.mxu0 0.0
    %4995 = vmatprep.subr.mxu0 0.0
    %4996 = vmatpush1.msra.mxu0 0.0
    %4997 = vmatprep.subr.mxu0 0.0
    %4998 = vmatpush1.msra.mxu0 0.0
    %4999 = vmatprep.subr.mxu0 0.0
    %5000 = vmatpush1.msra.mxu0 0.0
    %5001 = vmatprep.subr.mxu0 0.0
    %5002 = vmatpush1.msra.mxu0 0.0
    %5003 = vmatprep.subr.mxu0 0.0
    %5004 = vmatpush1.msra.mxu0 0.0
    %5005 = vmatprep.subr.mxu0 0.0
    %5006 = vmatpush1.msra.mxu0 0.0
    %5007 = vmatprep.subr.mxu0 0.0
    %5008 = vmatpush1.msra.mxu0 0.0
    %5009 = vmatprep.mubr.f32.mxu0 0.0
    %5010 = vmatmul.mubr.f32.gmra.mrb[0].mxu0 %v4943
    %v5011 = vpop.f32.mrb[0].mxu0
    %v5012 = vadd.f32 0.0, %v5011
    %v5013 = vpop.f32.mrb[0].mxu0
    %5014 = vdwg.mxu0
    %v5015 = vadd.f32 %v4520, %v5012
    %v5016 = vrot.slane %v4519, 1
    %v5017 = vsel %vm4203, %v5016, 0
    %5019 = vmatprep.subr.mxu0 0.0
    %5020 = vmatpush1.msra.mxu0 %v4605
    %5021 = vmatprep.subr.mxu0 0.0
    %5022 = vmatpush1.msra.mxu0 %v4606
    %5023 = vmatprep.subr.mxu0 0.0
    %5024 = vmatpush1.msra.mxu0 %v4607
    %5025 = vmatprep.subr.mxu0 0.0
    %5026 = vmatpush1.msra.mxu0 %v4608
    %5027 = vmatprep.subr.mxu0 0.0
    %5028 = vmatpush1.msra.mxu0 %v4609
    %5029 = vmatprep.subr.mxu0 0.0
    %5030 = vmatpush1.msra.mxu0 %v4610
    %5031 = vmatprep.subr.mxu0 0.0
    %5032 = vmatpush1.msra.mxu0 %v4611
    %5033 = vmatprep.subr.mxu0 0.0
    %5034 = vmatpush1.msra.mxu0 %v4612
    %5035 = vmatprep.subr.mxu0 0.0
    %5036 = vmatpush1.msra.mxu0 %v4613
    %5037 = vmatprep.subr.mxu0 0.0
    %5038 = vmatpush1.msra.mxu0 %v4614
    %5039 = vmatprep.subr.mxu0 0.0
    %5040 = vmatpush1.msra.mxu0 0.0
    %5041 = vmatprep.subr.mxu0 0.0
    %5042 = vmatpush1.msra.mxu0 0.0
    %5043 = vmatprep.subr.mxu0 0.0
    %5044 = vmatpush1.msra.mxu0 0.0
    %5045 = vmatprep.subr.mxu0 0.0
    %5046 = vmatpush1.msra.mxu0 0.0
    %5047 = vmatprep.subr.mxu0 0.0
    %5048 = vmatpush1.msra.mxu0 0.0
    %5049 = vmatprep.subr.mxu0 0.0
    %5050 = vmatpush1.msra.mxu0 0.0
    %5051 = vmatprep.subr.mxu0 0.0
    %5052 = vmatpush1.msra.mxu0 0.0
    %5053 = vmatprep.subr.mxu0 0.0
    %5054 = vmatpush1.msra.mxu0 0.0
    %5055 = vmatprep.subr.mxu0 0.0
    %5056 = vmatpush1.msra.mxu0 0.0
    %5057 = vmatprep.subr.mxu0 0.0
    %5058 = vmatpush1.msra.mxu0 0.0
    %5059 = vmatprep.subr.mxu0 0.0
    %5060 = vmatpush1.msra.mxu0 0.0
    %5061 = vmatprep.subr.mxu0 0.0
    %5062 = vmatpush1.msra.mxu0 0.0
    %5063 = vmatprep.subr.mxu0 0.0
    %5064 = vmatpush1.msra.mxu0 0.0
    %5065 = vmatprep.subr.mxu0 0.0
    %5066 = vmatpush1.msra.mxu0 0.0
    %5067 = vmatprep.subr.mxu0 0.0
    %5068 = vmatpush1.msra.mxu0 0.0
    %5069 = vmatprep.subr.mxu0 0.0
    %5070 = vmatpush1.msra.mxu0 0.0
    %5071 = vmatprep.subr.mxu0 0.0
    %5072 = vmatpush1.msra.mxu0 0.0
    %5073 = vmatprep.subr.mxu0 0.0
    %5074 = vmatpush1.msra.mxu0 0.0
    %5075 = vmatprep.subr.mxu0 0.0
    %5076 = vmatpush1.msra.mxu0 0.0
    %5077 = vmatprep.subr.mxu0 0.0
    %5078 = vmatpush1.msra.mxu0 0.0
    %5079 = vmatprep.subr.mxu0 0.0
    %5080 = vmatpush1.msra.mxu0 0.0
    %5081 = vmatprep.subr.mxu0 0.0
    %5082 = vmatpush1.msra.mxu0 0.0
    %5083 = vmatprep.mubr.f32.mxu0 0.0
    %5084 = vmatmul.mubr.f32.gmra.mrb[0].mxu0 %v5017
    %v5085 = vpop.f32.mrb[0].mxu0
    %v5086 = vadd.f32 0.0, %v5085
    %v5087 = vpop.f32.mrb[0].mxu0
    %5088 = vdwg.mxu0
    %v5089 = vadd.f32 %v5015, %v5086
    %v5090 = vrot.slane %v4519, 2
    %v5091 = vsel %vm4203, %v5090, 0
    %5093 = vmatprep.subr.mxu0 0.0
    %5094 = vmatpush1.msra.mxu0 %v4689
    %5095 = vmatprep.subr.mxu0 0.0
    %5096 = vmatpush1.msra.mxu0 %v4690
    %5097 = vmatprep.subr.mxu0 0.0
    %5098 = vmatpush1.msra.mxu0 %v4691
    %5099 = vmatprep.subr.mxu0 0.0
    %5100 = vmatpush1.msra.mxu0 %v4692
    %5101 = vmatprep.subr.mxu0 0.0
    %5102 = vmatpush1.msra.mxu0 %v4693
    %5103 = vmatprep.subr.mxu0 0.0
    %5104 = vmatpush1.msra.mxu0 %v4694
    %5105 = vmatprep.subr.mxu0 0.0
    %5106 = vmatpush1.msra.mxu0 %v4695
    %5107 = vmatprep.subr.mxu0 0.0
    %5108 = vmatpush1.msra.mxu0 %v4696
    %5109 = vmatprep.subr.mxu0 0.0
    %5110 = vmatpush1.msra.mxu0 %v4697
    %5111 = vmatprep.subr.mxu0 0.0
    %5112 = vmatpush1.msra.mxu0 %v4698
    %5113 = vmatprep.subr.mxu0 0.0
    %5114 = vmatpush1.msra.mxu0 0.0
    %5115 = vmatprep.subr.mxu0 0.0
    %5116 = vmatpush1.msra.mxu0 0.0
    %5117 = vmatprep.subr.mxu0 0.0
    %5118 = vmatpush1.msra.mxu0 0.0
    %5119 = vmatprep.subr.mxu0 0.0
    %5120 = vmatpush1.msra.mxu0 0.0
    %5121 = vmatprep.subr.mxu0 0.0
    %5122 = vmatpush1.msra.mxu0 0.0
    %5123 = vmatprep.subr.mxu0 0.0
    %5124 = vmatpush1.msra.mxu0 0.0
    %5125 = vmatprep.subr.mxu0 0.0
    %5126 = vmatpush1.msra.mxu0 0.0
    %5127 = vmatprep.subr.mxu0 0.0
    %5128 = vmatpush1.msra.mxu0 0.0
    %5129 = vmatprep.subr.mxu0 0.0
    %5130 = vmatpush1.msra.mxu0 0.0
    %5131 = vmatprep.subr.mxu0 0.0
    %5132 = vmatpush1.msra.mxu0 0.0
    %5133 = vmatprep.subr.mxu0 0.0
    %5134 = vmatpush1.msra.mxu0 0.0
    %5135 = vmatprep.subr.mxu0 0.0
    %5136 = vmatpush1.msra.mxu0 0.0
    %5137 = vmatprep.subr.mxu0 0.0
    %5138 = vmatpush1.msra.mxu0 0.0
    %5139 = vmatprep.subr.mxu0 0.0
    %5140 = vmatpush1.msra.mxu0 0.0
    %5141 = vmatprep.subr.mxu0 0.0
    %5142 = vmatpush1.msra.mxu0 0.0
    %5143 = vmatprep.subr.mxu0 0.0
    %5144 = vmatpush1.msra.mxu0 0.0
    %5145 = vmatprep.subr.mxu0 0.0
    %5146 = vmatpush1.msra.mxu0 0.0
    %5147 = vmatprep.subr.mxu0 0.0
    %5148 = vmatpush1.msra.mxu0 0.0
    %5149 = vmatprep.subr.mxu0 0.0
    %5150 = vmatpush1.msra.mxu0 0.0
    %5151 = vmatprep.subr.mxu0 0.0
    %5152 = vmatpush1.msra.mxu0 0.0
    %5153 = vmatprep.subr.mxu0 0.0
    %5154 = vmatpush1.msra.mxu0 0.0
    %5155 = vmatprep.subr.mxu0 0.0
    %5156 = vmatpush1.msra.mxu0 0.0
    %5157 = vmatprep.mubr.f32.mxu0 0.0
    %5158 = vmatmul.mubr.f32.gmra.mrb[0].mxu0 %v5091
    %v5159 = vpop.f32.mrb[0].mxu0
    %v5160 = vadd.f32 0.0, %v5159
    %v5161 = vpop.f32.mrb[0].mxu0
    %5162 = vdwg.mxu0
    %v5163 = vadd.f32 %v5089, %v5160
    %v5164 = vrot.slane %v4519, 3
    %v5165 = vsel %vm4203, %v5164, 0
    %5167 = vmatprep.subr.mxu0 0.0
    %5168 = vmatpush1.msra.mxu0 %v4773
    %5169 = vmatprep.subr.mxu0 0.0
    %5170 = vmatpush1.msra.mxu0 %v4774
    %5171 = vmatprep.subr.mxu0 0.0
    %5172 = vmatpush1.msra.mxu0 %v4775
    %5173 = vmatprep.subr.mxu0 0.0
    %5174 = vmatpush1.msra.mxu0 %v4776
    %5175 = vmatprep.subr.mxu0 0.0
    %5176 = vmatpush1.msra.mxu0 %v4777
    %5177 = vmatprep.subr.mxu0 0.0
    %5178 = vmatpush1.msra.mxu0 %v4778
    %5179 = vmatprep.subr.mxu0 0.0
    %5180 = vmatpush1.msra.mxu0 %v4779
    %5181 = vmatprep.subr.mxu0 0.0
    %5182 = vmatpush1.msra.mxu0 %v4780
    %5183 = vmatprep.subr.mxu0 0.0
    %5184 = vmatpush1.msra.mxu0 %v4781
    %5185 = vmatprep.subr.mxu0 0.0
    %5186 = vmatpush1.msra.mxu0 %v4782
    %5187 = vmatprep.subr.mxu0 0.0
    %5188 = vmatpush1.msra.mxu0 0.0
    %5189 = vmatprep.subr.mxu0 0.0
    %5190 = vmatpush1.msra.mxu0 0.0
    %5191 = vmatprep.subr.mxu0 0.0
    %5192 = vmatpush1.msra.mxu0 0.0
    %5193 = vmatprep.subr.mxu0 0.0
    %5194 = vmatpush1.msra.mxu0 0.0
    %5195 = vmatprep.subr.mxu0 0.0
    %5196 = vmatpush1.msra.mxu0 0.0
    %5197 = vmatprep.subr.mxu0 0.0
    %5198 = vmatpush1.msra.mxu0 0.0
    %5199 = vmatprep.subr.mxu0 0.0
    %5200 = vmatpush1.msra.mxu0 0.0
    %5201 = vmatprep.subr.mxu0 0.0
    %5202 = vmatpush1.msra.mxu0 0.0
    %5203 = vmatprep.subr.mxu0 0.0
    %5204 = vmatpush1.msra.mxu0 0.0
    %5205 = vmatprep.subr.mxu0 0.0
    %5206 = vmatpush1.msra.mxu0 0.0
    %5207 = vmatprep.subr.mxu0 0.0
    %5208 = vmatpush1.msra.mxu0 0.0
    %5209 = vmatprep.subr.mxu0 0.0
    %5210 = vmatpush1.msra.mxu0 0.0
    %5211 = vmatprep.subr.mxu0 0.0
    %5212 = vmatpush1.msra.mxu0 0.0
    %5213 = vmatprep.subr.mxu0 0.0
    %5214 = vmatpush1.msra.mxu0 0.0
    %5215 = vmatprep.subr.mxu0 0.0
    %5216 = vmatpush1.msra.mxu0 0.0
    %5217 = vmatprep.subr.mxu0 0.0
    %5218 = vmatpush1.msra.mxu0 0.0
    %5219 = vmatprep.subr.mxu0 0.0
    %5220 = vmatpush1.msra.mxu0 0.0
    %5221 = vmatprep.subr.mxu0 0.0
    %5222 = vmatpush1.msra.mxu0 0.0
    %5223 = vmatprep.subr.mxu0 0.0
    %5224 = vmatpush1.msra.mxu0 0.0
    %5225 = vmatprep.subr.mxu0 0.0
    %5226 = vmatpush1.msra.mxu0 0.0
    %5227 = vmatprep.subr.mxu0 0.0
    %5228 = vmatpush1.msra.mxu0 0.0
    %5229 = vmatprep.subr.mxu0 0.0
    %5230 = vmatpush1.msra.mxu0 0.0
    %5231 = vmatprep.mubr.f32.mxu0 0.0
    %5232 = vmatmul.mubr.f32.gmra.mrb[0].mxu0 %v5165
    %v5233 = vpop.f32.mrb[0].mxu0
    %v5234 = vadd.f32 0.0, %v5233
    %v5235 = vpop.f32.mrb[0].mxu0
    %5236 = vdwg.mxu0
    %v5237 = vadd.f32 %v5163, %v5234
    %v5238 = vrot.slane %v4519, 4
    %v5239 = vsel %vm4203, %v5238, 0
    %5241 = vmatprep.subr.mxu0 0.0
    %5242 = vmatpush1.msra.mxu0 %v4857
    %5243 = vmatprep.subr.mxu0 0.0
    %5244 = vmatpush1.msra.mxu0 %v4858
    %5245 = vmatprep.subr.mxu0 0.0
    %5246 = vmatpush1.msra.mxu0 %v4859
    %5247 = vmatprep.subr.mxu0 0.0
    %5248 = vmatpush1.msra.mxu0 %v4860
    %5249 = vmatprep.subr.mxu0 0.0
    %5250 = vmatpush1.msra.mxu0 %v4861
    %5251 = vmatprep.subr.mxu0 0.0
    %5252 = vmatpush1.msra.mxu0 %v4862
    %5253 = vmatprep.subr.mxu0 0.0
    %5254 = vmatpush1.msra.mxu0 %v4863
    %5255 = vmatprep.subr.mxu0 0.0
    %5256 = vmatpush1.msra.mxu0 %v4864
    %5257 = vmatprep.subr.mxu0 0.0
    %5258 = vmatpush1.msra.mxu0 %v4865
    %5259 = vmatprep.subr.mxu0 0.0
    %5260 = vmatpush1.msra.mxu0 %v4866
    %5261 = vmatprep.subr.mxu0 0.0
    %5262 = vmatpush1.msra.mxu0 0.0
    %5263 = vmatprep.subr.mxu0 0.0
    %5264 = vmatpush1.msra.mxu0 0.0
    %5265 = vmatprep.subr.mxu0 0.0
    %5266 = vmatpush1.msra.mxu0 0.0
    %5267 = vmatprep.subr.mxu0 0.0
    %5268 = vmatpush1.msra.mxu0 0.0
    %5269 = vmatprep.subr.mxu0 0.0
    %5270 = vmatpush1.msra.mxu0 0.0
    %5271 = vmatprep.subr.mxu0 0.0
    %5272 = vmatpush1.msra.mxu0 0.0
    %5273 = vmatprep.subr.mxu0 0.0
    %5274 = vmatpush1.msra.mxu0 0.0
    %5275 = vmatprep.subr.mxu0 0.0
    %5276 = vmatpush1.msra.mxu0 0.0
    %5277 = vmatprep.subr.mxu0 0.0
    %5278 = vmatpush1.msra.mxu0 0.0
    %5279 = vmatprep.subr.mxu0 0.0
    %5280 = vmatpush1.msra.mxu0 0.0
    %5281 = vmatprep.subr.mxu0 0.0
    %5282 = vmatpush1.msra.mxu0 0.0
    %5283 = vmatprep.subr.mxu0 0.0
    %5284 = vmatpush1.msra.mxu0 0.0
    %5285 = vmatprep.subr.mxu0 0.0
    %5286 = vmatpush1.msra.mxu0 0.0
    %5287 = vmatprep.subr.mxu0 0.0
    %5288 = vmatpush1.msra.mxu0 0.0
    %5289 = vmatprep.subr.mxu0 0.0
    %5290 = vmatpush1.msra.mxu0 0.0
    %5291 = vmatprep.subr.mxu0 0.0
    %5292 = vmatpush1.msra.mxu0 0.0
    %5293 = vmatprep.subr.mxu0 0.0
    %5294 = vmatpush1.msra.mxu0 0.0
    %5295 = vmatprep.subr.mxu0 0.0
    %5296 = vmatpush1.msra.mxu0 0.0
    %5297 = vmatprep.subr.mxu0 0.0
    %5298 = vmatpush1.msra.mxu0 0.0
    %5299 = vmatprep.subr.mxu0 0.0
    %5300 = vmatpush1.msra.mxu0 0.0
    %5301 = vmatprep.subr.mxu0 0.0
    %5302 = vmatpush1.msra.mxu0 0.0
    %5303 = vmatprep.subr.mxu0 0.0
    %5304 = vmatpush1.msra.mxu0 0.0
    %5305 = vmatprep.mubr.f32.mxu0 0.0
    %5306 = vmatmul.mubr.f32.gmra.mrb[0].mxu0 %v5239
    %v5307 = vpop.f32.mrb[0].mxu0
    %v5308 = vadd.f32 0.0, %v5307
    %v5309 = vpop.f32.mrb[0].mxu0
    %5310 = vdwg.mxu0
    %v5311 = vadd.f32 %v5237, %v5308
    %v5312 = vmax.f32 %v5311, 0.0
    %v5313 = vld [vmem:[%s47] sm:$0x1]
    %v5314 = vld [vmem:[%s49] sm:$0x1]
    %v5315 = vmul.f32 %v4941, %v4941
    %v5316 = vadd.f32 %v4941, %v5312
    %v5317 = vmul.f32 %v5312, %v5312
    %v5318 = vadd.f32 %v5315, %v5317
    %v5319 = vmul.f32 %v5316, 0.5
    %v5320 = vmul.f32 %v5318, 0.5
    %v5321 = vmul.f32 %v5319, %v5319
    %v5322 = vsub.f32 %v5320, %v5321
    %v5323 = vmax.f32 %v5322, 0.0
    %v5324 = vadd.f32 %v5323, 1e-05
    %v5325 = vrsqrt.pop %v5324
    %v5326 = vmul.f32 %v5313, %v5325
    %v5327 = vmul.f32 %v5319, %v5326
    %v5328 = vsub.f32 %v5314, %v5327
    %v5329 = vmul.f32 %v4941, %v5326
    %v5330 = vadd.f32 %v5329, %v5328
    %v5331 = vmul.f32 %v5312, %v5326
    %v5332 = vadd.f32 %v5331, %v5328
    %v5333 = vld [vmem:[%s51] sm:$0xff]
    %v5334 = vld [vmem:[%s51 + $0x8] sm:$0xff]
    %v5335 = vld [vmem:[%s51 + $0x10] sm:$0xff]
    %v5336 = vld [vmem:[%s51 + $0x18] sm:$0xff]
    %v5337 = vld [vmem:[%s51 + $0x20] sm:$0xff]
    %v5338 = vld [vmem:[%s51 + $0x28] sm:$0xff]
    %v5339 = vld [vmem:[%s51 + $0x30] sm:$0xff]
    %v5340 = vld [vmem:[%s51 + $0x38] sm:$0xff]
    %v5341 = vld [vmem:[%s51 + $0x40] sm:$0xff]
    %v5342 = vld [vmem:[%s51 + $0x48] sm:$0xff]
    %v5343 = vld [vmem:[%s51 + $0x50] sm:$0xff]
    %v5344 = vld [vmem:[%s51 + $0x58] sm:$0xff]
    %v5345 = vld [vmem:[%s51 + $0x60] sm:$0xff]
    %v5346 = vld [vmem:[%s51 + $0x68] sm:$0xff]
    %v5347 = vld [vmem:[%s51 + $0x70] sm:$0xff]
    %v5348 = vld [vmem:[%s53] sm:$0x1]
    %vm5349 = vcmask 982016
    %v5351 = vsel %vm5349, %v5330, 0
    %5353 = vmatprep.subr.mxu0 0.0
    %5354 = vmatpush1.msra.mxu0 %v5333
    %5355 = vmatprep.subr.mxu0 0.0
    %5356 = vmatpush1.msra.mxu0 %v5334
    %5357 = vmatprep.subr.mxu0 0.0
    %5358 = vmatpush1.msra.mxu0 %v5335
    %5359 = vmatprep.subr.mxu0 0.0
    %5360 = vmatpush1.msra.mxu0 %v5336
    %5361 = vmatprep.subr.mxu0 0.0
    %5362 = vmatpush1.msra.mxu0 %v5337
    %5363 = vmatprep.subr.mxu0 0.0
    %5364 = vmatpush1.msra.mxu0 %v5338
    %5365 = vmatprep.subr.mxu0 0.0
    %5366 = vmatpush1.msra.mxu0 %v5339
    %5367 = vmatprep.subr.mxu0 0.0
    %5368 = vmatpush1.msra.mxu0 %v5340
    %5369 = vmatprep.subr.mxu0 0.0
    %5370 = vmatpush1.msra.mxu0 %v5341
    %5371 = vmatprep.subr.mxu0 0.0
    %5372 = vmatpush1.msra.mxu0 %v5342
    %5373 = vmatprep.subr.mxu0 0.0
    %5374 = vmatpush1.msra.mxu0 %v5343
    %5375 = vmatprep.subr.mxu0 0.0
    %5376 = vmatpush1.msra.mxu0 %v5344
    %5377 = vmatprep.subr.mxu0 0.0
    %5378 = vmatpush1.msra.mxu0 %v5345
    %5379 = vmatprep.subr.mxu0 0.0
    %5380 = vmatpush1.msra.mxu0 %v5346
    %5381 = vmatprep.subr.mxu0 0.0
    %5382 = vmatpush1.msra.mxu0 %v5347
    %5383 = vmatprep.subr.mxu0 0.0
    %5384 = vmatpush1.msra.mxu0 0.0
    %5385 = vmatprep.subr.mxu0 0.0
    %5386 = vmatpush1.msra.mxu0 0.0
    %5387 = vmatprep.subr.mxu0 0.0
    %5388 = vmatpush1.msra.mxu0 0.0
    %5389 = vmatprep.subr.mxu0 0.0
    %5390 = vmatpush1.msra.mxu0 0.0
    %5391 = vmatprep.subr.mxu0 0.0
    %5392 = vmatpush1.msra.mxu0 0.0
    %5393 = vmatprep.subr.mxu0 0.0
    %5394 = vmatpush1.msra.mxu0 0.0
    %5395 = vmatprep.subr.mxu0 0.0
    %5396 = vmatpush1.msra.mxu0 0.0
    %5397 = vmatprep.subr.mxu0 0.0
    %5398 = vmatpush1.msra.mxu0 0.0
    %5399 = vmatprep.subr.mxu0 0.0
    %5400 = vmatpush1.msra.mxu0 0.0
    %5401 = vmatprep.subr.mxu0 0.0
    %5402 = vmatpush1.msra.mxu0 0.0
    %5403 = vmatprep.subr.mxu0 0.0
    %5404 = vmatpush1.msra.mxu0 0.0
    %5405 = vmatprep.subr.mxu0 0.0
    %5406 = vmatpush1.msra.mxu0 0.0
    %5407 = vmatprep.subr.mxu0 0.0
    %5408 = vmatpush1.msra.mxu0 0.0
    %5409 = vmatprep.subr.mxu0 0.0
    %5410 = vmatpush1.msra.mxu0 0.0
    %5411 = vmatprep.subr.mxu0 0.0
    %5412 = vmatpush1.msra.mxu0 0.0
    %5413 = vmatprep.subr.mxu0 0.0
    %5414 = vmatpush1.msra.mxu0 0.0
    %5415 = vmatprep.subr.mxu0 0.0
    %5416 = vmatpush1.msra.mxu0 0.0
    %5417 = vmatprep.mubr.f32.mxu0 0.0
    %5418 = vmatmul.mubr.f32.gmra.mrb[0].mxu0 %v5351
    %v5419 = vpop.f32.mrb[0].mxu0
    %v5420 = vadd.f32 %v5348, %v5419
    %v5421 = vpop.f32.mrb[0].mxu0
    %5422 = vdwg.mxu0
    %v5423 = vmax.f32 %v5420, 0.0
    %v5425 = vsel %vm5349, %v5332, 0
    %5427 = vmatprep.subr.mxu0 0.0
    %5428 = vmatpush1.msra.mxu0 %v5333
    %5429 = vmatprep.subr.mxu0 0.0
    %5430 = vmatpush1.msra.mxu0 %v5334
    %5431 = vmatprep.subr.mxu0 0.0
    %5432 = vmatpush1.msra.mxu0 %v5335
    %5433 = vmatprep.subr.mxu0 0.0
    %5434 = vmatpush1.msra.mxu0 %v5336
    %5435 = vmatprep.subr.mxu0 0.0
    %5436 = vmatpush1.msra.mxu0 %v5337
    %5437 = vmatprep.subr.mxu0 0.0
    %5438 = vmatpush1.msra.mxu0 %v5338
    %5439 = vmatprep.subr.mxu0 0.0
    %5440 = vmatpush1.msra.mxu0 %v5339
    %5441 = vmatprep.subr.mxu0 0.0
    %5442 = vmatpush1.msra.mxu0 %v5340
    %5443 = vmatprep.subr.mxu0 0.0
    %5444 = vmatpush1.msra.mxu0 %v5341
    %5445 = vmatprep.subr.mxu0 0.0
    %5446 = vmatpush1.msra.mxu0 %v5342
    %5447 = vmatprep.subr.mxu0 0.0
    %5448 = vmatpush1.msra.mxu0 %v5343
    %5449 = vmatprep.subr.mxu0 0.0
    %5450 = vmatpush1.msra.mxu0 %v5344
    %5451 = vmatprep.subr.mxu0 0.0
    %5452 = vmatpush1.msra.mxu0 %v5345
    %5453 = vmatprep.subr.mxu0 0.0
    %5454 = vmatpush1.msra.mxu0 %v5346
    %5455 = vmatprep.subr.mxu0 0.0
    %5456 = vmatpush1.msra.mxu0 %v5347
    %5457 = vmatprep.subr.mxu0 0.0
    %5458 = vmatpush1.msra.mxu0 0.0
    %5459 = vmatprep.subr.mxu0 0.0
    %5460 = vmatpush1.msra.mxu0 0.0
    %5461 = vmatprep.subr.mxu0 0.0
    %5462 = vmatpush1.msra.mxu0 0.0
    %5463 = vmatprep.subr.mxu0 0.0
    %5464 = vmatpush1.msra.mxu0 0.0
    %5465 = vmatprep.subr.mxu0 0.0
    %5466 = vmatpush1.msra.mxu0 0.0
    %5467 = vmatprep.subr.mxu0 0.0
    %5468 = vmatpush1.msra.mxu0 0.0
    %5469 = vmatprep.subr.mxu0 0.0
    %5470 = vmatpush1.msra.mxu0 0.0
    %5471 = vmatprep.subr.mxu0 0.0
    %5472 = vmatpush1.msra.mxu0 0.0
    %5473 = vmatprep.subr.mxu0 0.0
    %5474 = vmatpush1.msra.mxu0 0.0
    %5475 = vmatprep.subr.mxu0 0.0
    %5476 = vmatpush1.msra.mxu0 0.0
    %5477 = vmatprep.subr.mxu0 0.0
    %5478 = vmatpush1.msra.mxu0 0.0
    %5479 = vmatprep.subr.mxu0 0.0
    %5480 = vmatpush1.msra.mxu0 0.0
    %5481 = vmatprep.subr.mxu0 0.0
    %5482 = vmatpush1.msra.mxu0 0.0
    %5483 = vmatprep.subr.mxu0 0.0
    %5484 = vmatpush1.msra.mxu0 0.0
    %5485 = vmatprep.subr.mxu0 0.0
    %5486 = vmatpush1.msra.mxu0 0.0
    %5487 = vmatprep.subr.mxu0 0.0
    %5488 = vmatpush1.msra.mxu0 0.0
    %5489 = vmatprep.subr.mxu0 0.0
    %5490 = vmatpush1.msra.mxu0 0.0
    %5491 = vmatprep.mubr.f32.mxu0 0.0
    %5492 = vmatmul.mubr.f32.gmra.mrb[0].mxu0 %v5425
    %v5493 = vpop.f32.mrb[0].mxu0
    %v5494 = vadd.f32 %v5348, %v5493
    %v5495 = vpop.f32.mrb[0].mxu0
    %5496 = vdwg.mxu0
    %v5497 = vmax.f32 %v5494, 0.0
    %v5498 = vld [vmem:[%s55] sm:$0x1]
    %v5499 = vld [vmem:[%s57] sm:$0x1]
    %v5500 = vmul.f32 %v5423, %v5423
    %v5501 = vadd.f32 %v5423, %v5497
    %v5502 = vmul.f32 %v5497, %v5497
    %v5503 = vadd.f32 %v5500, %v5502
    %v5504 = vmul.f32 %v5501, 0.5
    %v5505 = vmul.f32 %v5503, 0.5
    %v5506 = vmul.f32 %v5504, %v5504
    %v5507 = vsub.f32 %v5505, %v5506
    %v5508 = vmax.f32 %v5507, 0.0
    %v5509 = vadd.f32 %v5508, 1e-05
    %v5510 = vrsqrt.pop %v5509
    %v5511 = vmul.f32 %v5498, %v5510
    %v5512 = vmul.f32 %v5504, %v5511
    %v5513 = vsub.f32 %v5499, %v5512
    %v5514 = vmul.f32 %v5423, %v5511
    %v5515 = vadd.f32 %v5514, %v5513
    %v5516 = vmul.f32 %v5497, %v5511
    %v5517 = vadd.f32 %v5516, %v5513
    %vm5518 = vcmask 679936
    %5519 = vst.msk [vmem:[#allocation2] sm:$0x1] %vm5518, %v5515
    %5520 = vst.msk [vmem:[#allocation2 + $0x1] sm:$0x1] %vm5518, %v5517
    // Predicated region
    $region118: #{simple_cnn_h2_forward.1} parent=1 // pred_check
      _
    $region119: #{simple_cnn_h2_forward.1} parent=1 // pred_check_branch
      %5522 = sbr.rel (0) target = $region121
    $region120: #{simple_cnn_h2_forward.1} parent=1 // pred_region
      %s5524 = ssub.s32 32, 32
      %5525 = vsyncadd [#allocation3], %s5524
      %s5527 = sshll.u32 [#allocation2], 4
      %s5528 = int_to_ptr.vmem [resolvable:$true] %s5527
      %5530 = dma.vmem_to_hbm [thread:$0]  %s5528, 32, %s59, [#allocation3]
    $region121: #{simple_cnn_h2_forward.1} parent=1 // pred_fallthru
      _
    // Predicated region
    $region122: #{simple_cnn_h2_forward.1} parent=1 // pred_check
      _
    $region123: #{simple_cnn_h2_forward.1} parent=1 // pred_check_branch
      %5532 = sbr.rel (0) target = $region125
    $region124: #{simple_cnn_h2_forward.1} parent=1 // pred_region
      %5533 = dma.done [#allocation3], 32
    $region125: #{simple_cnn_h2_forward.1} parent=1 // pred_fallthru
      _
    %5534 = vsyncpa [#allocation3], 1

</llo_original>
